<compile_context>
chip_gen: v5e
topology: v5e:2x2
jax: 0.10.0
libtpu: 0.0.40
codegen_flags: <defaults>
</compile_context>

<pallas_src>
import functools
import numpy as np

import jax
import jax.numpy as jnp
from jax.experimental import pallas as pl
from jax.experimental.pallas import tpu as pltpu

LANE = 128


# ----------------------------------------------------------------------------
# Static structure matrices (built host-side from shapes only).
# ----------------------------------------------------------------------------
def _round_up(x, m):
    return (x + m - 1) // m * m


def _conv_out(size, k, s, p):
    return (size + 2 * p - k) // s + 1


def _build_conv_matrix(H, W, k, stride, pad, s_in, s_out):
    """Vertically stacked per-tap 0/1 selection matrix, shape (k*k*s_in, s_out).

    Row block t (= di*k + dj) holds G_t with G_t[y*W+x, i*Wo+j] = 1 iff input
    pixel (y, x) is the tap-t sample of output pixel (i, j) for a k x k conv
    with the given stride / zero padding.  Padded rows / columns stay zero so
    lane padding of activations never leaks into valid outputs.
    """
    Ho, Wo = _conv_out(H, k, stride, pad), _conv_out(W, k, stride, pad)
    G = np.zeros((k * k, s_in, s_out), np.float32)
    for di in range(k):
        for dj in range(k):
            t = di * k + dj
            for i in range(Ho):
                y = i * stride + di - pad
                if y < 0 or y >= H:
                    continue
                for j in range(Wo):
                    x = j * stride + dj - pad
                    if 0 <= x < W:
                        G[t, y * W + x, i * Wo + j] = 1.0
    return G.reshape(k * k * s_in, s_out), Ho, Wo


def _build_pool_matrix(H, W, k, stride, s_in, s_out):
    """Horizontally stacked per-offset 0/1 selection matrices (s_in, k*k*s_out)
    for max_pool2d(kernel_size=k, stride=stride, padding=0)."""
    P, Q = (H - k) // stride + 1, (W - k) // stride + 1
    G = np.zeros((k * k, s_in, s_out), np.float32)
    for di in range(k):
        for dj in range(k):
            o = di * k + dj
            for p in range(P):
                for q in range(Q):
                    G[o, (p * stride + di) * W + (q * stride + dj), p * Q + q] = 1.0
    return np.concatenate(list(G), axis=1), P, Q


def _bilinear_matrix(out_size, in_size):
    """Row-weight matrix matching F.interpolate(mode='bilinear', align_corners=False)."""
    A = np.zeros((out_size, in_size), np.float32)
    if in_size == 1:
        A[:, 0] = 1.0
        return A
    scale = in_size / out_size
    for d in range(out_size):
        src = max(scale * (d + 0.5) - 0.5, 0.0)
        i0 = min(int(np.floor(src)), in_size - 1)
        i1 = min(i0 + 1, in_size - 1)
        frac = src - i0
        A[d, i0] += 1.0 - frac
        A[d, i1] += frac
    return A


# ----------------------------------------------------------------------------
# Pallas kernel: full SA forward for a block of TB samples (stacked on sublanes).
# ----------------------------------------------------------------------------
def _sa_kernel(x_ref, w1_ref, b1_ref, wf_ref, bf_ref,
               w2_ref, b2_ref, g2_ref, gp_ref,
               wm_ref, bm_ref, w3_ref, b3_ref, w3p_ref, b3p_ref, gs_ref,
               u_ref, w4_ref, b4_ref, o_ref):
    f32 = jnp.float32
    tbf = w1_ref.shape[0]            # TB * f
    s3p = u_ref.shape[0]             # lane-padded pooled-grid size
    n_pool = gp_ref.shape[1] // s3p  # 49 pooling offsets

    def conv3x3(act, wt_ref, b_ref, g_ref):
        # 1 MXU push with the 9 tap weights (block-diag over the TB samples),
        # an aligned sublane-block -> lane-block rearrangement, then 1 wide push
        # against the vstacked 0/1 selection matrix (tap sum folded into K).
        y = jnp.dot(wt_ref[...], act, preferred_element_type=f32)        # (9*TBf, S_in)
        yr = jnp.concatenate(
            [y[t * tbf:(t + 1) * tbf, :] for t in range(9)], axis=-1)    # (TBf, 9*S_in)
        return jnp.dot(yr, g_ref[...], preferred_element_type=f32) + b_ref[...]

    x_in = x_ref[...].astype(f32)                                        # (TB*C, HWp)

    # conv1 (1x1): n_feats -> f, all TB samples in one push (block-diag weights)
    c1_ = jnp.dot(w1_ref[...], x_in, preferred_element_type=f32) + b1_ref[...]
    # conv_f (1x1): f -> f
    cf = jnp.dot(wf_ref[...], c1_, preferred_element_type=f32) + bf_ref[...]
    # conv2 (3x3, stride 2, pad 0): full-res HWp -> S2p
    c2 = conv3x3(c1_, w2_ref, b2_ref, g2_ref)
    # max_pool2d(kernel=7, stride=3): one wide selection matmul, then a VPU max
    # tree over the 49 lane-aligned offset blocks (off the MXU critical path).
    z = jnp.dot(c2, gp_ref[...], preferred_element_type=f32)             # (TBf, 49*S3p)
    pooled = z[:, :s3p]
    for o in range(1, n_pool):
        pooled = jnp.maximum(pooled, z[:, o * s3p:(o + 1) * s3p])
    # conv_max (3x3, pad 1) + relu
    v_range = jnp.maximum(conv3x3(pooled, wm_ref, bm_ref, gs_ref), 0.0)
    # conv3 (3x3, pad 1) + relu ; conv3_ (3x3, pad 1)
    c3 = jnp.maximum(conv3x3(v_range, w3_ref, b3_ref, gs_ref), 0.0)
    c3 = conv3x3(c3, w3p_ref, b3p_ref, gs_ref)                           # (TBf, S3p)
    # bilinear upsample back to full resolution: one matmul with kron(A_h, A_w)
    c3up = jnp.dot(c3, u_ref[...], preferred_element_type=f32)           # (TBf, HWp)
    # conv4 (1x1): f -> n_feats, sigmoid gate, modulate x
    c4 = jnp.dot(w4_ref[...], c3up + cf, preferred_element_type=f32) + b4_ref[...]
    o_ref[...] = (x_ref[...].astype(f32) * jax.nn.sigmoid(c4)).astype(o_ref.dtype)


# ----------------------------------------------------------------------------
# Wrapper helpers (generation-aware heuristics).
# ----------------------------------------------------------------------------
def _num_tensorcores_per_chip():
    try:
        kind = jax.devices()[0].device_kind.lower()
    except Exception:
        return 1
    return 2 if ("v7" in kind or "7x" in kind) else 1


def _vmem_limit_bytes():
    # v7x: 64 MiB physical VMEM per core; v5e/v6e: 128 MiB. Leave headroom.
    try:
        cap = getattr(pltpu.get_tpu_info(), "vmem_capacity_bytes", None)
    except Exception:
        cap = None
    if not cap:
        cap = 64 * 1024 * 1024
    return int(min(cap * 3 // 4, 100 * 1024 * 1024))


def _pick_tb(N, C, HWp, max_tb=8):
    # x/out blocks scale with TB (constants don't); keep them modest.
    per_tb = C * HWp * 4 * 4          # in + out, double-buffered, f32
    cap = max(1, min(max_tb, (16 << 20) // max(1, per_tb)))
    if _num_tensorcores_per_chip() >= 2 and N >= 2:
        cap = max(1, min(cap, N // 2))  # keep >= 2 parallel grid steps on dual-TC chips
    # TODO(synk): on v7x with N == 1 add a second parallel grid axis (split HW)
    # so both TensorCores are used.
    tb = 1
    for d in range(1, N + 1):
        if N % d == 0 and d <= cap:
            tb = d
    return tb


# ----------------------------------------------------------------------------
# Wrapper
# ----------------------------------------------------------------------------
@functools.partial(jax.jit)
def sa_forward(x, params):
    """SA forward. x: (N, n_feats, H, W). params: PyTorch-layout conv weights."""
    N, C, H, W = x.shape
    HW = H * W
    HWp = _round_up(HW, LANE)

    H2, W2 = _conv_out(H, 3, 2, 0), _conv_out(W, 3, 2, 0)
    assert H2 >= 7 and W2 >= 7, "input too small for max_pool2d(kernel_size=7)"
    S2p = _round_up(H2 * W2, LANE)
    P, Q = (H2 - 7) // 3 + 1, (W2 - 7) // 3 + 1
    S3p = _round_up(P * Q, LANE)

    # Static structure matrices (stride/pad/pool/bilinear structure only).
    G2, _, _ = _build_conv_matrix(H, W, 3, 2, 0, s_in=HWp, s_out=S2p)    # (9*HWp, S2p)
    GP, _, _ = _build_pool_matrix(H2, W2, 7, 3, s_in=S2p, s_out=S3p)     # (S2p, 49*S3p)
    GS, _, _ = _build_conv_matrix(P, Q, 3, 1, 1, s_in=S3p, s_out=S3p)    # (9*S3p, S3p)
    U = np.zeros((S3p, HWp), np.float32)
    U[:P * Q, :HW] = np.kron(_bilinear_matrix(H, P), _bilinear_matrix(W, Q)).T

    TB = _pick_tb(N, C, HWp)
    eye = jnp.eye(TB, dtype=jnp.float32)

    def blk(w2d):                      # (O, I) -> block-diag (TB*O, TB*I)
        return jnp.kron(eye, w2d.astype(jnp.float32))

    def blk_taps(w):                   # (O, I, 3, 3) -> (9*TB*O, TB*I), taps outermost
        t = jnp.transpose(w.astype(jnp.float32), (2, 3, 0, 1)).reshape(9, w.shape[0], w.shape[1])
        return jnp.concatenate([jnp.kron(eye, t[k]) for k in range(9)], axis=0)

    def blk_bias(b):                   # (O,) -> (TB*O, 1)
        return jnp.tile(b.astype(jnp.float32).reshape(-1, 1), (TB, 1))

    consts = [
        blk(params['w1'][:, :, 0, 0]), blk_bias(params['b1']),
        blk(params['wf'][:, :, 0, 0]), blk_bias(params['bf']),
        blk_taps(params['w2']), blk_bias(params['b2']),
        jnp.asarray(G2), jnp.asarray(GP),
        blk_taps(params['wmax']), blk_bias(params['bmax']),
        blk_taps(params['w3']), blk_bias(params['b3']),
        blk_taps(params['w3_']), blk_bias(params['b3_']),
        jnp.asarray(GS), jnp.asarray(U),
        blk(params['w4'][:, :, 0, 0]), blk_bias(params['b4']),
    ]

    # Lane-dense slab: (N*C) sublanes x HWp lanes, spatial padded to 128.
    x2 = jnp.pad(x.reshape(N, C, HW), ((0, 0), (0, 0), (0, HWp - HW)))
    x2 = x2.reshape(N * C, HWp)

    # Constants are grid-invariant: keep them resident in VMEM, no pipelining /
    # double buffering.
    const_spec = pl.BlockSpec(memory_space=pltpu.MemorySpace.VMEM)

    out = pl.pallas_call(
        _sa_kernel,
        out_shape=jax.ShapeDtypeStruct((N * C, HWp), x.dtype),
        grid_spec=pltpu.PrefetchScalarGridSpec(
            num_scalar_prefetch=0,
            grid=(N // TB,),
            in_specs=[pl.BlockSpec((TB * C, HWp), lambda n: (n, 0))]
                     + [const_spec] * len(consts),
            out_specs=pl.BlockSpec((TB * C, HWp), lambda n: (n, 0)),
        ),
        input_output_aliases={0: 0},   # overwrite the padded x slab in place
        compiler_params=pltpu.CompilerParams(
            dimension_semantics=("parallel",),
            vmem_limit_bytes=_vmem_limit_bytes()),
    )(x2, *consts)

    return out.reshape(N, C, HWp)[:, :, :HW].reshape(N, C, H, W)


# ----------------------------------------------------------------------------
# Pure-JAX reference (XLA convs / reduce_window) matching the PyTorch module.
# ----------------------------------------------------------------------------
def sa_reference(x, params, A_h, A_w):
    def conv(v, w, b, stride=1, pad=0):
        out = jax.lax.conv_general_dilated(
            v, w, window_strides=(stride, stride),
            padding=[(pad, pad), (pad, pad)],
            dimension_numbers=('NCHW', 'OIHW', 'NCHW'))
        return out + b.reshape(1, -1, 1, 1)

    c1_ = conv(x, params['w1'], params['b1'])
    c1 = conv(c1_, params['w2'], params['b2'], stride=2, pad=0)
    v_max = jax.lax.reduce_window(c1, -jnp.inf, jax.lax.max,
                                  (1, 1, 7, 7), (1, 1, 3, 3), 'VALID')
    v_range = jax.nn.relu(conv(v_max, params['wmax'], params['bmax'], pad=1))
    c3 = jax.nn.relu(conv(v_range, params['w3'], params['b3'], pad=1))
    c3 = conv(c3, params['w3_'], params['b3_'], pad=1)
    # bilinear, align_corners=False (same separable weights as the kernel path)
    c3 = jnp.einsum('hp,ncpq,wq->nchw', A_h, c3, A_w)
    cf = conv(c1_, params['wf'], params['bf'])
    c4 = conv(c3 + cf, params['w4'], params['b4'])
    return x * jax.nn.sigmoid(c4)


if __name__ == "__main__":
    N, n_feats, H, W = 2, 16, 24, 24
    f = n_feats // 4

    key = jax.random.PRNGKey(0)
    keys = jax.random.split(key, 16)

    def rnd(k, shape, scale=0.1):
        return jax.random.normal(k, shape, dtype=jnp.float32) * scale

    x = jax.random.normal(keys[0], (N, n_feats, H, W), dtype=jnp.float32)
    params = dict(
        w1=rnd(keys[1], (f, n_feats, 1, 1)),   b1=rnd(keys[2], (f,)),
        wf=rnd(keys[3], (f, f, 1, 1)),         bf=rnd(keys[4], (f,)),
        wmax=rnd(keys[5], (f, f, 3, 3)),       bmax=rnd(keys[6], (f,)),
        w2=rnd(keys[7], (f, f, 3, 3)),         b2=rnd(keys[8], (f,)),
        w3=rnd(keys[9], (f, f, 3, 3)),         b3=rnd(keys[10], (f,)),
        w3_=rnd(keys[11], (f, f, 3, 3)),       b3_=rnd(keys[12], (f,)),
        w4=rnd(keys[13], (n_feats, f, 1, 1)),  b4=rnd(keys[14], (n_feats,)),
    )

    out = jax.block_until_ready(sa_forward(x, params))

    H2, W2 = _conv_out(H, 3, 2, 0), _conv_out(W, 3, 2, 0)
    P, Q = (H2 - 7) // 3 + 1, (W2 - 7) // 3 + 1
    A_h = jnp.asarray(_bilinear_matrix(H, P))
    A_w = jnp.asarray(_bilinear_matrix(W, Q))
    ref = jax.block_until_ready(sa_reference(x, params, A_h, A_w))

    assert out.shape == x.shape and out.dtype == x.dtype
    max_err = float(jnp.max(jnp.abs(out - ref)))
    assert jnp.allclose(out, ref, atol=1e-4, rtol=1e-4), f"mismatch vs reference: {max_err}"
    print("KERNEL_OK")
</pallas_src>

<mosaic_0001>
module attributes {stable_mosaic.version = 11 : i64} {
  func.func @_sa_kernel(%arg0: i32, %arg1: memref<32x640xf32, #tpu.memory_space<vmem>>, %arg2: memref<8x32xf32, #tpu.memory_space<vmem>>, %arg3: memref<8x1xf32, #tpu.memory_space<vmem>>, %arg4: memref<8x8xf32, #tpu.memory_space<vmem>>, %arg5: memref<8x1xf32, #tpu.memory_space<vmem>>, %arg6: memref<72x8xf32, #tpu.memory_space<vmem>>, %arg7: memref<8x1xf32, #tpu.memory_space<vmem>>, %arg8: memref<5760x128xf32, #tpu.memory_space<vmem>>, %arg9: memref<128x6272xf32, #tpu.memory_space<vmem>>, %arg10: memref<72x8xf32, #tpu.memory_space<vmem>>, %arg11: memref<8x1xf32, #tpu.memory_space<vmem>>, %arg12: memref<72x8xf32, #tpu.memory_space<vmem>>, %arg13: memref<8x1xf32, #tpu.memory_space<vmem>>, %arg14: memref<72x8xf32, #tpu.memory_space<vmem>>, %arg15: memref<8x1xf32, #tpu.memory_space<vmem>>, %arg16: memref<1152x128xf32, #tpu.memory_space<vmem>>, %arg17: memref<128x640xf32, #tpu.memory_space<vmem>>, %arg18: memref<32x8xf32, #tpu.memory_space<vmem>>, %arg19: memref<32x1xf32, #tpu.memory_space<vmem>>, %arg20: memref<32x640xf32, #tpu.memory_space<vmem>>) attributes {dimension_semantics = [#tpu.dimension_semantics<parallel>], iteration_bounds = array<i64: 1>, scalar_prefetch = 0 : i64, scratch_operands = 0 : i64, tpu.core_type = #tpu.core_type<tc>, window_params = [{transform_indices = @transform_0, window_bounds = array<i64: 32, 640>}, {pipeline_mode = #tpu.pipeline_mode<synchronous>, transform_indices = @transform_1, window_bounds = array<i64: 8, 32>}, {pipeline_mode = #tpu.pipeline_mode<synchronous>, transform_indices = @transform_2, window_bounds = array<i64: 8, 1>}, {pipeline_mode = #tpu.pipeline_mode<synchronous>, transform_indices = @transform_3, window_bounds = array<i64: 8, 8>}, {pipeline_mode = #tpu.pipeline_mode<synchronous>, transform_indices = @transform_4, window_bounds = array<i64: 8, 1>}, {pipeline_mode = #tpu.pipeline_mode<synchronous>, transform_indices = @transform_5, window_bounds = array<i64: 72, 8>}, {pipeline_mode = #tpu.pipeline_mode<synchronous>, transform_indices = @transform_6, window_bounds = array<i64: 8, 1>}, {pipeline_mode = #tpu.pipeline_mode<synchronous>, transform_indices = @transform_7, window_bounds = array<i64: 5760, 128>}, {pipeline_mode = #tpu.pipeline_mode<synchronous>, transform_indices = @transform_8, window_bounds = array<i64: 128, 6272>}, {pipeline_mode = #tpu.pipeline_mode<synchronous>, transform_indices = @transform_9, window_bounds = array<i64: 72, 8>}, {pipeline_mode = #tpu.pipeline_mode<synchronous>, transform_indices = @transform_10, window_bounds = array<i64: 8, 1>}, {pipeline_mode = #tpu.pipeline_mode<synchronous>, transform_indices = @transform_11, window_bounds = array<i64: 72, 8>}, {pipeline_mode = #tpu.pipeline_mode<synchronous>, transform_indices = @transform_12, window_bounds = array<i64: 8, 1>}, {pipeline_mode = #tpu.pipeline_mode<synchronous>, transform_indices = @transform_13, window_bounds = array<i64: 72, 8>}, {pipeline_mode = #tpu.pipeline_mode<synchronous>, transform_indices = @transform_14, window_bounds = array<i64: 8, 1>}, {pipeline_mode = #tpu.pipeline_mode<synchronous>, transform_indices = @transform_15, window_bounds = array<i64: 1152, 128>}, {pipeline_mode = #tpu.pipeline_mode<synchronous>, transform_indices = @transform_16, window_bounds = array<i64: 128, 640>}, {pipeline_mode = #tpu.pipeline_mode<synchronous>, transform_indices = @transform_17, window_bounds = array<i64: 32, 8>}, {pipeline_mode = #tpu.pipeline_mode<synchronous>, transform_indices = @transform_18, window_bounds = array<i64: 32, 1>}, {transform_indices = @transform_19, window_bounds = array<i64: 32, 640>}]} {
    %c0 = arith.constant 0 : index
    %c0_0 = arith.constant 0 : index
    %0 = vector.load %arg1[%c0, %c0_0] : memref<32x640xf32, #tpu.memory_space<vmem>>, vector<32x640xf32>
    %c0_1 = arith.constant 0 : index
    %c0_2 = arith.constant 0 : index
    %1 = vector.load %arg2[%c0_1, %c0_2] : memref<8x32xf32, #tpu.memory_space<vmem>>, vector<8x32xf32>
    %cst = arith.constant dense<0.000000e+00> : vector<8x640xf32>
    %2 = tpu.matmul %1, %0, %cst {dimension_numbers = #tpu.dot_dimension_numbers<[1], [0], [0], [1], [0, 0, 1, 1], [], []>} : vector<8x32xf32>, vector<32x640xf32>, vector<8x640xf32> -> vector<8x640xf32>
    %c0_3 = arith.constant 0 : index
    %c0_4 = arith.constant 0 : index
    %3 = vector.load %arg3[%c0_3, %c0_4] : memref<8x1xf32, #tpu.memory_space<vmem>>, vector<8x1xf32>
    %4 = vector.broadcast %3 : vector<8x1xf32> to vector<8x640xf32>
    %5 = arith.addf %2, %4 : vector<8x640xf32>
    %c0_5 = arith.constant 0 : index
    %c0_6 = arith.constant 0 : index
    %6 = vector.load %arg4[%c0_5, %c0_6] : memref<8x8xf32, #tpu.memory_space<vmem>>, vector<8x8xf32>
    %cst_7 = arith.constant dense<0.000000e+00> : vector<8x640xf32>
    %7 = tpu.matmul %6, %5, %cst_7 {dimension_numbers = #tpu.dot_dimension_numbers<[1], [0], [0], [1], [0, 0, 1, 1], [], []>} : vector<8x8xf32>, vector<8x640xf32>, vector<8x640xf32> -> vector<8x640xf32>
    %c0_8 = arith.constant 0 : index
    %c0_9 = arith.constant 0 : index
    %8 = vector.load %arg5[%c0_8, %c0_9] : memref<8x1xf32, #tpu.memory_space<vmem>>, vector<8x1xf32>
    %9 = vector.broadcast %8 : vector<8x1xf32> to vector<8x640xf32>
    %10 = arith.addf %7, %9 : vector<8x640xf32>
    %c0_10 = arith.constant 0 : index
    %c0_11 = arith.constant 0 : index
    %11 = vector.load %arg6[%c0_10, %c0_11] : memref<72x8xf32, #tpu.memory_space<vmem>>, vector<72x8xf32>
    %cst_12 = arith.constant dense<0.000000e+00> : vector<72x640xf32>
    %12 = tpu.matmul %11, %5, %cst_12 {dimension_numbers = #tpu.dot_dimension_numbers<[1], [0], [0], [1], [0, 0, 1, 1], [], []>} : vector<72x8xf32>, vector<8x640xf32>, vector<72x640xf32> -> vector<72x640xf32>
    %13 = vector.extract_strided_slice %12 {offsets = [0, 0], sizes = [8, 640], strides = [1, 1]} : vector<72x640xf32> to vector<8x640xf32>
    %14 = vector.extract_strided_slice %12 {offsets = [8, 0], sizes = [8, 640], strides = [1, 1]} : vector<72x640xf32> to vector<8x640xf32>
    %15 = vector.extract_strided_slice %12 {offsets = [16, 0], sizes = [8, 640], strides = [1, 1]} : vector<72x640xf32> to vector<8x640xf32>
    %16 = vector.extract_strided_slice %12 {offsets = [24, 0], sizes = [8, 640], strides = [1, 1]} : vector<72x640xf32> to vector<8x640xf32>
    %17 = vector.extract_strided_slice %12 {offsets = [32, 0], sizes = [8, 640], strides = [1, 1]} : vector<72x640xf32> to vector<8x640xf32>
    %18 = vector.extract_strided_slice %12 {offsets = [40, 0], sizes = [8, 640], strides = [1, 1]} : vector<72x640xf32> to vector<8x640xf32>
    %19 = vector.extract_strided_slice %12 {offsets = [48, 0], sizes = [8, 640], strides = [1, 1]} : vector<72x640xf32> to vector<8x640xf32>
    %20 = vector.extract_strided_slice %12 {offsets = [56, 0], sizes = [8, 640], strides = [1, 1]} : vector<72x640xf32> to vector<8x640xf32>
    %21 = vector.extract_strided_slice %12 {offsets = [64, 0], sizes = [8, 640], strides = [1, 1]} : vector<72x640xf32> to vector<8x640xf32>
    %22 = tpu.concatenate %13, %14, %15, %16, %17, %18, %19, %20, %21 in 1 : vector<8x640xf32>, vector<8x640xf32>, vector<8x640xf32>, vector<8x640xf32>, vector<8x640xf32>, vector<8x640xf32>, vector<8x640xf32>, vector<8x640xf32>, vector<8x640xf32> -> vector<8x5760xf32>
    %c0_13 = arith.constant 0 : index
    %c0_14 = arith.constant 0 : index
    %23 = vector.load %arg8[%c0_13, %c0_14] : memref<5760x128xf32, #tpu.memory_space<vmem>>, vector<5760x128xf32>
    %cst_15 = arith.constant dense<0.000000e+00> : vector<8x128xf32>
    %24 = tpu.matmul %22, %23, %cst_15 {dimension_numbers = #tpu.dot_dimension_numbers<[1], [0], [0], [1], [0, 0, 1, 1], [], []>} : vector<8x5760xf32>, vector<5760x128xf32>, vector<8x128xf32> -> vector<8x128xf32>
    %c0_16 = arith.constant 0 : index
    %c0_17 = arith.constant 0 : index
    %25 = vector.load %arg7[%c0_16, %c0_17] : memref<8x1xf32, #tpu.memory_space<vmem>>, vector<8x1xf32>
    %26 = vector.broadcast %25 : vector<8x1xf32> to vector<8x128xf32>
    %27 = arith.addf %24, %26 : vector<8x128xf32>
    %c0_18 = arith.constant 0 : index
    %c0_19 = arith.constant 0 : index
    %28 = vector.load %arg9[%c0_18, %c0_19] : memref<128x6272xf32, #tpu.memory_space<vmem>>, vector<128x6272xf32>
    %cst_20 = arith.constant dense<0.000000e+00> : vector<8x6272xf32>
    %29 = tpu.matmul %27, %28, %cst_20 {dimension_numbers = #tpu.dot_dimension_numbers<[1], [0], [0], [1], [0, 0, 1, 1], [], []>} : vector<8x128xf32>, vector<128x6272xf32>, vector<8x6272xf32> -> vector<8x6272xf32>
    %30 = vector.extract_strided_slice %29 {offsets = [0, 0], sizes = [8, 128], strides = [1, 1]} : vector<8x6272xf32> to vector<8x128xf32>
    %31 = vector.extract_strided_slice %29 {offsets = [0, 128], sizes = [8, 128], strides = [1, 1]} : vector<8x6272xf32> to vector<8x128xf32>
    %32 = arith.maximumf %30, %31 : vector<8x128xf32>
    %33 = vector.extract_strided_slice %29 {offsets = [0, 256], sizes = [8, 128], strides = [1, 1]} : vector<8x6272xf32> to vector<8x128xf32>
    %34 = arith.maximumf %32, %33 : vector<8x128xf32>
    %35 = vector.extract_strided_slice %29 {offsets = [0, 384], sizes = [8, 128], strides = [1, 1]} : vector<8x6272xf32> to vector<8x128xf32>
    %36 = arith.maximumf %34, %35 : vector<8x128xf32>
    %37 = vector.extract_strided_slice %29 {offsets = [0, 512], sizes = [8, 128], strides = [1, 1]} : vector<8x6272xf32> to vector<8x128xf32>
    %38 = arith.maximumf %36, %37 : vector<8x128xf32>
    %39 = vector.extract_strided_slice %29 {offsets = [0, 640], sizes = [8, 128], strides = [1, 1]} : vector<8x6272xf32> to vector<8x128xf32>
    %40 = arith.maximumf %38, %39 : vector<8x128xf32>
    %41 = vector.extract_strided_slice %29 {offsets = [0, 768], sizes = [8, 128], strides = [1, 1]} : vector<8x6272xf32> to vector<8x128xf32>
    %42 = arith.maximumf %40, %41 : vector<8x128xf32>
    %43 = vector.extract_strided_slice %29 {offsets = [0, 896], sizes = [8, 128], strides = [1, 1]} : vector<8x6272xf32> to vector<8x128xf32>
    %44 = arith.maximumf %42, %43 : vector<8x128xf32>
    %45 = vector.extract_strided_slice %29 {offsets = [0, 1024], sizes = [8, 128], strides = [1, 1]} : vector<8x6272xf32> to vector<8x128xf32>
    %46 = arith.maximumf %44, %45 : vector<8x128xf32>
    %47 = vector.extract_strided_slice %29 {offsets = [0, 1152], sizes = [8, 128], strides = [1, 1]} : vector<8x6272xf32> to vector<8x128xf32>
    %48 = arith.maximumf %46, %47 : vector<8x128xf32>
    %49 = vector.extract_strided_slice %29 {offsets = [0, 1280], sizes = [8, 128], strides = [1, 1]} : vector<8x6272xf32> to vector<8x128xf32>
    %50 = arith.maximumf %48, %49 : vector<8x128xf32>
    %51 = vector.extract_strided_slice %29 {offsets = [0, 1408], sizes = [8, 128], strides = [1, 1]} : vector<8x6272xf32> to vector<8x128xf32>
    %52 = arith.maximumf %50, %51 : vector<8x128xf32>
    %53 = vector.extract_strided_slice %29 {offsets = [0, 1536], sizes = [8, 128], strides = [1, 1]} : vector<8x6272xf32> to vector<8x128xf32>
    %54 = arith.maximumf %52, %53 : vector<8x128xf32>
    %55 = vector.extract_strided_slice %29 {offsets = [0, 1664], sizes = [8, 128], strides = [1, 1]} : vector<8x6272xf32> to vector<8x128xf32>
    %56 = arith.maximumf %54, %55 : vector<8x128xf32>
    %57 = vector.extract_strided_slice %29 {offsets = [0, 1792], sizes = [8, 128], strides = [1, 1]} : vector<8x6272xf32> to vector<8x128xf32>
    %58 = arith.maximumf %56, %57 : vector<8x128xf32>
    %59 = vector.extract_strided_slice %29 {offsets = [0, 1920], sizes = [8, 128], strides = [1, 1]} : vector<8x6272xf32> to vector<8x128xf32>
    %60 = arith.maximumf %58, %59 : vector<8x128xf32>
    %61 = vector.extract_strided_slice %29 {offsets = [0, 2048], sizes = [8, 128], strides = [1, 1]} : vector<8x6272xf32> to vector<8x128xf32>
    %62 = arith.maximumf %60, %61 : vector<8x128xf32>
    %63 = vector.extract_strided_slice %29 {offsets = [0, 2176], sizes = [8, 128], strides = [1, 1]} : vector<8x6272xf32> to vector<8x128xf32>
    %64 = arith.maximumf %62, %63 : vector<8x128xf32>
    %65 = vector.extract_strided_slice %29 {offsets = [0, 2304], sizes = [8, 128], strides = [1, 1]} : vector<8x6272xf32> to vector<8x128xf32>
    %66 = arith.maximumf %64, %65 : vector<8x128xf32>
    %67 = vector.extract_strided_slice %29 {offsets = [0, 2432], sizes = [8, 128], strides = [1, 1]} : vector<8x6272xf32> to vector<8x128xf32>
    %68 = arith.maximumf %66, %67 : vector<8x128xf32>
    %69 = vector.extract_strided_slice %29 {offsets = [0, 2560], sizes = [8, 128], strides = [1, 1]} : vector<8x6272xf32> to vector<8x128xf32>
    %70 = arith.maximumf %68, %69 : vector<8x128xf32>
    %71 = vector.extract_strided_slice %29 {offsets = [0, 2688], sizes = [8, 128], strides = [1, 1]} : vector<8x6272xf32> to vector<8x128xf32>
    %72 = arith.maximumf %70, %71 : vector<8x128xf32>
    %73 = vector.extract_strided_slice %29 {offsets = [0, 2816], sizes = [8, 128], strides = [1, 1]} : vector<8x6272xf32> to vector<8x128xf32>
    %74 = arith.maximumf %72, %73 : vector<8x128xf32>
    %75 = vector.extract_strided_slice %29 {offsets = [0, 2944], sizes = [8, 128], strides = [1, 1]} : vector<8x6272xf32> to vector<8x128xf32>
    %76 = arith.maximumf %74, %75 : vector<8x128xf32>
    %77 = vector.extract_strided_slice %29 {offsets = [0, 3072], sizes = [8, 128], strides = [1, 1]} : vector<8x6272xf32> to vector<8x128xf32>
    %78 = arith.maximumf %76, %77 : vector<8x128xf32>
    %79 = vector.extract_strided_slice %29 {offsets = [0, 3200], sizes = [8, 128], strides = [1, 1]} : vector<8x6272xf32> to vector<8x128xf32>
    %80 = arith.maximumf %78, %79 : vector<8x128xf32>
    %81 = vector.extract_strided_slice %29 {offsets = [0, 3328], sizes = [8, 128], strides = [1, 1]} : vector<8x6272xf32> to vector<8x128xf32>
    %82 = arith.maximumf %80, %81 : vector<8x128xf32>
    %83 = vector.extract_strided_slice %29 {offsets = [0, 3456], sizes = [8, 128], strides = [1, 1]} : vector<8x6272xf32> to vector<8x128xf32>
    %84 = arith.maximumf %82, %83 : vector<8x128xf32>
    %85 = vector.extract_strided_slice %29 {offsets = [0, 3584], sizes = [8, 128], strides = [1, 1]} : vector<8x6272xf32> to vector<8x128xf32>
    %86 = arith.maximumf %84, %85 : vector<8x128xf32>
    %87 = vector.extract_strided_slice %29 {offsets = [0, 3712], sizes = [8, 128], strides = [1, 1]} : vector<8x6272xf32> to vector<8x128xf32>
    %88 = arith.maximumf %86, %87 : vector<8x128xf32>
    %89 = vector.extract_strided_slice %29 {offsets = [0, 3840], sizes = [8, 128], strides = [1, 1]} : vector<8x6272xf32> to vector<8x128xf32>
    %90 = arith.maximumf %88, %89 : vector<8x128xf32>
    %91 = vector.extract_strided_slice %29 {offsets = [0, 3968], sizes = [8, 128], strides = [1, 1]} : vector<8x6272xf32> to vector<8x128xf32>
    %92 = arith.maximumf %90, %91 : vector<8x128xf32>
    %93 = vector.extract_strided_slice %29 {offsets = [0, 4096], sizes = [8, 128], strides = [1, 1]} : vector<8x6272xf32> to vector<8x128xf32>
    %94 = arith.maximumf %92, %93 : vector<8x128xf32>
    %95 = vector.extract_strided_slice %29 {offsets = [0, 4224], sizes = [8, 128], strides = [1, 1]} : vector<8x6272xf32> to vector<8x128xf32>
    %96 = arith.maximumf %94, %95 : vector<8x128xf32>
    %97 = vector.extract_strided_slice %29 {offsets = [0, 4352], sizes = [8, 128], strides = [1, 1]} : vector<8x6272xf32> to vector<8x128xf32>
    %98 = arith.maximumf %96, %97 : vector<8x128xf32>
    %99 = vector.extract_strided_slice %29 {offsets = [0, 4480], sizes = [8, 128], strides = [1, 1]} : vector<8x6272xf32> to vector<8x128xf32>
    %100 = arith.maximumf %98, %99 : vector<8x128xf32>
    %101 = vector.extract_strided_slice %29 {offsets = [0, 4608], sizes = [8, 128], strides = [1, 1]} : vector<8x6272xf32> to vector<8x128xf32>
    %102 = arith.maximumf %100, %101 : vector<8x128xf32>
    %103 = vector.extract_strided_slice %29 {offsets = [0, 4736], sizes = [8, 128], strides = [1, 1]} : vector<8x6272xf32> to vector<8x128xf32>
    %104 = arith.maximumf %102, %103 : vector<8x128xf32>
    %105 = vector.extract_strided_slice %29 {offsets = [0, 4864], sizes = [8, 128], strides = [1, 1]} : vector<8x6272xf32> to vector<8x128xf32>
    %106 = arith.maximumf %104, %105 : vector<8x128xf32>
    %107 = vector.extract_strided_slice %29 {offsets = [0, 4992], sizes = [8, 128], strides = [1, 1]} : vector<8x6272xf32> to vector<8x128xf32>
    %108 = arith.maximumf %106, %107 : vector<8x128xf32>
    %109 = vector.extract_strided_slice %29 {offsets = [0, 5120], sizes = [8, 128], strides = [1, 1]} : vector<8x6272xf32> to vector<8x128xf32>
    %110 = arith.maximumf %108, %109 : vector<8x128xf32>
    %111 = vector.extract_strided_slice %29 {offsets = [0, 5248], sizes = [8, 128], strides = [1, 1]} : vector<8x6272xf32> to vector<8x128xf32>
    %112 = arith.maximumf %110, %111 : vector<8x128xf32>
    %113 = vector.extract_strided_slice %29 {offsets = [0, 5376], sizes = [8, 128], strides = [1, 1]} : vector<8x6272xf32> to vector<8x128xf32>
    %114 = arith.maximumf %112, %113 : vector<8x128xf32>
    %115 = vector.extract_strided_slice %29 {offsets = [0, 5504], sizes = [8, 128], strides = [1, 1]} : vector<8x6272xf32> to vector<8x128xf32>
    %116 = arith.maximumf %114, %115 : vector<8x128xf32>
    %117 = vector.extract_strided_slice %29 {offsets = [0, 5632], sizes = [8, 128], strides = [1, 1]} : vector<8x6272xf32> to vector<8x128xf32>
    %118 = arith.maximumf %116, %117 : vector<8x128xf32>
    %119 = vector.extract_strided_slice %29 {offsets = [0, 5760], sizes = [8, 128], strides = [1, 1]} : vector<8x6272xf32> to vector<8x128xf32>
    %120 = arith.maximumf %118, %119 : vector<8x128xf32>
    %121 = vector.extract_strided_slice %29 {offsets = [0, 5888], sizes = [8, 128], strides = [1, 1]} : vector<8x6272xf32> to vector<8x128xf32>
    %122 = arith.maximumf %120, %121 : vector<8x128xf32>
    %123 = vector.extract_strided_slice %29 {offsets = [0, 6016], sizes = [8, 128], strides = [1, 1]} : vector<8x6272xf32> to vector<8x128xf32>
    %124 = arith.maximumf %122, %123 : vector<8x128xf32>
    %125 = vector.extract_strided_slice %29 {offsets = [0, 6144], sizes = [8, 128], strides = [1, 1]} : vector<8x6272xf32> to vector<8x128xf32>
    %126 = arith.maximumf %124, %125 : vector<8x128xf32>
    %c0_21 = arith.constant 0 : index
    %c0_22 = arith.constant 0 : index
    %127 = vector.load %arg10[%c0_21, %c0_22] : memref<72x8xf32, #tpu.memory_space<vmem>>, vector<72x8xf32>
    %cst_23 = arith.constant dense<0.000000e+00> : vector<72x128xf32>
    %128 = tpu.matmul %127, %126, %cst_23 {dimension_numbers = #tpu.dot_dimension_numbers<[1], [0], [0], [1], [0, 0, 1, 1], [], []>} : vector<72x8xf32>, vector<8x128xf32>, vector<72x128xf32> -> vector<72x128xf32>
    %129 = vector.extract_strided_slice %128 {offsets = [0, 0], sizes = [8, 128], strides = [1, 1]} : vector<72x128xf32> to vector<8x128xf32>
    %130 = vector.extract_strided_slice %128 {offsets = [8, 0], sizes = [8, 128], strides = [1, 1]} : vector<72x128xf32> to vector<8x128xf32>
    %131 = vector.extract_strided_slice %128 {offsets = [16, 0], sizes = [8, 128], strides = [1, 1]} : vector<72x128xf32> to vector<8x128xf32>
    %132 = vector.extract_strided_slice %128 {offsets = [24, 0], sizes = [8, 128], strides = [1, 1]} : vector<72x128xf32> to vector<8x128xf32>
    %133 = vector.extract_strided_slice %128 {offsets = [32, 0], sizes = [8, 128], strides = [1, 1]} : vector<72x128xf32> to vector<8x128xf32>
    %134 = vector.extract_strided_slice %128 {offsets = [40, 0], sizes = [8, 128], strides = [1, 1]} : vector<72x128xf32> to vector<8x128xf32>
    %135 = vector.extract_strided_slice %128 {offsets = [48, 0], sizes = [8, 128], strides = [1, 1]} : vector<72x128xf32> to vector<8x128xf32>
    %136 = vector.extract_strided_slice %128 {offsets = [56, 0], sizes = [8, 128], strides = [1, 1]} : vector<72x128xf32> to vector<8x128xf32>
    %137 = vector.extract_strided_slice %128 {offsets = [64, 0], sizes = [8, 128], strides = [1, 1]} : vector<72x128xf32> to vector<8x128xf32>
    %138 = tpu.concatenate %129, %130, %131, %132, %133, %134, %135, %136, %137 in 1 : vector<8x128xf32>, vector<8x128xf32>, vector<8x128xf32>, vector<8x128xf32>, vector<8x128xf32>, vector<8x128xf32>, vector<8x128xf32>, vector<8x128xf32>, vector<8x128xf32> -> vector<8x1152xf32>
    %c0_24 = arith.constant 0 : index
    %c0_25 = arith.constant 0 : index
    %139 = vector.load %arg16[%c0_24, %c0_25] : memref<1152x128xf32, #tpu.memory_space<vmem>>, vector<1152x128xf32>
    %cst_26 = arith.constant dense<0.000000e+00> : vector<8x128xf32>
    %140 = tpu.matmul %138, %139, %cst_26 {dimension_numbers = #tpu.dot_dimension_numbers<[1], [0], [0], [1], [0, 0, 1, 1], [], []>} : vector<8x1152xf32>, vector<1152x128xf32>, vector<8x128xf32> -> vector<8x128xf32>
    %c0_27 = arith.constant 0 : index
    %c0_28 = arith.constant 0 : index
    %141 = vector.load %arg11[%c0_27, %c0_28] : memref<8x1xf32, #tpu.memory_space<vmem>>, vector<8x1xf32>
    %142 = vector.broadcast %141 : vector<8x1xf32> to vector<8x128xf32>
    %143 = arith.addf %140, %142 : vector<8x128xf32>
    %cst_29 = arith.constant 0.000000e+00 : f32
    %144 = vector.broadcast %cst_29 : f32 to vector<8x128xf32>
    %145 = arith.maximumf %143, %144 : vector<8x128xf32>
    %c0_30 = arith.constant 0 : index
    %c0_31 = arith.constant 0 : index
    %146 = vector.load %arg12[%c0_30, %c0_31] : memref<72x8xf32, #tpu.memory_space<vmem>>, vector<72x8xf32>
    %cst_32 = arith.constant dense<0.000000e+00> : vector<72x128xf32>
    %147 = tpu.matmul %146, %145, %cst_32 {dimension_numbers = #tpu.dot_dimension_numbers<[1], [0], [0], [1], [0, 0, 1, 1], [], []>} : vector<72x8xf32>, vector<8x128xf32>, vector<72x128xf32> -> vector<72x128xf32>
    %148 = vector.extract_strided_slice %147 {offsets = [0, 0], sizes = [8, 128], strides = [1, 1]} : vector<72x128xf32> to vector<8x128xf32>
    %149 = vector.extract_strided_slice %147 {offsets = [8, 0], sizes = [8, 128], strides = [1, 1]} : vector<72x128xf32> to vector<8x128xf32>
    %150 = vector.extract_strided_slice %147 {offsets = [16, 0], sizes = [8, 128], strides = [1, 1]} : vector<72x128xf32> to vector<8x128xf32>
    %151 = vector.extract_strided_slice %147 {offsets = [24, 0], sizes = [8, 128], strides = [1, 1]} : vector<72x128xf32> to vector<8x128xf32>
    %152 = vector.extract_strided_slice %147 {offsets = [32, 0], sizes = [8, 128], strides = [1, 1]} : vector<72x128xf32> to vector<8x128xf32>
    %153 = vector.extract_strided_slice %147 {offsets = [40, 0], sizes = [8, 128], strides = [1, 1]} : vector<72x128xf32> to vector<8x128xf32>
    %154 = vector.extract_strided_slice %147 {offsets = [48, 0], sizes = [8, 128], strides = [1, 1]} : vector<72x128xf32> to vector<8x128xf32>
    %155 = vector.extract_strided_slice %147 {offsets = [56, 0], sizes = [8, 128], strides = [1, 1]} : vector<72x128xf32> to vector<8x128xf32>
    %156 = vector.extract_strided_slice %147 {offsets = [64, 0], sizes = [8, 128], strides = [1, 1]} : vector<72x128xf32> to vector<8x128xf32>
    %157 = tpu.concatenate %148, %149, %150, %151, %152, %153, %154, %155, %156 in 1 : vector<8x128xf32>, vector<8x128xf32>, vector<8x128xf32>, vector<8x128xf32>, vector<8x128xf32>, vector<8x128xf32>, vector<8x128xf32>, vector<8x128xf32>, vector<8x128xf32> -> vector<8x1152xf32>
    %c0_33 = arith.constant 0 : index
    %c0_34 = arith.constant 0 : index
    %158 = vector.load %arg16[%c0_33, %c0_34] : memref<1152x128xf32, #tpu.memory_space<vmem>>, vector<1152x128xf32>
    %cst_35 = arith.constant dense<0.000000e+00> : vector<8x128xf32>
    %159 = tpu.matmul %157, %158, %cst_35 {dimension_numbers = #tpu.dot_dimension_numbers<[1], [0], [0], [1], [0, 0, 1, 1], [], []>} : vector<8x1152xf32>, vector<1152x128xf32>, vector<8x128xf32> -> vector<8x128xf32>
    %c0_36 = arith.constant 0 : index
    %c0_37 = arith.constant 0 : index
    %160 = vector.load %arg13[%c0_36, %c0_37] : memref<8x1xf32, #tpu.memory_space<vmem>>, vector<8x1xf32>
    %161 = vector.broadcast %160 : vector<8x1xf32> to vector<8x128xf32>
    %162 = arith.addf %159, %161 : vector<8x128xf32>
    %cst_38 = arith.constant 0.000000e+00 : f32
    %163 = vector.broadcast %cst_38 : f32 to vector<8x128xf32>
    %164 = arith.maximumf %162, %163 : vector<8x128xf32>
    %c0_39 = arith.constant 0 : index
    %c0_40 = arith.constant 0 : index
    %165 = vector.load %arg14[%c0_39, %c0_40] : memref<72x8xf32, #tpu.memory_space<vmem>>, vector<72x8xf32>
    %cst_41 = arith.constant dense<0.000000e+00> : vector<72x128xf32>
    %166 = tpu.matmul %165, %164, %cst_41 {dimension_numbers = #tpu.dot_dimension_numbers<[1], [0], [0], [1], [0, 0, 1, 1], [], []>} : vector<72x8xf32>, vector<8x128xf32>, vector<72x128xf32> -> vector<72x128xf32>
    %167 = vector.extract_strided_slice %166 {offsets = [0, 0], sizes = [8, 128], strides = [1, 1]} : vector<72x128xf32> to vector<8x128xf32>
    %168 = vector.extract_strided_slice %166 {offsets = [8, 0], sizes = [8, 128], strides = [1, 1]} : vector<72x128xf32> to vector<8x128xf32>
    %169 = vector.extract_strided_slice %166 {offsets = [16, 0], sizes = [8, 128], strides = [1, 1]} : vector<72x128xf32> to vector<8x128xf32>
    %170 = vector.extract_strided_slice %166 {offsets = [24, 0], sizes = [8, 128], strides = [1, 1]} : vector<72x128xf32> to vector<8x128xf32>
    %171 = vector.extract_strided_slice %166 {offsets = [32, 0], sizes = [8, 128], strides = [1, 1]} : vector<72x128xf32> to vector<8x128xf32>
    %172 = vector.extract_strided_slice %166 {offsets = [40, 0], sizes = [8, 128], strides = [1, 1]} : vector<72x128xf32> to vector<8x128xf32>
    %173 = vector.extract_strided_slice %166 {offsets = [48, 0], sizes = [8, 128], strides = [1, 1]} : vector<72x128xf32> to vector<8x128xf32>
    %174 = vector.extract_strided_slice %166 {offsets = [56, 0], sizes = [8, 128], strides = [1, 1]} : vector<72x128xf32> to vector<8x128xf32>
    %175 = vector.extract_strided_slice %166 {offsets = [64, 0], sizes = [8, 128], strides = [1, 1]} : vector<72x128xf32> to vector<8x128xf32>
    %176 = tpu.concatenate %167, %168, %169, %170, %171, %172, %173, %174, %175 in 1 : vector<8x128xf32>, vector<8x128xf32>, vector<8x128xf32>, vector<8x128xf32>, vector<8x128xf32>, vector<8x128xf32>, vector<8x128xf32>, vector<8x128xf32>, vector<8x128xf32> -> vector<8x1152xf32>
    %c0_42 = arith.constant 0 : index
    %c0_43 = arith.constant 0 : index
    %177 = vector.load %arg16[%c0_42, %c0_43] : memref<1152x128xf32, #tpu.memory_space<vmem>>, vector<1152x128xf32>
    %cst_44 = arith.constant dense<0.000000e+00> : vector<8x128xf32>
    %178 = tpu.matmul %176, %177, %cst_44 {dimension_numbers = #tpu.dot_dimension_numbers<[1], [0], [0], [1], [0, 0, 1, 1], [], []>} : vector<8x1152xf32>, vector<1152x128xf32>, vector<8x128xf32> -> vector<8x128xf32>
    %c0_45 = arith.constant 0 : index
    %c0_46 = arith.constant 0 : index
    %179 = vector.load %arg15[%c0_45, %c0_46] : memref<8x1xf32, #tpu.memory_space<vmem>>, vector<8x1xf32>
    %180 = vector.broadcast %179 : vector<8x1xf32> to vector<8x128xf32>
    %181 = arith.addf %178, %180 : vector<8x128xf32>
    %c0_47 = arith.constant 0 : index
    %c0_48 = arith.constant 0 : index
    %182 = vector.load %arg17[%c0_47, %c0_48] : memref<128x640xf32, #tpu.memory_space<vmem>>, vector<128x640xf32>
    %cst_49 = arith.constant dense<0.000000e+00> : vector<8x640xf32>
    %183 = tpu.matmul %181, %182, %cst_49 {dimension_numbers = #tpu.dot_dimension_numbers<[1], [0], [0], [1], [0, 0, 1, 1], [], []>} : vector<8x128xf32>, vector<128x640xf32>, vector<8x640xf32> -> vector<8x640xf32>
    %c0_50 = arith.constant 0 : index
    %c0_51 = arith.constant 0 : index
    %184 = vector.load %arg18[%c0_50, %c0_51] : memref<32x8xf32, #tpu.memory_space<vmem>>, vector<32x8xf32>
    %185 = arith.addf %183, %10 : vector<8x640xf32>
    %cst_52 = arith.constant dense<0.000000e+00> : vector<32x640xf32>
    %186 = tpu.matmul %184, %185, %cst_52 {dimension_numbers = #tpu.dot_dimension_numbers<[1], [0], [0], [1], [0, 0, 1, 1], [], []>} : vector<32x8xf32>, vector<8x640xf32>, vector<32x640xf32> -> vector<32x640xf32>
    %c0_53 = arith.constant 0 : index
    %c0_54 = arith.constant 0 : index
    %187 = vector.load %arg19[%c0_53, %c0_54] : memref<32x1xf32, #tpu.memory_space<vmem>>, vector<32x1xf32>
    %188 = vector.broadcast %187 : vector<32x1xf32> to vector<32x640xf32>
    %189 = arith.addf %186, %188 : vector<32x640xf32>
    %c0_55 = arith.constant 0 : index
    %c0_56 = arith.constant 0 : index
    %190 = vector.load %arg1[%c0_55, %c0_56] : memref<32x640xf32, #tpu.memory_space<vmem>>, vector<32x640xf32>
    %191 = arith.negf %189 : vector<32x640xf32>
    %192 = math.exp %191 : vector<32x640xf32>
    %cst_57 = arith.constant 1.000000e+00 : f32
    %193 = vector.broadcast %cst_57 : f32 to vector<32x640xf32>
    %194 = arith.addf %193, %192 : vector<32x640xf32>
    %195 = arith.divf %193, %194 : vector<32x640xf32>
    %196 = arith.mulf %190, %195 : vector<32x640xf32>
    %c0_58 = arith.constant 0 : index
    %c0_59 = arith.constant 0 : index
    %197 = vector.load %arg20[%c0_58, %c0_59] : memref<32x640xf32, #tpu.memory_space<vmem>>, vector<32x640xf32>
    tpu.vector_store %arg20[%c0_58, %c0_59], %196 {strides = array<i32>} : memref<32x640xf32, #tpu.memory_space<vmem>>, vector<32x640xf32>,
    return
  }
  func.func @transform_0(%arg0: i32) -> (i32, i32) {
    %c0_i32 = arith.constant 0 : i32
    %c0_i32_0 = arith.constant 0 : i32
    return %arg0, %c0_i32 : i32, i32
  }
  func.func @transform_1(%arg0: i32) -> (i32, i32) {
    %c0_i32 = arith.constant 0 : i32
    %c0_i32_0 = arith.constant 0 : i32
    %c0_i32_1 = arith.constant 0 : i32
    return %c0_i32, %c0_i32_0 : i32, i32
  }
  func.func @transform_2(%arg0: i32) -> (i32, i32) {
    %c0_i32 = arith.constant 0 : i32
    %c0_i32_0 = arith.constant 0 : i32
    %c0_i32_1 = arith.constant 0 : i32
    return %c0_i32, %c0_i32_0 : i32, i32
  }
  func.func @transform_3(%arg0: i32) -> (i32, i32) {
    %c0_i32 = arith.constant 0 : i32
    %c0_i32_0 = arith.constant 0 : i32
    %c0_i32_1 = arith.constant 0 : i32
    return %c0_i32, %c0_i32_0 : i32, i32
  }
  func.func @transform_4(%arg0: i32) -> (i32, i32) {
    %c0_i32 = arith.constant 0 : i32
    %c0_i32_0 = arith.constant 0 : i32
    %c0_i32_1 = arith.constant 0 : i32
    return %c0_i32, %c0_i32_0 : i32, i32
  }
  func.func @transform_5(%arg0: i32) -> (i32, i32) {
    %c0_i32 = arith.constant 0 : i32
    %c0_i32_0 = arith.constant 0 : i32
    %c0_i32_1 = arith.constant 0 : i32
    return %c0_i32, %c0_i32_0 : i32, i32
  }
  func.func @transform_6(%arg0: i32) -> (i32, i32) {
    %c0_i32 = arith.constant 0 : i32
    %c0_i32_0 = arith.constant 0 : i32
    %c0_i32_1 = arith.constant 0 : i32
    return %c0_i32, %c0_i32_0 : i32, i32
  }
  func.func @transform_7(%arg0: i32) -> (i32, i32) {
    %c0_i32 = arith.constant 0 : i32
    %c0_i32_0 = arith.constant 0 : i32
    %c0_i32_1 = arith.constant 0 : i32
    return %c0_i32, %c0_i32_0 : i32, i32
  }
  func.func @transform_8(%arg0: i32) -> (i32, i32) {
    %c0_i32 = arith.constant 0 : i32
    %c0_i32_0 = arith.constant 0 : i32
    %c0_i32_1 = arith.constant 0 : i32
    return %c0_i32, %c0_i32_0 : i32, i32
  }
  func.func @transform_9(%arg0: i32) -> (i32, i32) {
    %c0_i32 = arith.constant 0 : i32
    %c0_i32_0 = arith.constant 0 : i32
    %c0_i32_1 = arith.constant 0 : i32
    return %c0_i32, %c0_i32_0 : i32, i32
  }
  func.func @transform_10(%arg0: i32) -> (i32, i32) {
    %c0_i32 = arith.constant 0 : i32
    %c0_i32_0 = arith.constant 0 : i32
    %c0_i32_1 = arith.constant 0 : i32
    return %c0_i32, %c0_i32_0 : i32, i32
  }
  func.func @transform_11(%arg0: i32) -> (i32, i32) {
    %c0_i32 = arith.constant 0 : i32
    %c0_i32_0 = arith.constant 0 : i32
    %c0_i32_1 = arith.constant 0 : i32
    return %c0_i32, %c0_i32_0 : i32, i32
  }
  func.func @transform_12(%arg0: i32) -> (i32, i32) {
    %c0_i32 = arith.constant 0 : i32
    %c0_i32_0 = arith.constant 0 : i32
    %c0_i32_1 = arith.constant 0 : i32
    return %c0_i32, %c0_i32_0 : i32, i32
  }
  func.func @transform_13(%arg0: i32) -> (i32, i32) {
    %c0_i32 = arith.constant 0 : i32
    %c0_i32_0 = arith.constant 0 : i32
    %c0_i32_1 = arith.constant 0 : i32
    return %c0_i32, %c0_i32_0 : i32, i32
  }
  func.func @transform_14(%arg0: i32) -> (i32, i32) {
    %c0_i32 = arith.constant 0 : i32
    %c0_i32_0 = arith.constant 0 : i32
    %c0_i32_1 = arith.constant 0 : i32
    return %c0_i32, %c0_i32_0 : i32, i32
  }
  func.func @transform_15(%arg0: i32) -> (i32, i32) {
    %c0_i32 = arith.constant 0 : i32
    %c0_i32_0 = arith.constant 0 : i32
    %c0_i32_1 = arith.constant 0 : i32
    return %c0_i32, %c0_i32_0 : i32, i32
  }
  func.func @transform_16(%arg0: i32) -> (i32, i32) {
    %c0_i32 = arith.constant 0 : i32
    %c0_i32_0 = arith.constant 0 : i32
    %c0_i32_1 = arith.constant 0 : i32
    return %c0_i32, %c0_i32_0 : i32, i32
  }
  func.func @transform_17(%arg0: i32) -> (i32, i32) {
    %c0_i32 = arith.constant 0 : i32
    %c0_i32_0 = arith.constant 0 : i32
    %c0_i32_1 = arith.constant 0 : i32
    return %c0_i32, %c0_i32_0 : i32, i32
  }
  func.func @transform_18(%arg0: i32) -> (i32, i32) {
    %c0_i32 = arith.constant 0 : i32
    %c0_i32_0 = arith.constant 0 : i32
    %c0_i32_1 = arith.constant 0 : i32
    return %c0_i32, %c0_i32_0 : i32, i32
  }
  func.func @transform_19(%arg0: i32) -> (i32, i32) {
    %c0_i32 = arith.constant 0 : i32
    %c0_i32_0 = arith.constant 0 : i32
    return %arg0, %c0_i32 : i32, i32
  }
}

</mosaic_0001>

<llo_original>
// kernel: sa_forward.1
$region0: #{sa_forward.1}
  #allocation0 [shape = 'u32[]', space=smem, size = 0x4, offset = 0x4, fixed_abs, tag = 'smem constant byte address 0x4 - core index']
  #allocation1 [shape = 'u32[72,128]{1,0:T(1,128)}', space=vmem, size = 0x9000, scoped, tag = 'internal scratch']
  %s0 = inlined_call_operand.vmem [shape: f32[32,640], index: 0, kind: input, shape index: {}, may-alias: {0,19}]
  %s1 = inlined_call_operand.vmem [shape: f32[8,32], index: 1, kind: input, shape index: {}]
  %s2 = inlined_call_operand.vmem [shape: f32[8,1], index: 2, kind: input, shape index: {}]
  %s3 = inlined_call_operand.vmem [shape: f32[8,8], index: 3, kind: input, shape index: {}]
  %s4 = inlined_call_operand.vmem [shape: f32[8,1], index: 4, kind: input, shape index: {}]
  %s5 = inlined_call_operand.vmem [shape: f32[72,8], index: 5, kind: input, shape index: {}]
  %s6 = inlined_call_operand.vmem [shape: f32[8,1], index: 6, kind: input, shape index: {}]
  %s7 = inlined_call_operand.hbm [shape: f32[5760,128], index: 7, kind: input, shape index: {}]
  %s8 = inlined_call_operand.hbm [shape: f32[128,6272], index: 8, kind: input, shape index: {}]
  %s9 = inlined_call_operand.vmem [shape: f32[72,8], index: 9, kind: input, shape index: {}]
  %s10 = inlined_call_operand.vmem [shape: f32[8,1], index: 10, kind: input, shape index: {}]
  %s11 = inlined_call_operand.vmem [shape: f32[72,8], index: 11, kind: input, shape index: {}]
  %s12 = inlined_call_operand.vmem [shape: f32[8,1], index: 12, kind: input, shape index: {}]
  %s13 = inlined_call_operand.vmem [shape: f32[72,8], index: 13, kind: input, shape index: {}]
  %s14 = inlined_call_operand.vmem [shape: f32[8,1], index: 14, kind: input, shape index: {}]
  %s15 = inlined_call_operand.hbm [shape: f32[1152,128], index: 15, kind: input, shape index: {}]
  %s16 = inlined_call_operand.hbm [shape: f32[128,640], index: 16, kind: input, shape index: {}]
  %s17 = inlined_call_operand.vmem [shape: f32[32,8], index: 17, kind: input, shape index: {}]
  %s18 = inlined_call_operand.vmem [shape: f32[32,1], index: 18, kind: input, shape index: {}]
  %s19 = inlined_call_operand.vmem [shape: f32[32,640], index: 19, kind: output, shape index: {}, may-alias: {0,19}]
  %s20 = sld [smem:[#allocation0]]
  $region102: #{sa_forward.1} parent=0
    _
  %s22 = ssub.s32 1, %s20
  %s23 = scalar_select 0, %s22, %s20
  $region1: #{sa_forward.1} parent=0
    #allocation2 [shape = 'u8[2949120]{0}', space=vmem, size = 0x2d0000, scoped, tag = 'input window, operand 7, single buffered']
    #allocation3 [shape = 's32[1]{0}', space=sflag, size = 0x4, scoped, tag = 'scoped memory for sa_forward.1']
    #allocation4 [shape = 'u8[3211264]{0}', space=vmem, size = 0x310000, scoped, tag = 'input window, operand 8, single buffered']
    #allocation5 [shape = 's32[1]{0}', space=sflag, size = 0x4, scoped, tag = 'scoped memory for sa_forward.1']
    #allocation6 [shape = 'u8[589824]{0}', space=vmem, size = 0x90000, scoped, tag = 'input window, operand 15, single buffered']
    #allocation7 [shape = 'u8[327680]{0}', space=vmem, size = 0x50000, scoped, tag = 'input window, operand 16, single buffered']
    #allocation8 [shape = 's32[1]{0}', space=sflag, size = 0x4, scoped, tag = 'scoped memory for sa_forward.1']
    %24 = vsyncpa [#allocation3], 0
    %25 = vsyncpa [#allocation5], 0
    %26 = vsyncpa [#allocation8], 0
    // Predicated region
    $region2: #{sa_forward.1} parent=1 // pred_check
      _
    $region3: #{sa_forward.1} parent=1 // pred_check_branch
      %28 = sbr.rel (0) target = $region5
    $region4: #{sa_forward.1} parent=1 // pred_region
      _
    $region5: #{sa_forward.1} parent=1 // pred_fallthru
      _
    // Predicated region
    $region6: #{sa_forward.1} parent=1 // pred_check
      _
    $region7: #{sa_forward.1} parent=1 // pred_check_branch
      %30 = sbr.rel (0) target = $region9
    $region8: #{sa_forward.1} parent=1 // pred_region
      _
    $region9: #{sa_forward.1} parent=1 // pred_fallthru
      _
    // Predicated region
    $region10: #{sa_forward.1} parent=1 // pred_check
      _
    $region11: #{sa_forward.1} parent=1 // pred_check_branch
      %32 = sbr.rel (0) target = $region13
    $region12: #{sa_forward.1} parent=1 // pred_region
      _
    $region13: #{sa_forward.1} parent=1 // pred_fallthru
      _
    // Predicated region
    $region14: #{sa_forward.1} parent=1 // pred_check
      _
    $region15: #{sa_forward.1} parent=1 // pred_check_branch
      %34 = sbr.rel (0) target = $region17
    $region16: #{sa_forward.1} parent=1 // pred_region
      _
    $region17: #{sa_forward.1} parent=1 // pred_fallthru
      _
    // Predicated region
    $region18: #{sa_forward.1} parent=1 // pred_check
      _
    $region19: #{sa_forward.1} parent=1 // pred_check_branch
      %36 = sbr.rel (0) target = $region21
    $region20: #{sa_forward.1} parent=1 // pred_region
      _
    $region21: #{sa_forward.1} parent=1 // pred_fallthru
      _
    // Predicated region
    $region22: #{sa_forward.1} parent=1 // pred_check
      _
    $region23: #{sa_forward.1} parent=1 // pred_check_branch
      %38 = sbr.rel (0) target = $region25
    $region24: #{sa_forward.1} parent=1 // pred_region
      _
    $region25: #{sa_forward.1} parent=1 // pred_fallthru
      _
    // Predicated region
    $region26: #{sa_forward.1} parent=1 // pred_check
      _
    $region27: #{sa_forward.1} parent=1 // pred_check_branch
      %40 = sbr.rel (0) target = $region29
    $region28: #{sa_forward.1} parent=1 // pred_region
      _
    $region29: #{sa_forward.1} parent=1 // pred_fallthru
      _
    // Predicated region
    $region30: #{sa_forward.1} parent=1 // pred_check
      _
    $region31: #{sa_forward.1} parent=1 // pred_check_branch
      %42 = sbr.rel (0) target = $region33
    $region32: #{sa_forward.1} parent=1 // pred_region
      %44 = vsyncadd [#allocation3], 0
      %s45 = sshll.u32 %s7, 4
      %s46 = int_to_ptr.hbm [resolvable:$true] %s45
      %s47 = sshll.u32 [#allocation2], 4
      %s48 = int_to_ptr.vmem [resolvable:$true] %s47
      %53 = dma.hbm_to_vmem [thread:$0]  %s46, 92160, %s48, [#allocation3], 128, 128, 8
    $region33: #{sa_forward.1} parent=1 // pred_fallthru
      _
    // Predicated region
    $region34: #{sa_forward.1} parent=1 // pred_check
      _
    $region35: #{sa_forward.1} parent=1 // pred_check_branch
      %55 = sbr.rel (0) target = $region37
    $region36: #{sa_forward.1} parent=1 // pred_region
      %57 = vsyncadd [#allocation5], 0
      %s58 = sshll.u32 %s8, 4
      %s59 = int_to_ptr.hbm [resolvable:$true] %s58
      %s60 = sshll.u32 [#allocation4], 4
      %s61 = int_to_ptr.vmem [resolvable:$true] %s60
      %66 = dma.hbm_to_vmem [thread:$0]  %s59, 100352, %s61, [#allocation5], 6272, 6272, 392
    $region37: #{sa_forward.1} parent=1 // pred_fallthru
      _
    // Predicated region
    $region38: #{sa_forward.1} parent=1 // pred_check
      _
    $region39: #{sa_forward.1} parent=1 // pred_check_branch
      %68 = sbr.rel (0) target = $region41
    $region40: #{sa_forward.1} parent=1 // pred_region
      _
    $region41: #{sa_forward.1} parent=1 // pred_fallthru
      _
    // Predicated region
    $region42: #{sa_forward.1} parent=1 // pred_check
      _
    $region43: #{sa_forward.1} parent=1 // pred_check_branch
      %70 = sbr.rel (0) target = $region45
    $region44: #{sa_forward.1} parent=1 // pred_region
      _
    $region45: #{sa_forward.1} parent=1 // pred_fallthru
      _
    // Predicated region
    $region46: #{sa_forward.1} parent=1 // pred_check
      _
    $region47: #{sa_forward.1} parent=1 // pred_check_branch
      %72 = sbr.rel (0) target = $region49
    $region48: #{sa_forward.1} parent=1 // pred_region
      _
    $region49: #{sa_forward.1} parent=1 // pred_fallthru
      _
    // Predicated region
    $region50: #{sa_forward.1} parent=1 // pred_check
      _
    $region51: #{sa_forward.1} parent=1 // pred_check_branch
      %74 = sbr.rel (0) target = $region53
    $region52: #{sa_forward.1} parent=1 // pred_region
      _
    $region53: #{sa_forward.1} parent=1 // pred_fallthru
      _
    // Predicated region
    $region54: #{sa_forward.1} parent=1 // pred_check
      _
    $region55: #{sa_forward.1} parent=1 // pred_check_branch
      %76 = sbr.rel (0) target = $region57
    $region56: #{sa_forward.1} parent=1 // pred_region
      _
    $region57: #{sa_forward.1} parent=1 // pred_fallthru
      _
    // Predicated region
    $region58: #{sa_forward.1} parent=1 // pred_check
      _
    $region59: #{sa_forward.1} parent=1 // pred_check_branch
      %78 = sbr.rel (0) target = $region61
    $region60: #{sa_forward.1} parent=1 // pred_region
      _
    $region61: #{sa_forward.1} parent=1 // pred_fallthru
      _
    // Predicated region
    $region62: #{sa_forward.1} parent=1 // pred_check
      _
    $region63: #{sa_forward.1} parent=1 // pred_check_branch
      %80 = sbr.rel (0) target = $region65
    $region64: #{sa_forward.1} parent=1 // pred_region
      %82 = vsyncadd [#allocation5], 0
      %s83 = sshll.u32 %s15, 4
      %s84 = int_to_ptr.hbm [resolvable:$true] %s83
      %s85 = sshll.u32 [#allocation6], 4
      %s86 = int_to_ptr.vmem [resolvable:$true] %s85
      %91 = dma.hbm_to_vmem [thread:$0]  %s84, 18432, %s86, [#allocation5], 128, 128, 8
    $region65: #{sa_forward.1} parent=1 // pred_fallthru
      _
    // Predicated region
    $region66: #{sa_forward.1} parent=1 // pred_check
      _
    $region67: #{sa_forward.1} parent=1 // pred_check_branch
      %93 = sbr.rel (0) target = $region69
    $region68: #{sa_forward.1} parent=1 // pred_region
      %95 = vsyncadd [#allocation8], 0
      %s96 = sshll.u32 %s16, 4
      %s97 = int_to_ptr.hbm [resolvable:$true] %s96
      %s98 = sshll.u32 [#allocation7], 4
      %s99 = int_to_ptr.vmem [resolvable:$true] %s98
      %104 = dma.hbm_to_vmem [thread:$0]  %s97, 10240, %s99, [#allocation8], 640, 640, 40
    $region69: #{sa_forward.1} parent=1 // pred_fallthru
      _
    // Predicated region
    $region70: #{sa_forward.1} parent=1 // pred_check
      _
    $region71: #{sa_forward.1} parent=1 // pred_check_branch
      %106 = sbr.rel (0) target = $region73
    $region72: #{sa_forward.1} parent=1 // pred_region
      _
    $region73: #{sa_forward.1} parent=1 // pred_fallthru
      _
    // Predicated region
    $region74: #{sa_forward.1} parent=1 // pred_check
      _
    $region75: #{sa_forward.1} parent=1 // pred_check_branch
      %108 = sbr.rel (0) target = $region77
    $region76: #{sa_forward.1} parent=1 // pred_region
      _
    $region77: #{sa_forward.1} parent=1 // pred_fallthru
      _
    // Predicated region
    $region78: #{sa_forward.1} parent=1 // pred_check
      _
    $region79: #{sa_forward.1} parent=1 // pred_check_branch
      %110 = sbr.rel (0) target = $region81
    $region80: #{sa_forward.1} parent=1 // pred_region
      %112 = dma.done [#allocation3], 92160
    $region81: #{sa_forward.1} parent=1 // pred_fallthru
      _
    // Predicated region
    $region82: #{sa_forward.1} parent=1 // pred_check
      _
    $region83: #{sa_forward.1} parent=1 // pred_check_branch
      %114 = sbr.rel (0) target = $region85
    $region84: #{sa_forward.1} parent=1 // pred_region
      %116 = dma.done [#allocation5], 100352
    $region85: #{sa_forward.1} parent=1 // pred_fallthru
      _
    // Predicated region
    $region86: #{sa_forward.1} parent=1 // pred_check
      _
    $region87: #{sa_forward.1} parent=1 // pred_check_branch
      %118 = sbr.rel (0) target = $region89
    $region88: #{sa_forward.1} parent=1 // pred_region
      %120 = dma.done [#allocation5], 18432
    $region89: #{sa_forward.1} parent=1 // pred_fallthru
      _
    // Predicated region
    $region90: #{sa_forward.1} parent=1 // pred_check
      _
    $region91: #{sa_forward.1} parent=1 // pred_check_branch
      %122 = sbr.rel (0) target = $region93
    $region92: #{sa_forward.1} parent=1 // pred_region
      %124 = dma.done [#allocation8], 10240
    $region93: #{sa_forward.1} parent=1 // pred_fallthru
      _
    %v125 = vld [vmem:[%s0] sm:$0xff]
    %v126 = vld [vmem:[%s0 + $0x8] sm:$0xff]
    %v127 = vld [vmem:[%s0 + $0x10] sm:$0xff]
    %v128 = vld [vmem:[%s0 + $0x18] sm:$0xff]
    %v129 = vld [vmem:[%s0 + $0x20] sm:$0xff]
    %v130 = vld [vmem:[%s0 + $0x28] sm:$0xff]
    %v131 = vld [vmem:[%s0 + $0x30] sm:$0xff]
    %v132 = vld [vmem:[%s0 + $0x38] sm:$0xff]
    %v133 = vld [vmem:[%s0 + $0x40] sm:$0xff]
    %v134 = vld [vmem:[%s0 + $0x48] sm:$0xff]
    %v135 = vld [vmem:[%s0 + $0x50] sm:$0xff]
    %v136 = vld [vmem:[%s0 + $0x58] sm:$0xff]
    %v137 = vld [vmem:[%s0 + $0x60] sm:$0xff]
    %v138 = vld [vmem:[%s0 + $0x68] sm:$0xff]
    %v139 = vld [vmem:[%s0 + $0x70] sm:$0xff]
    %v140 = vld [vmem:[%s0 + $0x78] sm:$0xff]
    %v141 = vld [vmem:[%s0 + $0x80] sm:$0xff]
    %v142 = vld [vmem:[%s0 + $0x88] sm:$0xff]
    %v143 = vld [vmem:[%s0 + $0x90] sm:$0xff]
    %v144 = vld [vmem:[%s0 + $0x98] sm:$0xff]
    %v145 = vld [vmem:[%s1] sm:$0xff]
    %v146 = vld [vmem:[%s2] sm:$0xff]
    %148 = vset.pattern.permute.xlu0 0
    %149 = vperm.xlu0 %148, %v146
    %v150 = vpop.permute.xlu0 %149
    %vm152 = vcmask 261120
    %v154 = vsel %vm152, %v145, 0
    %156 = vmatpush.msra.mxu0 0.0
    %157 = vmatpush.msra.mxu0 0.0
    %158 = vmatpush.msra.mxu0 0.0
    %159 = vmatpush.msra.mxu0 0.0
    %160 = vmatpush.msra.mxu0 0.0
    %161 = vmatpush.msra.mxu0 0.0
    %162 = vmatpush.msra.mxu0 0.0
    %163 = vmatpush.msra.mxu0 0.0
    %164 = vmatpush.msra.mxu0 0.0
    %165 = vmatpush.msra.mxu0 0.0
    %166 = vmatpush.msra.mxu0 0.0
    %167 = vmatpush.msra.mxu0 0.0
    %168 = vmatpush.msra.mxu0 %v140
    %169 = vmatpush.msra.mxu0 %v135
    %170 = vmatpush.msra.mxu0 %v130
    %171 = vmatpush.msra.mxu0 %v125
    %172 = vmatmul.f32.gmra.mxu0 %v154
    %v173 = vpop.f32.mrf.mxu0
    %v174 = vadd.f32 %v150, %v173
    %175 = vdwg.mxu0
    %176 = vmatpush.msra.mxu0 0.0
    %177 = vmatpush.msra.mxu0 0.0
    %178 = vmatpush.msra.mxu0 0.0
    %179 = vmatpush.msra.mxu0 0.0
    %180 = vmatpush.msra.mxu0 0.0
    %181 = vmatpush.msra.mxu0 0.0
    %182 = vmatpush.msra.mxu0 0.0
    %183 = vmatpush.msra.mxu0 0.0
    %184 = vmatpush.msra.mxu0 0.0
    %185 = vmatpush.msra.mxu0 0.0
    %186 = vmatpush.msra.mxu0 0.0
    %187 = vmatpush.msra.mxu0 0.0
    %188 = vmatpush.msra.mxu0 %v141
    %189 = vmatpush.msra.mxu0 %v136
    %190 = vmatpush.msra.mxu0 %v131
    %191 = vmatpush.msra.mxu0 %v126
    %192 = vmatmul.f32.gmra.mxu0 %v154
    %v193 = vpop.f32.mrf.mxu0
    %v194 = vadd.f32 %v150, %v193
    %195 = vdwg.mxu0
    %196 = vmatpush.msra.mxu0 0.0
    %197 = vmatpush.msra.mxu0 0.0
    %198 = vmatpush.msra.mxu0 0.0
    %199 = vmatpush.msra.mxu0 0.0
    %200 = vmatpush.msra.mxu0 0.0
    %201 = vmatpush.msra.mxu0 0.0
    %202 = vmatpush.msra.mxu0 0.0
    %203 = vmatpush.msra.mxu0 0.0
    %204 = vmatpush.msra.mxu0 0.0
    %205 = vmatpush.msra.mxu0 0.0
    %206 = vmatpush.msra.mxu0 0.0
    %207 = vmatpush.msra.mxu0 0.0
    %208 = vmatpush.msra.mxu0 %v142
    %209 = vmatpush.msra.mxu0 %v137
    %210 = vmatpush.msra.mxu0 %v132
    %211 = vmatpush.msra.mxu0 %v127
    %212 = vmatmul.f32.gmra.mxu0 %v154
    %v213 = vpop.f32.mrf.mxu0
    %v214 = vadd.f32 %v150, %v213
    %215 = vdwg.mxu0
    %216 = vmatpush.msra.mxu0 0.0
    %217 = vmatpush.msra.mxu0 0.0
    %218 = vmatpush.msra.mxu0 0.0
    %219 = vmatpush.msra.mxu0 0.0
    %220 = vmatpush.msra.mxu0 0.0
    %221 = vmatpush.msra.mxu0 0.0
    %222 = vmatpush.msra.mxu0 0.0
    %223 = vmatpush.msra.mxu0 0.0
    %224 = vmatpush.msra.mxu0 0.0
    %225 = vmatpush.msra.mxu0 0.0
    %226 = vmatpush.msra.mxu0 0.0
    %227 = vmatpush.msra.mxu0 0.0
    %228 = vmatpush.msra.mxu0 %v143
    %229 = vmatpush.msra.mxu0 %v138
    %230 = vmatpush.msra.mxu0 %v133
    %231 = vmatpush.msra.mxu0 %v128
    %232 = vmatmul.f32.gmra.mxu0 %v154
    %v233 = vpop.f32.mrf.mxu0
    %v234 = vadd.f32 %v150, %v233
    %235 = vdwg.mxu0
    %236 = vmatpush.msra.mxu0 0.0
    %237 = vmatpush.msra.mxu0 0.0
    %238 = vmatpush.msra.mxu0 0.0
    %239 = vmatpush.msra.mxu0 0.0
    %240 = vmatpush.msra.mxu0 0.0
    %241 = vmatpush.msra.mxu0 0.0
    %242 = vmatpush.msra.mxu0 0.0
    %243 = vmatpush.msra.mxu0 0.0
    %244 = vmatpush.msra.mxu0 0.0
    %245 = vmatpush.msra.mxu0 0.0
    %246 = vmatpush.msra.mxu0 0.0
    %247 = vmatpush.msra.mxu0 0.0
    %248 = vmatpush.msra.mxu0 %v144
    %249 = vmatpush.msra.mxu0 %v139
    %250 = vmatpush.msra.mxu0 %v134
    %251 = vmatpush.msra.mxu0 %v129
    %252 = vmatmul.f32.gmra.mxu0 %v154
    %v253 = vpop.f32.mrf.mxu0
    %v254 = vadd.f32 %v150, %v253
    %255 = vdwg.mxu0
    %v256 = vld [vmem:[%s3] sm:$0xff]
    %v257 = vld [vmem:[%s4] sm:$0xff]
    %259 = vset.pattern.permute.xlu0 0
    %260 = vperm.xlu0 %259, %v257
    %v261 = vpop.permute.xlu0 %260
    %vm263 = vcmask 64512
    %v265 = vsel %vm263, %v256, 0
    %267 = vmatpush.msra.mxu0 0.0
    %268 = vmatpush.msra.mxu0 0.0
    %269 = vmatpush.msra.mxu0 0.0
    %270 = vmatpush.msra.mxu0 0.0
    %271 = vmatpush.msra.mxu0 0.0
    %272 = vmatpush.msra.mxu0 0.0
    %273 = vmatpush.msra.mxu0 0.0
    %274 = vmatpush.msra.mxu0 0.0
    %275 = vmatpush.msra.mxu0 0.0
    %276 = vmatpush.msra.mxu0 0.0
    %277 = vmatpush.msra.mxu0 0.0
    %278 = vmatpush.msra.mxu0 0.0
    %279 = vmatpush.msra.mxu0 0.0
    %280 = vmatpush.msra.mxu0 0.0
    %281 = vmatpush.msra.mxu0 0.0
    %282 = vmatpush.msra.mxu0 %v174
    %283 = vmatmul.f32.gmra.mxu0 %v265
    %v284 = vpop.f32.mrf.mxu0
    %v285 = vadd.f32 %v261, %v284
    %286 = vdwg.mxu0
    %287 = vmatpush.msra.mxu0 0.0
    %288 = vmatpush.msra.mxu0 0.0
    %289 = vmatpush.msra.mxu0 0.0
    %290 = vmatpush.msra.mxu0 0.0
    %291 = vmatpush.msra.mxu0 0.0
    %292 = vmatpush.msra.mxu0 0.0
    %293 = vmatpush.msra.mxu0 0.0
    %294 = vmatpush.msra.mxu0 0.0
    %295 = vmatpush.msra.mxu0 0.0
    %296 = vmatpush.msra.mxu0 0.0
    %297 = vmatpush.msra.mxu0 0.0
    %298 = vmatpush.msra.mxu0 0.0
    %299 = vmatpush.msra.mxu0 0.0
    %300 = vmatpush.msra.mxu0 0.0
    %301 = vmatpush.msra.mxu0 0.0
    %302 = vmatpush.msra.mxu0 %v194
    %303 = vmatmul.f32.gmra.mxu0 %v265
    %v304 = vpop.f32.mrf.mxu0
    %v305 = vadd.f32 %v261, %v304
    %306 = vdwg.mxu0
    %307 = vmatpush.msra.mxu0 0.0
    %308 = vmatpush.msra.mxu0 0.0
    %309 = vmatpush.msra.mxu0 0.0
    %310 = vmatpush.msra.mxu0 0.0
    %311 = vmatpush.msra.mxu0 0.0
    %312 = vmatpush.msra.mxu0 0.0
    %313 = vmatpush.msra.mxu0 0.0
    %314 = vmatpush.msra.mxu0 0.0
    %315 = vmatpush.msra.mxu0 0.0
    %316 = vmatpush.msra.mxu0 0.0
    %317 = vmatpush.msra.mxu0 0.0
    %318 = vmatpush.msra.mxu0 0.0
    %319 = vmatpush.msra.mxu0 0.0
    %320 = vmatpush.msra.mxu0 0.0
    %321 = vmatpush.msra.mxu0 0.0
    %322 = vmatpush.msra.mxu0 %v214
    %323 = vmatmul.f32.gmra.mxu0 %v265
    %v324 = vpop.f32.mrf.mxu0
    %v325 = vadd.f32 %v261, %v324
    %326 = vdwg.mxu0
    %327 = vmatpush.msra.mxu0 0.0
    %328 = vmatpush.msra.mxu0 0.0
    %329 = vmatpush.msra.mxu0 0.0
    %330 = vmatpush.msra.mxu0 0.0
    %331 = vmatpush.msra.mxu0 0.0
    %332 = vmatpush.msra.mxu0 0.0
    %333 = vmatpush.msra.mxu0 0.0
    %334 = vmatpush.msra.mxu0 0.0
    %335 = vmatpush.msra.mxu0 0.0
    %336 = vmatpush.msra.mxu0 0.0
    %337 = vmatpush.msra.mxu0 0.0
    %338 = vmatpush.msra.mxu0 0.0
    %339 = vmatpush.msra.mxu0 0.0
    %340 = vmatpush.msra.mxu0 0.0
    %341 = vmatpush.msra.mxu0 0.0
    %342 = vmatpush.msra.mxu0 %v234
    %343 = vmatmul.f32.gmra.mxu0 %v265
    %v344 = vpop.f32.mrf.mxu0
    %v345 = vadd.f32 %v261, %v344
    %346 = vdwg.mxu0
    %347 = vmatpush.msra.mxu0 0.0
    %348 = vmatpush.msra.mxu0 0.0
    %349 = vmatpush.msra.mxu0 0.0
    %350 = vmatpush.msra.mxu0 0.0
    %351 = vmatpush.msra.mxu0 0.0
    %352 = vmatpush.msra.mxu0 0.0
    %353 = vmatpush.msra.mxu0 0.0
    %354 = vmatpush.msra.mxu0 0.0
    %355 = vmatpush.msra.mxu0 0.0
    %356 = vmatpush.msra.mxu0 0.0
    %357 = vmatpush.msra.mxu0 0.0
    %358 = vmatpush.msra.mxu0 0.0
    %359 = vmatpush.msra.mxu0 0.0
    %360 = vmatpush.msra.mxu0 0.0
    %361 = vmatpush.msra.mxu0 0.0
    %362 = vmatpush.msra.mxu0 %v254
    %363 = vmatmul.f32.gmra.mxu0 %v265
    %v364 = vpop.f32.mrf.mxu0
    %v365 = vadd.f32 %v261, %v364
    %366 = vdwg.mxu0
    %v367 = vld [vmem:[%s5] sm:$0xff]
    %v368 = vld [vmem:[%s5 + $0x8] sm:$0xff]
    %v369 = vld [vmem:[%s5 + $0x10] sm:$0xff]
    %v370 = vld [vmem:[%s5 + $0x18] sm:$0xff]
    %v371 = vld [vmem:[%s5 + $0x20] sm:$0xff]
    %v372 = vld [vmem:[%s5 + $0x28] sm:$0xff]
    %v373 = vld [vmem:[%s5 + $0x30] sm:$0xff]
    %v374 = vld [vmem:[%s5 + $0x38] sm:$0xff]
    %v375 = vld [vmem:[%s5 + $0x40] sm:$0xff]
    %v377 = vsel %vm263, %v367, 0
    %v380 = vsel %vm263, %v368, 0
    %v383 = vsel %vm263, %v369, 0
    %v386 = vsel %vm263, %v370, 0
    %v389 = vsel %vm263, %v371, 0
    %v392 = vsel %vm263, %v372, 0
    %v395 = vsel %vm263, %v373, 0
    %v398 = vsel %vm263, %v374, 0
    %v401 = vsel %vm263, %v375, 0
    %403 = vmatpush.msra.mxu0 0.0
    %404 = vmatpush.msra.mxu0 0.0
    %405 = vmatpush.msra.mxu0 0.0
    %406 = vmatpush.msra.mxu0 0.0
    %407 = vmatpush.msra.mxu0 0.0
    %408 = vmatpush.msra.mxu0 0.0
    %409 = vmatpush.msra.mxu0 0.0
    %410 = vmatpush.msra.mxu0 0.0
    %411 = vmatpush.msra.mxu0 0.0
    %412 = vmatpush.msra.mxu0 0.0
    %413 = vmatpush.msra.mxu0 0.0
    %414 = vmatpush.msra.mxu0 0.0
    %415 = vmatpush.msra.mxu0 0.0
    %416 = vmatpush.msra.mxu0 0.0
    %417 = vmatpush.msra.mxu0 0.0
    %418 = vmatpush.msra.mxu0 %v174
    %419 = vmatmul.f32.gmra.mxu0 %v377
    %v420 = vpop.f32.mrf.mxu0
    %v421 = vadd.f32 0.0, %v420
    %422 = vmatmul.f32.gmra.mxu0 %v380
    %v423 = vpop.f32.mrf.mxu0
    %v424 = vadd.f32 0.0, %v423
    %425 = vmatmul.f32.gmra.mxu0 %v383
    %v426 = vpop.f32.mrf.mxu0
    %v427 = vadd.f32 0.0, %v426
    %428 = vmatmul.f32.gmra.mxu0 %v386
    %v429 = vpop.f32.mrf.mxu0
    %v430 = vadd.f32 0.0, %v429
    %431 = vmatmul.f32.gmra.mxu0 %v389
    %v432 = vpop.f32.mrf.mxu0
    %v433 = vadd.f32 0.0, %v432
    %434 = vmatmul.f32.gmra.mxu0 %v392
    %v435 = vpop.f32.mrf.mxu0
    %v436 = vadd.f32 0.0, %v435
    %437 = vmatmul.f32.gmra.mxu0 %v395
    %v438 = vpop.f32.mrf.mxu0
    %v439 = vadd.f32 0.0, %v438
    %440 = vmatmul.f32.gmra.mxu0 %v398
    %v441 = vpop.f32.mrf.mxu0
    %v442 = vadd.f32 0.0, %v441
    %443 = vmatmul.f32.gmra.mxu0 %v401
    %v444 = vpop.f32.mrf.mxu0
    %v445 = vadd.f32 0.0, %v444
    %446 = vdwg.mxu0
    %447 = vmatpush.msra.mxu0 0.0
    %448 = vmatpush.msra.mxu0 0.0
    %449 = vmatpush.msra.mxu0 0.0
    %450 = vmatpush.msra.mxu0 0.0
    %451 = vmatpush.msra.mxu0 0.0
    %452 = vmatpush.msra.mxu0 0.0
    %453 = vmatpush.msra.mxu0 0.0
    %454 = vmatpush.msra.mxu0 0.0
    %455 = vmatpush.msra.mxu0 0.0
    %456 = vmatpush.msra.mxu0 0.0
    %457 = vmatpush.msra.mxu0 0.0
    %458 = vmatpush.msra.mxu0 0.0
    %459 = vmatpush.msra.mxu0 0.0
    %460 = vmatpush.msra.mxu0 0.0
    %461 = vmatpush.msra.mxu0 0.0
    %462 = vmatpush.msra.mxu0 %v194
    %463 = vmatmul.f32.gmra.mxu0 %v377
    %v464 = vpop.f32.mrf.mxu0
    %v465 = vadd.f32 0.0, %v464
    %466 = vmatmul.f32.gmra.mxu0 %v380
    %v467 = vpop.f32.mrf.mxu0
    %v468 = vadd.f32 0.0, %v467
    %469 = vmatmul.f32.gmra.mxu0 %v383
    %v470 = vpop.f32.mrf.mxu0
    %v471 = vadd.f32 0.0, %v470
    %472 = vmatmul.f32.gmra.mxu0 %v386
    %v473 = vpop.f32.mrf.mxu0
    %v474 = vadd.f32 0.0, %v473
    %475 = vmatmul.f32.gmra.mxu0 %v389
    %v476 = vpop.f32.mrf.mxu0
    %v477 = vadd.f32 0.0, %v476
    %478 = vmatmul.f32.gmra.mxu0 %v392
    %v479 = vpop.f32.mrf.mxu0
    %v480 = vadd.f32 0.0, %v479
    %481 = vmatmul.f32.gmra.mxu0 %v395
    %v482 = vpop.f32.mrf.mxu0
    %v483 = vadd.f32 0.0, %v482
    %484 = vmatmul.f32.gmra.mxu0 %v398
    %v485 = vpop.f32.mrf.mxu0
    %v486 = vadd.f32 0.0, %v485
    %487 = vmatmul.f32.gmra.mxu0 %v401
    %v488 = vpop.f32.mrf.mxu0
    %v489 = vadd.f32 0.0, %v488
    %490 = vdwg.mxu0
    %491 = vmatpush.msra.mxu0 0.0
    %492 = vmatpush.msra.mxu0 0.0
    %493 = vmatpush.msra.mxu0 0.0
    %494 = vmatpush.msra.mxu0 0.0
    %495 = vmatpush.msra.mxu0 0.0
    %496 = vmatpush.msra.mxu0 0.0
    %497 = vmatpush.msra.mxu0 0.0
    %498 = vmatpush.msra.mxu0 0.0
    %499 = vmatpush.msra.mxu0 0.0
    %500 = vmatpush.msra.mxu0 0.0
    %501 = vmatpush.msra.mxu0 0.0
    %502 = vmatpush.msra.mxu0 0.0
    %503 = vmatpush.msra.mxu0 0.0
    %504 = vmatpush.msra.mxu0 0.0
    %505 = vmatpush.msra.mxu0 0.0
    %506 = vmatpush.msra.mxu0 %v214
    %507 = vmatmul.f32.gmra.mxu0 %v377
    %v508 = vpop.f32.mrf.mxu0
    %v509 = vadd.f32 0.0, %v508
    %510 = vmatmul.f32.gmra.mxu0 %v380
    %v511 = vpop.f32.mrf.mxu0
    %v512 = vadd.f32 0.0, %v511
    %513 = vmatmul.f32.gmra.mxu0 %v383
    %v514 = vpop.f32.mrf.mxu0
    %v515 = vadd.f32 0.0, %v514
    %516 = vmatmul.f32.gmra.mxu0 %v386
    %v517 = vpop.f32.mrf.mxu0
    %v518 = vadd.f32 0.0, %v517
    %519 = vmatmul.f32.gmra.mxu0 %v389
    %v520 = vpop.f32.mrf.mxu0
    %v521 = vadd.f32 0.0, %v520
    %522 = vmatmul.f32.gmra.mxu0 %v392
    %v523 = vpop.f32.mrf.mxu0
    %v524 = vadd.f32 0.0, %v523
    %525 = vmatmul.f32.gmra.mxu0 %v395
    %v526 = vpop.f32.mrf.mxu0
    %v527 = vadd.f32 0.0, %v526
    %528 = vmatmul.f32.gmra.mxu0 %v398
    %v529 = vpop.f32.mrf.mxu0
    %v530 = vadd.f32 0.0, %v529
    %531 = vmatmul.f32.gmra.mxu0 %v401
    %v532 = vpop.f32.mrf.mxu0
    %v533 = vadd.f32 0.0, %v532
    %534 = vdwg.mxu0
    %535 = vmatpush.msra.mxu0 0.0
    %536 = vmatpush.msra.mxu0 0.0
    %537 = vmatpush.msra.mxu0 0.0
    %538 = vmatpush.msra.mxu0 0.0
    %539 = vmatpush.msra.mxu0 0.0
    %540 = vmatpush.msra.mxu0 0.0
    %541 = vmatpush.msra.mxu0 0.0
    %542 = vmatpush.msra.mxu0 0.0
    %543 = vmatpush.msra.mxu0 0.0
    %544 = vmatpush.msra.mxu0 0.0
    %545 = vmatpush.msra.mxu0 0.0
    %546 = vmatpush.msra.mxu0 0.0
    %547 = vmatpush.msra.mxu0 0.0
    %548 = vmatpush.msra.mxu0 0.0
    %549 = vmatpush.msra.mxu0 0.0
    %550 = vmatpush.msra.mxu0 %v234
    %551 = vmatmul.f32.gmra.mxu0 %v377
    %v552 = vpop.f32.mrf.mxu0
    %v553 = vadd.f32 0.0, %v552
    %554 = vmatmul.f32.gmra.mxu0 %v380
    %v555 = vpop.f32.mrf.mxu0
    %v556 = vadd.f32 0.0, %v555
    %557 = vmatmul.f32.gmra.mxu0 %v383
    %v558 = vpop.f32.mrf.mxu0
    %v559 = vadd.f32 0.0, %v558
    %560 = vmatmul.f32.gmra.mxu0 %v386
    %v561 = vpop.f32.mrf.mxu0
    %v562 = vadd.f32 0.0, %v561
    %563 = vmatmul.f32.gmra.mxu0 %v389
    %v564 = vpop.f32.mrf.mxu0
    %v565 = vadd.f32 0.0, %v564
    %566 = vmatmul.f32.gmra.mxu0 %v392
    %v567 = vpop.f32.mrf.mxu0
    %v568 = vadd.f32 0.0, %v567
    %569 = vmatmul.f32.gmra.mxu0 %v395
    %v570 = vpop.f32.mrf.mxu0
    %v571 = vadd.f32 0.0, %v570
    %572 = vmatmul.f32.gmra.mxu0 %v398
    %v573 = vpop.f32.mrf.mxu0
    %v574 = vadd.f32 0.0, %v573
    %575 = vmatmul.f32.gmra.mxu0 %v401
    %v576 = vpop.f32.mrf.mxu0
    %v577 = vadd.f32 0.0, %v576
    %578 = vdwg.mxu0
    %579 = vmatpush.msra.mxu0 0.0
    %580 = vmatpush.msra.mxu0 0.0
    %581 = vmatpush.msra.mxu0 0.0
    %582 = vmatpush.msra.mxu0 0.0
    %583 = vmatpush.msra.mxu0 0.0
    %584 = vmatpush.msra.mxu0 0.0
    %585 = vmatpush.msra.mxu0 0.0
    %586 = vmatpush.msra.mxu0 0.0
    %587 = vmatpush.msra.mxu0 0.0
    %588 = vmatpush.msra.mxu0 0.0
    %589 = vmatpush.msra.mxu0 0.0
    %590 = vmatpush.msra.mxu0 0.0
    %591 = vmatpush.msra.mxu0 0.0
    %592 = vmatpush.msra.mxu0 0.0
    %593 = vmatpush.msra.mxu0 0.0
    %594 = vmatpush.msra.mxu0 %v254
    %595 = vmatmul.f32.gmra.mxu0 %v377
    %v596 = vpop.f32.mrf.mxu0
    %v597 = vadd.f32 0.0, %v596
    %598 = vmatmul.f32.gmra.mxu0 %v380
    %v599 = vpop.f32.mrf.mxu0
    %v600 = vadd.f32 0.0, %v599
    %601 = vmatmul.f32.gmra.mxu0 %v383
    %v602 = vpop.f32.mrf.mxu0
    %v603 = vadd.f32 0.0, %v602
    %604 = vmatmul.f32.gmra.mxu0 %v386
    %v605 = vpop.f32.mrf.mxu0
    %v606 = vadd.f32 0.0, %v605
    %607 = vmatmul.f32.gmra.mxu0 %v389
    %v608 = vpop.f32.mrf.mxu0
    %v609 = vadd.f32 0.0, %v608
    %610 = vmatmul.f32.gmra.mxu0 %v392
    %v611 = vpop.f32.mrf.mxu0
    %v612 = vadd.f32 0.0, %v611
    %613 = vmatmul.f32.gmra.mxu0 %v395
    %v614 = vpop.f32.mrf.mxu0
    %v615 = vadd.f32 0.0, %v614
    %616 = vmatmul.f32.gmra.mxu0 %v398
    %v617 = vpop.f32.mrf.mxu0
    %v618 = vadd.f32 0.0, %v617
    %619 = vmatmul.f32.gmra.mxu0 %v401
    %v620 = vpop.f32.mrf.mxu0
    %v621 = vadd.f32 0.0, %v620
    %622 = vdwg.mxu0
    %v623 = vld [vmem:[#allocation2] sm:$0xff]
    %v624 = vld [vmem:[#allocation2 + $0x8] sm:$0xff]
    %v625 = vld [vmem:[#allocation2 + $0x10] sm:$0xff]
    %v626 = vld [vmem:[#allocation2 + $0x18] sm:$0xff]
    %v627 = vld [vmem:[#allocation2 + $0x20] sm:$0xff]
    %v628 = vld [vmem:[#allocation2 + $0x28] sm:$0xff]
    %v629 = vld [vmem:[#allocation2 + $0x30] sm:$0xff]
    %v630 = vld [vmem:[#allocation2 + $0x38] sm:$0xff]
    %v631 = vld [vmem:[#allocation2 + $0x40] sm:$0xff]
    %v632 = vld [vmem:[#allocation2 + $0x48] sm:$0xff]
    %v633 = vld [vmem:[#allocation2 + $0x50] sm:$0xff]
    %v634 = vld [vmem:[#allocation2 + $0x58] sm:$0xff]
    %v635 = vld [vmem:[#allocation2 + $0x60] sm:$0xff]
    %v636 = vld [vmem:[#allocation2 + $0x68] sm:$0xff]
    %v637 = vld [vmem:[#allocation2 + $0x70] sm:$0xff]
    %v638 = vld [vmem:[#allocation2 + $0x78] sm:$0xff]
    %v639 = vld [vmem:[#allocation2 + $0x80] sm:$0xff]
    %v640 = vld [vmem:[#allocation2 + $0x88] sm:$0xff]
    %v641 = vld [vmem:[#allocation2 + $0x90] sm:$0xff]
    %v642 = vld [vmem:[#allocation2 + $0x98] sm:$0xff]
    %v643 = vld [vmem:[#allocation2 + $0xa0] sm:$0xff]
    %v644 = vld [vmem:[#allocation2 + $0xa8] sm:$0xff]
    %v645 = vld [vmem:[#allocation2 + $0xb0] sm:$0xff]
    %v646 = vld [vmem:[#allocation2 + $0xb8] sm:$0xff]
    %v647 = vld [vmem:[#allocation2 + $0xc0] sm:$0xff]
    %v648 = vld [vmem:[#allocation2 + $0xc8] sm:$0xff]
    %v649 = vld [vmem:[#allocation2 + $0xd0] sm:$0xff]
    %v650 = vld [vmem:[#allocation2 + $0xd8] sm:$0xff]
    %v651 = vld [vmem:[#allocation2 + $0xe0] sm:$0xff]
    %v652 = vld [vmem:[#allocation2 + $0xe8] sm:$0xff]
    %v653 = vld [vmem:[#allocation2 + $0xf0] sm:$0xff]
    %v654 = vld [vmem:[#allocation2 + $0xf8] sm:$0xff]
    %v655 = vld [vmem:[#allocation2 + $0x100] sm:$0xff]
    %v656 = vld [vmem:[#allocation2 + $0x108] sm:$0xff]
    %v657 = vld [vmem:[#allocation2 + $0x110] sm:$0xff]
    %v658 = vld [vmem:[#allocation2 + $0x118] sm:$0xff]
    %v659 = vld [vmem:[#allocation2 + $0x120] sm:$0xff]
    %v660 = vld [vmem:[#allocation2 + $0x128] sm:$0xff]
    %v661 = vld [vmem:[#allocation2 + $0x130] sm:$0xff]
    %v662 = vld [vmem:[#allocation2 + $0x138] sm:$0xff]
    %v663 = vld [vmem:[#allocation2 + $0x140] sm:$0xff]
    %v664 = vld [vmem:[#allocation2 + $0x148] sm:$0xff]
    %v665 = vld [vmem:[#allocation2 + $0x150] sm:$0xff]
    %v666 = vld [vmem:[#allocation2 + $0x158] sm:$0xff]
    %v667 = vld [vmem:[#allocation2 + $0x160] sm:$0xff]
    %v668 = vld [vmem:[#allocation2 + $0x168] sm:$0xff]
    %v669 = vld [vmem:[#allocation2 + $0x170] sm:$0xff]
    %v670 = vld [vmem:[#allocation2 + $0x178] sm:$0xff]
    %v671 = vld [vmem:[#allocation2 + $0x180] sm:$0xff]
    %v672 = vld [vmem:[#allocation2 + $0x188] sm:$0xff]
    %v673 = vld [vmem:[#allocation2 + $0x190] sm:$0xff]
    %v674 = vld [vmem:[#allocation2 + $0x198] sm:$0xff]
    %v675 = vld [vmem:[#allocation2 + $0x1a0] sm:$0xff]
    %v676 = vld [vmem:[#allocation2 + $0x1a8] sm:$0xff]
    %v677 = vld [vmem:[#allocation2 + $0x1b0] sm:$0xff]
    %v678 = vld [vmem:[#allocation2 + $0x1b8] sm:$0xff]
    %v679 = vld [vmem:[#allocation2 + $0x1c0] sm:$0xff]
    %v680 = vld [vmem:[#allocation2 + $0x1c8] sm:$0xff]
    %v681 = vld [vmem:[#allocation2 + $0x1d0] sm:$0xff]
    %v682 = vld [vmem:[#allocation2 + $0x1d8] sm:$0xff]
    %v683 = vld [vmem:[#allocation2 + $0x1e0] sm:$0xff]
    %v684 = vld [vmem:[#allocation2 + $0x1e8] sm:$0xff]
    %v685 = vld [vmem:[#allocation2 + $0x1f0] sm:$0xff]
    %v686 = vld [vmem:[#allocation2 + $0x1f8] sm:$0xff]
    %v687 = vld [vmem:[#allocation2 + $0x200] sm:$0xff]
    %v688 = vld [vmem:[#allocation2 + $0x208] sm:$0xff]
    %v689 = vld [vmem:[#allocation2 + $0x210] sm:$0xff]
    %v690 = vld [vmem:[#allocation2 + $0x218] sm:$0xff]
    %v691 = vld [vmem:[#allocation2 + $0x220] sm:$0xff]
    %v692 = vld [vmem:[#allocation2 + $0x228] sm:$0xff]
    %v693 = vld [vmem:[#allocation2 + $0x230] sm:$0xff]
    %v694 = vld [vmem:[#allocation2 + $0x238] sm:$0xff]
    %v695 = vld [vmem:[#allocation2 + $0x240] sm:$0xff]
    %v696 = vld [vmem:[#allocation2 + $0x248] sm:$0xff]
    %v697 = vld [vmem:[#allocation2 + $0x250] sm:$0xff]
    %v698 = vld [vmem:[#allocation2 + $0x258] sm:$0xff]
    %v699 = vld [vmem:[#allocation2 + $0x260] sm:$0xff]
    %v700 = vld [vmem:[#allocation2 + $0x268] sm:$0xff]
    %v701 = vld [vmem:[#allocation2 + $0x270] sm:$0xff]
    %v702 = vld [vmem:[#allocation2 + $0x278] sm:$0xff]
    %v703 = vld [vmem:[#allocation2 + $0x280] sm:$0xff]
    %v704 = vld [vmem:[#allocation2 + $0x288] sm:$0xff]
    %v705 = vld [vmem:[#allocation2 + $0x290] sm:$0xff]
    %v706 = vld [vmem:[#allocation2 + $0x298] sm:$0xff]
    %v707 = vld [vmem:[#allocation2 + $0x2a0] sm:$0xff]
    %v708 = vld [vmem:[#allocation2 + $0x2a8] sm:$0xff]
    %v709 = vld [vmem:[#allocation2 + $0x2b0] sm:$0xff]
    %v710 = vld [vmem:[#allocation2 + $0x2b8] sm:$0xff]
    %v711 = vld [vmem:[#allocation2 + $0x2c0] sm:$0xff]
    %v712 = vld [vmem:[#allocation2 + $0x2c8] sm:$0xff]
    %v713 = vld [vmem:[#allocation2 + $0x2d0] sm:$0xff]
    %v714 = vld [vmem:[#allocation2 + $0x2d8] sm:$0xff]
    %v715 = vld [vmem:[#allocation2 + $0x2e0] sm:$0xff]
    %v716 = vld [vmem:[#allocation2 + $0x2e8] sm:$0xff]
    %v717 = vld [vmem:[#allocation2 + $0x2f0] sm:$0xff]
    %v718 = vld [vmem:[#allocation2 + $0x2f8] sm:$0xff]
    %v719 = vld [vmem:[#allocation2 + $0x300] sm:$0xff]
    %v720 = vld [vmem:[#allocation2 + $0x308] sm:$0xff]
    %v721 = vld [vmem:[#allocation2 + $0x310] sm:$0xff]
    %v722 = vld [vmem:[#allocation2 + $0x318] sm:$0xff]
    %v723 = vld [vmem:[#allocation2 + $0x320] sm:$0xff]
    %v724 = vld [vmem:[#allocation2 + $0x328] sm:$0xff]
    %v725 = vld [vmem:[#allocation2 + $0x330] sm:$0xff]
    %v726 = vld [vmem:[#allocation2 + $0x338] sm:$0xff]
    %v727 = vld [vmem:[#allocation2 + $0x340] sm:$0xff]
    %v728 = vld [vmem:[#allocation2 + $0x348] sm:$0xff]
    %v729 = vld [vmem:[#allocation2 + $0x350] sm:$0xff]
    %v730 = vld [vmem:[#allocation2 + $0x358] sm:$0xff]
    %v731 = vld [vmem:[#allocation2 + $0x360] sm:$0xff]
    %v732 = vld [vmem:[#allocation2 + $0x368] sm:$0xff]
    %v733 = vld [vmem:[#allocation2 + $0x370] sm:$0xff]
    %v734 = vld [vmem:[#allocation2 + $0x378] sm:$0xff]
    %v735 = vld [vmem:[#allocation2 + $0x380] sm:$0xff]
    %v736 = vld [vmem:[#allocation2 + $0x388] sm:$0xff]
    %v737 = vld [vmem:[#allocation2 + $0x390] sm:$0xff]
    %v738 = vld [vmem:[#allocation2 + $0x398] sm:$0xff]
    %v739 = vld [vmem:[#allocation2 + $0x3a0] sm:$0xff]
    %v740 = vld [vmem:[#allocation2 + $0x3a8] sm:$0xff]
    %v741 = vld [vmem:[#allocation2 + $0x3b0] sm:$0xff]
    %v742 = vld [vmem:[#allocation2 + $0x3b8] sm:$0xff]
    %v743 = vld [vmem:[#allocation2 + $0x3c0] sm:$0xff]
    %v744 = vld [vmem:[#allocation2 + $0x3c8] sm:$0xff]
    %v745 = vld [vmem:[#allocation2 + $0x3d0] sm:$0xff]
    %v746 = vld [vmem:[#allocation2 + $0x3d8] sm:$0xff]
    %v747 = vld [vmem:[#allocation2 + $0x3e0] sm:$0xff]
    %v748 = vld [vmem:[#allocation2 + $0x3e8] sm:$0xff]
    %v749 = vld [vmem:[#allocation2 + $0x3f0] sm:$0xff]
    %v750 = vld [vmem:[#allocation2 + $0x3f8] sm:$0xff]
    %v751 = vld [vmem:[#allocation2 + $0x400] sm:$0xff]
    %v752 = vld [vmem:[#allocation2 + $0x408] sm:$0xff]
    %v753 = vld [vmem:[#allocation2 + $0x410] sm:$0xff]
    %v754 = vld [vmem:[#allocation2 + $0x418] sm:$0xff]
    %v755 = vld [vmem:[#allocation2 + $0x420] sm:$0xff]
    %v756 = vld [vmem:[#allocation2 + $0x428] sm:$0xff]
    %v757 = vld [vmem:[#allocation2 + $0x430] sm:$0xff]
    %v758 = vld [vmem:[#allocation2 + $0x438] sm:$0xff]
    %v759 = vld [vmem:[#allocation2 + $0x440] sm:$0xff]
    %v760 = vld [vmem:[#allocation2 + $0x448] sm:$0xff]
    %v761 = vld [vmem:[#allocation2 + $0x450] sm:$0xff]
    %v762 = vld [vmem:[#allocation2 + $0x458] sm:$0xff]
    %v763 = vld [vmem:[#allocation2 + $0x460] sm:$0xff]
    %v764 = vld [vmem:[#allocation2 + $0x468] sm:$0xff]
    %v765 = vld [vmem:[#allocation2 + $0x470] sm:$0xff]
    %v766 = vld [vmem:[#allocation2 + $0x478] sm:$0xff]
    %v767 = vld [vmem:[#allocation2 + $0x480] sm:$0xff]
    %v768 = vld [vmem:[#allocation2 + $0x488] sm:$0xff]
    %v769 = vld [vmem:[#allocation2 + $0x490] sm:$0xff]
    %v770 = vld [vmem:[#allocation2 + $0x498] sm:$0xff]
    %v771 = vld [vmem:[#allocation2 + $0x4a0] sm:$0xff]
    %v772 = vld [vmem:[#allocation2 + $0x4a8] sm:$0xff]
    %v773 = vld [vmem:[#allocation2 + $0x4b0] sm:$0xff]
    %v774 = vld [vmem:[#allocation2 + $0x4b8] sm:$0xff]
    %v775 = vld [vmem:[#allocation2 + $0x4c0] sm:$0xff]
    %v776 = vld [vmem:[#allocation2 + $0x4c8] sm:$0xff]
    %v777 = vld [vmem:[#allocation2 + $0x4d0] sm:$0xff]
    %v778 = vld [vmem:[#allocation2 + $0x4d8] sm:$0xff]
    %v779 = vld [vmem:[#allocation2 + $0x4e0] sm:$0xff]
    %v780 = vld [vmem:[#allocation2 + $0x4e8] sm:$0xff]
    %v781 = vld [vmem:[#allocation2 + $0x4f0] sm:$0xff]
    %v782 = vld [vmem:[#allocation2 + $0x4f8] sm:$0xff]
    %v783 = vld [vmem:[#allocation2 + $0x500] sm:$0xff]
    %v784 = vld [vmem:[#allocation2 + $0x508] sm:$0xff]
    %v785 = vld [vmem:[#allocation2 + $0x510] sm:$0xff]
    %v786 = vld [vmem:[#allocation2 + $0x518] sm:$0xff]
    %v787 = vld [vmem:[#allocation2 + $0x520] sm:$0xff]
    %v788 = vld [vmem:[#allocation2 + $0x528] sm:$0xff]
    %v789 = vld [vmem:[#allocation2 + $0x530] sm:$0xff]
    %v790 = vld [vmem:[#allocation2 + $0x538] sm:$0xff]
    %v791 = vld [vmem:[#allocation2 + $0x540] sm:$0xff]
    %v792 = vld [vmem:[#allocation2 + $0x548] sm:$0xff]
    %v793 = vld [vmem:[#allocation2 + $0x550] sm:$0xff]
    %v794 = vld [vmem:[#allocation2 + $0x558] sm:$0xff]
    %v795 = vld [vmem:[#allocation2 + $0x560] sm:$0xff]
    %v796 = vld [vmem:[#allocation2 + $0x568] sm:$0xff]
    %v797 = vld [vmem:[#allocation2 + $0x570] sm:$0xff]
    %v798 = vld [vmem:[#allocation2 + $0x578] sm:$0xff]
    %v799 = vld [vmem:[#allocation2 + $0x580] sm:$0xff]
    %v800 = vld [vmem:[#allocation2 + $0x588] sm:$0xff]
    %v801 = vld [vmem:[#allocation2 + $0x590] sm:$0xff]
    %v802 = vld [vmem:[#allocation2 + $0x598] sm:$0xff]
    %v803 = vld [vmem:[#allocation2 + $0x5a0] sm:$0xff]
    %v804 = vld [vmem:[#allocation2 + $0x5a8] sm:$0xff]
    %v805 = vld [vmem:[#allocation2 + $0x5b0] sm:$0xff]
    %v806 = vld [vmem:[#allocation2 + $0x5b8] sm:$0xff]
    %v807 = vld [vmem:[#allocation2 + $0x5c0] sm:$0xff]
    %v808 = vld [vmem:[#allocation2 + $0x5c8] sm:$0xff]
    %v809 = vld [vmem:[#allocation2 + $0x5d0] sm:$0xff]
    %v810 = vld [vmem:[#allocation2 + $0x5d8] sm:$0xff]
    %v811 = vld [vmem:[#allocation2 + $0x5e0] sm:$0xff]
    %v812 = vld [vmem:[#allocation2 + $0x5e8] sm:$0xff]
    %v813 = vld [vmem:[#allocation2 + $0x5f0] sm:$0xff]
    %v814 = vld [vmem:[#allocation2 + $0x5f8] sm:$0xff]
    %v815 = vld [vmem:[#allocation2 + $0x600] sm:$0xff]
    %v816 = vld [vmem:[#allocation2 + $0x608] sm:$0xff]
    %v817 = vld [vmem:[#allocation2 + $0x610] sm:$0xff]
    %v818 = vld [vmem:[#allocation2 + $0x618] sm:$0xff]
    %v819 = vld [vmem:[#allocation2 + $0x620] sm:$0xff]
    %v820 = vld [vmem:[#allocation2 + $0x628] sm:$0xff]
    %v821 = vld [vmem:[#allocation2 + $0x630] sm:$0xff]
    %v822 = vld [vmem:[#allocation2 + $0x638] sm:$0xff]
    %v823 = vld [vmem:[#allocation2 + $0x640] sm:$0xff]
    %v824 = vld [vmem:[#allocation2 + $0x648] sm:$0xff]
    %v825 = vld [vmem:[#allocation2 + $0x650] sm:$0xff]
    %v826 = vld [vmem:[#allocation2 + $0x658] sm:$0xff]
    %v827 = vld [vmem:[#allocation2 + $0x660] sm:$0xff]
    %v828 = vld [vmem:[#allocation2 + $0x668] sm:$0xff]
    %v829 = vld [vmem:[#allocation2 + $0x670] sm:$0xff]
    %v830 = vld [vmem:[#allocation2 + $0x678] sm:$0xff]
    %v831 = vld [vmem:[#allocation2 + $0x680] sm:$0xff]
    %v832 = vld [vmem:[#allocation2 + $0x688] sm:$0xff]
    %v833 = vld [vmem:[#allocation2 + $0x690] sm:$0xff]
    %v834 = vld [vmem:[#allocation2 + $0x698] sm:$0xff]
    %v835 = vld [vmem:[#allocation2 + $0x6a0] sm:$0xff]
    %v836 = vld [vmem:[#allocation2 + $0x6a8] sm:$0xff]
    %v837 = vld [vmem:[#allocation2 + $0x6b0] sm:$0xff]
    %v838 = vld [vmem:[#allocation2 + $0x6b8] sm:$0xff]
    %v839 = vld [vmem:[#allocation2 + $0x6c0] sm:$0xff]
    %v840 = vld [vmem:[#allocation2 + $0x6c8] sm:$0xff]
    %v841 = vld [vmem:[#allocation2 + $0x6d0] sm:$0xff]
    %v842 = vld [vmem:[#allocation2 + $0x6d8] sm:$0xff]
    %v843 = vld [vmem:[#allocation2 + $0x6e0] sm:$0xff]
    %v844 = vld [vmem:[#allocation2 + $0x6e8] sm:$0xff]
    %v845 = vld [vmem:[#allocation2 + $0x6f0] sm:$0xff]
    %v846 = vld [vmem:[#allocation2 + $0x6f8] sm:$0xff]
    %v847 = vld [vmem:[#allocation2 + $0x700] sm:$0xff]
    %v848 = vld [vmem:[#allocation2 + $0x708] sm:$0xff]
    %v849 = vld [vmem:[#allocation2 + $0x710] sm:$0xff]
    %v850 = vld [vmem:[#allocation2 + $0x718] sm:$0xff]
    %v851 = vld [vmem:[#allocation2 + $0x720] sm:$0xff]
    %v852 = vld [vmem:[#allocation2 + $0x728] sm:$0xff]
    %v853 = vld [vmem:[#allocation2 + $0x730] sm:$0xff]
    %v854 = vld [vmem:[#allocation2 + $0x738] sm:$0xff]
    %v855 = vld [vmem:[#allocation2 + $0x740] sm:$0xff]
    %v856 = vld [vmem:[#allocation2 + $0x748] sm:$0xff]
    %v857 = vld [vmem:[#allocation2 + $0x750] sm:$0xff]
    %v858 = vld [vmem:[#allocation2 + $0x758] sm:$0xff]
    %v859 = vld [vmem:[#allocation2 + $0x760] sm:$0xff]
    %v860 = vld [vmem:[#allocation2 + $0x768] sm:$0xff]
    %v861 = vld [vmem:[#allocation2 + $0x770] sm:$0xff]
    %v862 = vld [vmem:[#allocation2 + $0x778] sm:$0xff]
    %v863 = vld [vmem:[#allocation2 + $0x780] sm:$0xff]
    %v864 = vld [vmem:[#allocation2 + $0x788] sm:$0xff]
    %v865 = vld [vmem:[#allocation2 + $0x790] sm:$0xff]
    %v866 = vld [vmem:[#allocation2 + $0x798] sm:$0xff]
    %v867 = vld [vmem:[#allocation2 + $0x7a0] sm:$0xff]
    %v868 = vld [vmem:[#allocation2 + $0x7a8] sm:$0xff]
    %v869 = vld [vmem:[#allocation2 + $0x7b0] sm:$0xff]
    %v870 = vld [vmem:[#allocation2 + $0x7b8] sm:$0xff]
    %v871 = vld [vmem:[#allocation2 + $0x7c0] sm:$0xff]
    %v872 = vld [vmem:[#allocation2 + $0x7c8] sm:$0xff]
    %v873 = vld [vmem:[#allocation2 + $0x7d0] sm:$0xff]
    %v874 = vld [vmem:[#allocation2 + $0x7d8] sm:$0xff]
    %v875 = vld [vmem:[#allocation2 + $0x7e0] sm:$0xff]
    %v876 = vld [vmem:[#allocation2 + $0x7e8] sm:$0xff]
    %v877 = vld [vmem:[#allocation2 + $0x7f0] sm:$0xff]
    %v878 = vld [vmem:[#allocation2 + $0x7f8] sm:$0xff]
    %v879 = vld [vmem:[#allocation2 + $0x800] sm:$0xff]
    %v880 = vld [vmem:[#allocation2 + $0x808] sm:$0xff]
    %v881 = vld [vmem:[#allocation2 + $0x810] sm:$0xff]
    %v882 = vld [vmem:[#allocation2 + $0x818] sm:$0xff]
    %v883 = vld [vmem:[#allocation2 + $0x820] sm:$0xff]
    %v884 = vld [vmem:[#allocation2 + $0x828] sm:$0xff]
    %v885 = vld [vmem:[#allocation2 + $0x830] sm:$0xff]
    %v886 = vld [vmem:[#allocation2 + $0x838] sm:$0xff]
    %v887 = vld [vmem:[#allocation2 + $0x840] sm:$0xff]
    %v888 = vld [vmem:[#allocation2 + $0x848] sm:$0xff]
    %v889 = vld [vmem:[#allocation2 + $0x850] sm:$0xff]
    %v890 = vld [vmem:[#allocation2 + $0x858] sm:$0xff]
    %v891 = vld [vmem:[#allocation2 + $0x860] sm:$0xff]
    %v892 = vld [vmem:[#allocation2 + $0x868] sm:$0xff]
    %v893 = vld [vmem:[#allocation2 + $0x870] sm:$0xff]
    %v894 = vld [vmem:[#allocation2 + $0x878] sm:$0xff]
    %v895 = vld [vmem:[#allocation2 + $0x880] sm:$0xff]
    %v896 = vld [vmem:[#allocation2 + $0x888] sm:$0xff]
    %v897 = vld [vmem:[#allocation2 + $0x890] sm:$0xff]
    %v898 = vld [vmem:[#allocation2 + $0x898] sm:$0xff]
    %v899 = vld [vmem:[#allocation2 + $0x8a0] sm:$0xff]
    %v900 = vld [vmem:[#allocation2 + $0x8a8] sm:$0xff]
    %v901 = vld [vmem:[#allocation2 + $0x8b0] sm:$0xff]
    %v902 = vld [vmem:[#allocation2 + $0x8b8] sm:$0xff]
    %v903 = vld [vmem:[#allocation2 + $0x8c0] sm:$0xff]
    %v904 = vld [vmem:[#allocation2 + $0x8c8] sm:$0xff]
    %v905 = vld [vmem:[#allocation2 + $0x8d0] sm:$0xff]
    %v906 = vld [vmem:[#allocation2 + $0x8d8] sm:$0xff]
    %v907 = vld [vmem:[#allocation2 + $0x8e0] sm:$0xff]
    %v908 = vld [vmem:[#allocation2 + $0x8e8] sm:$0xff]
    %v909 = vld [vmem:[#allocation2 + $0x8f0] sm:$0xff]
    %v910 = vld [vmem:[#allocation2 + $0x8f8] sm:$0xff]
    %v911 = vld [vmem:[#allocation2 + $0x900] sm:$0xff]
    %v912 = vld [vmem:[#allocation2 + $0x908] sm:$0xff]
    %v913 = vld [vmem:[#allocation2 + $0x910] sm:$0xff]
    %v914 = vld [vmem:[#allocation2 + $0x918] sm:$0xff]
    %v915 = vld [vmem:[#allocation2 + $0x920] sm:$0xff]
    %v916 = vld [vmem:[#allocation2 + $0x928] sm:$0xff]
    %v917 = vld [vmem:[#allocation2 + $0x930] sm:$0xff]
    %v918 = vld [vmem:[#allocation2 + $0x938] sm:$0xff]
    %v919 = vld [vmem:[#allocation2 + $0x940] sm:$0xff]
    %v920 = vld [vmem:[#allocation2 + $0x948] sm:$0xff]
    %v921 = vld [vmem:[#allocation2 + $0x950] sm:$0xff]
    %v922 = vld [vmem:[#allocation2 + $0x958] sm:$0xff]
    %v923 = vld [vmem:[#allocation2 + $0x960] sm:$0xff]
    %v924 = vld [vmem:[#allocation2 + $0x968] sm:$0xff]
    %v925 = vld [vmem:[#allocation2 + $0x970] sm:$0xff]
    %v926 = vld [vmem:[#allocation2 + $0x978] sm:$0xff]
    %v927 = vld [vmem:[#allocation2 + $0x980] sm:$0xff]
    %v928 = vld [vmem:[#allocation2 + $0x988] sm:$0xff]
    %v929 = vld [vmem:[#allocation2 + $0x990] sm:$0xff]
    %v930 = vld [vmem:[#allocation2 + $0x998] sm:$0xff]
    %v931 = vld [vmem:[#allocation2 + $0x9a0] sm:$0xff]
    %v932 = vld [vmem:[#allocation2 + $0x9a8] sm:$0xff]
    %v933 = vld [vmem:[#allocation2 + $0x9b0] sm:$0xff]
    %v934 = vld [vmem:[#allocation2 + $0x9b8] sm:$0xff]
    %v935 = vld [vmem:[#allocation2 + $0x9c0] sm:$0xff]
    %v936 = vld [vmem:[#allocation2 + $0x9c8] sm:$0xff]
    %v937 = vld [vmem:[#allocation2 + $0x9d0] sm:$0xff]
    %v938 = vld [vmem:[#allocation2 + $0x9d8] sm:$0xff]
    %v939 = vld [vmem:[#allocation2 + $0x9e0] sm:$0xff]
    %v940 = vld [vmem:[#allocation2 + $0x9e8] sm:$0xff]
    %v941 = vld [vmem:[#allocation2 + $0x9f0] sm:$0xff]
    %v942 = vld [vmem:[#allocation2 + $0x9f8] sm:$0xff]
    %v943 = vld [vmem:[#allocation2 + $0xa00] sm:$0xff]
    %v944 = vld [vmem:[#allocation2 + $0xa08] sm:$0xff]
    %v945 = vld [vmem:[#allocation2 + $0xa10] sm:$0xff]
    %v946 = vld [vmem:[#allocation2 + $0xa18] sm:$0xff]
    %v947 = vld [vmem:[#allocation2 + $0xa20] sm:$0xff]
    %v948 = vld [vmem:[#allocation2 + $0xa28] sm:$0xff]
    %v949 = vld [vmem:[#allocation2 + $0xa30] sm:$0xff]
    %v950 = vld [vmem:[#allocation2 + $0xa38] sm:$0xff]
    %v951 = vld [vmem:[#allocation2 + $0xa40] sm:$0xff]
    %v952 = vld [vmem:[#allocation2 + $0xa48] sm:$0xff]
    %v953 = vld [vmem:[#allocation2 + $0xa50] sm:$0xff]
    %v954 = vld [vmem:[#allocation2 + $0xa58] sm:$0xff]
    %v955 = vld [vmem:[#allocation2 + $0xa60] sm:$0xff]
    %v956 = vld [vmem:[#allocation2 + $0xa68] sm:$0xff]
    %v957 = vld [vmem:[#allocation2 + $0xa70] sm:$0xff]
    %v958 = vld [vmem:[#allocation2 + $0xa78] sm:$0xff]
    %v959 = vld [vmem:[#allocation2 + $0xa80] sm:$0xff]
    %v960 = vld [vmem:[#allocation2 + $0xa88] sm:$0xff]
    %v961 = vld [vmem:[#allocation2 + $0xa90] sm:$0xff]
    %v962 = vld [vmem:[#allocation2 + $0xa98] sm:$0xff]
    %v963 = vld [vmem:[#allocation2 + $0xaa0] sm:$0xff]
    %v964 = vld [vmem:[#allocation2 + $0xaa8] sm:$0xff]
    %v965 = vld [vmem:[#allocation2 + $0xab0] sm:$0xff]
    %v966 = vld [vmem:[#allocation2 + $0xab8] sm:$0xff]
    %v967 = vld [vmem:[#allocation2 + $0xac0] sm:$0xff]
    %v968 = vld [vmem:[#allocation2 + $0xac8] sm:$0xff]
    %v969 = vld [vmem:[#allocation2 + $0xad0] sm:$0xff]
    %v970 = vld [vmem:[#allocation2 + $0xad8] sm:$0xff]
    %v971 = vld [vmem:[#allocation2 + $0xae0] sm:$0xff]
    %v972 = vld [vmem:[#allocation2 + $0xae8] sm:$0xff]
    %v973 = vld [vmem:[#allocation2 + $0xaf0] sm:$0xff]
    %v974 = vld [vmem:[#allocation2 + $0xaf8] sm:$0xff]
    %v975 = vld [vmem:[#allocation2 + $0xb00] sm:$0xff]
    %v976 = vld [vmem:[#allocation2 + $0xb08] sm:$0xff]
    %v977 = vld [vmem:[#allocation2 + $0xb10] sm:$0xff]
    %v978 = vld [vmem:[#allocation2 + $0xb18] sm:$0xff]
    %v979 = vld [vmem:[#allocation2 + $0xb20] sm:$0xff]
    %v980 = vld [vmem:[#allocation2 + $0xb28] sm:$0xff]
    %v981 = vld [vmem:[#allocation2 + $0xb30] sm:$0xff]
    %v982 = vld [vmem:[#allocation2 + $0xb38] sm:$0xff]
    %v983 = vld [vmem:[#allocation2 + $0xb40] sm:$0xff]
    %v984 = vld [vmem:[#allocation2 + $0xb48] sm:$0xff]
    %v985 = vld [vmem:[#allocation2 + $0xb50] sm:$0xff]
    %v986 = vld [vmem:[#allocation2 + $0xb58] sm:$0xff]
    %v987 = vld [vmem:[#allocation2 + $0xb60] sm:$0xff]
    %v988 = vld [vmem:[#allocation2 + $0xb68] sm:$0xff]
    %v989 = vld [vmem:[#allocation2 + $0xb70] sm:$0xff]
    %v990 = vld [vmem:[#allocation2 + $0xb78] sm:$0xff]
    %v991 = vld [vmem:[#allocation2 + $0xb80] sm:$0xff]
    %v992 = vld [vmem:[#allocation2 + $0xb88] sm:$0xff]
    %v993 = vld [vmem:[#allocation2 + $0xb90] sm:$0xff]
    %v994 = vld [vmem:[#allocation2 + $0xb98] sm:$0xff]
    %v995 = vld [vmem:[#allocation2 + $0xba0] sm:$0xff]
    %v996 = vld [vmem:[#allocation2 + $0xba8] sm:$0xff]
    %v997 = vld [vmem:[#allocation2 + $0xbb0] sm:$0xff]
    %v998 = vld [vmem:[#allocation2 + $0xbb8] sm:$0xff]
    %v999 = vld [vmem:[#allocation2 + $0xbc0] sm:$0xff]
    %v1000 = vld [vmem:[#allocation2 + $0xbc8] sm:$0xff]
    %v1001 = vld [vmem:[#allocation2 + $0xbd0] sm:$0xff]
    %v1002 = vld [vmem:[#allocation2 + $0xbd8] sm:$0xff]
    %v1003 = vld [vmem:[#allocation2 + $0xbe0] sm:$0xff]
    %v1004 = vld [vmem:[#allocation2 + $0xbe8] sm:$0xff]
    %v1005 = vld [vmem:[#allocation2 + $0xbf0] sm:$0xff]
    %v1006 = vld [vmem:[#allocation2 + $0xbf8] sm:$0xff]
    %v1007 = vld [vmem:[#allocation2 + $0xc00] sm:$0xff]
    %v1008 = vld [vmem:[#allocation2 + $0xc08] sm:$0xff]
    %v1009 = vld [vmem:[#allocation2 + $0xc10] sm:$0xff]
    %v1010 = vld [vmem:[#allocation2 + $0xc18] sm:$0xff]
    %v1011 = vld [vmem:[#allocation2 + $0xc20] sm:$0xff]
    %v1012 = vld [vmem:[#allocation2 + $0xc28] sm:$0xff]
    %v1013 = vld [vmem:[#allocation2 + $0xc30] sm:$0xff]
    %v1014 = vld [vmem:[#allocation2 + $0xc38] sm:$0xff]
    %v1015 = vld [vmem:[#allocation2 + $0xc40] sm:$0xff]
    %v1016 = vld [vmem:[#allocation2 + $0xc48] sm:$0xff]
    %v1017 = vld [vmem:[#allocation2 + $0xc50] sm:$0xff]
    %v1018 = vld [vmem:[#allocation2 + $0xc58] sm:$0xff]
    %v1019 = vld [vmem:[#allocation2 + $0xc60] sm:$0xff]
    %v1020 = vld [vmem:[#allocation2 + $0xc68] sm:$0xff]
    %v1021 = vld [vmem:[#allocation2 + $0xc70] sm:$0xff]
    %v1022 = vld [vmem:[#allocation2 + $0xc78] sm:$0xff]
    %v1023 = vld [vmem:[#allocation2 + $0xc80] sm:$0xff]
    %v1024 = vld [vmem:[#allocation2 + $0xc88] sm:$0xff]
    %v1025 = vld [vmem:[#allocation2 + $0xc90] sm:$0xff]
    %v1026 = vld [vmem:[#allocation2 + $0xc98] sm:$0xff]
    %v1027 = vld [vmem:[#allocation2 + $0xca0] sm:$0xff]
    %v1028 = vld [vmem:[#allocation2 + $0xca8] sm:$0xff]
    %v1029 = vld [vmem:[#allocation2 + $0xcb0] sm:$0xff]
    %v1030 = vld [vmem:[#allocation2 + $0xcb8] sm:$0xff]
    %v1031 = vld [vmem:[#allocation2 + $0xcc0] sm:$0xff]
    %v1032 = vld [vmem:[#allocation2 + $0xcc8] sm:$0xff]
    %v1033 = vld [vmem:[#allocation2 + $0xcd0] sm:$0xff]
    %v1034 = vld [vmem:[#allocation2 + $0xcd8] sm:$0xff]
    %v1035 = vld [vmem:[#allocation2 + $0xce0] sm:$0xff]
    %v1036 = vld [vmem:[#allocation2 + $0xce8] sm:$0xff]
    %v1037 = vld [vmem:[#allocation2 + $0xcf0] sm:$0xff]
    %v1038 = vld [vmem:[#allocation2 + $0xcf8] sm:$0xff]
    %v1039 = vld [vmem:[#allocation2 + $0xd00] sm:$0xff]
    %v1040 = vld [vmem:[#allocation2 + $0xd08] sm:$0xff]
    %v1041 = vld [vmem:[#allocation2 + $0xd10] sm:$0xff]
    %v1042 = vld [vmem:[#allocation2 + $0xd18] sm:$0xff]
    %v1043 = vld [vmem:[#allocation2 + $0xd20] sm:$0xff]
    %v1044 = vld [vmem:[#allocation2 + $0xd28] sm:$0xff]
    %v1045 = vld [vmem:[#allocation2 + $0xd30] sm:$0xff]
    %v1046 = vld [vmem:[#allocation2 + $0xd38] sm:$0xff]
    %v1047 = vld [vmem:[#allocation2 + $0xd40] sm:$0xff]
    %v1048 = vld [vmem:[#allocation2 + $0xd48] sm:$0xff]
    %v1049 = vld [vmem:[#allocation2 + $0xd50] sm:$0xff]
    %v1050 = vld [vmem:[#allocation2 + $0xd58] sm:$0xff]
    %v1051 = vld [vmem:[#allocation2 + $0xd60] sm:$0xff]
    %v1052 = vld [vmem:[#allocation2 + $0xd68] sm:$0xff]
    %v1053 = vld [vmem:[#allocation2 + $0xd70] sm:$0xff]
    %v1054 = vld [vmem:[#allocation2 + $0xd78] sm:$0xff]
    %v1055 = vld [vmem:[#allocation2 + $0xd80] sm:$0xff]
    %v1056 = vld [vmem:[#allocation2 + $0xd88] sm:$0xff]
    %v1057 = vld [vmem:[#allocation2 + $0xd90] sm:$0xff]
    %v1058 = vld [vmem:[#allocation2 + $0xd98] sm:$0xff]
    %v1059 = vld [vmem:[#allocation2 + $0xda0] sm:$0xff]
    %v1060 = vld [vmem:[#allocation2 + $0xda8] sm:$0xff]
    %v1061 = vld [vmem:[#allocation2 + $0xdb0] sm:$0xff]
    %v1062 = vld [vmem:[#allocation2 + $0xdb8] sm:$0xff]
    %v1063 = vld [vmem:[#allocation2 + $0xdc0] sm:$0xff]
    %v1064 = vld [vmem:[#allocation2 + $0xdc8] sm:$0xff]
    %v1065 = vld [vmem:[#allocation2 + $0xdd0] sm:$0xff]
    %v1066 = vld [vmem:[#allocation2 + $0xdd8] sm:$0xff]
    %v1067 = vld [vmem:[#allocation2 + $0xde0] sm:$0xff]
    %v1068 = vld [vmem:[#allocation2 + $0xde8] sm:$0xff]
    %v1069 = vld [vmem:[#allocation2 + $0xdf0] sm:$0xff]
    %v1070 = vld [vmem:[#allocation2 + $0xdf8] sm:$0xff]
    %v1071 = vld [vmem:[#allocation2 + $0xe00] sm:$0xff]
    %v1072 = vld [vmem:[#allocation2 + $0xe08] sm:$0xff]
    %v1073 = vld [vmem:[#allocation2 + $0xe10] sm:$0xff]
    %v1074 = vld [vmem:[#allocation2 + $0xe18] sm:$0xff]
    %v1075 = vld [vmem:[#allocation2 + $0xe20] sm:$0xff]
    %v1076 = vld [vmem:[#allocation2 + $0xe28] sm:$0xff]
    %v1077 = vld [vmem:[#allocation2 + $0xe30] sm:$0xff]
    %v1078 = vld [vmem:[#allocation2 + $0xe38] sm:$0xff]
    %v1079 = vld [vmem:[#allocation2 + $0xe40] sm:$0xff]
    %v1080 = vld [vmem:[#allocation2 + $0xe48] sm:$0xff]
    %v1081 = vld [vmem:[#allocation2 + $0xe50] sm:$0xff]
    %v1082 = vld [vmem:[#allocation2 + $0xe58] sm:$0xff]
    %v1083 = vld [vmem:[#allocation2 + $0xe60] sm:$0xff]
    %v1084 = vld [vmem:[#allocation2 + $0xe68] sm:$0xff]
    %v1085 = vld [vmem:[#allocation2 + $0xe70] sm:$0xff]
    %v1086 = vld [vmem:[#allocation2 + $0xe78] sm:$0xff]
    %v1087 = vld [vmem:[#allocation2 + $0xe80] sm:$0xff]
    %v1088 = vld [vmem:[#allocation2 + $0xe88] sm:$0xff]
    %v1089 = vld [vmem:[#allocation2 + $0xe90] sm:$0xff]
    %v1090 = vld [vmem:[#allocation2 + $0xe98] sm:$0xff]
    %v1091 = vld [vmem:[#allocation2 + $0xea0] sm:$0xff]
    %v1092 = vld [vmem:[#allocation2 + $0xea8] sm:$0xff]
    %v1093 = vld [vmem:[#allocation2 + $0xeb0] sm:$0xff]
    %v1094 = vld [vmem:[#allocation2 + $0xeb8] sm:$0xff]
    %v1095 = vld [vmem:[#allocation2 + $0xec0] sm:$0xff]
    %v1096 = vld [vmem:[#allocation2 + $0xec8] sm:$0xff]
    %v1097 = vld [vmem:[#allocation2 + $0xed0] sm:$0xff]
    %v1098 = vld [vmem:[#allocation2 + $0xed8] sm:$0xff]
    %v1099 = vld [vmem:[#allocation2 + $0xee0] sm:$0xff]
    %v1100 = vld [vmem:[#allocation2 + $0xee8] sm:$0xff]
    %v1101 = vld [vmem:[#allocation2 + $0xef0] sm:$0xff]
    %v1102 = vld [vmem:[#allocation2 + $0xef8] sm:$0xff]
    %v1103 = vld [vmem:[#allocation2 + $0xf00] sm:$0xff]
    %v1104 = vld [vmem:[#allocation2 + $0xf08] sm:$0xff]
    %v1105 = vld [vmem:[#allocation2 + $0xf10] sm:$0xff]
    %v1106 = vld [vmem:[#allocation2 + $0xf18] sm:$0xff]
    %v1107 = vld [vmem:[#allocation2 + $0xf20] sm:$0xff]
    %v1108 = vld [vmem:[#allocation2 + $0xf28] sm:$0xff]
    %v1109 = vld [vmem:[#allocation2 + $0xf30] sm:$0xff]
    %v1110 = vld [vmem:[#allocation2 + $0xf38] sm:$0xff]
    %v1111 = vld [vmem:[#allocation2 + $0xf40] sm:$0xff]
    %v1112 = vld [vmem:[#allocation2 + $0xf48] sm:$0xff]
    %v1113 = vld [vmem:[#allocation2 + $0xf50] sm:$0xff]
    %v1114 = vld [vmem:[#allocation2 + $0xf58] sm:$0xff]
    %v1115 = vld [vmem:[#allocation2 + $0xf60] sm:$0xff]
    %v1116 = vld [vmem:[#allocation2 + $0xf68] sm:$0xff]
    %v1117 = vld [vmem:[#allocation2 + $0xf70] sm:$0xff]
    %v1118 = vld [vmem:[#allocation2 + $0xf78] sm:$0xff]
    %v1119 = vld [vmem:[#allocation2 + $0xf80] sm:$0xff]
    %v1120 = vld [vmem:[#allocation2 + $0xf88] sm:$0xff]
    %v1121 = vld [vmem:[#allocation2 + $0xf90] sm:$0xff]
    %v1122 = vld [vmem:[#allocation2 + $0xf98] sm:$0xff]
    %v1123 = vld [vmem:[#allocation2 + $0xfa0] sm:$0xff]
    %v1124 = vld [vmem:[#allocation2 + $0xfa8] sm:$0xff]
    %v1125 = vld [vmem:[#allocation2 + $0xfb0] sm:$0xff]
    %v1126 = vld [vmem:[#allocation2 + $0xfb8] sm:$0xff]
    %v1127 = vld [vmem:[#allocation2 + $0xfc0] sm:$0xff]
    %v1128 = vld [vmem:[#allocation2 + $0xfc8] sm:$0xff]
    %v1129 = vld [vmem:[#allocation2 + $0xfd0] sm:$0xff]
    %v1130 = vld [vmem:[#allocation2 + $0xfd8] sm:$0xff]
    %v1131 = vld [vmem:[#allocation2 + $0xfe0] sm:$0xff]
    %v1132 = vld [vmem:[#allocation2 + $0xfe8] sm:$0xff]
    %v1133 = vld [vmem:[#allocation2 + $0xff0] sm:$0xff]
    %v1134 = vld [vmem:[#allocation2 + $0xff8] sm:$0xff]
    %v1135 = vld [vmem:[#allocation2 + $0x1000] sm:$0xff]
    %v1136 = vld [vmem:[#allocation2 + $0x1008] sm:$0xff]
    %v1137 = vld [vmem:[#allocation2 + $0x1010] sm:$0xff]
    %v1138 = vld [vmem:[#allocation2 + $0x1018] sm:$0xff]
    %v1139 = vld [vmem:[#allocation2 + $0x1020] sm:$0xff]
    %v1140 = vld [vmem:[#allocation2 + $0x1028] sm:$0xff]
    %v1141 = vld [vmem:[#allocation2 + $0x1030] sm:$0xff]
    %v1142 = vld [vmem:[#allocation2 + $0x1038] sm:$0xff]
    %v1143 = vld [vmem:[#allocation2 + $0x1040] sm:$0xff]
    %v1144 = vld [vmem:[#allocation2 + $0x1048] sm:$0xff]
    %v1145 = vld [vmem:[#allocation2 + $0x1050] sm:$0xff]
    %v1146 = vld [vmem:[#allocation2 + $0x1058] sm:$0xff]
    %v1147 = vld [vmem:[#allocation2 + $0x1060] sm:$0xff]
    %v1148 = vld [vmem:[#allocation2 + $0x1068] sm:$0xff]
    %v1149 = vld [vmem:[#allocation2 + $0x1070] sm:$0xff]
    %v1150 = vld [vmem:[#allocation2 + $0x1078] sm:$0xff]
    %v1151 = vld [vmem:[#allocation2 + $0x1080] sm:$0xff]
    %v1152 = vld [vmem:[#allocation2 + $0x1088] sm:$0xff]
    %v1153 = vld [vmem:[#allocation2 + $0x1090] sm:$0xff]
    %v1154 = vld [vmem:[#allocation2 + $0x1098] sm:$0xff]
    %v1155 = vld [vmem:[#allocation2 + $0x10a0] sm:$0xff]
    %v1156 = vld [vmem:[#allocation2 + $0x10a8] sm:$0xff]
    %v1157 = vld [vmem:[#allocation2 + $0x10b0] sm:$0xff]
    %v1158 = vld [vmem:[#allocation2 + $0x10b8] sm:$0xff]
    %v1159 = vld [vmem:[#allocation2 + $0x10c0] sm:$0xff]
    %v1160 = vld [vmem:[#allocation2 + $0x10c8] sm:$0xff]
    %v1161 = vld [vmem:[#allocation2 + $0x10d0] sm:$0xff]
    %v1162 = vld [vmem:[#allocation2 + $0x10d8] sm:$0xff]
    %v1163 = vld [vmem:[#allocation2 + $0x10e0] sm:$0xff]
    %v1164 = vld [vmem:[#allocation2 + $0x10e8] sm:$0xff]
    %v1165 = vld [vmem:[#allocation2 + $0x10f0] sm:$0xff]
    %v1166 = vld [vmem:[#allocation2 + $0x10f8] sm:$0xff]
    %v1167 = vld [vmem:[#allocation2 + $0x1100] sm:$0xff]
    %v1168 = vld [vmem:[#allocation2 + $0x1108] sm:$0xff]
    %v1169 = vld [vmem:[#allocation2 + $0x1110] sm:$0xff]
    %v1170 = vld [vmem:[#allocation2 + $0x1118] sm:$0xff]
    %v1171 = vld [vmem:[#allocation2 + $0x1120] sm:$0xff]
    %v1172 = vld [vmem:[#allocation2 + $0x1128] sm:$0xff]
    %v1173 = vld [vmem:[#allocation2 + $0x1130] sm:$0xff]
    %v1174 = vld [vmem:[#allocation2 + $0x1138] sm:$0xff]
    %v1175 = vld [vmem:[#allocation2 + $0x1140] sm:$0xff]
    %v1176 = vld [vmem:[#allocation2 + $0x1148] sm:$0xff]
    %v1177 = vld [vmem:[#allocation2 + $0x1150] sm:$0xff]
    %v1178 = vld [vmem:[#allocation2 + $0x1158] sm:$0xff]
    %v1179 = vld [vmem:[#allocation2 + $0x1160] sm:$0xff]
    %v1180 = vld [vmem:[#allocation2 + $0x1168] sm:$0xff]
    %v1181 = vld [vmem:[#allocation2 + $0x1170] sm:$0xff]
    %v1182 = vld [vmem:[#allocation2 + $0x1178] sm:$0xff]
    %v1183 = vld [vmem:[#allocation2 + $0x1180] sm:$0xff]
    %v1184 = vld [vmem:[#allocation2 + $0x1188] sm:$0xff]
    %v1185 = vld [vmem:[#allocation2 + $0x1190] sm:$0xff]
    %v1186 = vld [vmem:[#allocation2 + $0x1198] sm:$0xff]
    %v1187 = vld [vmem:[#allocation2 + $0x11a0] sm:$0xff]
    %v1188 = vld [vmem:[#allocation2 + $0x11a8] sm:$0xff]
    %v1189 = vld [vmem:[#allocation2 + $0x11b0] sm:$0xff]
    %v1190 = vld [vmem:[#allocation2 + $0x11b8] sm:$0xff]
    %v1191 = vld [vmem:[#allocation2 + $0x11c0] sm:$0xff]
    %v1192 = vld [vmem:[#allocation2 + $0x11c8] sm:$0xff]
    %v1193 = vld [vmem:[#allocation2 + $0x11d0] sm:$0xff]
    %v1194 = vld [vmem:[#allocation2 + $0x11d8] sm:$0xff]
    %v1195 = vld [vmem:[#allocation2 + $0x11e0] sm:$0xff]
    %v1196 = vld [vmem:[#allocation2 + $0x11e8] sm:$0xff]
    %v1197 = vld [vmem:[#allocation2 + $0x11f0] sm:$0xff]
    %v1198 = vld [vmem:[#allocation2 + $0x11f8] sm:$0xff]
    %v1199 = vld [vmem:[#allocation2 + $0x1200] sm:$0xff]
    %v1200 = vld [vmem:[#allocation2 + $0x1208] sm:$0xff]
    %v1201 = vld [vmem:[#allocation2 + $0x1210] sm:$0xff]
    %v1202 = vld [vmem:[#allocation2 + $0x1218] sm:$0xff]
    %v1203 = vld [vmem:[#allocation2 + $0x1220] sm:$0xff]
    %v1204 = vld [vmem:[#allocation2 + $0x1228] sm:$0xff]
    %v1205 = vld [vmem:[#allocation2 + $0x1230] sm:$0xff]
    %v1206 = vld [vmem:[#allocation2 + $0x1238] sm:$0xff]
    %v1207 = vld [vmem:[#allocation2 + $0x1240] sm:$0xff]
    %v1208 = vld [vmem:[#allocation2 + $0x1248] sm:$0xff]
    %v1209 = vld [vmem:[#allocation2 + $0x1250] sm:$0xff]
    %v1210 = vld [vmem:[#allocation2 + $0x1258] sm:$0xff]
    %v1211 = vld [vmem:[#allocation2 + $0x1260] sm:$0xff]
    %v1212 = vld [vmem:[#allocation2 + $0x1268] sm:$0xff]
    %v1213 = vld [vmem:[#allocation2 + $0x1270] sm:$0xff]
    %v1214 = vld [vmem:[#allocation2 + $0x1278] sm:$0xff]
    %v1215 = vld [vmem:[#allocation2 + $0x1280] sm:$0xff]
    %v1216 = vld [vmem:[#allocation2 + $0x1288] sm:$0xff]
    %v1217 = vld [vmem:[#allocation2 + $0x1290] sm:$0xff]
    %v1218 = vld [vmem:[#allocation2 + $0x1298] sm:$0xff]
    %v1219 = vld [vmem:[#allocation2 + $0x12a0] sm:$0xff]
    %v1220 = vld [vmem:[#allocation2 + $0x12a8] sm:$0xff]
    %v1221 = vld [vmem:[#allocation2 + $0x12b0] sm:$0xff]
    %v1222 = vld [vmem:[#allocation2 + $0x12b8] sm:$0xff]
    %v1223 = vld [vmem:[#allocation2 + $0x12c0] sm:$0xff]
    %v1224 = vld [vmem:[#allocation2 + $0x12c8] sm:$0xff]
    %v1225 = vld [vmem:[#allocation2 + $0x12d0] sm:$0xff]
    %v1226 = vld [vmem:[#allocation2 + $0x12d8] sm:$0xff]
    %v1227 = vld [vmem:[#allocation2 + $0x12e0] sm:$0xff]
    %v1228 = vld [vmem:[#allocation2 + $0x12e8] sm:$0xff]
    %v1229 = vld [vmem:[#allocation2 + $0x12f0] sm:$0xff]
    %v1230 = vld [vmem:[#allocation2 + $0x12f8] sm:$0xff]
    %v1231 = vld [vmem:[#allocation2 + $0x1300] sm:$0xff]
    %v1232 = vld [vmem:[#allocation2 + $0x1308] sm:$0xff]
    %v1233 = vld [vmem:[#allocation2 + $0x1310] sm:$0xff]
    %v1234 = vld [vmem:[#allocation2 + $0x1318] sm:$0xff]
    %v1235 = vld [vmem:[#allocation2 + $0x1320] sm:$0xff]
    %v1236 = vld [vmem:[#allocation2 + $0x1328] sm:$0xff]
    %v1237 = vld [vmem:[#allocation2 + $0x1330] sm:$0xff]
    %v1238 = vld [vmem:[#allocation2 + $0x1338] sm:$0xff]
    %v1239 = vld [vmem:[#allocation2 + $0x1340] sm:$0xff]
    %v1240 = vld [vmem:[#allocation2 + $0x1348] sm:$0xff]
    %v1241 = vld [vmem:[#allocation2 + $0x1350] sm:$0xff]
    %v1242 = vld [vmem:[#allocation2 + $0x1358] sm:$0xff]
    %v1243 = vld [vmem:[#allocation2 + $0x1360] sm:$0xff]
    %v1244 = vld [vmem:[#allocation2 + $0x1368] sm:$0xff]
    %v1245 = vld [vmem:[#allocation2 + $0x1370] sm:$0xff]
    %v1246 = vld [vmem:[#allocation2 + $0x1378] sm:$0xff]
    %v1247 = vld [vmem:[#allocation2 + $0x1380] sm:$0xff]
    %v1248 = vld [vmem:[#allocation2 + $0x1388] sm:$0xff]
    %v1249 = vld [vmem:[#allocation2 + $0x1390] sm:$0xff]
    %v1250 = vld [vmem:[#allocation2 + $0x1398] sm:$0xff]
    %v1251 = vld [vmem:[#allocation2 + $0x13a0] sm:$0xff]
    %v1252 = vld [vmem:[#allocation2 + $0x13a8] sm:$0xff]
    %v1253 = vld [vmem:[#allocation2 + $0x13b0] sm:$0xff]
    %v1254 = vld [vmem:[#allocation2 + $0x13b8] sm:$0xff]
    %v1255 = vld [vmem:[#allocation2 + $0x13c0] sm:$0xff]
    %v1256 = vld [vmem:[#allocation2 + $0x13c8] sm:$0xff]
    %v1257 = vld [vmem:[#allocation2 + $0x13d0] sm:$0xff]
    %v1258 = vld [vmem:[#allocation2 + $0x13d8] sm:$0xff]
    %v1259 = vld [vmem:[#allocation2 + $0x13e0] sm:$0xff]
    %v1260 = vld [vmem:[#allocation2 + $0x13e8] sm:$0xff]
    %v1261 = vld [vmem:[#allocation2 + $0x13f0] sm:$0xff]
    %v1262 = vld [vmem:[#allocation2 + $0x13f8] sm:$0xff]
    %v1263 = vld [vmem:[#allocation2 + $0x1400] sm:$0xff]
    %v1264 = vld [vmem:[#allocation2 + $0x1408] sm:$0xff]
    %v1265 = vld [vmem:[#allocation2 + $0x1410] sm:$0xff]
    %v1266 = vld [vmem:[#allocation2 + $0x1418] sm:$0xff]
    %v1267 = vld [vmem:[#allocation2 + $0x1420] sm:$0xff]
    %v1268 = vld [vmem:[#allocation2 + $0x1428] sm:$0xff]
    %v1269 = vld [vmem:[#allocation2 + $0x1430] sm:$0xff]
    %v1270 = vld [vmem:[#allocation2 + $0x1438] sm:$0xff]
    %v1271 = vld [vmem:[#allocation2 + $0x1440] sm:$0xff]
    %v1272 = vld [vmem:[#allocation2 + $0x1448] sm:$0xff]
    %v1273 = vld [vmem:[#allocation2 + $0x1450] sm:$0xff]
    %v1274 = vld [vmem:[#allocation2 + $0x1458] sm:$0xff]
    %v1275 = vld [vmem:[#allocation2 + $0x1460] sm:$0xff]
    %v1276 = vld [vmem:[#allocation2 + $0x1468] sm:$0xff]
    %v1277 = vld [vmem:[#allocation2 + $0x1470] sm:$0xff]
    %v1278 = vld [vmem:[#allocation2 + $0x1478] sm:$0xff]
    %v1279 = vld [vmem:[#allocation2 + $0x1480] sm:$0xff]
    %v1280 = vld [vmem:[#allocation2 + $0x1488] sm:$0xff]
    %v1281 = vld [vmem:[#allocation2 + $0x1490] sm:$0xff]
    %v1282 = vld [vmem:[#allocation2 + $0x1498] sm:$0xff]
    %v1283 = vld [vmem:[#allocation2 + $0x14a0] sm:$0xff]
    %v1284 = vld [vmem:[#allocation2 + $0x14a8] sm:$0xff]
    %v1285 = vld [vmem:[#allocation2 + $0x14b0] sm:$0xff]
    %v1286 = vld [vmem:[#allocation2 + $0x14b8] sm:$0xff]
    %v1287 = vld [vmem:[#allocation2 + $0x14c0] sm:$0xff]
    %v1288 = vld [vmem:[#allocation2 + $0x14c8] sm:$0xff]
    %v1289 = vld [vmem:[#allocation2 + $0x14d0] sm:$0xff]
    %v1290 = vld [vmem:[#allocation2 + $0x14d8] sm:$0xff]
    %v1291 = vld [vmem:[#allocation2 + $0x14e0] sm:$0xff]
    %v1292 = vld [vmem:[#allocation2 + $0x14e8] sm:$0xff]
    %v1293 = vld [vmem:[#allocation2 + $0x14f0] sm:$0xff]
    %v1294 = vld [vmem:[#allocation2 + $0x14f8] sm:$0xff]
    %v1295 = vld [vmem:[#allocation2 + $0x1500] sm:$0xff]
    %v1296 = vld [vmem:[#allocation2 + $0x1508] sm:$0xff]
    %v1297 = vld [vmem:[#allocation2 + $0x1510] sm:$0xff]
    %v1298 = vld [vmem:[#allocation2 + $0x1518] sm:$0xff]
    %v1299 = vld [vmem:[#allocation2 + $0x1520] sm:$0xff]
    %v1300 = vld [vmem:[#allocation2 + $0x1528] sm:$0xff]
    %v1301 = vld [vmem:[#allocation2 + $0x1530] sm:$0xff]
    %v1302 = vld [vmem:[#allocation2 + $0x1538] sm:$0xff]
    %v1303 = vld [vmem:[#allocation2 + $0x1540] sm:$0xff]
    %v1304 = vld [vmem:[#allocation2 + $0x1548] sm:$0xff]
    %v1305 = vld [vmem:[#allocation2 + $0x1550] sm:$0xff]
    %v1306 = vld [vmem:[#allocation2 + $0x1558] sm:$0xff]
    %v1307 = vld [vmem:[#allocation2 + $0x1560] sm:$0xff]
    %v1308 = vld [vmem:[#allocation2 + $0x1568] sm:$0xff]
    %v1309 = vld [vmem:[#allocation2 + $0x1570] sm:$0xff]
    %v1310 = vld [vmem:[#allocation2 + $0x1578] sm:$0xff]
    %v1311 = vld [vmem:[#allocation2 + $0x1580] sm:$0xff]
    %v1312 = vld [vmem:[#allocation2 + $0x1588] sm:$0xff]
    %v1313 = vld [vmem:[#allocation2 + $0x1590] sm:$0xff]
    %v1314 = vld [vmem:[#allocation2 + $0x1598] sm:$0xff]
    %v1315 = vld [vmem:[#allocation2 + $0x15a0] sm:$0xff]
    %v1316 = vld [vmem:[#allocation2 + $0x15a8] sm:$0xff]
    %v1317 = vld [vmem:[#allocation2 + $0x15b0] sm:$0xff]
    %v1318 = vld [vmem:[#allocation2 + $0x15b8] sm:$0xff]
    %v1319 = vld [vmem:[#allocation2 + $0x15c0] sm:$0xff]
    %v1320 = vld [vmem:[#allocation2 + $0x15c8] sm:$0xff]
    %v1321 = vld [vmem:[#allocation2 + $0x15d0] sm:$0xff]
    %v1322 = vld [vmem:[#allocation2 + $0x15d8] sm:$0xff]
    %v1323 = vld [vmem:[#allocation2 + $0x15e0] sm:$0xff]
    %v1324 = vld [vmem:[#allocation2 + $0x15e8] sm:$0xff]
    %v1325 = vld [vmem:[#allocation2 + $0x15f0] sm:$0xff]
    %v1326 = vld [vmem:[#allocation2 + $0x15f8] sm:$0xff]
    %v1327 = vld [vmem:[#allocation2 + $0x1600] sm:$0xff]
    %v1328 = vld [vmem:[#allocation2 + $0x1608] sm:$0xff]
    %v1329 = vld [vmem:[#allocation2 + $0x1610] sm:$0xff]
    %v1330 = vld [vmem:[#allocation2 + $0x1618] sm:$0xff]
    %v1331 = vld [vmem:[#allocation2 + $0x1620] sm:$0xff]
    %v1332 = vld [vmem:[#allocation2 + $0x1628] sm:$0xff]
    %v1333 = vld [vmem:[#allocation2 + $0x1630] sm:$0xff]
    %v1334 = vld [vmem:[#allocation2 + $0x1638] sm:$0xff]
    %v1335 = vld [vmem:[#allocation2 + $0x1640] sm:$0xff]
    %v1336 = vld [vmem:[#allocation2 + $0x1648] sm:$0xff]
    %v1337 = vld [vmem:[#allocation2 + $0x1650] sm:$0xff]
    %v1338 = vld [vmem:[#allocation2 + $0x1658] sm:$0xff]
    %v1339 = vld [vmem:[#allocation2 + $0x1660] sm:$0xff]
    %v1340 = vld [vmem:[#allocation2 + $0x1668] sm:$0xff]
    %v1341 = vld [vmem:[#allocation2 + $0x1670] sm:$0xff]
    %v1342 = vld [vmem:[#allocation2 + $0x1678] sm:$0xff]
    %v1343 = vld [vmem:[%s6] sm:$0xff]
    %1345 = vset.pattern.permute.xlu0 0
    %1346 = vperm.xlu0 %1345, %v1343
    %v1347 = vpop.permute.xlu0 %1346
    %1349 = vmatpush.msra.mxu0 %v638
    %1350 = vmatpush.msra.mxu0 %v637
    %1351 = vmatpush.msra.mxu0 %v636
    %1352 = vmatpush.msra.mxu0 %v635
    %1353 = vmatpush.msra.mxu0 %v634
    %1354 = vmatpush.msra.mxu0 %v633
    %1355 = vmatpush.msra.mxu0 %v632
    %1356 = vmatpush.msra.mxu0 %v631
    %1357 = vmatpush.msra.mxu0 %v630
    %1358 = vmatpush.msra.mxu0 %v629
    %1359 = vmatpush.msra.mxu0 %v628
    %1360 = vmatpush.msra.mxu0 %v627
    %1361 = vmatpush.msra.mxu0 %v626
    %1362 = vmatpush.msra.mxu0 %v625
    %1363 = vmatpush.msra.mxu0 %v624
    %1364 = vmatpush.msra.mxu0 %v623
    %1365 = vmatmul.f32.gmra.mxu0 %v421
    %v1366 = vpop.f32.mrf.mxu0
    %v1367 = vadd.f32 %v1347, %v1366
    %1368 = vdwg.mxu0
    %1369 = vmatpush.msra.mxu0 %v654
    %1370 = vmatpush.msra.mxu0 %v653
    %1371 = vmatpush.msra.mxu0 %v652
    %1372 = vmatpush.msra.mxu0 %v651
    %1373 = vmatpush.msra.mxu0 %v650
    %1374 = vmatpush.msra.mxu0 %v649
    %1375 = vmatpush.msra.mxu0 %v648
    %1376 = vmatpush.msra.mxu0 %v647
    %1377 = vmatpush.msra.mxu0 %v646
    %1378 = vmatpush.msra.mxu0 %v645
    %1379 = vmatpush.msra.mxu0 %v644
    %1380 = vmatpush.msra.mxu0 %v643
    %1381 = vmatpush.msra.mxu0 %v642
    %1382 = vmatpush.msra.mxu0 %v641
    %1383 = vmatpush.msra.mxu0 %v640
    %1384 = vmatpush.msra.mxu0 %v639
    %1385 = vmatmul.f32.gmra.mxu0 %v465
    %v1386 = vpop.f32.mrf.mxu0
    %v1387 = vadd.f32 %v1367, %v1386
    %1388 = vdwg.mxu0
    %1389 = vmatpush.msra.mxu0 %v670
    %1390 = vmatpush.msra.mxu0 %v669
    %1391 = vmatpush.msra.mxu0 %v668
    %1392 = vmatpush.msra.mxu0 %v667
    %1393 = vmatpush.msra.mxu0 %v666
    %1394 = vmatpush.msra.mxu0 %v665
    %1395 = vmatpush.msra.mxu0 %v664
    %1396 = vmatpush.msra.mxu0 %v663
    %1397 = vmatpush.msra.mxu0 %v662
    %1398 = vmatpush.msra.mxu0 %v661
    %1399 = vmatpush.msra.mxu0 %v660
    %1400 = vmatpush.msra.mxu0 %v659
    %1401 = vmatpush.msra.mxu0 %v658
    %1402 = vmatpush.msra.mxu0 %v657
    %1403 = vmatpush.msra.mxu0 %v656
    %1404 = vmatpush.msra.mxu0 %v655
    %1405 = vmatmul.f32.gmra.mxu0 %v509
    %v1406 = vpop.f32.mrf.mxu0
    %v1407 = vadd.f32 %v1387, %v1406
    %1408 = vdwg.mxu0
    %1409 = vmatpush.msra.mxu0 %v686
    %1410 = vmatpush.msra.mxu0 %v685
    %1411 = vmatpush.msra.mxu0 %v684
    %1412 = vmatpush.msra.mxu0 %v683
    %1413 = vmatpush.msra.mxu0 %v682
    %1414 = vmatpush.msra.mxu0 %v681
    %1415 = vmatpush.msra.mxu0 %v680
    %1416 = vmatpush.msra.mxu0 %v679
    %1417 = vmatpush.msra.mxu0 %v678
    %1418 = vmatpush.msra.mxu0 %v677
    %1419 = vmatpush.msra.mxu0 %v676
    %1420 = vmatpush.msra.mxu0 %v675
    %1421 = vmatpush.msra.mxu0 %v674
    %1422 = vmatpush.msra.mxu0 %v673
    %1423 = vmatpush.msra.mxu0 %v672
    %1424 = vmatpush.msra.mxu0 %v671
    %1425 = vmatmul.f32.gmra.mxu0 %v553
    %v1426 = vpop.f32.mrf.mxu0
    %v1427 = vadd.f32 %v1407, %v1426
    %1428 = vdwg.mxu0
    %1429 = vmatpush.msra.mxu0 %v702
    %1430 = vmatpush.msra.mxu0 %v701
    %1431 = vmatpush.msra.mxu0 %v700
    %1432 = vmatpush.msra.mxu0 %v699
    %1433 = vmatpush.msra.mxu0 %v698
    %1434 = vmatpush.msra.mxu0 %v697
    %1435 = vmatpush.msra.mxu0 %v696
    %1436 = vmatpush.msra.mxu0 %v695
    %1437 = vmatpush.msra.mxu0 %v694
    %1438 = vmatpush.msra.mxu0 %v693
    %1439 = vmatpush.msra.mxu0 %v692
    %1440 = vmatpush.msra.mxu0 %v691
    %1441 = vmatpush.msra.mxu0 %v690
    %1442 = vmatpush.msra.mxu0 %v689
    %1443 = vmatpush.msra.mxu0 %v688
    %1444 = vmatpush.msra.mxu0 %v687
    %1445 = vmatmul.f32.gmra.mxu0 %v597
    %v1446 = vpop.f32.mrf.mxu0
    %v1447 = vadd.f32 %v1427, %v1446
    %1448 = vdwg.mxu0
    %1449 = vmatpush.msra.mxu0 %v718
    %1450 = vmatpush.msra.mxu0 %v717
    %1451 = vmatpush.msra.mxu0 %v716
    %1452 = vmatpush.msra.mxu0 %v715
    %1453 = vmatpush.msra.mxu0 %v714
    %1454 = vmatpush.msra.mxu0 %v713
    %1455 = vmatpush.msra.mxu0 %v712
    %1456 = vmatpush.msra.mxu0 %v711
    %1457 = vmatpush.msra.mxu0 %v710
    %1458 = vmatpush.msra.mxu0 %v709
    %1459 = vmatpush.msra.mxu0 %v708
    %1460 = vmatpush.msra.mxu0 %v707
    %1461 = vmatpush.msra.mxu0 %v706
    %1462 = vmatpush.msra.mxu0 %v705
    %1463 = vmatpush.msra.mxu0 %v704
    %1464 = vmatpush.msra.mxu0 %v703
    %1465 = vmatmul.f32.gmra.mxu0 %v424
    %v1466 = vpop.f32.mrf.mxu0
    %v1467 = vadd.f32 %v1447, %v1466
    %1468 = vdwg.mxu0
    %1469 = vmatpush.msra.mxu0 %v734
    %1470 = vmatpush.msra.mxu0 %v733
    %1471 = vmatpush.msra.mxu0 %v732
    %1472 = vmatpush.msra.mxu0 %v731
    %1473 = vmatpush.msra.mxu0 %v730
    %1474 = vmatpush.msra.mxu0 %v729
    %1475 = vmatpush.msra.mxu0 %v728
    %1476 = vmatpush.msra.mxu0 %v727
    %1477 = vmatpush.msra.mxu0 %v726
    %1478 = vmatpush.msra.mxu0 %v725
    %1479 = vmatpush.msra.mxu0 %v724
    %1480 = vmatpush.msra.mxu0 %v723
    %1481 = vmatpush.msra.mxu0 %v722
    %1482 = vmatpush.msra.mxu0 %v721
    %1483 = vmatpush.msra.mxu0 %v720
    %1484 = vmatpush.msra.mxu0 %v719
    %1485 = vmatmul.f32.gmra.mxu0 %v468
    %v1486 = vpop.f32.mrf.mxu0
    %v1487 = vadd.f32 %v1467, %v1486
    %1488 = vdwg.mxu0
    %1489 = vmatpush.msra.mxu0 %v750
    %1490 = vmatpush.msra.mxu0 %v749
    %1491 = vmatpush.msra.mxu0 %v748
    %1492 = vmatpush.msra.mxu0 %v747
    %1493 = vmatpush.msra.mxu0 %v746
    %1494 = vmatpush.msra.mxu0 %v745
    %1495 = vmatpush.msra.mxu0 %v744
    %1496 = vmatpush.msra.mxu0 %v743
    %1497 = vmatpush.msra.mxu0 %v742
    %1498 = vmatpush.msra.mxu0 %v741
    %1499 = vmatpush.msra.mxu0 %v740
    %1500 = vmatpush.msra.mxu0 %v739
    %1501 = vmatpush.msra.mxu0 %v738
    %1502 = vmatpush.msra.mxu0 %v737
    %1503 = vmatpush.msra.mxu0 %v736
    %1504 = vmatpush.msra.mxu0 %v735
    %1505 = vmatmul.f32.gmra.mxu0 %v512
    %v1506 = vpop.f32.mrf.mxu0
    %v1507 = vadd.f32 %v1487, %v1506
    %1508 = vdwg.mxu0
    %1509 = vmatpush.msra.mxu0 %v766
    %1510 = vmatpush.msra.mxu0 %v765
    %1511 = vmatpush.msra.mxu0 %v764
    %1512 = vmatpush.msra.mxu0 %v763
    %1513 = vmatpush.msra.mxu0 %v762
    %1514 = vmatpush.msra.mxu0 %v761
    %1515 = vmatpush.msra.mxu0 %v760
    %1516 = vmatpush.msra.mxu0 %v759
    %1517 = vmatpush.msra.mxu0 %v758
    %1518 = vmatpush.msra.mxu0 %v757
    %1519 = vmatpush.msra.mxu0 %v756
    %1520 = vmatpush.msra.mxu0 %v755
    %1521 = vmatpush.msra.mxu0 %v754
    %1522 = vmatpush.msra.mxu0 %v753
    %1523 = vmatpush.msra.mxu0 %v752
    %1524 = vmatpush.msra.mxu0 %v751
    %1525 = vmatmul.f32.gmra.mxu0 %v556
    %v1526 = vpop.f32.mrf.mxu0
    %v1527 = vadd.f32 %v1507, %v1526
    %1528 = vdwg.mxu0
    %1529 = vmatpush.msra.mxu0 %v782
    %1530 = vmatpush.msra.mxu0 %v781
    %1531 = vmatpush.msra.mxu0 %v780
    %1532 = vmatpush.msra.mxu0 %v779
    %1533 = vmatpush.msra.mxu0 %v778
    %1534 = vmatpush.msra.mxu0 %v777
    %1535 = vmatpush.msra.mxu0 %v776
    %1536 = vmatpush.msra.mxu0 %v775
    %1537 = vmatpush.msra.mxu0 %v774
    %1538 = vmatpush.msra.mxu0 %v773
    %1539 = vmatpush.msra.mxu0 %v772
    %1540 = vmatpush.msra.mxu0 %v771
    %1541 = vmatpush.msra.mxu0 %v770
    %1542 = vmatpush.msra.mxu0 %v769
    %1543 = vmatpush.msra.mxu0 %v768
    %1544 = vmatpush.msra.mxu0 %v767
    %1545 = vmatmul.f32.gmra.mxu0 %v600
    %v1546 = vpop.f32.mrf.mxu0
    %v1547 = vadd.f32 %v1527, %v1546
    %1548 = vdwg.mxu0
    %1549 = vmatpush.msra.mxu0 %v798
    %1550 = vmatpush.msra.mxu0 %v797
    %1551 = vmatpush.msra.mxu0 %v796
    %1552 = vmatpush.msra.mxu0 %v795
    %1553 = vmatpush.msra.mxu0 %v794
    %1554 = vmatpush.msra.mxu0 %v793
    %1555 = vmatpush.msra.mxu0 %v792
    %1556 = vmatpush.msra.mxu0 %v791
    %1557 = vmatpush.msra.mxu0 %v790
    %1558 = vmatpush.msra.mxu0 %v789
    %1559 = vmatpush.msra.mxu0 %v788
    %1560 = vmatpush.msra.mxu0 %v787
    %1561 = vmatpush.msra.mxu0 %v786
    %1562 = vmatpush.msra.mxu0 %v785
    %1563 = vmatpush.msra.mxu0 %v784
    %1564 = vmatpush.msra.mxu0 %v783
    %1565 = vmatmul.f32.gmra.mxu0 %v427
    %v1566 = vpop.f32.mrf.mxu0
    %v1567 = vadd.f32 %v1547, %v1566
    %1568 = vdwg.mxu0
    %1569 = vmatpush.msra.mxu0 %v814
    %1570 = vmatpush.msra.mxu0 %v813
    %1571 = vmatpush.msra.mxu0 %v812
    %1572 = vmatpush.msra.mxu0 %v811
    %1573 = vmatpush.msra.mxu0 %v810
    %1574 = vmatpush.msra.mxu0 %v809
    %1575 = vmatpush.msra.mxu0 %v808
    %1576 = vmatpush.msra.mxu0 %v807
    %1577 = vmatpush.msra.mxu0 %v806
    %1578 = vmatpush.msra.mxu0 %v805
    %1579 = vmatpush.msra.mxu0 %v804
    %1580 = vmatpush.msra.mxu0 %v803
    %1581 = vmatpush.msra.mxu0 %v802
    %1582 = vmatpush.msra.mxu0 %v801
    %1583 = vmatpush.msra.mxu0 %v800
    %1584 = vmatpush.msra.mxu0 %v799
    %1585 = vmatmul.f32.gmra.mxu0 %v471
    %v1586 = vpop.f32.mrf.mxu0
    %v1587 = vadd.f32 %v1567, %v1586
    %1588 = vdwg.mxu0
    %1589 = vmatpush.msra.mxu0 %v830
    %1590 = vmatpush.msra.mxu0 %v829
    %1591 = vmatpush.msra.mxu0 %v828
    %1592 = vmatpush.msra.mxu0 %v827
    %1593 = vmatpush.msra.mxu0 %v826
    %1594 = vmatpush.msra.mxu0 %v825
    %1595 = vmatpush.msra.mxu0 %v824
    %1596 = vmatpush.msra.mxu0 %v823
    %1597 = vmatpush.msra.mxu0 %v822
    %1598 = vmatpush.msra.mxu0 %v821
    %1599 = vmatpush.msra.mxu0 %v820
    %1600 = vmatpush.msra.mxu0 %v819
    %1601 = vmatpush.msra.mxu0 %v818
    %1602 = vmatpush.msra.mxu0 %v817
    %1603 = vmatpush.msra.mxu0 %v816
    %1604 = vmatpush.msra.mxu0 %v815
    %1605 = vmatmul.f32.gmra.mxu0 %v515
    %v1606 = vpop.f32.mrf.mxu0
    %v1607 = vadd.f32 %v1587, %v1606
    %1608 = vdwg.mxu0
    %1609 = vmatpush.msra.mxu0 %v846
    %1610 = vmatpush.msra.mxu0 %v845
    %1611 = vmatpush.msra.mxu0 %v844
    %1612 = vmatpush.msra.mxu0 %v843
    %1613 = vmatpush.msra.mxu0 %v842
    %1614 = vmatpush.msra.mxu0 %v841
    %1615 = vmatpush.msra.mxu0 %v840
    %1616 = vmatpush.msra.mxu0 %v839
    %1617 = vmatpush.msra.mxu0 %v838
    %1618 = vmatpush.msra.mxu0 %v837
    %1619 = vmatpush.msra.mxu0 %v836
    %1620 = vmatpush.msra.mxu0 %v835
    %1621 = vmatpush.msra.mxu0 %v834
    %1622 = vmatpush.msra.mxu0 %v833
    %1623 = vmatpush.msra.mxu0 %v832
    %1624 = vmatpush.msra.mxu0 %v831
    %1625 = vmatmul.f32.gmra.mxu0 %v559
    %v1626 = vpop.f32.mrf.mxu0
    %v1627 = vadd.f32 %v1607, %v1626
    %1628 = vdwg.mxu0
    %1629 = vmatpush.msra.mxu0 %v862
    %1630 = vmatpush.msra.mxu0 %v861
    %1631 = vmatpush.msra.mxu0 %v860
    %1632 = vmatpush.msra.mxu0 %v859
    %1633 = vmatpush.msra.mxu0 %v858
    %1634 = vmatpush.msra.mxu0 %v857
    %1635 = vmatpush.msra.mxu0 %v856
    %1636 = vmatpush.msra.mxu0 %v855
    %1637 = vmatpush.msra.mxu0 %v854
    %1638 = vmatpush.msra.mxu0 %v853
    %1639 = vmatpush.msra.mxu0 %v852
    %1640 = vmatpush.msra.mxu0 %v851
    %1641 = vmatpush.msra.mxu0 %v850
    %1642 = vmatpush.msra.mxu0 %v849
    %1643 = vmatpush.msra.mxu0 %v848
    %1644 = vmatpush.msra.mxu0 %v847
    %1645 = vmatmul.f32.gmra.mxu0 %v603
    %v1646 = vpop.f32.mrf.mxu0
    %v1647 = vadd.f32 %v1627, %v1646
    %1648 = vdwg.mxu0
    %1649 = vmatpush.msra.mxu0 %v878
    %1650 = vmatpush.msra.mxu0 %v877
    %1651 = vmatpush.msra.mxu0 %v876
    %1652 = vmatpush.msra.mxu0 %v875
    %1653 = vmatpush.msra.mxu0 %v874
    %1654 = vmatpush.msra.mxu0 %v873
    %1655 = vmatpush.msra.mxu0 %v872
    %1656 = vmatpush.msra.mxu0 %v871
    %1657 = vmatpush.msra.mxu0 %v870
    %1658 = vmatpush.msra.mxu0 %v869
    %1659 = vmatpush.msra.mxu0 %v868
    %1660 = vmatpush.msra.mxu0 %v867
    %1661 = vmatpush.msra.mxu0 %v866
    %1662 = vmatpush.msra.mxu0 %v865
    %1663 = vmatpush.msra.mxu0 %v864
    %1664 = vmatpush.msra.mxu0 %v863
    %1665 = vmatmul.f32.gmra.mxu0 %v430
    %v1666 = vpop.f32.mrf.mxu0
    %v1667 = vadd.f32 %v1647, %v1666
    %1668 = vdwg.mxu0
    %1669 = vmatpush.msra.mxu0 %v894
    %1670 = vmatpush.msra.mxu0 %v893
    %1671 = vmatpush.msra.mxu0 %v892
    %1672 = vmatpush.msra.mxu0 %v891
    %1673 = vmatpush.msra.mxu0 %v890
    %1674 = vmatpush.msra.mxu0 %v889
    %1675 = vmatpush.msra.mxu0 %v888
    %1676 = vmatpush.msra.mxu0 %v887
    %1677 = vmatpush.msra.mxu0 %v886
    %1678 = vmatpush.msra.mxu0 %v885
    %1679 = vmatpush.msra.mxu0 %v884
    %1680 = vmatpush.msra.mxu0 %v883
    %1681 = vmatpush.msra.mxu0 %v882
    %1682 = vmatpush.msra.mxu0 %v881
    %1683 = vmatpush.msra.mxu0 %v880
    %1684 = vmatpush.msra.mxu0 %v879
    %1685 = vmatmul.f32.gmra.mxu0 %v474
    %v1686 = vpop.f32.mrf.mxu0
    %v1687 = vadd.f32 %v1667, %v1686
    %1688 = vdwg.mxu0
    %1689 = vmatpush.msra.mxu0 %v910
    %1690 = vmatpush.msra.mxu0 %v909
    %1691 = vmatpush.msra.mxu0 %v908
    %1692 = vmatpush.msra.mxu0 %v907
    %1693 = vmatpush.msra.mxu0 %v906
    %1694 = vmatpush.msra.mxu0 %v905
    %1695 = vmatpush.msra.mxu0 %v904
    %1696 = vmatpush.msra.mxu0 %v903
    %1697 = vmatpush.msra.mxu0 %v902
    %1698 = vmatpush.msra.mxu0 %v901
    %1699 = vmatpush.msra.mxu0 %v900
    %1700 = vmatpush.msra.mxu0 %v899
    %1701 = vmatpush.msra.mxu0 %v898
    %1702 = vmatpush.msra.mxu0 %v897
    %1703 = vmatpush.msra.mxu0 %v896
    %1704 = vmatpush.msra.mxu0 %v895
    %1705 = vmatmul.f32.gmra.mxu0 %v518
    %v1706 = vpop.f32.mrf.mxu0
    %v1707 = vadd.f32 %v1687, %v1706
    %1708 = vdwg.mxu0
    %1709 = vmatpush.msra.mxu0 %v926
    %1710 = vmatpush.msra.mxu0 %v925
    %1711 = vmatpush.msra.mxu0 %v924
    %1712 = vmatpush.msra.mxu0 %v923
    %1713 = vmatpush.msra.mxu0 %v922
    %1714 = vmatpush.msra.mxu0 %v921
    %1715 = vmatpush.msra.mxu0 %v920
    %1716 = vmatpush.msra.mxu0 %v919
    %1717 = vmatpush.msra.mxu0 %v918
    %1718 = vmatpush.msra.mxu0 %v917
    %1719 = vmatpush.msra.mxu0 %v916
    %1720 = vmatpush.msra.mxu0 %v915
    %1721 = vmatpush.msra.mxu0 %v914
    %1722 = vmatpush.msra.mxu0 %v913
    %1723 = vmatpush.msra.mxu0 %v912
    %1724 = vmatpush.msra.mxu0 %v911
    %1725 = vmatmul.f32.gmra.mxu0 %v562
    %v1726 = vpop.f32.mrf.mxu0
    %v1727 = vadd.f32 %v1707, %v1726
    %1728 = vdwg.mxu0
    %1729 = vmatpush.msra.mxu0 %v942
    %1730 = vmatpush.msra.mxu0 %v941
    %1731 = vmatpush.msra.mxu0 %v940
    %1732 = vmatpush.msra.mxu0 %v939
    %1733 = vmatpush.msra.mxu0 %v938
    %1734 = vmatpush.msra.mxu0 %v937
    %1735 = vmatpush.msra.mxu0 %v936
    %1736 = vmatpush.msra.mxu0 %v935
    %1737 = vmatpush.msra.mxu0 %v934
    %1738 = vmatpush.msra.mxu0 %v933
    %1739 = vmatpush.msra.mxu0 %v932
    %1740 = vmatpush.msra.mxu0 %v931
    %1741 = vmatpush.msra.mxu0 %v930
    %1742 = vmatpush.msra.mxu0 %v929
    %1743 = vmatpush.msra.mxu0 %v928
    %1744 = vmatpush.msra.mxu0 %v927
    %1745 = vmatmul.f32.gmra.mxu0 %v606
    %v1746 = vpop.f32.mrf.mxu0
    %v1747 = vadd.f32 %v1727, %v1746
    %1748 = vdwg.mxu0
    %1749 = vmatpush.msra.mxu0 %v958
    %1750 = vmatpush.msra.mxu0 %v957
    %1751 = vmatpush.msra.mxu0 %v956
    %1752 = vmatpush.msra.mxu0 %v955
    %1753 = vmatpush.msra.mxu0 %v954
    %1754 = vmatpush.msra.mxu0 %v953
    %1755 = vmatpush.msra.mxu0 %v952
    %1756 = vmatpush.msra.mxu0 %v951
    %1757 = vmatpush.msra.mxu0 %v950
    %1758 = vmatpush.msra.mxu0 %v949
    %1759 = vmatpush.msra.mxu0 %v948
    %1760 = vmatpush.msra.mxu0 %v947
    %1761 = vmatpush.msra.mxu0 %v946
    %1762 = vmatpush.msra.mxu0 %v945
    %1763 = vmatpush.msra.mxu0 %v944
    %1764 = vmatpush.msra.mxu0 %v943
    %1765 = vmatmul.f32.gmra.mxu0 %v433
    %v1766 = vpop.f32.mrf.mxu0
    %v1767 = vadd.f32 %v1747, %v1766
    %1768 = vdwg.mxu0
    %1769 = vmatpush.msra.mxu0 %v974
    %1770 = vmatpush.msra.mxu0 %v973
    %1771 = vmatpush.msra.mxu0 %v972
    %1772 = vmatpush.msra.mxu0 %v971
    %1773 = vmatpush.msra.mxu0 %v970
    %1774 = vmatpush.msra.mxu0 %v969
    %1775 = vmatpush.msra.mxu0 %v968
    %1776 = vmatpush.msra.mxu0 %v967
    %1777 = vmatpush.msra.mxu0 %v966
    %1778 = vmatpush.msra.mxu0 %v965
    %1779 = vmatpush.msra.mxu0 %v964
    %1780 = vmatpush.msra.mxu0 %v963
    %1781 = vmatpush.msra.mxu0 %v962
    %1782 = vmatpush.msra.mxu0 %v961
    %1783 = vmatpush.msra.mxu0 %v960
    %1784 = vmatpush.msra.mxu0 %v959
    %1785 = vmatmul.f32.gmra.mxu0 %v477
    %v1786 = vpop.f32.mrf.mxu0
    %v1787 = vadd.f32 %v1767, %v1786
    %1788 = vdwg.mxu0
    %1789 = vmatpush.msra.mxu0 %v990
    %1790 = vmatpush.msra.mxu0 %v989
    %1791 = vmatpush.msra.mxu0 %v988
    %1792 = vmatpush.msra.mxu0 %v987
    %1793 = vmatpush.msra.mxu0 %v986
    %1794 = vmatpush.msra.mxu0 %v985
    %1795 = vmatpush.msra.mxu0 %v984
    %1796 = vmatpush.msra.mxu0 %v983
    %1797 = vmatpush.msra.mxu0 %v982
    %1798 = vmatpush.msra.mxu0 %v981
    %1799 = vmatpush.msra.mxu0 %v980
    %1800 = vmatpush.msra.mxu0 %v979
    %1801 = vmatpush.msra.mxu0 %v978
    %1802 = vmatpush.msra.mxu0 %v977
    %1803 = vmatpush.msra.mxu0 %v976
    %1804 = vmatpush.msra.mxu0 %v975
    %1805 = vmatmul.f32.gmra.mxu0 %v521
    %v1806 = vpop.f32.mrf.mxu0
    %v1807 = vadd.f32 %v1787, %v1806
    %1808 = vdwg.mxu0
    %1809 = vmatpush.msra.mxu0 %v1006
    %1810 = vmatpush.msra.mxu0 %v1005
    %1811 = vmatpush.msra.mxu0 %v1004
    %1812 = vmatpush.msra.mxu0 %v1003
    %1813 = vmatpush.msra.mxu0 %v1002
    %1814 = vmatpush.msra.mxu0 %v1001
    %1815 = vmatpush.msra.mxu0 %v1000
    %1816 = vmatpush.msra.mxu0 %v999
    %1817 = vmatpush.msra.mxu0 %v998
    %1818 = vmatpush.msra.mxu0 %v997
    %1819 = vmatpush.msra.mxu0 %v996
    %1820 = vmatpush.msra.mxu0 %v995
    %1821 = vmatpush.msra.mxu0 %v994
    %1822 = vmatpush.msra.mxu0 %v993
    %1823 = vmatpush.msra.mxu0 %v992
    %1824 = vmatpush.msra.mxu0 %v991
    %1825 = vmatmul.f32.gmra.mxu0 %v565
    %v1826 = vpop.f32.mrf.mxu0
    %v1827 = vadd.f32 %v1807, %v1826
    %1828 = vdwg.mxu0
    %1829 = vmatpush.msra.mxu0 %v1022
    %1830 = vmatpush.msra.mxu0 %v1021
    %1831 = vmatpush.msra.mxu0 %v1020
    %1832 = vmatpush.msra.mxu0 %v1019
    %1833 = vmatpush.msra.mxu0 %v1018
    %1834 = vmatpush.msra.mxu0 %v1017
    %1835 = vmatpush.msra.mxu0 %v1016
    %1836 = vmatpush.msra.mxu0 %v1015
    %1837 = vmatpush.msra.mxu0 %v1014
    %1838 = vmatpush.msra.mxu0 %v1013
    %1839 = vmatpush.msra.mxu0 %v1012
    %1840 = vmatpush.msra.mxu0 %v1011
    %1841 = vmatpush.msra.mxu0 %v1010
    %1842 = vmatpush.msra.mxu0 %v1009
    %1843 = vmatpush.msra.mxu0 %v1008
    %1844 = vmatpush.msra.mxu0 %v1007
    %1845 = vmatmul.f32.gmra.mxu0 %v609
    %v1846 = vpop.f32.mrf.mxu0
    %v1847 = vadd.f32 %v1827, %v1846
    %1848 = vdwg.mxu0
    %1849 = vmatpush.msra.mxu0 %v1038
    %1850 = vmatpush.msra.mxu0 %v1037
    %1851 = vmatpush.msra.mxu0 %v1036
    %1852 = vmatpush.msra.mxu0 %v1035
    %1853 = vmatpush.msra.mxu0 %v1034
    %1854 = vmatpush.msra.mxu0 %v1033
    %1855 = vmatpush.msra.mxu0 %v1032
    %1856 = vmatpush.msra.mxu0 %v1031
    %1857 = vmatpush.msra.mxu0 %v1030
    %1858 = vmatpush.msra.mxu0 %v1029
    %1859 = vmatpush.msra.mxu0 %v1028
    %1860 = vmatpush.msra.mxu0 %v1027
    %1861 = vmatpush.msra.mxu0 %v1026
    %1862 = vmatpush.msra.mxu0 %v1025
    %1863 = vmatpush.msra.mxu0 %v1024
    %1864 = vmatpush.msra.mxu0 %v1023
    %1865 = vmatmul.f32.gmra.mxu0 %v436
    %v1866 = vpop.f32.mrf.mxu0
    %v1867 = vadd.f32 %v1847, %v1866
    %1868 = vdwg.mxu0
    %1869 = vmatpush.msra.mxu0 %v1054
    %1870 = vmatpush.msra.mxu0 %v1053
    %1871 = vmatpush.msra.mxu0 %v1052
    %1872 = vmatpush.msra.mxu0 %v1051
    %1873 = vmatpush.msra.mxu0 %v1050
    %1874 = vmatpush.msra.mxu0 %v1049
    %1875 = vmatpush.msra.mxu0 %v1048
    %1876 = vmatpush.msra.mxu0 %v1047
    %1877 = vmatpush.msra.mxu0 %v1046
    %1878 = vmatpush.msra.mxu0 %v1045
    %1879 = vmatpush.msra.mxu0 %v1044
    %1880 = vmatpush.msra.mxu0 %v1043
    %1881 = vmatpush.msra.mxu0 %v1042
    %1882 = vmatpush.msra.mxu0 %v1041
    %1883 = vmatpush.msra.mxu0 %v1040
    %1884 = vmatpush.msra.mxu0 %v1039
    %1885 = vmatmul.f32.gmra.mxu0 %v480
    %v1886 = vpop.f32.mrf.mxu0
    %v1887 = vadd.f32 %v1867, %v1886
    %1888 = vdwg.mxu0
    %1889 = vmatpush.msra.mxu0 %v1070
    %1890 = vmatpush.msra.mxu0 %v1069
    %1891 = vmatpush.msra.mxu0 %v1068
    %1892 = vmatpush.msra.mxu0 %v1067
    %1893 = vmatpush.msra.mxu0 %v1066
    %1894 = vmatpush.msra.mxu0 %v1065
    %1895 = vmatpush.msra.mxu0 %v1064
    %1896 = vmatpush.msra.mxu0 %v1063
    %1897 = vmatpush.msra.mxu0 %v1062
    %1898 = vmatpush.msra.mxu0 %v1061
    %1899 = vmatpush.msra.mxu0 %v1060
    %1900 = vmatpush.msra.mxu0 %v1059
    %1901 = vmatpush.msra.mxu0 %v1058
    %1902 = vmatpush.msra.mxu0 %v1057
    %1903 = vmatpush.msra.mxu0 %v1056
    %1904 = vmatpush.msra.mxu0 %v1055
    %1905 = vmatmul.f32.gmra.mxu0 %v524
    %v1906 = vpop.f32.mrf.mxu0
    %v1907 = vadd.f32 %v1887, %v1906
    %1908 = vdwg.mxu0
    %1909 = vmatpush.msra.mxu0 %v1086
    %1910 = vmatpush.msra.mxu0 %v1085
    %1911 = vmatpush.msra.mxu0 %v1084
    %1912 = vmatpush.msra.mxu0 %v1083
    %1913 = vmatpush.msra.mxu0 %v1082
    %1914 = vmatpush.msra.mxu0 %v1081
    %1915 = vmatpush.msra.mxu0 %v1080
    %1916 = vmatpush.msra.mxu0 %v1079
    %1917 = vmatpush.msra.mxu0 %v1078
    %1918 = vmatpush.msra.mxu0 %v1077
    %1919 = vmatpush.msra.mxu0 %v1076
    %1920 = vmatpush.msra.mxu0 %v1075
    %1921 = vmatpush.msra.mxu0 %v1074
    %1922 = vmatpush.msra.mxu0 %v1073
    %1923 = vmatpush.msra.mxu0 %v1072
    %1924 = vmatpush.msra.mxu0 %v1071
    %1925 = vmatmul.f32.gmra.mxu0 %v568
    %v1926 = vpop.f32.mrf.mxu0
    %v1927 = vadd.f32 %v1907, %v1926
    %1928 = vdwg.mxu0
    %1929 = vmatpush.msra.mxu0 %v1102
    %1930 = vmatpush.msra.mxu0 %v1101
    %1931 = vmatpush.msra.mxu0 %v1100
    %1932 = vmatpush.msra.mxu0 %v1099
    %1933 = vmatpush.msra.mxu0 %v1098
    %1934 = vmatpush.msra.mxu0 %v1097
    %1935 = vmatpush.msra.mxu0 %v1096
    %1936 = vmatpush.msra.mxu0 %v1095
    %1937 = vmatpush.msra.mxu0 %v1094
    %1938 = vmatpush.msra.mxu0 %v1093
    %1939 = vmatpush.msra.mxu0 %v1092
    %1940 = vmatpush.msra.mxu0 %v1091
    %1941 = vmatpush.msra.mxu0 %v1090
    %1942 = vmatpush.msra.mxu0 %v1089
    %1943 = vmatpush.msra.mxu0 %v1088
    %1944 = vmatpush.msra.mxu0 %v1087
    %1945 = vmatmul.f32.gmra.mxu0 %v612
    %v1946 = vpop.f32.mrf.mxu0
    %v1947 = vadd.f32 %v1927, %v1946
    %1948 = vdwg.mxu0
    %1949 = vmatpush.msra.mxu0 %v1118
    %1950 = vmatpush.msra.mxu0 %v1117
    %1951 = vmatpush.msra.mxu0 %v1116
    %1952 = vmatpush.msra.mxu0 %v1115
    %1953 = vmatpush.msra.mxu0 %v1114
    %1954 = vmatpush.msra.mxu0 %v1113
    %1955 = vmatpush.msra.mxu0 %v1112
    %1956 = vmatpush.msra.mxu0 %v1111
    %1957 = vmatpush.msra.mxu0 %v1110
    %1958 = vmatpush.msra.mxu0 %v1109
    %1959 = vmatpush.msra.mxu0 %v1108
    %1960 = vmatpush.msra.mxu0 %v1107
    %1961 = vmatpush.msra.mxu0 %v1106
    %1962 = vmatpush.msra.mxu0 %v1105
    %1963 = vmatpush.msra.mxu0 %v1104
    %1964 = vmatpush.msra.mxu0 %v1103
    %1965 = vmatmul.f32.gmra.mxu0 %v439
    %v1966 = vpop.f32.mrf.mxu0
    %v1967 = vadd.f32 %v1947, %v1966
    %1968 = vdwg.mxu0
    %1969 = vmatpush.msra.mxu0 %v1134
    %1970 = vmatpush.msra.mxu0 %v1133
    %1971 = vmatpush.msra.mxu0 %v1132
    %1972 = vmatpush.msra.mxu0 %v1131
    %1973 = vmatpush.msra.mxu0 %v1130
    %1974 = vmatpush.msra.mxu0 %v1129
    %1975 = vmatpush.msra.mxu0 %v1128
    %1976 = vmatpush.msra.mxu0 %v1127
    %1977 = vmatpush.msra.mxu0 %v1126
    %1978 = vmatpush.msra.mxu0 %v1125
    %1979 = vmatpush.msra.mxu0 %v1124
    %1980 = vmatpush.msra.mxu0 %v1123
    %1981 = vmatpush.msra.mxu0 %v1122
    %1982 = vmatpush.msra.mxu0 %v1121
    %1983 = vmatpush.msra.mxu0 %v1120
    %1984 = vmatpush.msra.mxu0 %v1119
    %1985 = vmatmul.f32.gmra.mxu0 %v483
    %v1986 = vpop.f32.mrf.mxu0
    %v1987 = vadd.f32 %v1967, %v1986
    %1988 = vdwg.mxu0
    %1989 = vmatpush.msra.mxu0 %v1150
    %1990 = vmatpush.msra.mxu0 %v1149
    %1991 = vmatpush.msra.mxu0 %v1148
    %1992 = vmatpush.msra.mxu0 %v1147
    %1993 = vmatpush.msra.mxu0 %v1146
    %1994 = vmatpush.msra.mxu0 %v1145
    %1995 = vmatpush.msra.mxu0 %v1144
    %1996 = vmatpush.msra.mxu0 %v1143
    %1997 = vmatpush.msra.mxu0 %v1142
    %1998 = vmatpush.msra.mxu0 %v1141
    %1999 = vmatpush.msra.mxu0 %v1140
    %2000 = vmatpush.msra.mxu0 %v1139
    %2001 = vmatpush.msra.mxu0 %v1138
    %2002 = vmatpush.msra.mxu0 %v1137
    %2003 = vmatpush.msra.mxu0 %v1136
    %2004 = vmatpush.msra.mxu0 %v1135
    %2005 = vmatmul.f32.gmra.mxu0 %v527
    %v2006 = vpop.f32.mrf.mxu0
    %v2007 = vadd.f32 %v1987, %v2006
    %2008 = vdwg.mxu0
    %2009 = vmatpush.msra.mxu0 %v1166
    %2010 = vmatpush.msra.mxu0 %v1165
    %2011 = vmatpush.msra.mxu0 %v1164
    %2012 = vmatpush.msra.mxu0 %v1163
    %2013 = vmatpush.msra.mxu0 %v1162
    %2014 = vmatpush.msra.mxu0 %v1161
    %2015 = vmatpush.msra.mxu0 %v1160
    %2016 = vmatpush.msra.mxu0 %v1159
    %2017 = vmatpush.msra.mxu0 %v1158
    %2018 = vmatpush.msra.mxu0 %v1157
    %2019 = vmatpush.msra.mxu0 %v1156
    %2020 = vmatpush.msra.mxu0 %v1155
    %2021 = vmatpush.msra.mxu0 %v1154
    %2022 = vmatpush.msra.mxu0 %v1153
    %2023 = vmatpush.msra.mxu0 %v1152
    %2024 = vmatpush.msra.mxu0 %v1151
    %2025 = vmatmul.f32.gmra.mxu0 %v571
    %v2026 = vpop.f32.mrf.mxu0
    %v2027 = vadd.f32 %v2007, %v2026
    %2028 = vdwg.mxu0
    %2029 = vmatpush.msra.mxu0 %v1182
    %2030 = vmatpush.msra.mxu0 %v1181
    %2031 = vmatpush.msra.mxu0 %v1180
    %2032 = vmatpush.msra.mxu0 %v1179
    %2033 = vmatpush.msra.mxu0 %v1178
    %2034 = vmatpush.msra.mxu0 %v1177
    %2035 = vmatpush.msra.mxu0 %v1176
    %2036 = vmatpush.msra.mxu0 %v1175
    %2037 = vmatpush.msra.mxu0 %v1174
    %2038 = vmatpush.msra.mxu0 %v1173
    %2039 = vmatpush.msra.mxu0 %v1172
    %2040 = vmatpush.msra.mxu0 %v1171
    %2041 = vmatpush.msra.mxu0 %v1170
    %2042 = vmatpush.msra.mxu0 %v1169
    %2043 = vmatpush.msra.mxu0 %v1168
    %2044 = vmatpush.msra.mxu0 %v1167
    %2045 = vmatmul.f32.gmra.mxu0 %v615
    %v2046 = vpop.f32.mrf.mxu0
    %v2047 = vadd.f32 %v2027, %v2046
    %2048 = vdwg.mxu0
    %2049 = vmatpush.msra.mxu0 %v1198
    %2050 = vmatpush.msra.mxu0 %v1197
    %2051 = vmatpush.msra.mxu0 %v1196
    %2052 = vmatpush.msra.mxu0 %v1195
    %2053 = vmatpush.msra.mxu0 %v1194
    %2054 = vmatpush.msra.mxu0 %v1193
    %2055 = vmatpush.msra.mxu0 %v1192
    %2056 = vmatpush.msra.mxu0 %v1191
    %2057 = vmatpush.msra.mxu0 %v1190
    %2058 = vmatpush.msra.mxu0 %v1189
    %2059 = vmatpush.msra.mxu0 %v1188
    %2060 = vmatpush.msra.mxu0 %v1187
    %2061 = vmatpush.msra.mxu0 %v1186
    %2062 = vmatpush.msra.mxu0 %v1185
    %2063 = vmatpush.msra.mxu0 %v1184
    %2064 = vmatpush.msra.mxu0 %v1183
    %2065 = vmatmul.f32.gmra.mxu0 %v442
    %v2066 = vpop.f32.mrf.mxu0
    %v2067 = vadd.f32 %v2047, %v2066
    %2068 = vdwg.mxu0
    %2069 = vmatpush.msra.mxu0 %v1214
    %2070 = vmatpush.msra.mxu0 %v1213
    %2071 = vmatpush.msra.mxu0 %v1212
    %2072 = vmatpush.msra.mxu0 %v1211
    %2073 = vmatpush.msra.mxu0 %v1210
    %2074 = vmatpush.msra.mxu0 %v1209
    %2075 = vmatpush.msra.mxu0 %v1208
    %2076 = vmatpush.msra.mxu0 %v1207
    %2077 = vmatpush.msra.mxu0 %v1206
    %2078 = vmatpush.msra.mxu0 %v1205
    %2079 = vmatpush.msra.mxu0 %v1204
    %2080 = vmatpush.msra.mxu0 %v1203
    %2081 = vmatpush.msra.mxu0 %v1202
    %2082 = vmatpush.msra.mxu0 %v1201
    %2083 = vmatpush.msra.mxu0 %v1200
    %2084 = vmatpush.msra.mxu0 %v1199
    %2085 = vmatmul.f32.gmra.mxu0 %v486
    %v2086 = vpop.f32.mrf.mxu0
    %v2087 = vadd.f32 %v2067, %v2086
    %2088 = vdwg.mxu0
    %2089 = vmatpush.msra.mxu0 %v1230
    %2090 = vmatpush.msra.mxu0 %v1229
    %2091 = vmatpush.msra.mxu0 %v1228
    %2092 = vmatpush.msra.mxu0 %v1227
    %2093 = vmatpush.msra.mxu0 %v1226
    %2094 = vmatpush.msra.mxu0 %v1225
    %2095 = vmatpush.msra.mxu0 %v1224
    %2096 = vmatpush.msra.mxu0 %v1223
    %2097 = vmatpush.msra.mxu0 %v1222
    %2098 = vmatpush.msra.mxu0 %v1221
    %2099 = vmatpush.msra.mxu0 %v1220
    %2100 = vmatpush.msra.mxu0 %v1219
    %2101 = vmatpush.msra.mxu0 %v1218
    %2102 = vmatpush.msra.mxu0 %v1217
    %2103 = vmatpush.msra.mxu0 %v1216
    %2104 = vmatpush.msra.mxu0 %v1215
    %2105 = vmatmul.f32.gmra.mxu0 %v530
    %v2106 = vpop.f32.mrf.mxu0
    %v2107 = vadd.f32 %v2087, %v2106
    %2108 = vdwg.mxu0
    %2109 = vmatpush.msra.mxu0 %v1246
    %2110 = vmatpush.msra.mxu0 %v1245
    %2111 = vmatpush.msra.mxu0 %v1244
    %2112 = vmatpush.msra.mxu0 %v1243
    %2113 = vmatpush.msra.mxu0 %v1242
    %2114 = vmatpush.msra.mxu0 %v1241
    %2115 = vmatpush.msra.mxu0 %v1240
    %2116 = vmatpush.msra.mxu0 %v1239
    %2117 = vmatpush.msra.mxu0 %v1238
    %2118 = vmatpush.msra.mxu0 %v1237
    %2119 = vmatpush.msra.mxu0 %v1236
    %2120 = vmatpush.msra.mxu0 %v1235
    %2121 = vmatpush.msra.mxu0 %v1234
    %2122 = vmatpush.msra.mxu0 %v1233
    %2123 = vmatpush.msra.mxu0 %v1232
    %2124 = vmatpush.msra.mxu0 %v1231
    %2125 = vmatmul.f32.gmra.mxu0 %v574
    %v2126 = vpop.f32.mrf.mxu0
    %v2127 = vadd.f32 %v2107, %v2126
    %2128 = vdwg.mxu0
    %2129 = vmatpush.msra.mxu0 %v1262
    %2130 = vmatpush.msra.mxu0 %v1261
    %2131 = vmatpush.msra.mxu0 %v1260
    %2132 = vmatpush.msra.mxu0 %v1259
    %2133 = vmatpush.msra.mxu0 %v1258
    %2134 = vmatpush.msra.mxu0 %v1257
    %2135 = vmatpush.msra.mxu0 %v1256
    %2136 = vmatpush.msra.mxu0 %v1255
    %2137 = vmatpush.msra.mxu0 %v1254
    %2138 = vmatpush.msra.mxu0 %v1253
    %2139 = vmatpush.msra.mxu0 %v1252
    %2140 = vmatpush.msra.mxu0 %v1251
    %2141 = vmatpush.msra.mxu0 %v1250
    %2142 = vmatpush.msra.mxu0 %v1249
    %2143 = vmatpush.msra.mxu0 %v1248
    %2144 = vmatpush.msra.mxu0 %v1247
    %2145 = vmatmul.f32.gmra.mxu0 %v618
    %v2146 = vpop.f32.mrf.mxu0
    %v2147 = vadd.f32 %v2127, %v2146
    %2148 = vdwg.mxu0
    %2149 = vmatpush.msra.mxu0 %v1278
    %2150 = vmatpush.msra.mxu0 %v1277
    %2151 = vmatpush.msra.mxu0 %v1276
    %2152 = vmatpush.msra.mxu0 %v1275
    %2153 = vmatpush.msra.mxu0 %v1274
    %2154 = vmatpush.msra.mxu0 %v1273
    %2155 = vmatpush.msra.mxu0 %v1272
    %2156 = vmatpush.msra.mxu0 %v1271
    %2157 = vmatpush.msra.mxu0 %v1270
    %2158 = vmatpush.msra.mxu0 %v1269
    %2159 = vmatpush.msra.mxu0 %v1268
    %2160 = vmatpush.msra.mxu0 %v1267
    %2161 = vmatpush.msra.mxu0 %v1266
    %2162 = vmatpush.msra.mxu0 %v1265
    %2163 = vmatpush.msra.mxu0 %v1264
    %2164 = vmatpush.msra.mxu0 %v1263
    %2165 = vmatmul.f32.gmra.mxu0 %v445
    %v2166 = vpop.f32.mrf.mxu0
    %v2167 = vadd.f32 %v2147, %v2166
    %2168 = vdwg.mxu0
    %2169 = vmatpush.msra.mxu0 %v1294
    %2170 = vmatpush.msra.mxu0 %v1293
    %2171 = vmatpush.msra.mxu0 %v1292
    %2172 = vmatpush.msra.mxu0 %v1291
    %2173 = vmatpush.msra.mxu0 %v1290
    %2174 = vmatpush.msra.mxu0 %v1289
    %2175 = vmatpush.msra.mxu0 %v1288
    %2176 = vmatpush.msra.mxu0 %v1287
    %2177 = vmatpush.msra.mxu0 %v1286
    %2178 = vmatpush.msra.mxu0 %v1285
    %2179 = vmatpush.msra.mxu0 %v1284
    %2180 = vmatpush.msra.mxu0 %v1283
    %2181 = vmatpush.msra.mxu0 %v1282
    %2182 = vmatpush.msra.mxu0 %v1281
    %2183 = vmatpush.msra.mxu0 %v1280
    %2184 = vmatpush.msra.mxu0 %v1279
    %2185 = vmatmul.f32.gmra.mxu0 %v489
    %v2186 = vpop.f32.mrf.mxu0
    %v2187 = vadd.f32 %v2167, %v2186
    %2188 = vdwg.mxu0
    %2189 = vmatpush.msra.mxu0 %v1310
    %2190 = vmatpush.msra.mxu0 %v1309
    %2191 = vmatpush.msra.mxu0 %v1308
    %2192 = vmatpush.msra.mxu0 %v1307
    %2193 = vmatpush.msra.mxu0 %v1306
    %2194 = vmatpush.msra.mxu0 %v1305
    %2195 = vmatpush.msra.mxu0 %v1304
    %2196 = vmatpush.msra.mxu0 %v1303
    %2197 = vmatpush.msra.mxu0 %v1302
    %2198 = vmatpush.msra.mxu0 %v1301
    %2199 = vmatpush.msra.mxu0 %v1300
    %2200 = vmatpush.msra.mxu0 %v1299
    %2201 = vmatpush.msra.mxu0 %v1298
    %2202 = vmatpush.msra.mxu0 %v1297
    %2203 = vmatpush.msra.mxu0 %v1296
    %2204 = vmatpush.msra.mxu0 %v1295
    %2205 = vmatmul.f32.gmra.mxu0 %v533
    %v2206 = vpop.f32.mrf.mxu0
    %v2207 = vadd.f32 %v2187, %v2206
    %2208 = vdwg.mxu0
    %2209 = vmatpush.msra.mxu0 %v1326
    %2210 = vmatpush.msra.mxu0 %v1325
    %2211 = vmatpush.msra.mxu0 %v1324
    %2212 = vmatpush.msra.mxu0 %v1323
    %2213 = vmatpush.msra.mxu0 %v1322
    %2214 = vmatpush.msra.mxu0 %v1321
    %2215 = vmatpush.msra.mxu0 %v1320
    %2216 = vmatpush.msra.mxu0 %v1319
    %2217 = vmatpush.msra.mxu0 %v1318
    %2218 = vmatpush.msra.mxu0 %v1317
    %2219 = vmatpush.msra.mxu0 %v1316
    %2220 = vmatpush.msra.mxu0 %v1315
    %2221 = vmatpush.msra.mxu0 %v1314
    %2222 = vmatpush.msra.mxu0 %v1313
    %2223 = vmatpush.msra.mxu0 %v1312
    %2224 = vmatpush.msra.mxu0 %v1311
    %2225 = vmatmul.f32.gmra.mxu0 %v577
    %v2226 = vpop.f32.mrf.mxu0
    %v2227 = vadd.f32 %v2207, %v2226
    %2228 = vdwg.mxu0
    %2229 = vmatpush.msra.mxu0 %v1342
    %2230 = vmatpush.msra.mxu0 %v1341
    %2231 = vmatpush.msra.mxu0 %v1340
    %2232 = vmatpush.msra.mxu0 %v1339
    %2233 = vmatpush.msra.mxu0 %v1338
    %2234 = vmatpush.msra.mxu0 %v1337
    %2235 = vmatpush.msra.mxu0 %v1336
    %2236 = vmatpush.msra.mxu0 %v1335
    %2237 = vmatpush.msra.mxu0 %v1334
    %2238 = vmatpush.msra.mxu0 %v1333
    %2239 = vmatpush.msra.mxu0 %v1332
    %2240 = vmatpush.msra.mxu0 %v1331
    %2241 = vmatpush.msra.mxu0 %v1330
    %2242 = vmatpush.msra.mxu0 %v1329
    %2243 = vmatpush.msra.mxu0 %v1328
    %2244 = vmatpush.msra.mxu0 %v1327
    %2245 = vmatmul.f32.gmra.mxu0 %v621
    %v2246 = vpop.f32.mrf.mxu0
    %v2247 = vadd.f32 %v2227, %v2246
    %2248 = vdwg.mxu0
    %v2249 = vld [vmem:[#allocation4] sm:$0xff]
    %v2250 = vld [vmem:[#allocation4 + $0x8] sm:$0xff]
    %v2251 = vld [vmem:[#allocation4 + $0x10] sm:$0xff]
    %v2252 = vld [vmem:[#allocation4 + $0x18] sm:$0xff]
    %v2253 = vld [vmem:[#allocation4 + $0x20] sm:$0xff]
    %v2254 = vld [vmem:[#allocation4 + $0x28] sm:$0xff]
    %v2255 = vld [vmem:[#allocation4 + $0x30] sm:$0xff]
    %v2256 = vld [vmem:[#allocation4 + $0x38] sm:$0xff]
    %v2257 = vld [vmem:[#allocation4 + $0x40] sm:$0xff]
    %v2258 = vld [vmem:[#allocation4 + $0x48] sm:$0xff]
    %v2259 = vld [vmem:[#allocation4 + $0x50] sm:$0xff]
    %v2260 = vld [vmem:[#allocation4 + $0x58] sm:$0xff]
    %v2261 = vld [vmem:[#allocation4 + $0x60] sm:$0xff]
    %v2262 = vld [vmem:[#allocation4 + $0x68] sm:$0xff]
    %v2263 = vld [vmem:[#allocation4 + $0x70] sm:$0xff]
    %v2264 = vld [vmem:[#allocation4 + $0x78] sm:$0xff]
    %v2265 = vld [vmem:[#allocation4 + $0x80] sm:$0xff]
    %v2266 = vld [vmem:[#allocation4 + $0x88] sm:$0xff]
    %v2267 = vld [vmem:[#allocation4 + $0x90] sm:$0xff]
    %v2268 = vld [vmem:[#allocation4 + $0x98] sm:$0xff]
    %v2269 = vld [vmem:[#allocation4 + $0xa0] sm:$0xff]
    %v2270 = vld [vmem:[#allocation4 + $0xa8] sm:$0xff]
    %v2271 = vld [vmem:[#allocation4 + $0xb0] sm:$0xff]
    %v2272 = vld [vmem:[#allocation4 + $0xb8] sm:$0xff]
    %v2273 = vld [vmem:[#allocation4 + $0xc0] sm:$0xff]
    %v2274 = vld [vmem:[#allocation4 + $0xc8] sm:$0xff]
    %v2275 = vld [vmem:[#allocation4 + $0xd0] sm:$0xff]
    %v2276 = vld [vmem:[#allocation4 + $0xd8] sm:$0xff]
    %v2277 = vld [vmem:[#allocation4 + $0xe0] sm:$0xff]
    %v2278 = vld [vmem:[#allocation4 + $0xe8] sm:$0xff]
    %v2279 = vld [vmem:[#allocation4 + $0xf0] sm:$0xff]
    %v2280 = vld [vmem:[#allocation4 + $0xf8] sm:$0xff]
    %v2281 = vld [vmem:[#allocation4 + $0x100] sm:$0xff]
    %v2282 = vld [vmem:[#allocation4 + $0x108] sm:$0xff]
    %v2283 = vld [vmem:[#allocation4 + $0x110] sm:$0xff]
    %v2284 = vld [vmem:[#allocation4 + $0x118] sm:$0xff]
    %v2285 = vld [vmem:[#allocation4 + $0x120] sm:$0xff]
    %v2286 = vld [vmem:[#allocation4 + $0x128] sm:$0xff]
    %v2287 = vld [vmem:[#allocation4 + $0x130] sm:$0xff]
    %v2288 = vld [vmem:[#allocation4 + $0x138] sm:$0xff]
    %v2289 = vld [vmem:[#allocation4 + $0x140] sm:$0xff]
    %v2290 = vld [vmem:[#allocation4 + $0x148] sm:$0xff]
    %v2291 = vld [vmem:[#allocation4 + $0x150] sm:$0xff]
    %v2292 = vld [vmem:[#allocation4 + $0x158] sm:$0xff]
    %v2293 = vld [vmem:[#allocation4 + $0x160] sm:$0xff]
    %v2294 = vld [vmem:[#allocation4 + $0x168] sm:$0xff]
    %v2295 = vld [vmem:[#allocation4 + $0x170] sm:$0xff]
    %v2296 = vld [vmem:[#allocation4 + $0x178] sm:$0xff]
    %v2297 = vld [vmem:[#allocation4 + $0x180] sm:$0xff]
    %v2298 = vld [vmem:[#allocation4 + $0x188] sm:$0xff]
    %v2299 = vld [vmem:[#allocation4 + $0x190] sm:$0xff]
    %v2300 = vld [vmem:[#allocation4 + $0x198] sm:$0xff]
    %v2301 = vld [vmem:[#allocation4 + $0x1a0] sm:$0xff]
    %v2302 = vld [vmem:[#allocation4 + $0x1a8] sm:$0xff]
    %v2303 = vld [vmem:[#allocation4 + $0x1b0] sm:$0xff]
    %v2304 = vld [vmem:[#allocation4 + $0x1b8] sm:$0xff]
    %v2305 = vld [vmem:[#allocation4 + $0x1c0] sm:$0xff]
    %v2306 = vld [vmem:[#allocation4 + $0x1c8] sm:$0xff]
    %v2307 = vld [vmem:[#allocation4 + $0x1d0] sm:$0xff]
    %v2308 = vld [vmem:[#allocation4 + $0x1d8] sm:$0xff]
    %v2309 = vld [vmem:[#allocation4 + $0x1e0] sm:$0xff]
    %v2310 = vld [vmem:[#allocation4 + $0x1e8] sm:$0xff]
    %v2311 = vld [vmem:[#allocation4 + $0x1f0] sm:$0xff]
    %v2312 = vld [vmem:[#allocation4 + $0x1f8] sm:$0xff]
    %v2313 = vld [vmem:[#allocation4 + $0x200] sm:$0xff]
    %v2314 = vld [vmem:[#allocation4 + $0x208] sm:$0xff]
    %v2315 = vld [vmem:[#allocation4 + $0x210] sm:$0xff]
    %v2316 = vld [vmem:[#allocation4 + $0x218] sm:$0xff]
    %v2317 = vld [vmem:[#allocation4 + $0x220] sm:$0xff]
    %v2318 = vld [vmem:[#allocation4 + $0x228] sm:$0xff]
    %v2319 = vld [vmem:[#allocation4 + $0x230] sm:$0xff]
    %v2320 = vld [vmem:[#allocation4 + $0x238] sm:$0xff]
    %v2321 = vld [vmem:[#allocation4 + $0x240] sm:$0xff]
    %v2322 = vld [vmem:[#allocation4 + $0x248] sm:$0xff]
    %v2323 = vld [vmem:[#allocation4 + $0x250] sm:$0xff]
    %v2324 = vld [vmem:[#allocation4 + $0x258] sm:$0xff]
    %v2325 = vld [vmem:[#allocation4 + $0x260] sm:$0xff]
    %v2326 = vld [vmem:[#allocation4 + $0x268] sm:$0xff]
    %v2327 = vld [vmem:[#allocation4 + $0x270] sm:$0xff]
    %v2328 = vld [vmem:[#allocation4 + $0x278] sm:$0xff]
    %v2329 = vld [vmem:[#allocation4 + $0x280] sm:$0xff]
    %v2330 = vld [vmem:[#allocation4 + $0x288] sm:$0xff]
    %v2331 = vld [vmem:[#allocation4 + $0x290] sm:$0xff]
    %v2332 = vld [vmem:[#allocation4 + $0x298] sm:$0xff]
    %v2333 = vld [vmem:[#allocation4 + $0x2a0] sm:$0xff]
    %v2334 = vld [vmem:[#allocation4 + $0x2a8] sm:$0xff]
    %v2335 = vld [vmem:[#allocation4 + $0x2b0] sm:$0xff]
    %v2336 = vld [vmem:[#allocation4 + $0x2b8] sm:$0xff]
    %v2337 = vld [vmem:[#allocation4 + $0x2c0] sm:$0xff]
    %v2338 = vld [vmem:[#allocation4 + $0x2c8] sm:$0xff]
    %v2339 = vld [vmem:[#allocation4 + $0x2d0] sm:$0xff]
    %v2340 = vld [vmem:[#allocation4 + $0x2d8] sm:$0xff]
    %v2341 = vld [vmem:[#allocation4 + $0x2e0] sm:$0xff]
    %v2342 = vld [vmem:[#allocation4 + $0x2e8] sm:$0xff]
    %v2343 = vld [vmem:[#allocation4 + $0x2f0] sm:$0xff]
    %v2344 = vld [vmem:[#allocation4 + $0x2f8] sm:$0xff]
    %v2345 = vld [vmem:[#allocation4 + $0x300] sm:$0xff]
    %v2346 = vld [vmem:[#allocation4 + $0x308] sm:$0xff]
    %v2347 = vld [vmem:[#allocation4 + $0x310] sm:$0xff]
    %v2348 = vld [vmem:[#allocation4 + $0x318] sm:$0xff]
    %v2349 = vld [vmem:[#allocation4 + $0x320] sm:$0xff]
    %v2350 = vld [vmem:[#allocation4 + $0x328] sm:$0xff]
    %v2351 = vld [vmem:[#allocation4 + $0x330] sm:$0xff]
    %v2352 = vld [vmem:[#allocation4 + $0x338] sm:$0xff]
    %v2353 = vld [vmem:[#allocation4 + $0x340] sm:$0xff]
    %v2354 = vld [vmem:[#allocation4 + $0x348] sm:$0xff]
    %v2355 = vld [vmem:[#allocation4 + $0x350] sm:$0xff]
    %v2356 = vld [vmem:[#allocation4 + $0x358] sm:$0xff]
    %v2357 = vld [vmem:[#allocation4 + $0x360] sm:$0xff]
    %v2358 = vld [vmem:[#allocation4 + $0x368] sm:$0xff]
    %v2359 = vld [vmem:[#allocation4 + $0x370] sm:$0xff]
    %v2360 = vld [vmem:[#allocation4 + $0x378] sm:$0xff]
    %v2361 = vld [vmem:[#allocation4 + $0x380] sm:$0xff]
    %v2362 = vld [vmem:[#allocation4 + $0x388] sm:$0xff]
    %v2363 = vld [vmem:[#allocation4 + $0x390] sm:$0xff]
    %v2364 = vld [vmem:[#allocation4 + $0x398] sm:$0xff]
    %v2365 = vld [vmem:[#allocation4 + $0x3a0] sm:$0xff]
    %v2366 = vld [vmem:[#allocation4 + $0x3a8] sm:$0xff]
    %v2367 = vld [vmem:[#allocation4 + $0x3b0] sm:$0xff]
    %v2368 = vld [vmem:[#allocation4 + $0x3b8] sm:$0xff]
    %v2369 = vld [vmem:[#allocation4 + $0x3c0] sm:$0xff]
    %v2370 = vld [vmem:[#allocation4 + $0x3c8] sm:$0xff]
    %v2371 = vld [vmem:[#allocation4 + $0x3d0] sm:$0xff]
    %v2372 = vld [vmem:[#allocation4 + $0x3d8] sm:$0xff]
    %v2373 = vld [vmem:[#allocation4 + $0x3e0] sm:$0xff]
    %v2374 = vld [vmem:[#allocation4 + $0x3e8] sm:$0xff]
    %v2375 = vld [vmem:[#allocation4 + $0x3f0] sm:$0xff]
    %v2376 = vld [vmem:[#allocation4 + $0x3f8] sm:$0xff]
    %v2377 = vld [vmem:[#allocation4 + $0x400] sm:$0xff]
    %v2378 = vld [vmem:[#allocation4 + $0x408] sm:$0xff]
    %v2379 = vld [vmem:[#allocation4 + $0x410] sm:$0xff]
    %v2380 = vld [vmem:[#allocation4 + $0x418] sm:$0xff]
    %v2381 = vld [vmem:[#allocation4 + $0x420] sm:$0xff]
    %v2382 = vld [vmem:[#allocation4 + $0x428] sm:$0xff]
    %v2383 = vld [vmem:[#allocation4 + $0x430] sm:$0xff]
    %v2384 = vld [vmem:[#allocation4 + $0x438] sm:$0xff]
    %v2385 = vld [vmem:[#allocation4 + $0x440] sm:$0xff]
    %v2386 = vld [vmem:[#allocation4 + $0x448] sm:$0xff]
    %v2387 = vld [vmem:[#allocation4 + $0x450] sm:$0xff]
    %v2388 = vld [vmem:[#allocation4 + $0x458] sm:$0xff]
    %v2389 = vld [vmem:[#allocation4 + $0x460] sm:$0xff]
    %v2390 = vld [vmem:[#allocation4 + $0x468] sm:$0xff]
    %v2391 = vld [vmem:[#allocation4 + $0x470] sm:$0xff]
    %v2392 = vld [vmem:[#allocation4 + $0x478] sm:$0xff]
    %v2393 = vld [vmem:[#allocation4 + $0x480] sm:$0xff]
    %v2394 = vld [vmem:[#allocation4 + $0x488] sm:$0xff]
    %v2395 = vld [vmem:[#allocation4 + $0x490] sm:$0xff]
    %v2396 = vld [vmem:[#allocation4 + $0x498] sm:$0xff]
    %v2397 = vld [vmem:[#allocation4 + $0x4a0] sm:$0xff]
    %v2398 = vld [vmem:[#allocation4 + $0x4a8] sm:$0xff]
    %v2399 = vld [vmem:[#allocation4 + $0x4b0] sm:$0xff]
    %v2400 = vld [vmem:[#allocation4 + $0x4b8] sm:$0xff]
    %v2401 = vld [vmem:[#allocation4 + $0x4c0] sm:$0xff]
    %v2402 = vld [vmem:[#allocation4 + $0x4c8] sm:$0xff]
    %v2403 = vld [vmem:[#allocation4 + $0x4d0] sm:$0xff]
    %v2404 = vld [vmem:[#allocation4 + $0x4d8] sm:$0xff]
    %v2405 = vld [vmem:[#allocation4 + $0x4e0] sm:$0xff]
    %v2406 = vld [vmem:[#allocation4 + $0x4e8] sm:$0xff]
    %v2407 = vld [vmem:[#allocation4 + $0x4f0] sm:$0xff]
    %v2408 = vld [vmem:[#allocation4 + $0x4f8] sm:$0xff]
    %v2409 = vld [vmem:[#allocation4 + $0x500] sm:$0xff]
    %v2410 = vld [vmem:[#allocation4 + $0x508] sm:$0xff]
    %v2411 = vld [vmem:[#allocation4 + $0x510] sm:$0xff]
    %v2412 = vld [vmem:[#allocation4 + $0x518] sm:$0xff]
    %v2413 = vld [vmem:[#allocation4 + $0x520] sm:$0xff]
    %v2414 = vld [vmem:[#allocation4 + $0x528] sm:$0xff]
    %v2415 = vld [vmem:[#allocation4 + $0x530] sm:$0xff]
    %v2416 = vld [vmem:[#allocation4 + $0x538] sm:$0xff]
    %v2417 = vld [vmem:[#allocation4 + $0x540] sm:$0xff]
    %v2418 = vld [vmem:[#allocation4 + $0x548] sm:$0xff]
    %v2419 = vld [vmem:[#allocation4 + $0x550] sm:$0xff]
    %v2420 = vld [vmem:[#allocation4 + $0x558] sm:$0xff]
    %v2421 = vld [vmem:[#allocation4 + $0x560] sm:$0xff]
    %v2422 = vld [vmem:[#allocation4 + $0x568] sm:$0xff]
    %v2423 = vld [vmem:[#allocation4 + $0x570] sm:$0xff]
    %v2424 = vld [vmem:[#allocation4 + $0x578] sm:$0xff]
    %v2425 = vld [vmem:[#allocation4 + $0x580] sm:$0xff]
    %v2426 = vld [vmem:[#allocation4 + $0x588] sm:$0xff]
    %v2427 = vld [vmem:[#allocation4 + $0x590] sm:$0xff]
    %v2428 = vld [vmem:[#allocation4 + $0x598] sm:$0xff]
    %v2429 = vld [vmem:[#allocation4 + $0x5a0] sm:$0xff]
    %v2430 = vld [vmem:[#allocation4 + $0x5a8] sm:$0xff]
    %v2431 = vld [vmem:[#allocation4 + $0x5b0] sm:$0xff]
    %v2432 = vld [vmem:[#allocation4 + $0x5b8] sm:$0xff]
    %v2433 = vld [vmem:[#allocation4 + $0x5c0] sm:$0xff]
    %v2434 = vld [vmem:[#allocation4 + $0x5c8] sm:$0xff]
    %v2435 = vld [vmem:[#allocation4 + $0x5d0] sm:$0xff]
    %v2436 = vld [vmem:[#allocation4 + $0x5d8] sm:$0xff]
    %v2437 = vld [vmem:[#allocation4 + $0x5e0] sm:$0xff]
    %v2438 = vld [vmem:[#allocation4 + $0x5e8] sm:$0xff]
    %v2439 = vld [vmem:[#allocation4 + $0x5f0] sm:$0xff]
    %v2440 = vld [vmem:[#allocation4 + $0x5f8] sm:$0xff]
    %v2441 = vld [vmem:[#allocation4 + $0x600] sm:$0xff]
    %v2442 = vld [vmem:[#allocation4 + $0x608] sm:$0xff]
    %v2443 = vld [vmem:[#allocation4 + $0x610] sm:$0xff]
    %v2444 = vld [vmem:[#allocation4 + $0x618] sm:$0xff]
    %v2445 = vld [vmem:[#allocation4 + $0x620] sm:$0xff]
    %v2446 = vld [vmem:[#allocation4 + $0x628] sm:$0xff]
    %v2447 = vld [vmem:[#allocation4 + $0x630] sm:$0xff]
    %v2448 = vld [vmem:[#allocation4 + $0x638] sm:$0xff]
    %v2449 = vld [vmem:[#allocation4 + $0x640] sm:$0xff]
    %v2450 = vld [vmem:[#allocation4 + $0x648] sm:$0xff]
    %v2451 = vld [vmem:[#allocation4 + $0x650] sm:$0xff]
    %v2452 = vld [vmem:[#allocation4 + $0x658] sm:$0xff]
    %v2453 = vld [vmem:[#allocation4 + $0x660] sm:$0xff]
    %v2454 = vld [vmem:[#allocation4 + $0x668] sm:$0xff]
    %v2455 = vld [vmem:[#allocation4 + $0x670] sm:$0xff]
    %v2456 = vld [vmem:[#allocation4 + $0x678] sm:$0xff]
    %v2457 = vld [vmem:[#allocation4 + $0x680] sm:$0xff]
    %v2458 = vld [vmem:[#allocation4 + $0x688] sm:$0xff]
    %v2459 = vld [vmem:[#allocation4 + $0x690] sm:$0xff]
    %v2460 = vld [vmem:[#allocation4 + $0x698] sm:$0xff]
    %v2461 = vld [vmem:[#allocation4 + $0x6a0] sm:$0xff]
    %v2462 = vld [vmem:[#allocation4 + $0x6a8] sm:$0xff]
    %v2463 = vld [vmem:[#allocation4 + $0x6b0] sm:$0xff]
    %v2464 = vld [vmem:[#allocation4 + $0x6b8] sm:$0xff]
    %v2465 = vld [vmem:[#allocation4 + $0x6c0] sm:$0xff]
    %v2466 = vld [vmem:[#allocation4 + $0x6c8] sm:$0xff]
    %v2467 = vld [vmem:[#allocation4 + $0x6d0] sm:$0xff]
    %v2468 = vld [vmem:[#allocation4 + $0x6d8] sm:$0xff]
    %v2469 = vld [vmem:[#allocation4 + $0x6e0] sm:$0xff]
    %v2470 = vld [vmem:[#allocation4 + $0x6e8] sm:$0xff]
    %v2471 = vld [vmem:[#allocation4 + $0x6f0] sm:$0xff]
    %v2472 = vld [vmem:[#allocation4 + $0x6f8] sm:$0xff]
    %v2473 = vld [vmem:[#allocation4 + $0x700] sm:$0xff]
    %v2474 = vld [vmem:[#allocation4 + $0x708] sm:$0xff]
    %v2475 = vld [vmem:[#allocation4 + $0x710] sm:$0xff]
    %v2476 = vld [vmem:[#allocation4 + $0x718] sm:$0xff]
    %v2477 = vld [vmem:[#allocation4 + $0x720] sm:$0xff]
    %v2478 = vld [vmem:[#allocation4 + $0x728] sm:$0xff]
    %v2479 = vld [vmem:[#allocation4 + $0x730] sm:$0xff]
    %v2480 = vld [vmem:[#allocation4 + $0x738] sm:$0xff]
    %v2481 = vld [vmem:[#allocation4 + $0x740] sm:$0xff]
    %v2482 = vld [vmem:[#allocation4 + $0x748] sm:$0xff]
    %v2483 = vld [vmem:[#allocation4 + $0x750] sm:$0xff]
    %v2484 = vld [vmem:[#allocation4 + $0x758] sm:$0xff]
    %v2485 = vld [vmem:[#allocation4 + $0x760] sm:$0xff]
    %v2486 = vld [vmem:[#allocation4 + $0x768] sm:$0xff]
    %v2487 = vld [vmem:[#allocation4 + $0x770] sm:$0xff]
    %v2488 = vld [vmem:[#allocation4 + $0x778] sm:$0xff]
    %v2489 = vld [vmem:[#allocation4 + $0x780] sm:$0xff]
    %v2490 = vld [vmem:[#allocation4 + $0x788] sm:$0xff]
    %v2491 = vld [vmem:[#allocation4 + $0x790] sm:$0xff]
    %v2492 = vld [vmem:[#allocation4 + $0x798] sm:$0xff]
    %v2493 = vld [vmem:[#allocation4 + $0x7a0] sm:$0xff]
    %v2494 = vld [vmem:[#allocation4 + $0x7a8] sm:$0xff]
    %v2495 = vld [vmem:[#allocation4 + $0x7b0] sm:$0xff]
    %v2496 = vld [vmem:[#allocation4 + $0x7b8] sm:$0xff]
    %v2497 = vld [vmem:[#allocation4 + $0x7c0] sm:$0xff]
    %v2498 = vld [vmem:[#allocation4 + $0x7c8] sm:$0xff]
    %v2499 = vld [vmem:[#allocation4 + $0x7d0] sm:$0xff]
    %v2500 = vld [vmem:[#allocation4 + $0x7d8] sm:$0xff]
    %v2501 = vld [vmem:[#allocation4 + $0x7e0] sm:$0xff]
    %v2502 = vld [vmem:[#allocation4 + $0x7e8] sm:$0xff]
    %v2503 = vld [vmem:[#allocation4 + $0x7f0] sm:$0xff]
    %v2504 = vld [vmem:[#allocation4 + $0x7f8] sm:$0xff]
    %v2505 = vld [vmem:[#allocation4 + $0x800] sm:$0xff]
    %v2506 = vld [vmem:[#allocation4 + $0x808] sm:$0xff]
    %v2507 = vld [vmem:[#allocation4 + $0x810] sm:$0xff]
    %v2508 = vld [vmem:[#allocation4 + $0x818] sm:$0xff]
    %v2509 = vld [vmem:[#allocation4 + $0x820] sm:$0xff]
    %v2510 = vld [vmem:[#allocation4 + $0x828] sm:$0xff]
    %v2511 = vld [vmem:[#allocation4 + $0x830] sm:$0xff]
    %v2512 = vld [vmem:[#allocation4 + $0x838] sm:$0xff]
    %v2513 = vld [vmem:[#allocation4 + $0x840] sm:$0xff]
    %v2514 = vld [vmem:[#allocation4 + $0x848] sm:$0xff]
    %v2515 = vld [vmem:[#allocation4 + $0x850] sm:$0xff]
    %v2516 = vld [vmem:[#allocation4 + $0x858] sm:$0xff]
    %v2517 = vld [vmem:[#allocation4 + $0x860] sm:$0xff]
    %v2518 = vld [vmem:[#allocation4 + $0x868] sm:$0xff]
    %v2519 = vld [vmem:[#allocation4 + $0x870] sm:$0xff]
    %v2520 = vld [vmem:[#allocation4 + $0x878] sm:$0xff]
    %v2521 = vld [vmem:[#allocation4 + $0x880] sm:$0xff]
    %v2522 = vld [vmem:[#allocation4 + $0x888] sm:$0xff]
    %v2523 = vld [vmem:[#allocation4 + $0x890] sm:$0xff]
    %v2524 = vld [vmem:[#allocation4 + $0x898] sm:$0xff]
    %v2525 = vld [vmem:[#allocation4 + $0x8a0] sm:$0xff]
    %v2526 = vld [vmem:[#allocation4 + $0x8a8] sm:$0xff]
    %v2527 = vld [vmem:[#allocation4 + $0x8b0] sm:$0xff]
    %v2528 = vld [vmem:[#allocation4 + $0x8b8] sm:$0xff]
    %v2529 = vld [vmem:[#allocation4 + $0x8c0] sm:$0xff]
    %v2530 = vld [vmem:[#allocation4 + $0x8c8] sm:$0xff]
    %v2531 = vld [vmem:[#allocation4 + $0x8d0] sm:$0xff]
    %v2532 = vld [vmem:[#allocation4 + $0x8d8] sm:$0xff]
    %v2533 = vld [vmem:[#allocation4 + $0x8e0] sm:$0xff]
    %v2534 = vld [vmem:[#allocation4 + $0x8e8] sm:$0xff]
    %v2535 = vld [vmem:[#allocation4 + $0x8f0] sm:$0xff]
    %v2536 = vld [vmem:[#allocation4 + $0x8f8] sm:$0xff]
    %v2537 = vld [vmem:[#allocation4 + $0x900] sm:$0xff]
    %v2538 = vld [vmem:[#allocation4 + $0x908] sm:$0xff]
    %v2539 = vld [vmem:[#allocation4 + $0x910] sm:$0xff]
    %v2540 = vld [vmem:[#allocation4 + $0x918] sm:$0xff]
    %v2541 = vld [vmem:[#allocation4 + $0x920] sm:$0xff]
    %v2542 = vld [vmem:[#allocation4 + $0x928] sm:$0xff]
    %v2543 = vld [vmem:[#allocation4 + $0x930] sm:$0xff]
    %v2544 = vld [vmem:[#allocation4 + $0x938] sm:$0xff]
    %v2545 = vld [vmem:[#allocation4 + $0x940] sm:$0xff]
    %v2546 = vld [vmem:[#allocation4 + $0x948] sm:$0xff]
    %v2547 = vld [vmem:[#allocation4 + $0x950] sm:$0xff]
    %v2548 = vld [vmem:[#allocation4 + $0x958] sm:$0xff]
    %v2549 = vld [vmem:[#allocation4 + $0x960] sm:$0xff]
    %v2550 = vld [vmem:[#allocation4 + $0x968] sm:$0xff]
    %v2551 = vld [vmem:[#allocation4 + $0x970] sm:$0xff]
    %v2552 = vld [vmem:[#allocation4 + $0x978] sm:$0xff]
    %v2553 = vld [vmem:[#allocation4 + $0x980] sm:$0xff]
    %v2554 = vld [vmem:[#allocation4 + $0x988] sm:$0xff]
    %v2555 = vld [vmem:[#allocation4 + $0x990] sm:$0xff]
    %v2556 = vld [vmem:[#allocation4 + $0x998] sm:$0xff]
    %v2557 = vld [vmem:[#allocation4 + $0x9a0] sm:$0xff]
    %v2558 = vld [vmem:[#allocation4 + $0x9a8] sm:$0xff]
    %v2559 = vld [vmem:[#allocation4 + $0x9b0] sm:$0xff]
    %v2560 = vld [vmem:[#allocation4 + $0x9b8] sm:$0xff]
    %v2561 = vld [vmem:[#allocation4 + $0x9c0] sm:$0xff]
    %v2562 = vld [vmem:[#allocation4 + $0x9c8] sm:$0xff]
    %v2563 = vld [vmem:[#allocation4 + $0x9d0] sm:$0xff]
    %v2564 = vld [vmem:[#allocation4 + $0x9d8] sm:$0xff]
    %v2565 = vld [vmem:[#allocation4 + $0x9e0] sm:$0xff]
    %v2566 = vld [vmem:[#allocation4 + $0x9e8] sm:$0xff]
    %v2567 = vld [vmem:[#allocation4 + $0x9f0] sm:$0xff]
    %v2568 = vld [vmem:[#allocation4 + $0x9f8] sm:$0xff]
    %v2569 = vld [vmem:[#allocation4 + $0xa00] sm:$0xff]
    %v2570 = vld [vmem:[#allocation4 + $0xa08] sm:$0xff]
    %v2571 = vld [vmem:[#allocation4 + $0xa10] sm:$0xff]
    %v2572 = vld [vmem:[#allocation4 + $0xa18] sm:$0xff]
    %v2573 = vld [vmem:[#allocation4 + $0xa20] sm:$0xff]
    %v2574 = vld [vmem:[#allocation4 + $0xa28] sm:$0xff]
    %v2575 = vld [vmem:[#allocation4 + $0xa30] sm:$0xff]
    %v2576 = vld [vmem:[#allocation4 + $0xa38] sm:$0xff]
    %v2577 = vld [vmem:[#allocation4 + $0xa40] sm:$0xff]
    %v2578 = vld [vmem:[#allocation4 + $0xa48] sm:$0xff]
    %v2579 = vld [vmem:[#allocation4 + $0xa50] sm:$0xff]
    %v2580 = vld [vmem:[#allocation4 + $0xa58] sm:$0xff]
    %v2581 = vld [vmem:[#allocation4 + $0xa60] sm:$0xff]
    %v2582 = vld [vmem:[#allocation4 + $0xa68] sm:$0xff]
    %v2583 = vld [vmem:[#allocation4 + $0xa70] sm:$0xff]
    %v2584 = vld [vmem:[#allocation4 + $0xa78] sm:$0xff]
    %v2585 = vld [vmem:[#allocation4 + $0xa80] sm:$0xff]
    %v2586 = vld [vmem:[#allocation4 + $0xa88] sm:$0xff]
    %v2587 = vld [vmem:[#allocation4 + $0xa90] sm:$0xff]
    %v2588 = vld [vmem:[#allocation4 + $0xa98] sm:$0xff]
    %v2589 = vld [vmem:[#allocation4 + $0xaa0] sm:$0xff]
    %v2590 = vld [vmem:[#allocation4 + $0xaa8] sm:$0xff]
    %v2591 = vld [vmem:[#allocation4 + $0xab0] sm:$0xff]
    %v2592 = vld [vmem:[#allocation4 + $0xab8] sm:$0xff]
    %v2593 = vld [vmem:[#allocation4 + $0xac0] sm:$0xff]
    %v2594 = vld [vmem:[#allocation4 + $0xac8] sm:$0xff]
    %v2595 = vld [vmem:[#allocation4 + $0xad0] sm:$0xff]
    %v2596 = vld [vmem:[#allocation4 + $0xad8] sm:$0xff]
    %v2597 = vld [vmem:[#allocation4 + $0xae0] sm:$0xff]
    %v2598 = vld [vmem:[#allocation4 + $0xae8] sm:$0xff]
    %v2599 = vld [vmem:[#allocation4 + $0xaf0] sm:$0xff]
    %v2600 = vld [vmem:[#allocation4 + $0xaf8] sm:$0xff]
    %v2601 = vld [vmem:[#allocation4 + $0xb00] sm:$0xff]
    %v2602 = vld [vmem:[#allocation4 + $0xb08] sm:$0xff]
    %v2603 = vld [vmem:[#allocation4 + $0xb10] sm:$0xff]
    %v2604 = vld [vmem:[#allocation4 + $0xb18] sm:$0xff]
    %v2605 = vld [vmem:[#allocation4 + $0xb20] sm:$0xff]
    %v2606 = vld [vmem:[#allocation4 + $0xb28] sm:$0xff]
    %v2607 = vld [vmem:[#allocation4 + $0xb30] sm:$0xff]
    %v2608 = vld [vmem:[#allocation4 + $0xb38] sm:$0xff]
    %v2609 = vld [vmem:[#allocation4 + $0xb40] sm:$0xff]
    %v2610 = vld [vmem:[#allocation4 + $0xb48] sm:$0xff]
    %v2611 = vld [vmem:[#allocation4 + $0xb50] sm:$0xff]
    %v2612 = vld [vmem:[#allocation4 + $0xb58] sm:$0xff]
    %v2613 = vld [vmem:[#allocation4 + $0xb60] sm:$0xff]
    %v2614 = vld [vmem:[#allocation4 + $0xb68] sm:$0xff]
    %v2615 = vld [vmem:[#allocation4 + $0xb70] sm:$0xff]
    %v2616 = vld [vmem:[#allocation4 + $0xb78] sm:$0xff]
    %v2617 = vld [vmem:[#allocation4 + $0xb80] sm:$0xff]
    %v2618 = vld [vmem:[#allocation4 + $0xb88] sm:$0xff]
    %v2619 = vld [vmem:[#allocation4 + $0xb90] sm:$0xff]
    %v2620 = vld [vmem:[#allocation4 + $0xb98] sm:$0xff]
    %v2621 = vld [vmem:[#allocation4 + $0xba0] sm:$0xff]
    %v2622 = vld [vmem:[#allocation4 + $0xba8] sm:$0xff]
    %v2623 = vld [vmem:[#allocation4 + $0xbb0] sm:$0xff]
    %v2624 = vld [vmem:[#allocation4 + $0xbb8] sm:$0xff]
    %v2625 = vld [vmem:[#allocation4 + $0xbc0] sm:$0xff]
    %v2626 = vld [vmem:[#allocation4 + $0xbc8] sm:$0xff]
    %v2627 = vld [vmem:[#allocation4 + $0xbd0] sm:$0xff]
    %v2628 = vld [vmem:[#allocation4 + $0xbd8] sm:$0xff]
    %v2629 = vld [vmem:[#allocation4 + $0xbe0] sm:$0xff]
    %v2630 = vld [vmem:[#allocation4 + $0xbe8] sm:$0xff]
    %v2631 = vld [vmem:[#allocation4 + $0xbf0] sm:$0xff]
    %v2632 = vld [vmem:[#allocation4 + $0xbf8] sm:$0xff]
    %v2633 = vld [vmem:[#allocation4 + $0xc00] sm:$0xff]
    %v2634 = vld [vmem:[#allocation4 + $0xc08] sm:$0xff]
    %v2635 = vld [vmem:[#allocation4 + $0xc10] sm:$0xff]
    %v2636 = vld [vmem:[#allocation4 + $0xc18] sm:$0xff]
    %v2637 = vld [vmem:[#allocation4 + $0xc20] sm:$0xff]
    %v2638 = vld [vmem:[#allocation4 + $0xc28] sm:$0xff]
    %v2639 = vld [vmem:[#allocation4 + $0xc30] sm:$0xff]
    %v2640 = vld [vmem:[#allocation4 + $0xc38] sm:$0xff]
    %v2641 = vld [vmem:[#allocation4 + $0xc40] sm:$0xff]
    %v2642 = vld [vmem:[#allocation4 + $0xc48] sm:$0xff]
    %v2643 = vld [vmem:[#allocation4 + $0xc50] sm:$0xff]
    %v2644 = vld [vmem:[#allocation4 + $0xc58] sm:$0xff]
    %v2645 = vld [vmem:[#allocation4 + $0xc60] sm:$0xff]
    %v2646 = vld [vmem:[#allocation4 + $0xc68] sm:$0xff]
    %v2647 = vld [vmem:[#allocation4 + $0xc70] sm:$0xff]
    %v2648 = vld [vmem:[#allocation4 + $0xc78] sm:$0xff]
    %v2649 = vld [vmem:[#allocation4 + $0xc80] sm:$0xff]
    %v2650 = vld [vmem:[#allocation4 + $0xc88] sm:$0xff]
    %v2651 = vld [vmem:[#allocation4 + $0xc90] sm:$0xff]
    %v2652 = vld [vmem:[#allocation4 + $0xc98] sm:$0xff]
    %v2653 = vld [vmem:[#allocation4 + $0xca0] sm:$0xff]
    %v2654 = vld [vmem:[#allocation4 + $0xca8] sm:$0xff]
    %v2655 = vld [vmem:[#allocation4 + $0xcb0] sm:$0xff]
    %v2656 = vld [vmem:[#allocation4 + $0xcb8] sm:$0xff]
    %v2657 = vld [vmem:[#allocation4 + $0xcc0] sm:$0xff]
    %v2658 = vld [vmem:[#allocation4 + $0xcc8] sm:$0xff]
    %v2659 = vld [vmem:[#allocation4 + $0xcd0] sm:$0xff]
    %v2660 = vld [vmem:[#allocation4 + $0xcd8] sm:$0xff]
    %v2661 = vld [vmem:[#allocation4 + $0xce0] sm:$0xff]
    %v2662 = vld [vmem:[#allocation4 + $0xce8] sm:$0xff]
    %v2663 = vld [vmem:[#allocation4 + $0xcf0] sm:$0xff]
    %v2664 = vld [vmem:[#allocation4 + $0xcf8] sm:$0xff]
    %v2665 = vld [vmem:[#allocation4 + $0xd00] sm:$0xff]
    %v2666 = vld [vmem:[#allocation4 + $0xd08] sm:$0xff]
    %v2667 = vld [vmem:[#allocation4 + $0xd10] sm:$0xff]
    %v2668 = vld [vmem:[#allocation4 + $0xd18] sm:$0xff]
    %v2669 = vld [vmem:[#allocation4 + $0xd20] sm:$0xff]
    %v2670 = vld [vmem:[#allocation4 + $0xd28] sm:$0xff]
    %v2671 = vld [vmem:[#allocation4 + $0xd30] sm:$0xff]
    %v2672 = vld [vmem:[#allocation4 + $0xd38] sm:$0xff]
    %v2673 = vld [vmem:[#allocation4 + $0xd40] sm:$0xff]
    %v2674 = vld [vmem:[#allocation4 + $0xd48] sm:$0xff]
    %v2675 = vld [vmem:[#allocation4 + $0xd50] sm:$0xff]
    %v2676 = vld [vmem:[#allocation4 + $0xd58] sm:$0xff]
    %v2677 = vld [vmem:[#allocation4 + $0xd60] sm:$0xff]
    %v2678 = vld [vmem:[#allocation4 + $0xd68] sm:$0xff]
    %v2679 = vld [vmem:[#allocation4 + $0xd70] sm:$0xff]
    %v2680 = vld [vmem:[#allocation4 + $0xd78] sm:$0xff]
    %v2681 = vld [vmem:[#allocation4 + $0xd80] sm:$0xff]
    %v2682 = vld [vmem:[#allocation4 + $0xd88] sm:$0xff]
    %v2683 = vld [vmem:[#allocation4 + $0xd90] sm:$0xff]
    %v2684 = vld [vmem:[#allocation4 + $0xd98] sm:$0xff]
    %v2685 = vld [vmem:[#allocation4 + $0xda0] sm:$0xff]
    %v2686 = vld [vmem:[#allocation4 + $0xda8] sm:$0xff]
    %v2687 = vld [vmem:[#allocation4 + $0xdb0] sm:$0xff]
    %v2688 = vld [vmem:[#allocation4 + $0xdb8] sm:$0xff]
    %v2689 = vld [vmem:[#allocation4 + $0xdc0] sm:$0xff]
    %v2690 = vld [vmem:[#allocation4 + $0xdc8] sm:$0xff]
    %v2691 = vld [vmem:[#allocation4 + $0xdd0] sm:$0xff]
    %v2692 = vld [vmem:[#allocation4 + $0xdd8] sm:$0xff]
    %v2693 = vld [vmem:[#allocation4 + $0xde0] sm:$0xff]
    %v2694 = vld [vmem:[#allocation4 + $0xde8] sm:$0xff]
    %v2695 = vld [vmem:[#allocation4 + $0xdf0] sm:$0xff]
    %v2696 = vld [vmem:[#allocation4 + $0xdf8] sm:$0xff]
    %v2697 = vld [vmem:[#allocation4 + $0xe00] sm:$0xff]
    %v2698 = vld [vmem:[#allocation4 + $0xe08] sm:$0xff]
    %v2699 = vld [vmem:[#allocation4 + $0xe10] sm:$0xff]
    %v2700 = vld [vmem:[#allocation4 + $0xe18] sm:$0xff]
    %v2701 = vld [vmem:[#allocation4 + $0xe20] sm:$0xff]
    %v2702 = vld [vmem:[#allocation4 + $0xe28] sm:$0xff]
    %v2703 = vld [vmem:[#allocation4 + $0xe30] sm:$0xff]
    %v2704 = vld [vmem:[#allocation4 + $0xe38] sm:$0xff]
    %v2705 = vld [vmem:[#allocation4 + $0xe40] sm:$0xff]
    %v2706 = vld [vmem:[#allocation4 + $0xe48] sm:$0xff]
    %v2707 = vld [vmem:[#allocation4 + $0xe50] sm:$0xff]
    %v2708 = vld [vmem:[#allocation4 + $0xe58] sm:$0xff]
    %v2709 = vld [vmem:[#allocation4 + $0xe60] sm:$0xff]
    %v2710 = vld [vmem:[#allocation4 + $0xe68] sm:$0xff]
    %v2711 = vld [vmem:[#allocation4 + $0xe70] sm:$0xff]
    %v2712 = vld [vmem:[#allocation4 + $0xe78] sm:$0xff]
    %v2713 = vld [vmem:[#allocation4 + $0xe80] sm:$0xff]
    %v2714 = vld [vmem:[#allocation4 + $0xe88] sm:$0xff]
    %v2715 = vld [vmem:[#allocation4 + $0xe90] sm:$0xff]
    %v2716 = vld [vmem:[#allocation4 + $0xe98] sm:$0xff]
    %v2717 = vld [vmem:[#allocation4 + $0xea0] sm:$0xff]
    %v2718 = vld [vmem:[#allocation4 + $0xea8] sm:$0xff]
    %v2719 = vld [vmem:[#allocation4 + $0xeb0] sm:$0xff]
    %v2720 = vld [vmem:[#allocation4 + $0xeb8] sm:$0xff]
    %v2721 = vld [vmem:[#allocation4 + $0xec0] sm:$0xff]
    %v2722 = vld [vmem:[#allocation4 + $0xec8] sm:$0xff]
    %v2723 = vld [vmem:[#allocation4 + $0xed0] sm:$0xff]
    %v2724 = vld [vmem:[#allocation4 + $0xed8] sm:$0xff]
    %v2725 = vld [vmem:[#allocation4 + $0xee0] sm:$0xff]
    %v2726 = vld [vmem:[#allocation4 + $0xee8] sm:$0xff]
    %v2727 = vld [vmem:[#allocation4 + $0xef0] sm:$0xff]
    %v2728 = vld [vmem:[#allocation4 + $0xef8] sm:$0xff]
    %v2729 = vld [vmem:[#allocation4 + $0xf00] sm:$0xff]
    %v2730 = vld [vmem:[#allocation4 + $0xf08] sm:$0xff]
    %v2731 = vld [vmem:[#allocation4 + $0xf10] sm:$0xff]
    %v2732 = vld [vmem:[#allocation4 + $0xf18] sm:$0xff]
    %v2733 = vld [vmem:[#allocation4 + $0xf20] sm:$0xff]
    %v2734 = vld [vmem:[#allocation4 + $0xf28] sm:$0xff]
    %v2735 = vld [vmem:[#allocation4 + $0xf30] sm:$0xff]
    %v2736 = vld [vmem:[#allocation4 + $0xf38] sm:$0xff]
    %v2737 = vld [vmem:[#allocation4 + $0xf40] sm:$0xff]
    %v2738 = vld [vmem:[#allocation4 + $0xf48] sm:$0xff]
    %v2739 = vld [vmem:[#allocation4 + $0xf50] sm:$0xff]
    %v2740 = vld [vmem:[#allocation4 + $0xf58] sm:$0xff]
    %v2741 = vld [vmem:[#allocation4 + $0xf60] sm:$0xff]
    %v2742 = vld [vmem:[#allocation4 + $0xf68] sm:$0xff]
    %v2743 = vld [vmem:[#allocation4 + $0xf70] sm:$0xff]
    %v2744 = vld [vmem:[#allocation4 + $0xf78] sm:$0xff]
    %v2745 = vld [vmem:[#allocation4 + $0xf80] sm:$0xff]
    %v2746 = vld [vmem:[#allocation4 + $0xf88] sm:$0xff]
    %v2747 = vld [vmem:[#allocation4 + $0xf90] sm:$0xff]
    %v2748 = vld [vmem:[#allocation4 + $0xf98] sm:$0xff]
    %v2749 = vld [vmem:[#allocation4 + $0xfa0] sm:$0xff]
    %v2750 = vld [vmem:[#allocation4 + $0xfa8] sm:$0xff]
    %v2751 = vld [vmem:[#allocation4 + $0xfb0] sm:$0xff]
    %v2752 = vld [vmem:[#allocation4 + $0xfb8] sm:$0xff]
    %v2753 = vld [vmem:[#allocation4 + $0xfc0] sm:$0xff]
    %v2754 = vld [vmem:[#allocation4 + $0xfc8] sm:$0xff]
    %v2755 = vld [vmem:[#allocation4 + $0xfd0] sm:$0xff]
    %v2756 = vld [vmem:[#allocation4 + $0xfd8] sm:$0xff]
    %v2757 = vld [vmem:[#allocation4 + $0xfe0] sm:$0xff]
    %v2758 = vld [vmem:[#allocation4 + $0xfe8] sm:$0xff]
    %v2759 = vld [vmem:[#allocation4 + $0xff0] sm:$0xff]
    %v2760 = vld [vmem:[#allocation4 + $0xff8] sm:$0xff]
    %v2761 = vld [vmem:[#allocation4 + $0x1000] sm:$0xff]
    %v2762 = vld [vmem:[#allocation4 + $0x1008] sm:$0xff]
    %v2763 = vld [vmem:[#allocation4 + $0x1010] sm:$0xff]
    %v2764 = vld [vmem:[#allocation4 + $0x1018] sm:$0xff]
    %v2765 = vld [vmem:[#allocation4 + $0x1020] sm:$0xff]
    %v2766 = vld [vmem:[#allocation4 + $0x1028] sm:$0xff]
    %v2767 = vld [vmem:[#allocation4 + $0x1030] sm:$0xff]
    %v2768 = vld [vmem:[#allocation4 + $0x1038] sm:$0xff]
    %v2769 = vld [vmem:[#allocation4 + $0x1040] sm:$0xff]
    %v2770 = vld [vmem:[#allocation4 + $0x1048] sm:$0xff]
    %v2771 = vld [vmem:[#allocation4 + $0x1050] sm:$0xff]
    %v2772 = vld [vmem:[#allocation4 + $0x1058] sm:$0xff]
    %v2773 = vld [vmem:[#allocation4 + $0x1060] sm:$0xff]
    %v2774 = vld [vmem:[#allocation4 + $0x1068] sm:$0xff]
    %v2775 = vld [vmem:[#allocation4 + $0x1070] sm:$0xff]
    %v2776 = vld [vmem:[#allocation4 + $0x1078] sm:$0xff]
    %v2777 = vld [vmem:[#allocation4 + $0x1080] sm:$0xff]
    %v2778 = vld [vmem:[#allocation4 + $0x1088] sm:$0xff]
    %v2779 = vld [vmem:[#allocation4 + $0x1090] sm:$0xff]
    %v2780 = vld [vmem:[#allocation4 + $0x1098] sm:$0xff]
    %v2781 = vld [vmem:[#allocation4 + $0x10a0] sm:$0xff]
    %v2782 = vld [vmem:[#allocation4 + $0x10a8] sm:$0xff]
    %v2783 = vld [vmem:[#allocation4 + $0x10b0] sm:$0xff]
    %v2784 = vld [vmem:[#allocation4 + $0x10b8] sm:$0xff]
    %v2785 = vld [vmem:[#allocation4 + $0x10c0] sm:$0xff]
    %v2786 = vld [vmem:[#allocation4 + $0x10c8] sm:$0xff]
    %v2787 = vld [vmem:[#allocation4 + $0x10d0] sm:$0xff]
    %v2788 = vld [vmem:[#allocation4 + $0x10d8] sm:$0xff]
    %v2789 = vld [vmem:[#allocation4 + $0x10e0] sm:$0xff]
    %v2790 = vld [vmem:[#allocation4 + $0x10e8] sm:$0xff]
    %v2791 = vld [vmem:[#allocation4 + $0x10f0] sm:$0xff]
    %v2792 = vld [vmem:[#allocation4 + $0x10f8] sm:$0xff]
    %v2793 = vld [vmem:[#allocation4 + $0x1100] sm:$0xff]
    %v2794 = vld [vmem:[#allocation4 + $0x1108] sm:$0xff]
    %v2795 = vld [vmem:[#allocation4 + $0x1110] sm:$0xff]
    %v2796 = vld [vmem:[#allocation4 + $0x1118] sm:$0xff]
    %v2797 = vld [vmem:[#allocation4 + $0x1120] sm:$0xff]
    %v2798 = vld [vmem:[#allocation4 + $0x1128] sm:$0xff]
    %v2799 = vld [vmem:[#allocation4 + $0x1130] sm:$0xff]
    %v2800 = vld [vmem:[#allocation4 + $0x1138] sm:$0xff]
    %v2801 = vld [vmem:[#allocation4 + $0x1140] sm:$0xff]
    %v2802 = vld [vmem:[#allocation4 + $0x1148] sm:$0xff]
    %v2803 = vld [vmem:[#allocation4 + $0x1150] sm:$0xff]
    %v2804 = vld [vmem:[#allocation4 + $0x1158] sm:$0xff]
    %v2805 = vld [vmem:[#allocation4 + $0x1160] sm:$0xff]
    %v2806 = vld [vmem:[#allocation4 + $0x1168] sm:$0xff]
    %v2807 = vld [vmem:[#allocation4 + $0x1170] sm:$0xff]
    %v2808 = vld [vmem:[#allocation4 + $0x1178] sm:$0xff]
    %v2809 = vld [vmem:[#allocation4 + $0x1180] sm:$0xff]
    %v2810 = vld [vmem:[#allocation4 + $0x1188] sm:$0xff]
    %v2811 = vld [vmem:[#allocation4 + $0x1190] sm:$0xff]
    %v2812 = vld [vmem:[#allocation4 + $0x1198] sm:$0xff]
    %v2813 = vld [vmem:[#allocation4 + $0x11a0] sm:$0xff]
    %v2814 = vld [vmem:[#allocation4 + $0x11a8] sm:$0xff]
    %v2815 = vld [vmem:[#allocation4 + $0x11b0] sm:$0xff]
    %v2816 = vld [vmem:[#allocation4 + $0x11b8] sm:$0xff]
    %v2817 = vld [vmem:[#allocation4 + $0x11c0] sm:$0xff]
    %v2818 = vld [vmem:[#allocation4 + $0x11c8] sm:$0xff]
    %v2819 = vld [vmem:[#allocation4 + $0x11d0] sm:$0xff]
    %v2820 = vld [vmem:[#allocation4 + $0x11d8] sm:$0xff]
    %v2821 = vld [vmem:[#allocation4 + $0x11e0] sm:$0xff]
    %v2822 = vld [vmem:[#allocation4 + $0x11e8] sm:$0xff]
    %v2823 = vld [vmem:[#allocation4 + $0x11f0] sm:$0xff]
    %v2824 = vld [vmem:[#allocation4 + $0x11f8] sm:$0xff]
    %v2825 = vld [vmem:[#allocation4 + $0x1200] sm:$0xff]
    %v2826 = vld [vmem:[#allocation4 + $0x1208] sm:$0xff]
    %v2827 = vld [vmem:[#allocation4 + $0x1210] sm:$0xff]
    %v2828 = vld [vmem:[#allocation4 + $0x1218] sm:$0xff]
    %v2829 = vld [vmem:[#allocation4 + $0x1220] sm:$0xff]
    %v2830 = vld [vmem:[#allocation4 + $0x1228] sm:$0xff]
    %v2831 = vld [vmem:[#allocation4 + $0x1230] sm:$0xff]
    %v2832 = vld [vmem:[#allocation4 + $0x1238] sm:$0xff]
    %v2833 = vld [vmem:[#allocation4 + $0x1240] sm:$0xff]
    %v2834 = vld [vmem:[#allocation4 + $0x1248] sm:$0xff]
    %v2835 = vld [vmem:[#allocation4 + $0x1250] sm:$0xff]
    %v2836 = vld [vmem:[#allocation4 + $0x1258] sm:$0xff]
    %v2837 = vld [vmem:[#allocation4 + $0x1260] sm:$0xff]
    %v2838 = vld [vmem:[#allocation4 + $0x1268] sm:$0xff]
    %v2839 = vld [vmem:[#allocation4 + $0x1270] sm:$0xff]
    %v2840 = vld [vmem:[#allocation4 + $0x1278] sm:$0xff]
    %v2841 = vld [vmem:[#allocation4 + $0x1280] sm:$0xff]
    %v2842 = vld [vmem:[#allocation4 + $0x1288] sm:$0xff]
    %v2843 = vld [vmem:[#allocation4 + $0x1290] sm:$0xff]
    %v2844 = vld [vmem:[#allocation4 + $0x1298] sm:$0xff]
    %v2845 = vld [vmem:[#allocation4 + $0x12a0] sm:$0xff]
    %v2846 = vld [vmem:[#allocation4 + $0x12a8] sm:$0xff]
    %v2847 = vld [vmem:[#allocation4 + $0x12b0] sm:$0xff]
    %v2848 = vld [vmem:[#allocation4 + $0x12b8] sm:$0xff]
    %v2849 = vld [vmem:[#allocation4 + $0x12c0] sm:$0xff]
    %v2850 = vld [vmem:[#allocation4 + $0x12c8] sm:$0xff]
    %v2851 = vld [vmem:[#allocation4 + $0x12d0] sm:$0xff]
    %v2852 = vld [vmem:[#allocation4 + $0x12d8] sm:$0xff]
    %v2853 = vld [vmem:[#allocation4 + $0x12e0] sm:$0xff]
    %v2854 = vld [vmem:[#allocation4 + $0x12e8] sm:$0xff]
    %v2855 = vld [vmem:[#allocation4 + $0x12f0] sm:$0xff]
    %v2856 = vld [vmem:[#allocation4 + $0x12f8] sm:$0xff]
    %v2857 = vld [vmem:[#allocation4 + $0x1300] sm:$0xff]
    %v2858 = vld [vmem:[#allocation4 + $0x1308] sm:$0xff]
    %v2859 = vld [vmem:[#allocation4 + $0x1310] sm:$0xff]
    %v2860 = vld [vmem:[#allocation4 + $0x1318] sm:$0xff]
    %v2861 = vld [vmem:[#allocation4 + $0x1320] sm:$0xff]
    %v2862 = vld [vmem:[#allocation4 + $0x1328] sm:$0xff]
    %v2863 = vld [vmem:[#allocation4 + $0x1330] sm:$0xff]
    %v2864 = vld [vmem:[#allocation4 + $0x1338] sm:$0xff]
    %v2865 = vld [vmem:[#allocation4 + $0x1340] sm:$0xff]
    %v2866 = vld [vmem:[#allocation4 + $0x1348] sm:$0xff]
    %v2867 = vld [vmem:[#allocation4 + $0x1350] sm:$0xff]
    %v2868 = vld [vmem:[#allocation4 + $0x1358] sm:$0xff]
    %v2869 = vld [vmem:[#allocation4 + $0x1360] sm:$0xff]
    %v2870 = vld [vmem:[#allocation4 + $0x1368] sm:$0xff]
    %v2871 = vld [vmem:[#allocation4 + $0x1370] sm:$0xff]
    %v2872 = vld [vmem:[#allocation4 + $0x1378] sm:$0xff]
    %v2873 = vld [vmem:[#allocation4 + $0x1380] sm:$0xff]
    %v2874 = vld [vmem:[#allocation4 + $0x1388] sm:$0xff]
    %v2875 = vld [vmem:[#allocation4 + $0x1390] sm:$0xff]
    %v2876 = vld [vmem:[#allocation4 + $0x1398] sm:$0xff]
    %v2877 = vld [vmem:[#allocation4 + $0x13a0] sm:$0xff]
    %v2878 = vld [vmem:[#allocation4 + $0x13a8] sm:$0xff]
    %v2879 = vld [vmem:[#allocation4 + $0x13b0] sm:$0xff]
    %v2880 = vld [vmem:[#allocation4 + $0x13b8] sm:$0xff]
    %v2881 = vld [vmem:[#allocation4 + $0x13c0] sm:$0xff]
    %v2882 = vld [vmem:[#allocation4 + $0x13c8] sm:$0xff]
    %v2883 = vld [vmem:[#allocation4 + $0x13d0] sm:$0xff]
    %v2884 = vld [vmem:[#allocation4 + $0x13d8] sm:$0xff]
    %v2885 = vld [vmem:[#allocation4 + $0x13e0] sm:$0xff]
    %v2886 = vld [vmem:[#allocation4 + $0x13e8] sm:$0xff]
    %v2887 = vld [vmem:[#allocation4 + $0x13f0] sm:$0xff]
    %v2888 = vld [vmem:[#allocation4 + $0x13f8] sm:$0xff]
    %v2889 = vld [vmem:[#allocation4 + $0x1400] sm:$0xff]
    %v2890 = vld [vmem:[#allocation4 + $0x1408] sm:$0xff]
    %v2891 = vld [vmem:[#allocation4 + $0x1410] sm:$0xff]
    %v2892 = vld [vmem:[#allocation4 + $0x1418] sm:$0xff]
    %v2893 = vld [vmem:[#allocation4 + $0x1420] sm:$0xff]
    %v2894 = vld [vmem:[#allocation4 + $0x1428] sm:$0xff]
    %v2895 = vld [vmem:[#allocation4 + $0x1430] sm:$0xff]
    %v2896 = vld [vmem:[#allocation4 + $0x1438] sm:$0xff]
    %v2897 = vld [vmem:[#allocation4 + $0x1440] sm:$0xff]
    %v2898 = vld [vmem:[#allocation4 + $0x1448] sm:$0xff]
    %v2899 = vld [vmem:[#allocation4 + $0x1450] sm:$0xff]
    %v2900 = vld [vmem:[#allocation4 + $0x1458] sm:$0xff]
    %v2901 = vld [vmem:[#allocation4 + $0x1460] sm:$0xff]
    %v2902 = vld [vmem:[#allocation4 + $0x1468] sm:$0xff]
    %v2903 = vld [vmem:[#allocation4 + $0x1470] sm:$0xff]
    %v2904 = vld [vmem:[#allocation4 + $0x1478] sm:$0xff]
    %v2905 = vld [vmem:[#allocation4 + $0x1480] sm:$0xff]
    %v2906 = vld [vmem:[#allocation4 + $0x1488] sm:$0xff]
    %v2907 = vld [vmem:[#allocation4 + $0x1490] sm:$0xff]
    %v2908 = vld [vmem:[#allocation4 + $0x1498] sm:$0xff]
    %v2909 = vld [vmem:[#allocation4 + $0x14a0] sm:$0xff]
    %v2910 = vld [vmem:[#allocation4 + $0x14a8] sm:$0xff]
    %v2911 = vld [vmem:[#allocation4 + $0x14b0] sm:$0xff]
    %v2912 = vld [vmem:[#allocation4 + $0x14b8] sm:$0xff]
    %v2913 = vld [vmem:[#allocation4 + $0x14c0] sm:$0xff]
    %v2914 = vld [vmem:[#allocation4 + $0x14c8] sm:$0xff]
    %v2915 = vld [vmem:[#allocation4 + $0x14d0] sm:$0xff]
    %v2916 = vld [vmem:[#allocation4 + $0x14d8] sm:$0xff]
    %v2917 = vld [vmem:[#allocation4 + $0x14e0] sm:$0xff]
    %v2918 = vld [vmem:[#allocation4 + $0x14e8] sm:$0xff]
    %v2919 = vld [vmem:[#allocation4 + $0x14f0] sm:$0xff]
    %v2920 = vld [vmem:[#allocation4 + $0x14f8] sm:$0xff]
    %v2921 = vld [vmem:[#allocation4 + $0x1500] sm:$0xff]
    %v2922 = vld [vmem:[#allocation4 + $0x1508] sm:$0xff]
    %v2923 = vld [vmem:[#allocation4 + $0x1510] sm:$0xff]
    %v2924 = vld [vmem:[#allocation4 + $0x1518] sm:$0xff]
    %v2925 = vld [vmem:[#allocation4 + $0x1520] sm:$0xff]
    %v2926 = vld [vmem:[#allocation4 + $0x1528] sm:$0xff]
    %v2927 = vld [vmem:[#allocation4 + $0x1530] sm:$0xff]
    %v2928 = vld [vmem:[#allocation4 + $0x1538] sm:$0xff]
    %v2929 = vld [vmem:[#allocation4 + $0x1540] sm:$0xff]
    %v2930 = vld [vmem:[#allocation4 + $0x1548] sm:$0xff]
    %v2931 = vld [vmem:[#allocation4 + $0x1550] sm:$0xff]
    %v2932 = vld [vmem:[#allocation4 + $0x1558] sm:$0xff]
    %v2933 = vld [vmem:[#allocation4 + $0x1560] sm:$0xff]
    %v2934 = vld [vmem:[#allocation4 + $0x1568] sm:$0xff]
    %v2935 = vld [vmem:[#allocation4 + $0x1570] sm:$0xff]
    %v2936 = vld [vmem:[#allocation4 + $0x1578] sm:$0xff]
    %v2937 = vld [vmem:[#allocation4 + $0x1580] sm:$0xff]
    %v2938 = vld [vmem:[#allocation4 + $0x1588] sm:$0xff]
    %v2939 = vld [vmem:[#allocation4 + $0x1590] sm:$0xff]
    %v2940 = vld [vmem:[#allocation4 + $0x1598] sm:$0xff]
    %v2941 = vld [vmem:[#allocation4 + $0x15a0] sm:$0xff]
    %v2942 = vld [vmem:[#allocation4 + $0x15a8] sm:$0xff]
    %v2943 = vld [vmem:[#allocation4 + $0x15b0] sm:$0xff]
    %v2944 = vld [vmem:[#allocation4 + $0x15b8] sm:$0xff]
    %v2945 = vld [vmem:[#allocation4 + $0x15c0] sm:$0xff]
    %v2946 = vld [vmem:[#allocation4 + $0x15c8] sm:$0xff]
    %v2947 = vld [vmem:[#allocation4 + $0x15d0] sm:$0xff]
    %v2948 = vld [vmem:[#allocation4 + $0x15d8] sm:$0xff]
    %v2949 = vld [vmem:[#allocation4 + $0x15e0] sm:$0xff]
    %v2950 = vld [vmem:[#allocation4 + $0x15e8] sm:$0xff]
    %v2951 = vld [vmem:[#allocation4 + $0x15f0] sm:$0xff]
    %v2952 = vld [vmem:[#allocation4 + $0x15f8] sm:$0xff]
    %v2953 = vld [vmem:[#allocation4 + $0x1600] sm:$0xff]
    %v2954 = vld [vmem:[#allocation4 + $0x1608] sm:$0xff]
    %v2955 = vld [vmem:[#allocation4 + $0x1610] sm:$0xff]
    %v2956 = vld [vmem:[#allocation4 + $0x1618] sm:$0xff]
    %v2957 = vld [vmem:[#allocation4 + $0x1620] sm:$0xff]
    %v2958 = vld [vmem:[#allocation4 + $0x1628] sm:$0xff]
    %v2959 = vld [vmem:[#allocation4 + $0x1630] sm:$0xff]
    %v2960 = vld [vmem:[#allocation4 + $0x1638] sm:$0xff]
    %v2961 = vld [vmem:[#allocation4 + $0x1640] sm:$0xff]
    %v2962 = vld [vmem:[#allocation4 + $0x1648] sm:$0xff]
    %v2963 = vld [vmem:[#allocation4 + $0x1650] sm:$0xff]
    %v2964 = vld [vmem:[#allocation4 + $0x1658] sm:$0xff]
    %v2965 = vld [vmem:[#allocation4 + $0x1660] sm:$0xff]
    %v2966 = vld [vmem:[#allocation4 + $0x1668] sm:$0xff]
    %v2967 = vld [vmem:[#allocation4 + $0x1670] sm:$0xff]
    %v2968 = vld [vmem:[#allocation4 + $0x1678] sm:$0xff]
    %v2969 = vld [vmem:[#allocation4 + $0x1680] sm:$0xff]
    %v2970 = vld [vmem:[#allocation4 + $0x1688] sm:$0xff]
    %v2971 = vld [vmem:[#allocation4 + $0x1690] sm:$0xff]
    %v2972 = vld [vmem:[#allocation4 + $0x1698] sm:$0xff]
    %v2973 = vld [vmem:[#allocation4 + $0x16a0] sm:$0xff]
    %v2974 = vld [vmem:[#allocation4 + $0x16a8] sm:$0xff]
    %v2975 = vld [vmem:[#allocation4 + $0x16b0] sm:$0xff]
    %v2976 = vld [vmem:[#allocation4 + $0x16b8] sm:$0xff]
    %v2977 = vld [vmem:[#allocation4 + $0x16c0] sm:$0xff]
    %v2978 = vld [vmem:[#allocation4 + $0x16c8] sm:$0xff]
    %v2979 = vld [vmem:[#allocation4 + $0x16d0] sm:$0xff]
    %v2980 = vld [vmem:[#allocation4 + $0x16d8] sm:$0xff]
    %v2981 = vld [vmem:[#allocation4 + $0x16e0] sm:$0xff]
    %v2982 = vld [vmem:[#allocation4 + $0x16e8] sm:$0xff]
    %v2983 = vld [vmem:[#allocation4 + $0x16f0] sm:$0xff]
    %v2984 = vld [vmem:[#allocation4 + $0x16f8] sm:$0xff]
    %v2985 = vld [vmem:[#allocation4 + $0x1700] sm:$0xff]
    %v2986 = vld [vmem:[#allocation4 + $0x1708] sm:$0xff]
    %v2987 = vld [vmem:[#allocation4 + $0x1710] sm:$0xff]
    %v2988 = vld [vmem:[#allocation4 + $0x1718] sm:$0xff]
    %v2989 = vld [vmem:[#allocation4 + $0x1720] sm:$0xff]
    %v2990 = vld [vmem:[#allocation4 + $0x1728] sm:$0xff]
    %v2991 = vld [vmem:[#allocation4 + $0x1730] sm:$0xff]
    %v2992 = vld [vmem:[#allocation4 + $0x1738] sm:$0xff]
    %v2993 = vld [vmem:[#allocation4 + $0x1740] sm:$0xff]
    %v2994 = vld [vmem:[#allocation4 + $0x1748] sm:$0xff]
    %v2995 = vld [vmem:[#allocation4 + $0x1750] sm:$0xff]
    %v2996 = vld [vmem:[#allocation4 + $0x1758] sm:$0xff]
    %v2997 = vld [vmem:[#allocation4 + $0x1760] sm:$0xff]
    %v2998 = vld [vmem:[#allocation4 + $0x1768] sm:$0xff]
    %v2999 = vld [vmem:[#allocation4 + $0x1770] sm:$0xff]
    %v3000 = vld [vmem:[#allocation4 + $0x1778] sm:$0xff]
    %v3001 = vld [vmem:[#allocation4 + $0x1780] sm:$0xff]
    %v3002 = vld [vmem:[#allocation4 + $0x1788] sm:$0xff]
    %v3003 = vld [vmem:[#allocation4 + $0x1790] sm:$0xff]
    %v3004 = vld [vmem:[#allocation4 + $0x1798] sm:$0xff]
    %v3005 = vld [vmem:[#allocation4 + $0x17a0] sm:$0xff]
    %v3006 = vld [vmem:[#allocation4 + $0x17a8] sm:$0xff]
    %v3007 = vld [vmem:[#allocation4 + $0x17b0] sm:$0xff]
    %v3008 = vld [vmem:[#allocation4 + $0x17b8] sm:$0xff]
    %v3009 = vld [vmem:[#allocation4 + $0x17c0] sm:$0xff]
    %v3010 = vld [vmem:[#allocation4 + $0x17c8] sm:$0xff]
    %v3011 = vld [vmem:[#allocation4 + $0x17d0] sm:$0xff]
    %v3012 = vld [vmem:[#allocation4 + $0x17d8] sm:$0xff]
    %v3013 = vld [vmem:[#allocation4 + $0x17e0] sm:$0xff]
    %v3014 = vld [vmem:[#allocation4 + $0x17e8] sm:$0xff]
    %v3015 = vld [vmem:[#allocation4 + $0x17f0] sm:$0xff]
    %v3016 = vld [vmem:[#allocation4 + $0x17f8] sm:$0xff]
    %v3017 = vld [vmem:[#allocation4 + $0x1800] sm:$0xff]
    %v3018 = vld [vmem:[#allocation4 + $0x1808] sm:$0xff]
    %v3019 = vld [vmem:[#allocation4 + $0x1810] sm:$0xff]
    %v3020 = vld [vmem:[#allocation4 + $0x1818] sm:$0xff]
    %v3021 = vld [vmem:[#allocation4 + $0x1820] sm:$0xff]
    %v3022 = vld [vmem:[#allocation4 + $0x1828] sm:$0xff]
    %v3023 = vld [vmem:[#allocation4 + $0x1830] sm:$0xff]
    %v3024 = vld [vmem:[#allocation4 + $0x1838] sm:$0xff]
    %v3025 = vld [vmem:[#allocation4 + $0x1840] sm:$0xff]
    %v3026 = vld [vmem:[#allocation4 + $0x1848] sm:$0xff]
    %v3027 = vld [vmem:[#allocation4 + $0x1850] sm:$0xff]
    %v3028 = vld [vmem:[#allocation4 + $0x1858] sm:$0xff]
    %v3029 = vld [vmem:[#allocation4 + $0x1860] sm:$0xff]
    %v3030 = vld [vmem:[#allocation4 + $0x1868] sm:$0xff]
    %v3031 = vld [vmem:[#allocation4 + $0x1870] sm:$0xff]
    %v3032 = vld [vmem:[#allocation4 + $0x1878] sm:$0xff]
    %3033 = vmatpush.msra.mxu0 %v2984
    %3034 = vmatpush.msra.mxu0 %v2935
    %3035 = vmatpush.msra.mxu0 %v2886
    %3036 = vmatpush.msra.mxu0 %v2837
    %3037 = vmatpush.msra.mxu0 %v2788
    %3038 = vmatpush.msra.mxu0 %v2739
    %3039 = vmatpush.msra.mxu0 %v2690
    %3040 = vmatpush.msra.mxu0 %v2641
    %3041 = vmatpush.msra.mxu0 %v2592
    %3042 = vmatpush.msra.mxu0 %v2543
    %3043 = vmatpush.msra.mxu0 %v2494
    %3044 = vmatpush.msra.mxu0 %v2445
    %3045 = vmatpush.msra.mxu0 %v2396
    %3046 = vmatpush.msra.mxu0 %v2347
    %3047 = vmatpush.msra.mxu0 %v2298
    %3048 = vmatpush.msra.mxu0 %v2249
    %3049 = vmatmul.f32.gmra.mxu0 %v2247
    %v3050 = vpop.f32.mrf.mxu0
    %v3051 = vadd.f32 0.0, %v3050
    %3052 = vdwg.mxu0
    %3053 = vmatpush.msra.mxu0 %v2985
    %3054 = vmatpush.msra.mxu0 %v2936
    %3055 = vmatpush.msra.mxu0 %v2887
    %3056 = vmatpush.msra.mxu0 %v2838
    %3057 = vmatpush.msra.mxu0 %v2789
    %3058 = vmatpush.msra.mxu0 %v2740
    %3059 = vmatpush.msra.mxu0 %v2691
    %3060 = vmatpush.msra.mxu0 %v2642
    %3061 = vmatpush.msra.mxu0 %v2593
    %3062 = vmatpush.msra.mxu0 %v2544
    %3063 = vmatpush.msra.mxu0 %v2495
    %3064 = vmatpush.msra.mxu0 %v2446
    %3065 = vmatpush.msra.mxu0 %v2397
    %3066 = vmatpush.msra.mxu0 %v2348
    %3067 = vmatpush.msra.mxu0 %v2299
    %3068 = vmatpush.msra.mxu0 %v2250
    %3069 = vmatmul.f32.gmra.mxu0 %v2247
    %v3070 = vpop.f32.mrf.mxu0
    %v3071 = vadd.f32 0.0, %v3070
    %3072 = vdwg.mxu0
    %3073 = vmatpush.msra.mxu0 %v2986
    %3074 = vmatpush.msra.mxu0 %v2937
    %3075 = vmatpush.msra.mxu0 %v2888
    %3076 = vmatpush.msra.mxu0 %v2839
    %3077 = vmatpush.msra.mxu0 %v2790
    %3078 = vmatpush.msra.mxu0 %v2741
    %3079 = vmatpush.msra.mxu0 %v2692
    %3080 = vmatpush.msra.mxu0 %v2643
    %3081 = vmatpush.msra.mxu0 %v2594
    %3082 = vmatpush.msra.mxu0 %v2545
    %3083 = vmatpush.msra.mxu0 %v2496
    %3084 = vmatpush.msra.mxu0 %v2447
    %3085 = vmatpush.msra.mxu0 %v2398
    %3086 = vmatpush.msra.mxu0 %v2349
    %3087 = vmatpush.msra.mxu0 %v2300
    %3088 = vmatpush.msra.mxu0 %v2251
    %3089 = vmatmul.f32.gmra.mxu0 %v2247
    %v3090 = vpop.f32.mrf.mxu0
    %v3091 = vadd.f32 0.0, %v3090
    %3092 = vdwg.mxu0
    %3093 = vmatpush.msra.mxu0 %v2987
    %3094 = vmatpush.msra.mxu0 %v2938
    %3095 = vmatpush.msra.mxu0 %v2889
    %3096 = vmatpush.msra.mxu0 %v2840
    %3097 = vmatpush.msra.mxu0 %v2791
    %3098 = vmatpush.msra.mxu0 %v2742
    %3099 = vmatpush.msra.mxu0 %v2693
    %3100 = vmatpush.msra.mxu0 %v2644
    %3101 = vmatpush.msra.mxu0 %v2595
    %3102 = vmatpush.msra.mxu0 %v2546
    %3103 = vmatpush.msra.mxu0 %v2497
    %3104 = vmatpush.msra.mxu0 %v2448
    %3105 = vmatpush.msra.mxu0 %v2399
    %3106 = vmatpush.msra.mxu0 %v2350
    %3107 = vmatpush.msra.mxu0 %v2301
    %3108 = vmatpush.msra.mxu0 %v2252
    %3109 = vmatmul.f32.gmra.mxu0 %v2247
    %v3110 = vpop.f32.mrf.mxu0
    %v3111 = vadd.f32 0.0, %v3110
    %3112 = vdwg.mxu0
    %3113 = vmatpush.msra.mxu0 %v2988
    %3114 = vmatpush.msra.mxu0 %v2939
    %3115 = vmatpush.msra.mxu0 %v2890
    %3116 = vmatpush.msra.mxu0 %v2841
    %3117 = vmatpush.msra.mxu0 %v2792
    %3118 = vmatpush.msra.mxu0 %v2743
    %3119 = vmatpush.msra.mxu0 %v2694
    %3120 = vmatpush.msra.mxu0 %v2645
    %3121 = vmatpush.msra.mxu0 %v2596
    %3122 = vmatpush.msra.mxu0 %v2547
    %3123 = vmatpush.msra.mxu0 %v2498
    %3124 = vmatpush.msra.mxu0 %v2449
    %3125 = vmatpush.msra.mxu0 %v2400
    %3126 = vmatpush.msra.mxu0 %v2351
    %3127 = vmatpush.msra.mxu0 %v2302
    %3128 = vmatpush.msra.mxu0 %v2253
    %3129 = vmatmul.f32.gmra.mxu0 %v2247
    %v3130 = vpop.f32.mrf.mxu0
    %v3131 = vadd.f32 0.0, %v3130
    %3132 = vdwg.mxu0
    %3133 = vmatpush.msra.mxu0 %v2989
    %3134 = vmatpush.msra.mxu0 %v2940
    %3135 = vmatpush.msra.mxu0 %v2891
    %3136 = vmatpush.msra.mxu0 %v2842
    %3137 = vmatpush.msra.mxu0 %v2793
    %3138 = vmatpush.msra.mxu0 %v2744
    %3139 = vmatpush.msra.mxu0 %v2695
    %3140 = vmatpush.msra.mxu0 %v2646
    %3141 = vmatpush.msra.mxu0 %v2597
    %3142 = vmatpush.msra.mxu0 %v2548
    %3143 = vmatpush.msra.mxu0 %v2499
    %3144 = vmatpush.msra.mxu0 %v2450
    %3145 = vmatpush.msra.mxu0 %v2401
    %3146 = vmatpush.msra.mxu0 %v2352
    %3147 = vmatpush.msra.mxu0 %v2303
    %3148 = vmatpush.msra.mxu0 %v2254
    %3149 = vmatmul.f32.gmra.mxu0 %v2247
    %v3150 = vpop.f32.mrf.mxu0
    %v3151 = vadd.f32 0.0, %v3150
    %3152 = vdwg.mxu0
    %3153 = vmatpush.msra.mxu0 %v2990
    %3154 = vmatpush.msra.mxu0 %v2941
    %3155 = vmatpush.msra.mxu0 %v2892
    %3156 = vmatpush.msra.mxu0 %v2843
    %3157 = vmatpush.msra.mxu0 %v2794
    %3158 = vmatpush.msra.mxu0 %v2745
    %3159 = vmatpush.msra.mxu0 %v2696
    %3160 = vmatpush.msra.mxu0 %v2647
    %3161 = vmatpush.msra.mxu0 %v2598
    %3162 = vmatpush.msra.mxu0 %v2549
    %3163 = vmatpush.msra.mxu0 %v2500
    %3164 = vmatpush.msra.mxu0 %v2451
    %3165 = vmatpush.msra.mxu0 %v2402
    %3166 = vmatpush.msra.mxu0 %v2353
    %3167 = vmatpush.msra.mxu0 %v2304
    %3168 = vmatpush.msra.mxu0 %v2255
    %3169 = vmatmul.f32.gmra.mxu0 %v2247
    %v3170 = vpop.f32.mrf.mxu0
    %v3171 = vadd.f32 0.0, %v3170
    %3172 = vdwg.mxu0
    %3173 = vmatpush.msra.mxu0 %v2991
    %3174 = vmatpush.msra.mxu0 %v2942
    %3175 = vmatpush.msra.mxu0 %v2893
    %3176 = vmatpush.msra.mxu0 %v2844
    %3177 = vmatpush.msra.mxu0 %v2795
    %3178 = vmatpush.msra.mxu0 %v2746
    %3179 = vmatpush.msra.mxu0 %v2697
    %3180 = vmatpush.msra.mxu0 %v2648
    %3181 = vmatpush.msra.mxu0 %v2599
    %3182 = vmatpush.msra.mxu0 %v2550
    %3183 = vmatpush.msra.mxu0 %v2501
    %3184 = vmatpush.msra.mxu0 %v2452
    %3185 = vmatpush.msra.mxu0 %v2403
    %3186 = vmatpush.msra.mxu0 %v2354
    %3187 = vmatpush.msra.mxu0 %v2305
    %3188 = vmatpush.msra.mxu0 %v2256
    %3189 = vmatmul.f32.gmra.mxu0 %v2247
    %v3190 = vpop.f32.mrf.mxu0
    %v3191 = vadd.f32 0.0, %v3190
    %3192 = vdwg.mxu0
    %3193 = vmatpush.msra.mxu0 %v2992
    %3194 = vmatpush.msra.mxu0 %v2943
    %3195 = vmatpush.msra.mxu0 %v2894
    %3196 = vmatpush.msra.mxu0 %v2845
    %3197 = vmatpush.msra.mxu0 %v2796
    %3198 = vmatpush.msra.mxu0 %v2747
    %3199 = vmatpush.msra.mxu0 %v2698
    %3200 = vmatpush.msra.mxu0 %v2649
    %3201 = vmatpush.msra.mxu0 %v2600
    %3202 = vmatpush.msra.mxu0 %v2551
    %3203 = vmatpush.msra.mxu0 %v2502
    %3204 = vmatpush.msra.mxu0 %v2453
    %3205 = vmatpush.msra.mxu0 %v2404
    %3206 = vmatpush.msra.mxu0 %v2355
    %3207 = vmatpush.msra.mxu0 %v2306
    %3208 = vmatpush.msra.mxu0 %v2257
    %3209 = vmatmul.f32.gmra.mxu0 %v2247
    %v3210 = vpop.f32.mrf.mxu0
    %v3211 = vadd.f32 0.0, %v3210
    %3212 = vdwg.mxu0
    %3213 = vmatpush.msra.mxu0 %v2993
    %3214 = vmatpush.msra.mxu0 %v2944
    %3215 = vmatpush.msra.mxu0 %v2895
    %3216 = vmatpush.msra.mxu0 %v2846
    %3217 = vmatpush.msra.mxu0 %v2797
    %3218 = vmatpush.msra.mxu0 %v2748
    %3219 = vmatpush.msra.mxu0 %v2699
    %3220 = vmatpush.msra.mxu0 %v2650
    %3221 = vmatpush.msra.mxu0 %v2601
    %3222 = vmatpush.msra.mxu0 %v2552
    %3223 = vmatpush.msra.mxu0 %v2503
    %3224 = vmatpush.msra.mxu0 %v2454
    %3225 = vmatpush.msra.mxu0 %v2405
    %3226 = vmatpush.msra.mxu0 %v2356
    %3227 = vmatpush.msra.mxu0 %v2307
    %3228 = vmatpush.msra.mxu0 %v2258
    %3229 = vmatmul.f32.gmra.mxu0 %v2247
    %v3230 = vpop.f32.mrf.mxu0
    %v3231 = vadd.f32 0.0, %v3230
    %3232 = vdwg.mxu0
    %3233 = vmatpush.msra.mxu0 %v2994
    %3234 = vmatpush.msra.mxu0 %v2945
    %3235 = vmatpush.msra.mxu0 %v2896
    %3236 = vmatpush.msra.mxu0 %v2847
    %3237 = vmatpush.msra.mxu0 %v2798
    %3238 = vmatpush.msra.mxu0 %v2749
    %3239 = vmatpush.msra.mxu0 %v2700
    %3240 = vmatpush.msra.mxu0 %v2651
    %3241 = vmatpush.msra.mxu0 %v2602
    %3242 = vmatpush.msra.mxu0 %v2553
    %3243 = vmatpush.msra.mxu0 %v2504
    %3244 = vmatpush.msra.mxu0 %v2455
    %3245 = vmatpush.msra.mxu0 %v2406
    %3246 = vmatpush.msra.mxu0 %v2357
    %3247 = vmatpush.msra.mxu0 %v2308
    %3248 = vmatpush.msra.mxu0 %v2259
    %3249 = vmatmul.f32.gmra.mxu0 %v2247
    %v3250 = vpop.f32.mrf.mxu0
    %v3251 = vadd.f32 0.0, %v3250
    %3252 = vdwg.mxu0
    %3253 = vmatpush.msra.mxu0 %v2995
    %3254 = vmatpush.msra.mxu0 %v2946
    %3255 = vmatpush.msra.mxu0 %v2897
    %3256 = vmatpush.msra.mxu0 %v2848
    %3257 = vmatpush.msra.mxu0 %v2799
    %3258 = vmatpush.msra.mxu0 %v2750
    %3259 = vmatpush.msra.mxu0 %v2701
    %3260 = vmatpush.msra.mxu0 %v2652
    %3261 = vmatpush.msra.mxu0 %v2603
    %3262 = vmatpush.msra.mxu0 %v2554
    %3263 = vmatpush.msra.mxu0 %v2505
    %3264 = vmatpush.msra.mxu0 %v2456
    %3265 = vmatpush.msra.mxu0 %v2407
    %3266 = vmatpush.msra.mxu0 %v2358
    %3267 = vmatpush.msra.mxu0 %v2309
    %3268 = vmatpush.msra.mxu0 %v2260
    %3269 = vmatmul.f32.gmra.mxu0 %v2247
    %v3270 = vpop.f32.mrf.mxu0
    %v3271 = vadd.f32 0.0, %v3270
    %3272 = vdwg.mxu0
    %3273 = vmatpush.msra.mxu0 %v2996
    %3274 = vmatpush.msra.mxu0 %v2947
    %3275 = vmatpush.msra.mxu0 %v2898
    %3276 = vmatpush.msra.mxu0 %v2849
    %3277 = vmatpush.msra.mxu0 %v2800
    %3278 = vmatpush.msra.mxu0 %v2751
    %3279 = vmatpush.msra.mxu0 %v2702
    %3280 = vmatpush.msra.mxu0 %v2653
    %3281 = vmatpush.msra.mxu0 %v2604
    %3282 = vmatpush.msra.mxu0 %v2555
    %3283 = vmatpush.msra.mxu0 %v2506
    %3284 = vmatpush.msra.mxu0 %v2457
    %3285 = vmatpush.msra.mxu0 %v2408
    %3286 = vmatpush.msra.mxu0 %v2359
    %3287 = vmatpush.msra.mxu0 %v2310
    %3288 = vmatpush.msra.mxu0 %v2261
    %3289 = vmatmul.f32.gmra.mxu0 %v2247
    %v3290 = vpop.f32.mrf.mxu0
    %v3291 = vadd.f32 0.0, %v3290
    %3292 = vdwg.mxu0
    %3293 = vmatpush.msra.mxu0 %v2997
    %3294 = vmatpush.msra.mxu0 %v2948
    %3295 = vmatpush.msra.mxu0 %v2899
    %3296 = vmatpush.msra.mxu0 %v2850
    %3297 = vmatpush.msra.mxu0 %v2801
    %3298 = vmatpush.msra.mxu0 %v2752
    %3299 = vmatpush.msra.mxu0 %v2703
    %3300 = vmatpush.msra.mxu0 %v2654
    %3301 = vmatpush.msra.mxu0 %v2605
    %3302 = vmatpush.msra.mxu0 %v2556
    %3303 = vmatpush.msra.mxu0 %v2507
    %3304 = vmatpush.msra.mxu0 %v2458
    %3305 = vmatpush.msra.mxu0 %v2409
    %3306 = vmatpush.msra.mxu0 %v2360
    %3307 = vmatpush.msra.mxu0 %v2311
    %3308 = vmatpush.msra.mxu0 %v2262
    %3309 = vmatmul.f32.gmra.mxu0 %v2247
    %v3310 = vpop.f32.mrf.mxu0
    %v3311 = vadd.f32 0.0, %v3310
    %3312 = vdwg.mxu0
    %3313 = vmatpush.msra.mxu0 %v2998
    %3314 = vmatpush.msra.mxu0 %v2949
    %3315 = vmatpush.msra.mxu0 %v2900
    %3316 = vmatpush.msra.mxu0 %v2851
    %3317 = vmatpush.msra.mxu0 %v2802
    %3318 = vmatpush.msra.mxu0 %v2753
    %3319 = vmatpush.msra.mxu0 %v2704
    %3320 = vmatpush.msra.mxu0 %v2655
    %3321 = vmatpush.msra.mxu0 %v2606
    %3322 = vmatpush.msra.mxu0 %v2557
    %3323 = vmatpush.msra.mxu0 %v2508
    %3324 = vmatpush.msra.mxu0 %v2459
    %3325 = vmatpush.msra.mxu0 %v2410
    %3326 = vmatpush.msra.mxu0 %v2361
    %3327 = vmatpush.msra.mxu0 %v2312
    %3328 = vmatpush.msra.mxu0 %v2263
    %3329 = vmatmul.f32.gmra.mxu0 %v2247
    %v3330 = vpop.f32.mrf.mxu0
    %v3331 = vadd.f32 0.0, %v3330
    %3332 = vdwg.mxu0
    %3333 = vmatpush.msra.mxu0 %v2999
    %3334 = vmatpush.msra.mxu0 %v2950
    %3335 = vmatpush.msra.mxu0 %v2901
    %3336 = vmatpush.msra.mxu0 %v2852
    %3337 = vmatpush.msra.mxu0 %v2803
    %3338 = vmatpush.msra.mxu0 %v2754
    %3339 = vmatpush.msra.mxu0 %v2705
    %3340 = vmatpush.msra.mxu0 %v2656
    %3341 = vmatpush.msra.mxu0 %v2607
    %3342 = vmatpush.msra.mxu0 %v2558
    %3343 = vmatpush.msra.mxu0 %v2509
    %3344 = vmatpush.msra.mxu0 %v2460
    %3345 = vmatpush.msra.mxu0 %v2411
    %3346 = vmatpush.msra.mxu0 %v2362
    %3347 = vmatpush.msra.mxu0 %v2313
    %3348 = vmatpush.msra.mxu0 %v2264
    %3349 = vmatmul.f32.gmra.mxu0 %v2247
    %v3350 = vpop.f32.mrf.mxu0
    %v3351 = vadd.f32 0.0, %v3350
    %3352 = vdwg.mxu0
    %3353 = vmatpush.msra.mxu0 %v3000
    %3354 = vmatpush.msra.mxu0 %v2951
    %3355 = vmatpush.msra.mxu0 %v2902
    %3356 = vmatpush.msra.mxu0 %v2853
    %3357 = vmatpush.msra.mxu0 %v2804
    %3358 = vmatpush.msra.mxu0 %v2755
    %3359 = vmatpush.msra.mxu0 %v2706
    %3360 = vmatpush.msra.mxu0 %v2657
    %3361 = vmatpush.msra.mxu0 %v2608
    %3362 = vmatpush.msra.mxu0 %v2559
    %3363 = vmatpush.msra.mxu0 %v2510
    %3364 = vmatpush.msra.mxu0 %v2461
    %3365 = vmatpush.msra.mxu0 %v2412
    %3366 = vmatpush.msra.mxu0 %v2363
    %3367 = vmatpush.msra.mxu0 %v2314
    %3368 = vmatpush.msra.mxu0 %v2265
    %3369 = vmatmul.f32.gmra.mxu0 %v2247
    %v3370 = vpop.f32.mrf.mxu0
    %v3371 = vadd.f32 0.0, %v3370
    %3372 = vdwg.mxu0
    %3373 = vmatpush.msra.mxu0 %v3001
    %3374 = vmatpush.msra.mxu0 %v2952
    %3375 = vmatpush.msra.mxu0 %v2903
    %3376 = vmatpush.msra.mxu0 %v2854
    %3377 = vmatpush.msra.mxu0 %v2805
    %3378 = vmatpush.msra.mxu0 %v2756
    %3379 = vmatpush.msra.mxu0 %v2707
    %3380 = vmatpush.msra.mxu0 %v2658
    %3381 = vmatpush.msra.mxu0 %v2609
    %3382 = vmatpush.msra.mxu0 %v2560
    %3383 = vmatpush.msra.mxu0 %v2511
    %3384 = vmatpush.msra.mxu0 %v2462
    %3385 = vmatpush.msra.mxu0 %v2413
    %3386 = vmatpush.msra.mxu0 %v2364
    %3387 = vmatpush.msra.mxu0 %v2315
    %3388 = vmatpush.msra.mxu0 %v2266
    %3389 = vmatmul.f32.gmra.mxu0 %v2247
    %v3390 = vpop.f32.mrf.mxu0
    %v3391 = vadd.f32 0.0, %v3390
    %3392 = vdwg.mxu0
    %3393 = vmatpush.msra.mxu0 %v3002
    %3394 = vmatpush.msra.mxu0 %v2953
    %3395 = vmatpush.msra.mxu0 %v2904
    %3396 = vmatpush.msra.mxu0 %v2855
    %3397 = vmatpush.msra.mxu0 %v2806
    %3398 = vmatpush.msra.mxu0 %v2757
    %3399 = vmatpush.msra.mxu0 %v2708
    %3400 = vmatpush.msra.mxu0 %v2659
    %3401 = vmatpush.msra.mxu0 %v2610
    %3402 = vmatpush.msra.mxu0 %v2561
    %3403 = vmatpush.msra.mxu0 %v2512
    %3404 = vmatpush.msra.mxu0 %v2463
    %3405 = vmatpush.msra.mxu0 %v2414
    %3406 = vmatpush.msra.mxu0 %v2365
    %3407 = vmatpush.msra.mxu0 %v2316
    %3408 = vmatpush.msra.mxu0 %v2267
    %3409 = vmatmul.f32.gmra.mxu0 %v2247
    %v3410 = vpop.f32.mrf.mxu0
    %v3411 = vadd.f32 0.0, %v3410
    %3412 = vdwg.mxu0
    %3413 = vmatpush.msra.mxu0 %v3003
    %3414 = vmatpush.msra.mxu0 %v2954
    %3415 = vmatpush.msra.mxu0 %v2905
    %3416 = vmatpush.msra.mxu0 %v2856
    %3417 = vmatpush.msra.mxu0 %v2807
    %3418 = vmatpush.msra.mxu0 %v2758
    %3419 = vmatpush.msra.mxu0 %v2709
    %3420 = vmatpush.msra.mxu0 %v2660
    %3421 = vmatpush.msra.mxu0 %v2611
    %3422 = vmatpush.msra.mxu0 %v2562
    %3423 = vmatpush.msra.mxu0 %v2513
    %3424 = vmatpush.msra.mxu0 %v2464
    %3425 = vmatpush.msra.mxu0 %v2415
    %3426 = vmatpush.msra.mxu0 %v2366
    %3427 = vmatpush.msra.mxu0 %v2317
    %3428 = vmatpush.msra.mxu0 %v2268
    %3429 = vmatmul.f32.gmra.mxu0 %v2247
    %v3430 = vpop.f32.mrf.mxu0
    %v3431 = vadd.f32 0.0, %v3430
    %3432 = vdwg.mxu0
    %3433 = vmatpush.msra.mxu0 %v3004
    %3434 = vmatpush.msra.mxu0 %v2955
    %3435 = vmatpush.msra.mxu0 %v2906
    %3436 = vmatpush.msra.mxu0 %v2857
    %3437 = vmatpush.msra.mxu0 %v2808
    %3438 = vmatpush.msra.mxu0 %v2759
    %3439 = vmatpush.msra.mxu0 %v2710
    %3440 = vmatpush.msra.mxu0 %v2661
    %3441 = vmatpush.msra.mxu0 %v2612
    %3442 = vmatpush.msra.mxu0 %v2563
    %3443 = vmatpush.msra.mxu0 %v2514
    %3444 = vmatpush.msra.mxu0 %v2465
    %3445 = vmatpush.msra.mxu0 %v2416
    %3446 = vmatpush.msra.mxu0 %v2367
    %3447 = vmatpush.msra.mxu0 %v2318
    %3448 = vmatpush.msra.mxu0 %v2269
    %3449 = vmatmul.f32.gmra.mxu0 %v2247
    %v3450 = vpop.f32.mrf.mxu0
    %v3451 = vadd.f32 0.0, %v3450
    %3452 = vdwg.mxu0
    %3453 = vmatpush.msra.mxu0 %v3005
    %3454 = vmatpush.msra.mxu0 %v2956
    %3455 = vmatpush.msra.mxu0 %v2907
    %3456 = vmatpush.msra.mxu0 %v2858
    %3457 = vmatpush.msra.mxu0 %v2809
    %3458 = vmatpush.msra.mxu0 %v2760
    %3459 = vmatpush.msra.mxu0 %v2711
    %3460 = vmatpush.msra.mxu0 %v2662
    %3461 = vmatpush.msra.mxu0 %v2613
    %3462 = vmatpush.msra.mxu0 %v2564
    %3463 = vmatpush.msra.mxu0 %v2515
    %3464 = vmatpush.msra.mxu0 %v2466
    %3465 = vmatpush.msra.mxu0 %v2417
    %3466 = vmatpush.msra.mxu0 %v2368
    %3467 = vmatpush.msra.mxu0 %v2319
    %3468 = vmatpush.msra.mxu0 %v2270
    %3469 = vmatmul.f32.gmra.mxu0 %v2247
    %v3470 = vpop.f32.mrf.mxu0
    %v3471 = vadd.f32 0.0, %v3470
    %3472 = vdwg.mxu0
    %3473 = vmatpush.msra.mxu0 %v3006
    %3474 = vmatpush.msra.mxu0 %v2957
    %3475 = vmatpush.msra.mxu0 %v2908
    %3476 = vmatpush.msra.mxu0 %v2859
    %3477 = vmatpush.msra.mxu0 %v2810
    %3478 = vmatpush.msra.mxu0 %v2761
    %3479 = vmatpush.msra.mxu0 %v2712
    %3480 = vmatpush.msra.mxu0 %v2663
    %3481 = vmatpush.msra.mxu0 %v2614
    %3482 = vmatpush.msra.mxu0 %v2565
    %3483 = vmatpush.msra.mxu0 %v2516
    %3484 = vmatpush.msra.mxu0 %v2467
    %3485 = vmatpush.msra.mxu0 %v2418
    %3486 = vmatpush.msra.mxu0 %v2369
    %3487 = vmatpush.msra.mxu0 %v2320
    %3488 = vmatpush.msra.mxu0 %v2271
    %3489 = vmatmul.f32.gmra.mxu0 %v2247
    %v3490 = vpop.f32.mrf.mxu0
    %v3491 = vadd.f32 0.0, %v3490
    %3492 = vdwg.mxu0
    %3493 = vmatpush.msra.mxu0 %v3007
    %3494 = vmatpush.msra.mxu0 %v2958
    %3495 = vmatpush.msra.mxu0 %v2909
    %3496 = vmatpush.msra.mxu0 %v2860
    %3497 = vmatpush.msra.mxu0 %v2811
    %3498 = vmatpush.msra.mxu0 %v2762
    %3499 = vmatpush.msra.mxu0 %v2713
    %3500 = vmatpush.msra.mxu0 %v2664
    %3501 = vmatpush.msra.mxu0 %v2615
    %3502 = vmatpush.msra.mxu0 %v2566
    %3503 = vmatpush.msra.mxu0 %v2517
    %3504 = vmatpush.msra.mxu0 %v2468
    %3505 = vmatpush.msra.mxu0 %v2419
    %3506 = vmatpush.msra.mxu0 %v2370
    %3507 = vmatpush.msra.mxu0 %v2321
    %3508 = vmatpush.msra.mxu0 %v2272
    %3509 = vmatmul.f32.gmra.mxu0 %v2247
    %v3510 = vpop.f32.mrf.mxu0
    %v3511 = vadd.f32 0.0, %v3510
    %3512 = vdwg.mxu0
    %3513 = vmatpush.msra.mxu0 %v3008
    %3514 = vmatpush.msra.mxu0 %v2959
    %3515 = vmatpush.msra.mxu0 %v2910
    %3516 = vmatpush.msra.mxu0 %v2861
    %3517 = vmatpush.msra.mxu0 %v2812
    %3518 = vmatpush.msra.mxu0 %v2763
    %3519 = vmatpush.msra.mxu0 %v2714
    %3520 = vmatpush.msra.mxu0 %v2665
    %3521 = vmatpush.msra.mxu0 %v2616
    %3522 = vmatpush.msra.mxu0 %v2567
    %3523 = vmatpush.msra.mxu0 %v2518
    %3524 = vmatpush.msra.mxu0 %v2469
    %3525 = vmatpush.msra.mxu0 %v2420
    %3526 = vmatpush.msra.mxu0 %v2371
    %3527 = vmatpush.msra.mxu0 %v2322
    %3528 = vmatpush.msra.mxu0 %v2273
    %3529 = vmatmul.f32.gmra.mxu0 %v2247
    %v3530 = vpop.f32.mrf.mxu0
    %v3531 = vadd.f32 0.0, %v3530
    %3532 = vdwg.mxu0
    %3533 = vmatpush.msra.mxu0 %v3009
    %3534 = vmatpush.msra.mxu0 %v2960
    %3535 = vmatpush.msra.mxu0 %v2911
    %3536 = vmatpush.msra.mxu0 %v2862
    %3537 = vmatpush.msra.mxu0 %v2813
    %3538 = vmatpush.msra.mxu0 %v2764
    %3539 = vmatpush.msra.mxu0 %v2715
    %3540 = vmatpush.msra.mxu0 %v2666
    %3541 = vmatpush.msra.mxu0 %v2617
    %3542 = vmatpush.msra.mxu0 %v2568
    %3543 = vmatpush.msra.mxu0 %v2519
    %3544 = vmatpush.msra.mxu0 %v2470
    %3545 = vmatpush.msra.mxu0 %v2421
    %3546 = vmatpush.msra.mxu0 %v2372
    %3547 = vmatpush.msra.mxu0 %v2323
    %3548 = vmatpush.msra.mxu0 %v2274
    %3549 = vmatmul.f32.gmra.mxu0 %v2247
    %v3550 = vpop.f32.mrf.mxu0
    %v3551 = vadd.f32 0.0, %v3550
    %3552 = vdwg.mxu0
    %3553 = vmatpush.msra.mxu0 %v3010
    %3554 = vmatpush.msra.mxu0 %v2961
    %3555 = vmatpush.msra.mxu0 %v2912
    %3556 = vmatpush.msra.mxu0 %v2863
    %3557 = vmatpush.msra.mxu0 %v2814
    %3558 = vmatpush.msra.mxu0 %v2765
    %3559 = vmatpush.msra.mxu0 %v2716
    %3560 = vmatpush.msra.mxu0 %v2667
    %3561 = vmatpush.msra.mxu0 %v2618
    %3562 = vmatpush.msra.mxu0 %v2569
    %3563 = vmatpush.msra.mxu0 %v2520
    %3564 = vmatpush.msra.mxu0 %v2471
    %3565 = vmatpush.msra.mxu0 %v2422
    %3566 = vmatpush.msra.mxu0 %v2373
    %3567 = vmatpush.msra.mxu0 %v2324
    %3568 = vmatpush.msra.mxu0 %v2275
    %3569 = vmatmul.f32.gmra.mxu0 %v2247
    %v3570 = vpop.f32.mrf.mxu0
    %v3571 = vadd.f32 0.0, %v3570
    %3572 = vdwg.mxu0
    %3573 = vmatpush.msra.mxu0 %v3011
    %3574 = vmatpush.msra.mxu0 %v2962
    %3575 = vmatpush.msra.mxu0 %v2913
    %3576 = vmatpush.msra.mxu0 %v2864
    %3577 = vmatpush.msra.mxu0 %v2815
    %3578 = vmatpush.msra.mxu0 %v2766
    %3579 = vmatpush.msra.mxu0 %v2717
    %3580 = vmatpush.msra.mxu0 %v2668
    %3581 = vmatpush.msra.mxu0 %v2619
    %3582 = vmatpush.msra.mxu0 %v2570
    %3583 = vmatpush.msra.mxu0 %v2521
    %3584 = vmatpush.msra.mxu0 %v2472
    %3585 = vmatpush.msra.mxu0 %v2423
    %3586 = vmatpush.msra.mxu0 %v2374
    %3587 = vmatpush.msra.mxu0 %v2325
    %3588 = vmatpush.msra.mxu0 %v2276
    %3589 = vmatmul.f32.gmra.mxu0 %v2247
    %v3590 = vpop.f32.mrf.mxu0
    %v3591 = vadd.f32 0.0, %v3590
    %3592 = vdwg.mxu0
    %3593 = vmatpush.msra.mxu0 %v3012
    %3594 = vmatpush.msra.mxu0 %v2963
    %3595 = vmatpush.msra.mxu0 %v2914
    %3596 = vmatpush.msra.mxu0 %v2865
    %3597 = vmatpush.msra.mxu0 %v2816
    %3598 = vmatpush.msra.mxu0 %v2767
    %3599 = vmatpush.msra.mxu0 %v2718
    %3600 = vmatpush.msra.mxu0 %v2669
    %3601 = vmatpush.msra.mxu0 %v2620
    %3602 = vmatpush.msra.mxu0 %v2571
    %3603 = vmatpush.msra.mxu0 %v2522
    %3604 = vmatpush.msra.mxu0 %v2473
    %3605 = vmatpush.msra.mxu0 %v2424
    %3606 = vmatpush.msra.mxu0 %v2375
    %3607 = vmatpush.msra.mxu0 %v2326
    %3608 = vmatpush.msra.mxu0 %v2277
    %3609 = vmatmul.f32.gmra.mxu0 %v2247
    %v3610 = vpop.f32.mrf.mxu0
    %v3611 = vadd.f32 0.0, %v3610
    %3612 = vdwg.mxu0
    %3613 = vmatpush.msra.mxu0 %v3013
    %3614 = vmatpush.msra.mxu0 %v2964
    %3615 = vmatpush.msra.mxu0 %v2915
    %3616 = vmatpush.msra.mxu0 %v2866
    %3617 = vmatpush.msra.mxu0 %v2817
    %3618 = vmatpush.msra.mxu0 %v2768
    %3619 = vmatpush.msra.mxu0 %v2719
    %3620 = vmatpush.msra.mxu0 %v2670
    %3621 = vmatpush.msra.mxu0 %v2621
    %3622 = vmatpush.msra.mxu0 %v2572
    %3623 = vmatpush.msra.mxu0 %v2523
    %3624 = vmatpush.msra.mxu0 %v2474
    %3625 = vmatpush.msra.mxu0 %v2425
    %3626 = vmatpush.msra.mxu0 %v2376
    %3627 = vmatpush.msra.mxu0 %v2327
    %3628 = vmatpush.msra.mxu0 %v2278
    %3629 = vmatmul.f32.gmra.mxu0 %v2247
    %v3630 = vpop.f32.mrf.mxu0
    %v3631 = vadd.f32 0.0, %v3630
    %3632 = vdwg.mxu0
    %3633 = vmatpush.msra.mxu0 %v3014
    %3634 = vmatpush.msra.mxu0 %v2965
    %3635 = vmatpush.msra.mxu0 %v2916
    %3636 = vmatpush.msra.mxu0 %v2867
    %3637 = vmatpush.msra.mxu0 %v2818
    %3638 = vmatpush.msra.mxu0 %v2769
    %3639 = vmatpush.msra.mxu0 %v2720
    %3640 = vmatpush.msra.mxu0 %v2671
    %3641 = vmatpush.msra.mxu0 %v2622
    %3642 = vmatpush.msra.mxu0 %v2573
    %3643 = vmatpush.msra.mxu0 %v2524
    %3644 = vmatpush.msra.mxu0 %v2475
    %3645 = vmatpush.msra.mxu0 %v2426
    %3646 = vmatpush.msra.mxu0 %v2377
    %3647 = vmatpush.msra.mxu0 %v2328
    %3648 = vmatpush.msra.mxu0 %v2279
    %3649 = vmatmul.f32.gmra.mxu0 %v2247
    %v3650 = vpop.f32.mrf.mxu0
    %v3651 = vadd.f32 0.0, %v3650
    %3652 = vdwg.mxu0
    %3653 = vmatpush.msra.mxu0 %v3015
    %3654 = vmatpush.msra.mxu0 %v2966
    %3655 = vmatpush.msra.mxu0 %v2917
    %3656 = vmatpush.msra.mxu0 %v2868
    %3657 = vmatpush.msra.mxu0 %v2819
    %3658 = vmatpush.msra.mxu0 %v2770
    %3659 = vmatpush.msra.mxu0 %v2721
    %3660 = vmatpush.msra.mxu0 %v2672
    %3661 = vmatpush.msra.mxu0 %v2623
    %3662 = vmatpush.msra.mxu0 %v2574
    %3663 = vmatpush.msra.mxu0 %v2525
    %3664 = vmatpush.msra.mxu0 %v2476
    %3665 = vmatpush.msra.mxu0 %v2427
    %3666 = vmatpush.msra.mxu0 %v2378
    %3667 = vmatpush.msra.mxu0 %v2329
    %3668 = vmatpush.msra.mxu0 %v2280
    %3669 = vmatmul.f32.gmra.mxu0 %v2247
    %v3670 = vpop.f32.mrf.mxu0
    %v3671 = vadd.f32 0.0, %v3670
    %3672 = vdwg.mxu0
    %3673 = vmatpush.msra.mxu0 %v3016
    %3674 = vmatpush.msra.mxu0 %v2967
    %3675 = vmatpush.msra.mxu0 %v2918
    %3676 = vmatpush.msra.mxu0 %v2869
    %3677 = vmatpush.msra.mxu0 %v2820
    %3678 = vmatpush.msra.mxu0 %v2771
    %3679 = vmatpush.msra.mxu0 %v2722
    %3680 = vmatpush.msra.mxu0 %v2673
    %3681 = vmatpush.msra.mxu0 %v2624
    %3682 = vmatpush.msra.mxu0 %v2575
    %3683 = vmatpush.msra.mxu0 %v2526
    %3684 = vmatpush.msra.mxu0 %v2477
    %3685 = vmatpush.msra.mxu0 %v2428
    %3686 = vmatpush.msra.mxu0 %v2379
    %3687 = vmatpush.msra.mxu0 %v2330
    %3688 = vmatpush.msra.mxu0 %v2281
    %3689 = vmatmul.f32.gmra.mxu0 %v2247
    %v3690 = vpop.f32.mrf.mxu0
    %v3691 = vadd.f32 0.0, %v3690
    %3692 = vdwg.mxu0
    %3693 = vmatpush.msra.mxu0 %v3017
    %3694 = vmatpush.msra.mxu0 %v2968
    %3695 = vmatpush.msra.mxu0 %v2919
    %3696 = vmatpush.msra.mxu0 %v2870
    %3697 = vmatpush.msra.mxu0 %v2821
    %3698 = vmatpush.msra.mxu0 %v2772
    %3699 = vmatpush.msra.mxu0 %v2723
    %3700 = vmatpush.msra.mxu0 %v2674
    %3701 = vmatpush.msra.mxu0 %v2625
    %3702 = vmatpush.msra.mxu0 %v2576
    %3703 = vmatpush.msra.mxu0 %v2527
    %3704 = vmatpush.msra.mxu0 %v2478
    %3705 = vmatpush.msra.mxu0 %v2429
    %3706 = vmatpush.msra.mxu0 %v2380
    %3707 = vmatpush.msra.mxu0 %v2331
    %3708 = vmatpush.msra.mxu0 %v2282
    %3709 = vmatmul.f32.gmra.mxu0 %v2247
    %v3710 = vpop.f32.mrf.mxu0
    %v3711 = vadd.f32 0.0, %v3710
    %3712 = vdwg.mxu0
    %3713 = vmatpush.msra.mxu0 %v3018
    %3714 = vmatpush.msra.mxu0 %v2969
    %3715 = vmatpush.msra.mxu0 %v2920
    %3716 = vmatpush.msra.mxu0 %v2871
    %3717 = vmatpush.msra.mxu0 %v2822
    %3718 = vmatpush.msra.mxu0 %v2773
    %3719 = vmatpush.msra.mxu0 %v2724
    %3720 = vmatpush.msra.mxu0 %v2675
    %3721 = vmatpush.msra.mxu0 %v2626
    %3722 = vmatpush.msra.mxu0 %v2577
    %3723 = vmatpush.msra.mxu0 %v2528
    %3724 = vmatpush.msra.mxu0 %v2479
    %3725 = vmatpush.msra.mxu0 %v2430
    %3726 = vmatpush.msra.mxu0 %v2381
    %3727 = vmatpush.msra.mxu0 %v2332
    %3728 = vmatpush.msra.mxu0 %v2283
    %3729 = vmatmul.f32.gmra.mxu0 %v2247
    %v3730 = vpop.f32.mrf.mxu0
    %v3731 = vadd.f32 0.0, %v3730
    %3732 = vdwg.mxu0
    %3733 = vmatpush.msra.mxu0 %v3019
    %3734 = vmatpush.msra.mxu0 %v2970
    %3735 = vmatpush.msra.mxu0 %v2921
    %3736 = vmatpush.msra.mxu0 %v2872
    %3737 = vmatpush.msra.mxu0 %v2823
    %3738 = vmatpush.msra.mxu0 %v2774
    %3739 = vmatpush.msra.mxu0 %v2725
    %3740 = vmatpush.msra.mxu0 %v2676
    %3741 = vmatpush.msra.mxu0 %v2627
    %3742 = vmatpush.msra.mxu0 %v2578
    %3743 = vmatpush.msra.mxu0 %v2529
    %3744 = vmatpush.msra.mxu0 %v2480
    %3745 = vmatpush.msra.mxu0 %v2431
    %3746 = vmatpush.msra.mxu0 %v2382
    %3747 = vmatpush.msra.mxu0 %v2333
    %3748 = vmatpush.msra.mxu0 %v2284
    %3749 = vmatmul.f32.gmra.mxu0 %v2247
    %v3750 = vpop.f32.mrf.mxu0
    %v3751 = vadd.f32 0.0, %v3750
    %3752 = vdwg.mxu0
    %3753 = vmatpush.msra.mxu0 %v3020
    %3754 = vmatpush.msra.mxu0 %v2971
    %3755 = vmatpush.msra.mxu0 %v2922
    %3756 = vmatpush.msra.mxu0 %v2873
    %3757 = vmatpush.msra.mxu0 %v2824
    %3758 = vmatpush.msra.mxu0 %v2775
    %3759 = vmatpush.msra.mxu0 %v2726
    %3760 = vmatpush.msra.mxu0 %v2677
    %3761 = vmatpush.msra.mxu0 %v2628
    %3762 = vmatpush.msra.mxu0 %v2579
    %3763 = vmatpush.msra.mxu0 %v2530
    %3764 = vmatpush.msra.mxu0 %v2481
    %3765 = vmatpush.msra.mxu0 %v2432
    %3766 = vmatpush.msra.mxu0 %v2383
    %3767 = vmatpush.msra.mxu0 %v2334
    %3768 = vmatpush.msra.mxu0 %v2285
    %3769 = vmatmul.f32.gmra.mxu0 %v2247
    %v3770 = vpop.f32.mrf.mxu0
    %v3771 = vadd.f32 0.0, %v3770
    %3772 = vdwg.mxu0
    %3773 = vmatpush.msra.mxu0 %v3021
    %3774 = vmatpush.msra.mxu0 %v2972
    %3775 = vmatpush.msra.mxu0 %v2923
    %3776 = vmatpush.msra.mxu0 %v2874
    %3777 = vmatpush.msra.mxu0 %v2825
    %3778 = vmatpush.msra.mxu0 %v2776
    %3779 = vmatpush.msra.mxu0 %v2727
    %3780 = vmatpush.msra.mxu0 %v2678
    %3781 = vmatpush.msra.mxu0 %v2629
    %3782 = vmatpush.msra.mxu0 %v2580
    %3783 = vmatpush.msra.mxu0 %v2531
    %3784 = vmatpush.msra.mxu0 %v2482
    %3785 = vmatpush.msra.mxu0 %v2433
    %3786 = vmatpush.msra.mxu0 %v2384
    %3787 = vmatpush.msra.mxu0 %v2335
    %3788 = vmatpush.msra.mxu0 %v2286
    %3789 = vmatmul.f32.gmra.mxu0 %v2247
    %v3790 = vpop.f32.mrf.mxu0
    %v3791 = vadd.f32 0.0, %v3790
    %3792 = vdwg.mxu0
    %3793 = vmatpush.msra.mxu0 %v3022
    %3794 = vmatpush.msra.mxu0 %v2973
    %3795 = vmatpush.msra.mxu0 %v2924
    %3796 = vmatpush.msra.mxu0 %v2875
    %3797 = vmatpush.msra.mxu0 %v2826
    %3798 = vmatpush.msra.mxu0 %v2777
    %3799 = vmatpush.msra.mxu0 %v2728
    %3800 = vmatpush.msra.mxu0 %v2679
    %3801 = vmatpush.msra.mxu0 %v2630
    %3802 = vmatpush.msra.mxu0 %v2581
    %3803 = vmatpush.msra.mxu0 %v2532
    %3804 = vmatpush.msra.mxu0 %v2483
    %3805 = vmatpush.msra.mxu0 %v2434
    %3806 = vmatpush.msra.mxu0 %v2385
    %3807 = vmatpush.msra.mxu0 %v2336
    %3808 = vmatpush.msra.mxu0 %v2287
    %3809 = vmatmul.f32.gmra.mxu0 %v2247
    %v3810 = vpop.f32.mrf.mxu0
    %v3811 = vadd.f32 0.0, %v3810
    %3812 = vdwg.mxu0
    %3813 = vmatpush.msra.mxu0 %v3023
    %3814 = vmatpush.msra.mxu0 %v2974
    %3815 = vmatpush.msra.mxu0 %v2925
    %3816 = vmatpush.msra.mxu0 %v2876
    %3817 = vmatpush.msra.mxu0 %v2827
    %3818 = vmatpush.msra.mxu0 %v2778
    %3819 = vmatpush.msra.mxu0 %v2729
    %3820 = vmatpush.msra.mxu0 %v2680
    %3821 = vmatpush.msra.mxu0 %v2631
    %3822 = vmatpush.msra.mxu0 %v2582
    %3823 = vmatpush.msra.mxu0 %v2533
    %3824 = vmatpush.msra.mxu0 %v2484
    %3825 = vmatpush.msra.mxu0 %v2435
    %3826 = vmatpush.msra.mxu0 %v2386
    %3827 = vmatpush.msra.mxu0 %v2337
    %3828 = vmatpush.msra.mxu0 %v2288
    %3829 = vmatmul.f32.gmra.mxu0 %v2247
    %v3830 = vpop.f32.mrf.mxu0
    %v3831 = vadd.f32 0.0, %v3830
    %3832 = vdwg.mxu0
    %3833 = vmatpush.msra.mxu0 %v3024
    %3834 = vmatpush.msra.mxu0 %v2975
    %3835 = vmatpush.msra.mxu0 %v2926
    %3836 = vmatpush.msra.mxu0 %v2877
    %3837 = vmatpush.msra.mxu0 %v2828
    %3838 = vmatpush.msra.mxu0 %v2779
    %3839 = vmatpush.msra.mxu0 %v2730
    %3840 = vmatpush.msra.mxu0 %v2681
    %3841 = vmatpush.msra.mxu0 %v2632
    %3842 = vmatpush.msra.mxu0 %v2583
    %3843 = vmatpush.msra.mxu0 %v2534
    %3844 = vmatpush.msra.mxu0 %v2485
    %3845 = vmatpush.msra.mxu0 %v2436
    %3846 = vmatpush.msra.mxu0 %v2387
    %3847 = vmatpush.msra.mxu0 %v2338
    %3848 = vmatpush.msra.mxu0 %v2289
    %3849 = vmatmul.f32.gmra.mxu0 %v2247
    %v3850 = vpop.f32.mrf.mxu0
    %v3851 = vadd.f32 0.0, %v3850
    %3852 = vdwg.mxu0
    %3853 = vmatpush.msra.mxu0 %v3025
    %3854 = vmatpush.msra.mxu0 %v2976
    %3855 = vmatpush.msra.mxu0 %v2927
    %3856 = vmatpush.msra.mxu0 %v2878
    %3857 = vmatpush.msra.mxu0 %v2829
    %3858 = vmatpush.msra.mxu0 %v2780
    %3859 = vmatpush.msra.mxu0 %v2731
    %3860 = vmatpush.msra.mxu0 %v2682
    %3861 = vmatpush.msra.mxu0 %v2633
    %3862 = vmatpush.msra.mxu0 %v2584
    %3863 = vmatpush.msra.mxu0 %v2535
    %3864 = vmatpush.msra.mxu0 %v2486
    %3865 = vmatpush.msra.mxu0 %v2437
    %3866 = vmatpush.msra.mxu0 %v2388
    %3867 = vmatpush.msra.mxu0 %v2339
    %3868 = vmatpush.msra.mxu0 %v2290
    %3869 = vmatmul.f32.gmra.mxu0 %v2247
    %v3870 = vpop.f32.mrf.mxu0
    %v3871 = vadd.f32 0.0, %v3870
    %3872 = vdwg.mxu0
    %3873 = vmatpush.msra.mxu0 %v3026
    %3874 = vmatpush.msra.mxu0 %v2977
    %3875 = vmatpush.msra.mxu0 %v2928
    %3876 = vmatpush.msra.mxu0 %v2879
    %3877 = vmatpush.msra.mxu0 %v2830
    %3878 = vmatpush.msra.mxu0 %v2781
    %3879 = vmatpush.msra.mxu0 %v2732
    %3880 = vmatpush.msra.mxu0 %v2683
    %3881 = vmatpush.msra.mxu0 %v2634
    %3882 = vmatpush.msra.mxu0 %v2585
    %3883 = vmatpush.msra.mxu0 %v2536
    %3884 = vmatpush.msra.mxu0 %v2487
    %3885 = vmatpush.msra.mxu0 %v2438
    %3886 = vmatpush.msra.mxu0 %v2389
    %3887 = vmatpush.msra.mxu0 %v2340
    %3888 = vmatpush.msra.mxu0 %v2291
    %3889 = vmatmul.f32.gmra.mxu0 %v2247
    %v3890 = vpop.f32.mrf.mxu0
    %v3891 = vadd.f32 0.0, %v3890
    %3892 = vdwg.mxu0
    %3893 = vmatpush.msra.mxu0 %v3027
    %3894 = vmatpush.msra.mxu0 %v2978
    %3895 = vmatpush.msra.mxu0 %v2929
    %3896 = vmatpush.msra.mxu0 %v2880
    %3897 = vmatpush.msra.mxu0 %v2831
    %3898 = vmatpush.msra.mxu0 %v2782
    %3899 = vmatpush.msra.mxu0 %v2733
    %3900 = vmatpush.msra.mxu0 %v2684
    %3901 = vmatpush.msra.mxu0 %v2635
    %3902 = vmatpush.msra.mxu0 %v2586
    %3903 = vmatpush.msra.mxu0 %v2537
    %3904 = vmatpush.msra.mxu0 %v2488
    %3905 = vmatpush.msra.mxu0 %v2439
    %3906 = vmatpush.msra.mxu0 %v2390
    %3907 = vmatpush.msra.mxu0 %v2341
    %3908 = vmatpush.msra.mxu0 %v2292
    %3909 = vmatmul.f32.gmra.mxu0 %v2247
    %v3910 = vpop.f32.mrf.mxu0
    %v3911 = vadd.f32 0.0, %v3910
    %3912 = vdwg.mxu0
    %3913 = vmatpush.msra.mxu0 %v3028
    %3914 = vmatpush.msra.mxu0 %v2979
    %3915 = vmatpush.msra.mxu0 %v2930
    %3916 = vmatpush.msra.mxu0 %v2881
    %3917 = vmatpush.msra.mxu0 %v2832
    %3918 = vmatpush.msra.mxu0 %v2783
    %3919 = vmatpush.msra.mxu0 %v2734
    %3920 = vmatpush.msra.mxu0 %v2685
    %3921 = vmatpush.msra.mxu0 %v2636
    %3922 = vmatpush.msra.mxu0 %v2587
    %3923 = vmatpush.msra.mxu0 %v2538
    %3924 = vmatpush.msra.mxu0 %v2489
    %3925 = vmatpush.msra.mxu0 %v2440
    %3926 = vmatpush.msra.mxu0 %v2391
    %3927 = vmatpush.msra.mxu0 %v2342
    %3928 = vmatpush.msra.mxu0 %v2293
    %3929 = vmatmul.f32.gmra.mxu0 %v2247
    %v3930 = vpop.f32.mrf.mxu0
    %v3931 = vadd.f32 0.0, %v3930
    %3932 = vdwg.mxu0
    %3933 = vmatpush.msra.mxu0 %v3029
    %3934 = vmatpush.msra.mxu0 %v2980
    %3935 = vmatpush.msra.mxu0 %v2931
    %3936 = vmatpush.msra.mxu0 %v2882
    %3937 = vmatpush.msra.mxu0 %v2833
    %3938 = vmatpush.msra.mxu0 %v2784
    %3939 = vmatpush.msra.mxu0 %v2735
    %3940 = vmatpush.msra.mxu0 %v2686
    %3941 = vmatpush.msra.mxu0 %v2637
    %3942 = vmatpush.msra.mxu0 %v2588
    %3943 = vmatpush.msra.mxu0 %v2539
    %3944 = vmatpush.msra.mxu0 %v2490
    %3945 = vmatpush.msra.mxu0 %v2441
    %3946 = vmatpush.msra.mxu0 %v2392
    %3947 = vmatpush.msra.mxu0 %v2343
    %3948 = vmatpush.msra.mxu0 %v2294
    %3949 = vmatmul.f32.gmra.mxu0 %v2247
    %v3950 = vpop.f32.mrf.mxu0
    %v3951 = vadd.f32 0.0, %v3950
    %3952 = vdwg.mxu0
    %3953 = vmatpush.msra.mxu0 %v3030
    %3954 = vmatpush.msra.mxu0 %v2981
    %3955 = vmatpush.msra.mxu0 %v2932
    %3956 = vmatpush.msra.mxu0 %v2883
    %3957 = vmatpush.msra.mxu0 %v2834
    %3958 = vmatpush.msra.mxu0 %v2785
    %3959 = vmatpush.msra.mxu0 %v2736
    %3960 = vmatpush.msra.mxu0 %v2687
    %3961 = vmatpush.msra.mxu0 %v2638
    %3962 = vmatpush.msra.mxu0 %v2589
    %3963 = vmatpush.msra.mxu0 %v2540
    %3964 = vmatpush.msra.mxu0 %v2491
    %3965 = vmatpush.msra.mxu0 %v2442
    %3966 = vmatpush.msra.mxu0 %v2393
    %3967 = vmatpush.msra.mxu0 %v2344
    %3968 = vmatpush.msra.mxu0 %v2295
    %3969 = vmatmul.f32.gmra.mxu0 %v2247
    %v3970 = vpop.f32.mrf.mxu0
    %v3971 = vadd.f32 0.0, %v3970
    %3972 = vdwg.mxu0
    %3973 = vmatpush.msra.mxu0 %v3031
    %3974 = vmatpush.msra.mxu0 %v2982
    %3975 = vmatpush.msra.mxu0 %v2933
    %3976 = vmatpush.msra.mxu0 %v2884
    %3977 = vmatpush.msra.mxu0 %v2835
    %3978 = vmatpush.msra.mxu0 %v2786
    %3979 = vmatpush.msra.mxu0 %v2737
    %3980 = vmatpush.msra.mxu0 %v2688
    %3981 = vmatpush.msra.mxu0 %v2639
    %3982 = vmatpush.msra.mxu0 %v2590
    %3983 = vmatpush.msra.mxu0 %v2541
    %3984 = vmatpush.msra.mxu0 %v2492
    %3985 = vmatpush.msra.mxu0 %v2443
    %3986 = vmatpush.msra.mxu0 %v2394
    %3987 = vmatpush.msra.mxu0 %v2345
    %3988 = vmatpush.msra.mxu0 %v2296
    %3989 = vmatmul.f32.gmra.mxu0 %v2247
    %v3990 = vpop.f32.mrf.mxu0
    %v3991 = vadd.f32 0.0, %v3990
    %3992 = vdwg.mxu0
    %3993 = vmatpush.msra.mxu0 %v3032
    %3994 = vmatpush.msra.mxu0 %v2983
    %3995 = vmatpush.msra.mxu0 %v2934
    %3996 = vmatpush.msra.mxu0 %v2885
    %3997 = vmatpush.msra.mxu0 %v2836
    %3998 = vmatpush.msra.mxu0 %v2787
    %3999 = vmatpush.msra.mxu0 %v2738
    %4000 = vmatpush.msra.mxu0 %v2689
    %4001 = vmatpush.msra.mxu0 %v2640
    %4002 = vmatpush.msra.mxu0 %v2591
    %4003 = vmatpush.msra.mxu0 %v2542
    %4004 = vmatpush.msra.mxu0 %v2493
    %4005 = vmatpush.msra.mxu0 %v2444
    %4006 = vmatpush.msra.mxu0 %v2395
    %4007 = vmatpush.msra.mxu0 %v2346
    %4008 = vmatpush.msra.mxu0 %v2297
    %4009 = vmatmul.f32.gmra.mxu0 %v2247
    %v4010 = vpop.f32.mrf.mxu0
    %v4011 = vadd.f32 0.0, %v4010
    %4012 = vdwg.mxu0
    %v4013 = vmax.f32 %v3051, %v3071
    %v4014 = vmax.f32 %v4013, %v3091
    %v4015 = vmax.f32 %v4014, %v3111
    %v4016 = vmax.f32 %v4015, %v3131
    %v4017 = vmax.f32 %v4016, %v3151
    %v4018 = vmax.f32 %v4017, %v3171
    %v4019 = vmax.f32 %v4018, %v3191
    %v4020 = vmax.f32 %v4019, %v3211
    %v4021 = vmax.f32 %v4020, %v3231
    %v4022 = vmax.f32 %v4021, %v3251
    %v4023 = vmax.f32 %v4022, %v3271
    %v4024 = vmax.f32 %v4023, %v3291
    %v4025 = vmax.f32 %v4024, %v3311
    %v4026 = vmax.f32 %v4025, %v3331
    %v4027 = vmax.f32 %v4026, %v3351
    %v4028 = vmax.f32 %v4027, %v3371
    %v4029 = vmax.f32 %v4028, %v3391
    %v4030 = vmax.f32 %v4029, %v3411
    %v4031 = vmax.f32 %v4030, %v3431
    %v4032 = vmax.f32 %v4031, %v3451
    %v4033 = vmax.f32 %v4032, %v3471
    %v4034 = vmax.f32 %v4033, %v3491
    %v4035 = vmax.f32 %v4034, %v3511
    %v4036 = vmax.f32 %v4035, %v3531
    %v4037 = vmax.f32 %v4036, %v3551
    %v4038 = vmax.f32 %v4037, %v3571
    %v4039 = vmax.f32 %v4038, %v3591
    %v4040 = vmax.f32 %v4039, %v3611
    %v4041 = vmax.f32 %v4040, %v3631
    %v4042 = vmax.f32 %v4041, %v3651
    %v4043 = vmax.f32 %v4042, %v3671
    %v4044 = vmax.f32 %v4043, %v3691
    %v4045 = vmax.f32 %v4044, %v3711
    %v4046 = vmax.f32 %v4045, %v3731
    %v4047 = vmax.f32 %v4046, %v3751
    %v4048 = vmax.f32 %v4047, %v3771
    %v4049 = vmax.f32 %v4048, %v3791
    %v4050 = vmax.f32 %v4049, %v3811
    %v4051 = vmax.f32 %v4050, %v3831
    %v4052 = vmax.f32 %v4051, %v3851
    %v4053 = vmax.f32 %v4052, %v3871
    %v4054 = vmax.f32 %v4053, %v3891
    %v4055 = vmax.f32 %v4054, %v3911
    %v4056 = vmax.f32 %v4055, %v3931
    %v4057 = vmax.f32 %v4056, %v3951
    %v4058 = vmax.f32 %v4057, %v3971
    %v4059 = vmax.f32 %v4058, %v3991
    %v4060 = vmax.f32 %v4059, %v4011
    %v4061 = vld [vmem:[%s9] sm:$0xff]
    %v4062 = vld [vmem:[%s9 + $0x8] sm:$0xff]
    %v4063 = vld [vmem:[%s9 + $0x10] sm:$0xff]
    %v4064 = vld [vmem:[%s9 + $0x18] sm:$0xff]
    %v4065 = vld [vmem:[%s9 + $0x20] sm:$0xff]
    %v4066 = vld [vmem:[%s9 + $0x28] sm:$0xff]
    %v4067 = vld [vmem:[%s9 + $0x30] sm:$0xff]
    %v4068 = vld [vmem:[%s9 + $0x38] sm:$0xff]
    %v4069 = vld [vmem:[%s9 + $0x40] sm:$0xff]
    %v4071 = vsel %vm263, %v4061, 0
    %v4074 = vsel %vm263, %v4062, 0
    %v4077 = vsel %vm263, %v4063, 0
    %v4080 = vsel %vm263, %v4064, 0
    %v4083 = vsel %vm263, %v4065, 0
    %v4086 = vsel %vm263, %v4066, 0
    %v4089 = vsel %vm263, %v4067, 0
    %v4092 = vsel %vm263, %v4068, 0
    %v4095 = vsel %vm263, %v4069, 0
    %4097 = vmatpush.msra.mxu0 0.0
    %4098 = vmatpush.msra.mxu0 0.0
    %4099 = vmatpush.msra.mxu0 0.0
    %4100 = vmatpush.msra.mxu0 0.0
    %4101 = vmatpush.msra.mxu0 0.0
    %4102 = vmatpush.msra.mxu0 0.0
    %4103 = vmatpush.msra.mxu0 0.0
    %4104 = vmatpush.msra.mxu0 0.0
    %4105 = vmatpush.msra.mxu0 0.0
    %4106 = vmatpush.msra.mxu0 0.0
    %4107 = vmatpush.msra.mxu0 0.0
    %4108 = vmatpush.msra.mxu0 0.0
    %4109 = vmatpush.msra.mxu0 0.0
    %4110 = vmatpush.msra.mxu0 0.0
    %4111 = vmatpush.msra.mxu0 0.0
    %4112 = vmatpush.msra.mxu0 %v4060
    %4113 = vmatmul.f32.gmra.mxu0 %v4071
    %v4114 = vpop.f32.mrf.mxu0
    %v4115 = vadd.f32 0.0, %v4114
    %4116 = vmatmul.f32.gmra.mxu0 %v4074
    %v4117 = vpop.f32.mrf.mxu0
    %v4118 = vadd.f32 0.0, %v4117
    %4119 = vmatmul.f32.gmra.mxu0 %v4077
    %v4120 = vpop.f32.mrf.mxu0
    %v4121 = vadd.f32 0.0, %v4120
    %4122 = vmatmul.f32.gmra.mxu0 %v4080
    %v4123 = vpop.f32.mrf.mxu0
    %v4124 = vadd.f32 0.0, %v4123
    %4125 = vmatmul.f32.gmra.mxu0 %v4083
    %v4126 = vpop.f32.mrf.mxu0
    %v4127 = vadd.f32 0.0, %v4126
    %4128 = vmatmul.f32.gmra.mxu0 %v4086
    %v4129 = vpop.f32.mrf.mxu0
    %v4130 = vadd.f32 0.0, %v4129
    %4131 = vmatmul.f32.gmra.mxu0 %v4089
    %v4132 = vpop.f32.mrf.mxu0
    %v4133 = vadd.f32 0.0, %v4132
    %4134 = vmatmul.f32.gmra.mxu0 %v4092
    %v4135 = vpop.f32.mrf.mxu0
    %v4136 = vadd.f32 0.0, %v4135
    %4137 = vmatmul.f32.gmra.mxu0 %v4095
    %v4138 = vpop.f32.mrf.mxu0
    %v4139 = vadd.f32 0.0, %v4138
    %4140 = vdwg.mxu0
    %v4141 = vld [vmem:[#allocation6] sm:$0xff]
    %v4142 = vld [vmem:[#allocation6 + $0x8] sm:$0xff]
    %v4143 = vld [vmem:[#allocation6 + $0x10] sm:$0xff]
    %v4144 = vld [vmem:[#allocation6 + $0x18] sm:$0xff]
    %v4145 = vld [vmem:[#allocation6 + $0x20] sm:$0xff]
    %v4146 = vld [vmem:[#allocation6 + $0x28] sm:$0xff]
    %v4147 = vld [vmem:[#allocation6 + $0x30] sm:$0xff]
    %v4148 = vld [vmem:[#allocation6 + $0x38] sm:$0xff]
    %v4149 = vld [vmem:[#allocation6 + $0x40] sm:$0xff]
    %v4150 = vld [vmem:[#allocation6 + $0x48] sm:$0xff]
    %v4151 = vld [vmem:[#allocation6 + $0x50] sm:$0xff]
    %v4152 = vld [vmem:[#allocation6 + $0x58] sm:$0xff]
    %v4153 = vld [vmem:[#allocation6 + $0x60] sm:$0xff]
    %v4154 = vld [vmem:[#allocation6 + $0x68] sm:$0xff]
    %v4155 = vld [vmem:[#allocation6 + $0x70] sm:$0xff]
    %v4156 = vld [vmem:[#allocation6 + $0x78] sm:$0xff]
    %v4157 = vld [vmem:[#allocation6 + $0x80] sm:$0xff]
    %v4158 = vld [vmem:[#allocation6 + $0x88] sm:$0xff]
    %v4159 = vld [vmem:[#allocation6 + $0x90] sm:$0xff]
    %v4160 = vld [vmem:[#allocation6 + $0x98] sm:$0xff]
    %v4161 = vld [vmem:[#allocation6 + $0xa0] sm:$0xff]
    %v4162 = vld [vmem:[#allocation6 + $0xa8] sm:$0xff]
    %v4163 = vld [vmem:[#allocation6 + $0xb0] sm:$0xff]
    %v4164 = vld [vmem:[#allocation6 + $0xb8] sm:$0xff]
    %v4165 = vld [vmem:[#allocation6 + $0xc0] sm:$0xff]
    %v4166 = vld [vmem:[#allocation6 + $0xc8] sm:$0xff]
    %v4167 = vld [vmem:[#allocation6 + $0xd0] sm:$0xff]
    %v4168 = vld [vmem:[#allocation6 + $0xd8] sm:$0xff]
    %v4169 = vld [vmem:[#allocation6 + $0xe0] sm:$0xff]
    %v4170 = vld [vmem:[#allocation6 + $0xe8] sm:$0xff]
    %v4171 = vld [vmem:[#allocation6 + $0xf0] sm:$0xff]
    %v4172 = vld [vmem:[#allocation6 + $0xf8] sm:$0xff]
    %v4173 = vld [vmem:[#allocation6 + $0x100] sm:$0xff]
    %v4174 = vld [vmem:[#allocation6 + $0x108] sm:$0xff]
    %v4175 = vld [vmem:[#allocation6 + $0x110] sm:$0xff]
    %v4176 = vld [vmem:[#allocation6 + $0x118] sm:$0xff]
    %v4177 = vld [vmem:[#allocation6 + $0x120] sm:$0xff]
    %v4178 = vld [vmem:[#allocation6 + $0x128] sm:$0xff]
    %v4179 = vld [vmem:[#allocation6 + $0x130] sm:$0xff]
    %v4180 = vld [vmem:[#allocation6 + $0x138] sm:$0xff]
    %v4181 = vld [vmem:[#allocation6 + $0x140] sm:$0xff]
    %v4182 = vld [vmem:[#allocation6 + $0x148] sm:$0xff]
    %v4183 = vld [vmem:[#allocation6 + $0x150] sm:$0xff]
    %v4184 = vld [vmem:[#allocation6 + $0x158] sm:$0xff]
    %v4185 = vld [vmem:[#allocation6 + $0x160] sm:$0xff]
    %v4186 = vld [vmem:[#allocation6 + $0x168] sm:$0xff]
    %v4187 = vld [vmem:[#allocation6 + $0x170] sm:$0xff]
    %v4188 = vld [vmem:[#allocation6 + $0x178] sm:$0xff]
    %v4189 = vld [vmem:[#allocation6 + $0x180] sm:$0xff]
    %v4190 = vld [vmem:[#allocation6 + $0x188] sm:$0xff]
    %v4191 = vld [vmem:[#allocation6 + $0x190] sm:$0xff]
    %v4192 = vld [vmem:[#allocation6 + $0x198] sm:$0xff]
    %v4193 = vld [vmem:[#allocation6 + $0x1a0] sm:$0xff]
    %v4194 = vld [vmem:[#allocation6 + $0x1a8] sm:$0xff]
    %v4195 = vld [vmem:[#allocation6 + $0x1b0] sm:$0xff]
    %v4196 = vld [vmem:[#allocation6 + $0x1b8] sm:$0xff]
    %v4197 = vld [vmem:[#allocation6 + $0x1c0] sm:$0xff]
    %v4198 = vld [vmem:[#allocation6 + $0x1c8] sm:$0xff]
    %v4199 = vld [vmem:[#allocation6 + $0x1d0] sm:$0xff]
    %v4200 = vld [vmem:[#allocation6 + $0x1d8] sm:$0xff]
    %v4201 = vld [vmem:[#allocation6 + $0x1e0] sm:$0xff]
    %v4202 = vld [vmem:[#allocation6 + $0x1e8] sm:$0xff]
    %v4203 = vld [vmem:[#allocation6 + $0x1f0] sm:$0xff]
    %v4204 = vld [vmem:[#allocation6 + $0x1f8] sm:$0xff]
    %v4205 = vld [vmem:[#allocation6 + $0x200] sm:$0xff]
    %v4206 = vld [vmem:[#allocation6 + $0x208] sm:$0xff]
    %v4207 = vld [vmem:[#allocation6 + $0x210] sm:$0xff]
    %v4208 = vld [vmem:[#allocation6 + $0x218] sm:$0xff]
    %v4209 = vld [vmem:[#allocation6 + $0x220] sm:$0xff]
    %v4210 = vld [vmem:[#allocation6 + $0x228] sm:$0xff]
    %v4211 = vld [vmem:[#allocation6 + $0x230] sm:$0xff]
    %v4212 = vld [vmem:[#allocation6 + $0x238] sm:$0xff]
    %v4213 = vld [vmem:[#allocation6 + $0x240] sm:$0xff]
    %v4214 = vld [vmem:[#allocation6 + $0x248] sm:$0xff]
    %v4215 = vld [vmem:[#allocation6 + $0x250] sm:$0xff]
    %v4216 = vld [vmem:[#allocation6 + $0x258] sm:$0xff]
    %v4217 = vld [vmem:[#allocation6 + $0x260] sm:$0xff]
    %v4218 = vld [vmem:[#allocation6 + $0x268] sm:$0xff]
    %v4219 = vld [vmem:[#allocation6 + $0x270] sm:$0xff]
    %v4220 = vld [vmem:[#allocation6 + $0x278] sm:$0xff]
    %v4221 = vld [vmem:[#allocation6 + $0x280] sm:$0xff]
    %v4222 = vld [vmem:[#allocation6 + $0x288] sm:$0xff]
    %v4223 = vld [vmem:[#allocation6 + $0x290] sm:$0xff]
    %v4224 = vld [vmem:[#allocation6 + $0x298] sm:$0xff]
    %v4225 = vld [vmem:[#allocation6 + $0x2a0] sm:$0xff]
    %v4226 = vld [vmem:[#allocation6 + $0x2a8] sm:$0xff]
    %v4227 = vld [vmem:[#allocation6 + $0x2b0] sm:$0xff]
    %v4228 = vld [vmem:[#allocation6 + $0x2b8] sm:$0xff]
    %v4229 = vld [vmem:[#allocation6 + $0x2c0] sm:$0xff]
    %v4230 = vld [vmem:[#allocation6 + $0x2c8] sm:$0xff]
    %v4231 = vld [vmem:[#allocation6 + $0x2d0] sm:$0xff]
    %v4232 = vld [vmem:[#allocation6 + $0x2d8] sm:$0xff]
    %v4233 = vld [vmem:[#allocation6 + $0x2e0] sm:$0xff]
    %v4234 = vld [vmem:[#allocation6 + $0x2e8] sm:$0xff]
    %v4235 = vld [vmem:[#allocation6 + $0x2f0] sm:$0xff]
    %v4236 = vld [vmem:[#allocation6 + $0x2f8] sm:$0xff]
    %v4237 = vld [vmem:[#allocation6 + $0x300] sm:$0xff]
    %v4238 = vld [vmem:[#allocation6 + $0x308] sm:$0xff]
    %v4239 = vld [vmem:[#allocation6 + $0x310] sm:$0xff]
    %v4240 = vld [vmem:[#allocation6 + $0x318] sm:$0xff]
    %v4241 = vld [vmem:[#allocation6 + $0x320] sm:$0xff]
    %v4242 = vld [vmem:[#allocation6 + $0x328] sm:$0xff]
    %v4243 = vld [vmem:[#allocation6 + $0x330] sm:$0xff]
    %v4244 = vld [vmem:[#allocation6 + $0x338] sm:$0xff]
    %v4245 = vld [vmem:[#allocation6 + $0x340] sm:$0xff]
    %v4246 = vld [vmem:[#allocation6 + $0x348] sm:$0xff]
    %v4247 = vld [vmem:[#allocation6 + $0x350] sm:$0xff]
    %v4248 = vld [vmem:[#allocation6 + $0x358] sm:$0xff]
    %v4249 = vld [vmem:[#allocation6 + $0x360] sm:$0xff]
    %v4250 = vld [vmem:[#allocation6 + $0x368] sm:$0xff]
    %v4251 = vld [vmem:[#allocation6 + $0x370] sm:$0xff]
    %v4252 = vld [vmem:[#allocation6 + $0x378] sm:$0xff]
    %v4253 = vld [vmem:[#allocation6 + $0x380] sm:$0xff]
    %v4254 = vld [vmem:[#allocation6 + $0x388] sm:$0xff]
    %v4255 = vld [vmem:[#allocation6 + $0x390] sm:$0xff]
    %v4256 = vld [vmem:[#allocation6 + $0x398] sm:$0xff]
    %v4257 = vld [vmem:[#allocation6 + $0x3a0] sm:$0xff]
    %v4258 = vld [vmem:[#allocation6 + $0x3a8] sm:$0xff]
    %v4259 = vld [vmem:[#allocation6 + $0x3b0] sm:$0xff]
    %v4260 = vld [vmem:[#allocation6 + $0x3b8] sm:$0xff]
    %v4261 = vld [vmem:[#allocation6 + $0x3c0] sm:$0xff]
    %v4262 = vld [vmem:[#allocation6 + $0x3c8] sm:$0xff]
    %v4263 = vld [vmem:[#allocation6 + $0x3d0] sm:$0xff]
    %v4264 = vld [vmem:[#allocation6 + $0x3d8] sm:$0xff]
    %v4265 = vld [vmem:[#allocation6 + $0x3e0] sm:$0xff]
    %v4266 = vld [vmem:[#allocation6 + $0x3e8] sm:$0xff]
    %v4267 = vld [vmem:[#allocation6 + $0x3f0] sm:$0xff]
    %v4268 = vld [vmem:[#allocation6 + $0x3f8] sm:$0xff]
    %v4269 = vld [vmem:[#allocation6 + $0x400] sm:$0xff]
    %v4270 = vld [vmem:[#allocation6 + $0x408] sm:$0xff]
    %v4271 = vld [vmem:[#allocation6 + $0x410] sm:$0xff]
    %v4272 = vld [vmem:[#allocation6 + $0x418] sm:$0xff]
    %v4273 = vld [vmem:[#allocation6 + $0x420] sm:$0xff]
    %v4274 = vld [vmem:[#allocation6 + $0x428] sm:$0xff]
    %v4275 = vld [vmem:[#allocation6 + $0x430] sm:$0xff]
    %v4276 = vld [vmem:[#allocation6 + $0x438] sm:$0xff]
    %v4277 = vld [vmem:[#allocation6 + $0x440] sm:$0xff]
    %v4278 = vld [vmem:[#allocation6 + $0x448] sm:$0xff]
    %v4279 = vld [vmem:[#allocation6 + $0x450] sm:$0xff]
    %v4280 = vld [vmem:[#allocation6 + $0x458] sm:$0xff]
    %v4281 = vld [vmem:[#allocation6 + $0x460] sm:$0xff]
    %v4282 = vld [vmem:[#allocation6 + $0x468] sm:$0xff]
    %v4283 = vld [vmem:[#allocation6 + $0x470] sm:$0xff]
    %v4284 = vld [vmem:[#allocation6 + $0x478] sm:$0xff]
    %v4285 = vld [vmem:[%s10] sm:$0xff]
    %4287 = vset.pattern.permute.xlu0 0
    %4288 = vperm.xlu0 %4287, %v4285
    %v4289 = vpop.permute.xlu0 %4288
    %4291 = vmatpush.msra.mxu0 %v4156
    %4292 = vmatpush.msra.mxu0 %v4155
    %4293 = vmatpush.msra.mxu0 %v4154
    %4294 = vmatpush.msra.mxu0 %v4153
    %4295 = vmatpush.msra.mxu0 %v4152
    %4296 = vmatpush.msra.mxu0 %v4151
    %4297 = vmatpush.msra.mxu0 %v4150
    %4298 = vmatpush.msra.mxu0 %v4149
    %4299 = vmatpush.msra.mxu0 %v4148
    %4300 = vmatpush.msra.mxu0 %v4147
    %4301 = vmatpush.msra.mxu0 %v4146
    %4302 = vmatpush.msra.mxu0 %v4145
    %4303 = vmatpush.msra.mxu0 %v4144
    %4304 = vmatpush.msra.mxu0 %v4143
    %4305 = vmatpush.msra.mxu0 %v4142
    %4306 = vmatpush.msra.mxu0 %v4141
    %4307 = vmatmul.f32.gmra.mxu0 %v4115
    %v4308 = vpop.f32.mrf.mxu0
    %v4309 = vadd.f32 %v4289, %v4308
    %4310 = vdwg.mxu0
    %4311 = vmatpush.msra.mxu0 %v4172
    %4312 = vmatpush.msra.mxu0 %v4171
    %4313 = vmatpush.msra.mxu0 %v4170
    %4314 = vmatpush.msra.mxu0 %v4169
    %4315 = vmatpush.msra.mxu0 %v4168
    %4316 = vmatpush.msra.mxu0 %v4167
    %4317 = vmatpush.msra.mxu0 %v4166
    %4318 = vmatpush.msra.mxu0 %v4165
    %4319 = vmatpush.msra.mxu0 %v4164
    %4320 = vmatpush.msra.mxu0 %v4163
    %4321 = vmatpush.msra.mxu0 %v4162
    %4322 = vmatpush.msra.mxu0 %v4161
    %4323 = vmatpush.msra.mxu0 %v4160
    %4324 = vmatpush.msra.mxu0 %v4159
    %4325 = vmatpush.msra.mxu0 %v4158
    %4326 = vmatpush.msra.mxu0 %v4157
    %4327 = vmatmul.f32.gmra.mxu0 %v4118
    %v4328 = vpop.f32.mrf.mxu0
    %v4329 = vadd.f32 %v4309, %v4328
    %4330 = vdwg.mxu0
    %4331 = vmatpush.msra.mxu0 %v4188
    %4332 = vmatpush.msra.mxu0 %v4187
    %4333 = vmatpush.msra.mxu0 %v4186
    %4334 = vmatpush.msra.mxu0 %v4185
    %4335 = vmatpush.msra.mxu0 %v4184
    %4336 = vmatpush.msra.mxu0 %v4183
    %4337 = vmatpush.msra.mxu0 %v4182
    %4338 = vmatpush.msra.mxu0 %v4181
    %4339 = vmatpush.msra.mxu0 %v4180
    %4340 = vmatpush.msra.mxu0 %v4179
    %4341 = vmatpush.msra.mxu0 %v4178
    %4342 = vmatpush.msra.mxu0 %v4177
    %4343 = vmatpush.msra.mxu0 %v4176
    %4344 = vmatpush.msra.mxu0 %v4175
    %4345 = vmatpush.msra.mxu0 %v4174
    %4346 = vmatpush.msra.mxu0 %v4173
    %4347 = vmatmul.f32.gmra.mxu0 %v4121
    %v4348 = vpop.f32.mrf.mxu0
    %v4349 = vadd.f32 %v4329, %v4348
    %4350 = vdwg.mxu0
    %4351 = vmatpush.msra.mxu0 %v4204
    %4352 = vmatpush.msra.mxu0 %v4203
    %4353 = vmatpush.msra.mxu0 %v4202
    %4354 = vmatpush.msra.mxu0 %v4201
    %4355 = vmatpush.msra.mxu0 %v4200
    %4356 = vmatpush.msra.mxu0 %v4199
    %4357 = vmatpush.msra.mxu0 %v4198
    %4358 = vmatpush.msra.mxu0 %v4197
    %4359 = vmatpush.msra.mxu0 %v4196
    %4360 = vmatpush.msra.mxu0 %v4195
    %4361 = vmatpush.msra.mxu0 %v4194
    %4362 = vmatpush.msra.mxu0 %v4193
    %4363 = vmatpush.msra.mxu0 %v4192
    %4364 = vmatpush.msra.mxu0 %v4191
    %4365 = vmatpush.msra.mxu0 %v4190
    %4366 = vmatpush.msra.mxu0 %v4189
    %4367 = vmatmul.f32.gmra.mxu0 %v4124
    %v4368 = vpop.f32.mrf.mxu0
    %v4369 = vadd.f32 %v4349, %v4368
    %4370 = vdwg.mxu0
    %4371 = vmatpush.msra.mxu0 %v4220
    %4372 = vmatpush.msra.mxu0 %v4219
    %4373 = vmatpush.msra.mxu0 %v4218
    %4374 = vmatpush.msra.mxu0 %v4217
    %4375 = vmatpush.msra.mxu0 %v4216
    %4376 = vmatpush.msra.mxu0 %v4215
    %4377 = vmatpush.msra.mxu0 %v4214
    %4378 = vmatpush.msra.mxu0 %v4213
    %4379 = vmatpush.msra.mxu0 %v4212
    %4380 = vmatpush.msra.mxu0 %v4211
    %4381 = vmatpush.msra.mxu0 %v4210
    %4382 = vmatpush.msra.mxu0 %v4209
    %4383 = vmatpush.msra.mxu0 %v4208
    %4384 = vmatpush.msra.mxu0 %v4207
    %4385 = vmatpush.msra.mxu0 %v4206
    %4386 = vmatpush.msra.mxu0 %v4205
    %4387 = vmatmul.f32.gmra.mxu0 %v4127
    %v4388 = vpop.f32.mrf.mxu0
    %v4389 = vadd.f32 %v4369, %v4388
    %4390 = vdwg.mxu0
    %4391 = vmatpush.msra.mxu0 %v4236
    %4392 = vmatpush.msra.mxu0 %v4235
    %4393 = vmatpush.msra.mxu0 %v4234
    %4394 = vmatpush.msra.mxu0 %v4233
    %4395 = vmatpush.msra.mxu0 %v4232
    %4396 = vmatpush.msra.mxu0 %v4231
    %4397 = vmatpush.msra.mxu0 %v4230
    %4398 = vmatpush.msra.mxu0 %v4229
    %4399 = vmatpush.msra.mxu0 %v4228
    %4400 = vmatpush.msra.mxu0 %v4227
    %4401 = vmatpush.msra.mxu0 %v4226
    %4402 = vmatpush.msra.mxu0 %v4225
    %4403 = vmatpush.msra.mxu0 %v4224
    %4404 = vmatpush.msra.mxu0 %v4223
    %4405 = vmatpush.msra.mxu0 %v4222
    %4406 = vmatpush.msra.mxu0 %v4221
    %4407 = vmatmul.f32.gmra.mxu0 %v4130
    %v4408 = vpop.f32.mrf.mxu0
    %v4409 = vadd.f32 %v4389, %v4408
    %4410 = vdwg.mxu0
    %4411 = vmatpush.msra.mxu0 %v4252
    %4412 = vmatpush.msra.mxu0 %v4251
    %4413 = vmatpush.msra.mxu0 %v4250
    %4414 = vmatpush.msra.mxu0 %v4249
    %4415 = vmatpush.msra.mxu0 %v4248
    %4416 = vmatpush.msra.mxu0 %v4247
    %4417 = vmatpush.msra.mxu0 %v4246
    %4418 = vmatpush.msra.mxu0 %v4245
    %4419 = vmatpush.msra.mxu0 %v4244
    %4420 = vmatpush.msra.mxu0 %v4243
    %4421 = vmatpush.msra.mxu0 %v4242
    %4422 = vmatpush.msra.mxu0 %v4241
    %4423 = vmatpush.msra.mxu0 %v4240
    %4424 = vmatpush.msra.mxu0 %v4239
    %4425 = vmatpush.msra.mxu0 %v4238
    %4426 = vmatpush.msra.mxu0 %v4237
    %4427 = vmatmul.f32.gmra.mxu0 %v4133
    %v4428 = vpop.f32.mrf.mxu0
    %v4429 = vadd.f32 %v4409, %v4428
    %4430 = vdwg.mxu0
    %4431 = vmatpush.msra.mxu0 %v4268
    %4432 = vmatpush.msra.mxu0 %v4267
    %4433 = vmatpush.msra.mxu0 %v4266
    %4434 = vmatpush.msra.mxu0 %v4265
    %4435 = vmatpush.msra.mxu0 %v4264
    %4436 = vmatpush.msra.mxu0 %v4263
    %4437 = vmatpush.msra.mxu0 %v4262
    %4438 = vmatpush.msra.mxu0 %v4261
    %4439 = vmatpush.msra.mxu0 %v4260
    %4440 = vmatpush.msra.mxu0 %v4259
    %4441 = vmatpush.msra.mxu0 %v4258
    %4442 = vmatpush.msra.mxu0 %v4257
    %4443 = vmatpush.msra.mxu0 %v4256
    %4444 = vmatpush.msra.mxu0 %v4255
    %4445 = vmatpush.msra.mxu0 %v4254
    %4446 = vmatpush.msra.mxu0 %v4253
    %4447 = vmatmul.f32.gmra.mxu0 %v4136
    %v4448 = vpop.f32.mrf.mxu0
    %v4449 = vadd.f32 %v4429, %v4448
    %4450 = vdwg.mxu0
    %4451 = vmatpush.msra.mxu0 %v4284
    %4452 = vmatpush.msra.mxu0 %v4283
    %4453 = vmatpush.msra.mxu0 %v4282
    %4454 = vmatpush.msra.mxu0 %v4281
    %4455 = vmatpush.msra.mxu0 %v4280
    %4456 = vmatpush.msra.mxu0 %v4279
    %4457 = vmatpush.msra.mxu0 %v4278
    %4458 = vmatpush.msra.mxu0 %v4277
    %4459 = vmatpush.msra.mxu0 %v4276
    %4460 = vmatpush.msra.mxu0 %v4275
    %4461 = vmatpush.msra.mxu0 %v4274
    %4462 = vmatpush.msra.mxu0 %v4273
    %4463 = vmatpush.msra.mxu0 %v4272
    %4464 = vmatpush.msra.mxu0 %v4271
    %4465 = vmatpush.msra.mxu0 %v4270
    %4466 = vmatpush.msra.mxu0 %v4269
    %4467 = vmatmul.f32.gmra.mxu0 %v4139
    %v4468 = vpop.f32.mrf.mxu0
    %v4469 = vadd.f32 %v4449, %v4468
    %4470 = vdwg.mxu0
    %v4471 = vmax.f32 %v4469, 0.0
    %v4472 = vld [vmem:[%s11] sm:$0xff]
    %v4473 = vld [vmem:[%s11 + $0x8] sm:$0xff]
    %v4474 = vld [vmem:[%s11 + $0x10] sm:$0xff]
    %v4475 = vld [vmem:[%s11 + $0x18] sm:$0xff]
    %v4476 = vld [vmem:[%s11 + $0x20] sm:$0xff]
    %v4477 = vld [vmem:[%s11 + $0x28] sm:$0xff]
    %v4478 = vld [vmem:[%s11 + $0x30] sm:$0xff]
    %v4479 = vld [vmem:[%s11 + $0x38] sm:$0xff]
    %v4480 = vld [vmem:[%s11 + $0x40] sm:$0xff]
    %v4482 = vsel %vm263, %v4472, 0
    %v4485 = vsel %vm263, %v4473, 0
    %v4488 = vsel %vm263, %v4474, 0
    %v4491 = vsel %vm263, %v4475, 0
    %v4494 = vsel %vm263, %v4476, 0
    %v4497 = vsel %vm263, %v4477, 0
    %v4500 = vsel %vm263, %v4478, 0
    %v4503 = vsel %vm263, %v4479, 0
    %v4506 = vsel %vm263, %v4480, 0
    %4508 = vmatpush.msra.mxu0 0.0
    %4509 = vmatpush.msra.mxu0 0.0
    %4510 = vmatpush.msra.mxu0 0.0
    %4511 = vmatpush.msra.mxu0 0.0
    %4512 = vmatpush.msra.mxu0 0.0
    %4513 = vmatpush.msra.mxu0 0.0
    %4514 = vmatpush.msra.mxu0 0.0
    %4515 = vmatpush.msra.mxu0 0.0
    %4516 = vmatpush.msra.mxu0 0.0
    %4517 = vmatpush.msra.mxu0 0.0
    %4518 = vmatpush.msra.mxu0 0.0
    %4519 = vmatpush.msra.mxu0 0.0
    %4520 = vmatpush.msra.mxu0 0.0
    %4521 = vmatpush.msra.mxu0 0.0
    %4522 = vmatpush.msra.mxu0 0.0
    %4523 = vmatpush.msra.mxu0 %v4471
    %4524 = vmatmul.f32.gmra.mxu0 %v4482
    %v4525 = vpop.f32.mrf.mxu0
    %v4526 = vadd.f32 0.0, %v4525
    %4527 = vmatmul.f32.gmra.mxu0 %v4485
    %v4528 = vpop.f32.mrf.mxu0
    %v4529 = vadd.f32 0.0, %v4528
    %4530 = vmatmul.f32.gmra.mxu0 %v4488
    %v4531 = vpop.f32.mrf.mxu0
    %v4532 = vadd.f32 0.0, %v4531
    %4533 = vmatmul.f32.gmra.mxu0 %v4491
    %v4534 = vpop.f32.mrf.mxu0
    %v4535 = vadd.f32 0.0, %v4534
    %4536 = vmatmul.f32.gmra.mxu0 %v4494
    %v4537 = vpop.f32.mrf.mxu0
    %v4538 = vadd.f32 0.0, %v4537
    %4539 = vmatmul.f32.gmra.mxu0 %v4497
    %v4540 = vpop.f32.mrf.mxu0
    %v4541 = vadd.f32 0.0, %v4540
    %4542 = vmatmul.f32.gmra.mxu0 %v4500
    %v4543 = vpop.f32.mrf.mxu0
    %v4544 = vadd.f32 0.0, %v4543
    %4545 = vmatmul.f32.gmra.mxu0 %v4503
    %v4546 = vpop.f32.mrf.mxu0
    %v4547 = vadd.f32 0.0, %v4546
    %4548 = vmatmul.f32.gmra.mxu0 %v4506
    %v4549 = vpop.f32.mrf.mxu0
    %v4550 = vadd.f32 0.0, %v4549
    %4551 = vdwg.mxu0
    %v4552 = vld [vmem:[%s12] sm:$0xff]
    %4554 = vset.pattern.permute.xlu0 0
    %4555 = vperm.xlu0 %4554, %v4552
    %v4556 = vpop.permute.xlu0 %4555
    %4558 = vmatpush.msra.mxu0 %v4156
    %4559 = vmatpush.msra.mxu0 %v4155
    %4560 = vmatpush.msra.mxu0 %v4154
    %4561 = vmatpush.msra.mxu0 %v4153
    %4562 = vmatpush.msra.mxu0 %v4152
    %4563 = vmatpush.msra.mxu0 %v4151
    %4564 = vmatpush.msra.mxu0 %v4150
    %4565 = vmatpush.msra.mxu0 %v4149
    %4566 = vmatpush.msra.mxu0 %v4148
    %4567 = vmatpush.msra.mxu0 %v4147
    %4568 = vmatpush.msra.mxu0 %v4146
    %4569 = vmatpush.msra.mxu0 %v4145
    %4570 = vmatpush.msra.mxu0 %v4144
    %4571 = vmatpush.msra.mxu0 %v4143
    %4572 = vmatpush.msra.mxu0 %v4142
    %4573 = vmatpush.msra.mxu0 %v4141
    %4574 = vmatmul.f32.gmra.mxu0 %v4526
    %v4575 = vpop.f32.mrf.mxu0
    %v4576 = vadd.f32 %v4556, %v4575
    %4577 = vdwg.mxu0
    %4578 = vmatpush.msra.mxu0 %v4172
    %4579 = vmatpush.msra.mxu0 %v4171
    %4580 = vmatpush.msra.mxu0 %v4170
    %4581 = vmatpush.msra.mxu0 %v4169
    %4582 = vmatpush.msra.mxu0 %v4168
    %4583 = vmatpush.msra.mxu0 %v4167
    %4584 = vmatpush.msra.mxu0 %v4166
    %4585 = vmatpush.msra.mxu0 %v4165
    %4586 = vmatpush.msra.mxu0 %v4164
    %4587 = vmatpush.msra.mxu0 %v4163
    %4588 = vmatpush.msra.mxu0 %v4162
    %4589 = vmatpush.msra.mxu0 %v4161
    %4590 = vmatpush.msra.mxu0 %v4160
    %4591 = vmatpush.msra.mxu0 %v4159
    %4592 = vmatpush.msra.mxu0 %v4158
    %4593 = vmatpush.msra.mxu0 %v4157
    %4594 = vmatmul.f32.gmra.mxu0 %v4529
    %v4595 = vpop.f32.mrf.mxu0
    %v4596 = vadd.f32 %v4576, %v4595
    %4597 = vdwg.mxu0
    %4598 = vmatpush.msra.mxu0 %v4188
    %4599 = vmatpush.msra.mxu0 %v4187
    %4600 = vmatpush.msra.mxu0 %v4186
    %4601 = vmatpush.msra.mxu0 %v4185
    %4602 = vmatpush.msra.mxu0 %v4184
    %4603 = vmatpush.msra.mxu0 %v4183
    %4604 = vmatpush.msra.mxu0 %v4182
    %4605 = vmatpush.msra.mxu0 %v4181
    %4606 = vmatpush.msra.mxu0 %v4180
    %4607 = vmatpush.msra.mxu0 %v4179
    %4608 = vmatpush.msra.mxu0 %v4178
    %4609 = vmatpush.msra.mxu0 %v4177
    %4610 = vmatpush.msra.mxu0 %v4176
    %4611 = vmatpush.msra.mxu0 %v4175
    %4612 = vmatpush.msra.mxu0 %v4174
    %4613 = vmatpush.msra.mxu0 %v4173
    %4614 = vmatmul.f32.gmra.mxu0 %v4532
    %v4615 = vpop.f32.mrf.mxu0
    %v4616 = vadd.f32 %v4596, %v4615
    %4617 = vdwg.mxu0
    %4618 = vmatpush.msra.mxu0 %v4204
    %4619 = vmatpush.msra.mxu0 %v4203
    %4620 = vmatpush.msra.mxu0 %v4202
    %4621 = vmatpush.msra.mxu0 %v4201
    %4622 = vmatpush.msra.mxu0 %v4200
    %4623 = vmatpush.msra.mxu0 %v4199
    %4624 = vmatpush.msra.mxu0 %v4198
    %4625 = vmatpush.msra.mxu0 %v4197
    %4626 = vmatpush.msra.mxu0 %v4196
    %4627 = vmatpush.msra.mxu0 %v4195
    %4628 = vmatpush.msra.mxu0 %v4194
    %4629 = vmatpush.msra.mxu0 %v4193
    %4630 = vmatpush.msra.mxu0 %v4192
    %4631 = vmatpush.msra.mxu0 %v4191
    %4632 = vmatpush.msra.mxu0 %v4190
    %4633 = vmatpush.msra.mxu0 %v4189
    %4634 = vmatmul.f32.gmra.mxu0 %v4535
    %v4635 = vpop.f32.mrf.mxu0
    %v4636 = vadd.f32 %v4616, %v4635
    %4637 = vdwg.mxu0
    %4638 = vmatpush.msra.mxu0 %v4220
    %4639 = vmatpush.msra.mxu0 %v4219
    %4640 = vmatpush.msra.mxu0 %v4218
    %4641 = vmatpush.msra.mxu0 %v4217
    %4642 = vmatpush.msra.mxu0 %v4216
    %4643 = vmatpush.msra.mxu0 %v4215
    %4644 = vmatpush.msra.mxu0 %v4214
    %4645 = vmatpush.msra.mxu0 %v4213
    %4646 = vmatpush.msra.mxu0 %v4212
    %4647 = vmatpush.msra.mxu0 %v4211
    %4648 = vmatpush.msra.mxu0 %v4210
    %4649 = vmatpush.msra.mxu0 %v4209
    %4650 = vmatpush.msra.mxu0 %v4208
    %4651 = vmatpush.msra.mxu0 %v4207
    %4652 = vmatpush.msra.mxu0 %v4206
    %4653 = vmatpush.msra.mxu0 %v4205
    %4654 = vmatmul.f32.gmra.mxu0 %v4538
    %v4655 = vpop.f32.mrf.mxu0
    %v4656 = vadd.f32 %v4636, %v4655
    %4657 = vdwg.mxu0
    %4658 = vmatpush.msra.mxu0 %v4236
    %4659 = vmatpush.msra.mxu0 %v4235
    %4660 = vmatpush.msra.mxu0 %v4234
    %4661 = vmatpush.msra.mxu0 %v4233
    %4662 = vmatpush.msra.mxu0 %v4232
    %4663 = vmatpush.msra.mxu0 %v4231
    %4664 = vmatpush.msra.mxu0 %v4230
    %4665 = vmatpush.msra.mxu0 %v4229
    %4666 = vmatpush.msra.mxu0 %v4228
    %4667 = vmatpush.msra.mxu0 %v4227
    %4668 = vmatpush.msra.mxu0 %v4226
    %4669 = vmatpush.msra.mxu0 %v4225
    %4670 = vmatpush.msra.mxu0 %v4224
    %4671 = vmatpush.msra.mxu0 %v4223
    %4672 = vmatpush.msra.mxu0 %v4222
    %4673 = vmatpush.msra.mxu0 %v4221
    %4674 = vmatmul.f32.gmra.mxu0 %v4541
    %v4675 = vpop.f32.mrf.mxu0
    %v4676 = vadd.f32 %v4656, %v4675
    %4677 = vdwg.mxu0
    %4678 = vmatpush.msra.mxu0 %v4252
    %4679 = vmatpush.msra.mxu0 %v4251
    %4680 = vmatpush.msra.mxu0 %v4250
    %4681 = vmatpush.msra.mxu0 %v4249
    %4682 = vmatpush.msra.mxu0 %v4248
    %4683 = vmatpush.msra.mxu0 %v4247
    %4684 = vmatpush.msra.mxu0 %v4246
    %4685 = vmatpush.msra.mxu0 %v4245
    %4686 = vmatpush.msra.mxu0 %v4244
    %4687 = vmatpush.msra.mxu0 %v4243
    %4688 = vmatpush.msra.mxu0 %v4242
    %4689 = vmatpush.msra.mxu0 %v4241
    %4690 = vmatpush.msra.mxu0 %v4240
    %4691 = vmatpush.msra.mxu0 %v4239
    %4692 = vmatpush.msra.mxu0 %v4238
    %4693 = vmatpush.msra.mxu0 %v4237
    %4694 = vmatmul.f32.gmra.mxu0 %v4544
    %v4695 = vpop.f32.mrf.mxu0
    %v4696 = vadd.f32 %v4676, %v4695
    %4697 = vdwg.mxu0
    %4698 = vmatpush.msra.mxu0 %v4268
    %4699 = vmatpush.msra.mxu0 %v4267
    %4700 = vmatpush.msra.mxu0 %v4266
    %4701 = vmatpush.msra.mxu0 %v4265
    %4702 = vmatpush.msra.mxu0 %v4264
    %4703 = vmatpush.msra.mxu0 %v4263
    %4704 = vmatpush.msra.mxu0 %v4262
    %4705 = vmatpush.msra.mxu0 %v4261
    %4706 = vmatpush.msra.mxu0 %v4260
    %4707 = vmatpush.msra.mxu0 %v4259
    %4708 = vmatpush.msra.mxu0 %v4258
    %4709 = vmatpush.msra.mxu0 %v4257
    %4710 = vmatpush.msra.mxu0 %v4256
    %4711 = vmatpush.msra.mxu0 %v4255
    %4712 = vmatpush.msra.mxu0 %v4254
    %4713 = vmatpush.msra.mxu0 %v4253
    %4714 = vmatmul.f32.gmra.mxu0 %v4547
    %v4715 = vpop.f32.mrf.mxu0
    %v4716 = vadd.f32 %v4696, %v4715
    %4717 = vdwg.mxu0
    %4718 = vmatpush.msra.mxu0 %v4284
    %4719 = vmatpush.msra.mxu0 %v4283
    %4720 = vmatpush.msra.mxu0 %v4282
    %4721 = vmatpush.msra.mxu0 %v4281
    %4722 = vmatpush.msra.mxu0 %v4280
    %4723 = vmatpush.msra.mxu0 %v4279
    %4724 = vmatpush.msra.mxu0 %v4278
    %4725 = vmatpush.msra.mxu0 %v4277
    %4726 = vmatpush.msra.mxu0 %v4276
    %4727 = vmatpush.msra.mxu0 %v4275
    %4728 = vmatpush.msra.mxu0 %v4274
    %4729 = vmatpush.msra.mxu0 %v4273
    %4730 = vmatpush.msra.mxu0 %v4272
    %4731 = vmatpush.msra.mxu0 %v4271
    %4732 = vmatpush.msra.mxu0 %v4270
    %4733 = vmatpush.msra.mxu0 %v4269
    %4734 = vmatmul.f32.gmra.mxu0 %v4550
    %v4735 = vpop.f32.mrf.mxu0
    %v4736 = vadd.f32 %v4716, %v4735
    %4737 = vdwg.mxu0
    %v4738 = vmax.f32 %v4736, 0.0
    %v4739 = vld [vmem:[%s13] sm:$0xff]
    %v4740 = vld [vmem:[%s13 + $0x8] sm:$0xff]
    %v4741 = vld [vmem:[%s13 + $0x10] sm:$0xff]
    %v4742 = vld [vmem:[%s13 + $0x18] sm:$0xff]
    %v4743 = vld [vmem:[%s13 + $0x20] sm:$0xff]
    %v4744 = vld [vmem:[%s13 + $0x28] sm:$0xff]
    %v4745 = vld [vmem:[%s13 + $0x30] sm:$0xff]
    %v4746 = vld [vmem:[%s13 + $0x38] sm:$0xff]
    %v4747 = vld [vmem:[%s13 + $0x40] sm:$0xff]
    %v4749 = vsel %vm263, %v4739, 0
    %v4752 = vsel %vm263, %v4740, 0
    %v4755 = vsel %vm263, %v4741, 0
    %v4758 = vsel %vm263, %v4742, 0
    %v4761 = vsel %vm263, %v4743, 0
    %v4764 = vsel %vm263, %v4744, 0
    %v4767 = vsel %vm263, %v4745, 0
    %v4770 = vsel %vm263, %v4746, 0
    %v4773 = vsel %vm263, %v4747, 0
    %4775 = vmatpush.msra.mxu0 0.0
    %4776 = vmatpush.msra.mxu0 0.0
    %4777 = vmatpush.msra.mxu0 0.0
    %4778 = vmatpush.msra.mxu0 0.0
    %4779 = vmatpush.msra.mxu0 0.0
    %4780 = vmatpush.msra.mxu0 0.0
    %4781 = vmatpush.msra.mxu0 0.0
    %4782 = vmatpush.msra.mxu0 0.0
    %4783 = vmatpush.msra.mxu0 0.0
    %4784 = vmatpush.msra.mxu0 0.0
    %4785 = vmatpush.msra.mxu0 0.0
    %4786 = vmatpush.msra.mxu0 0.0
    %4787 = vmatpush.msra.mxu0 0.0
    %4788 = vmatpush.msra.mxu0 0.0
    %4789 = vmatpush.msra.mxu0 0.0
    %4790 = vmatpush.msra.mxu0 %v4738
    %4791 = vmatmul.f32.gmra.mxu0 %v4749
    %v4792 = vpop.f32.mrf.mxu0
    %v4793 = vadd.f32 0.0, %v4792
    %4794 = vmatmul.f32.gmra.mxu0 %v4752
    %v4795 = vpop.f32.mrf.mxu0
    %v4796 = vadd.f32 0.0, %v4795
    %4797 = vmatmul.f32.gmra.mxu0 %v4755
    %v4798 = vpop.f32.mrf.mxu0
    %v4799 = vadd.f32 0.0, %v4798
    %4800 = vmatmul.f32.gmra.mxu0 %v4758
    %v4801 = vpop.f32.mrf.mxu0
    %v4802 = vadd.f32 0.0, %v4801
    %4803 = vmatmul.f32.gmra.mxu0 %v4761
    %v4804 = vpop.f32.mrf.mxu0
    %v4805 = vadd.f32 0.0, %v4804
    %4806 = vmatmul.f32.gmra.mxu0 %v4764
    %v4807 = vpop.f32.mrf.mxu0
    %v4808 = vadd.f32 0.0, %v4807
    %4809 = vmatmul.f32.gmra.mxu0 %v4767
    %v4810 = vpop.f32.mrf.mxu0
    %v4811 = vadd.f32 0.0, %v4810
    %4812 = vmatmul.f32.gmra.mxu0 %v4770
    %v4813 = vpop.f32.mrf.mxu0
    %v4814 = vadd.f32 0.0, %v4813
    %4815 = vmatmul.f32.gmra.mxu0 %v4773
    %v4816 = vpop.f32.mrf.mxu0
    %v4817 = vadd.f32 0.0, %v4816
    %4818 = vdwg.mxu0
    %v4819 = vld [vmem:[%s14] sm:$0xff]
    %4821 = vset.pattern.permute.xlu0 0
    %4822 = vperm.xlu0 %4821, %v4819
    %v4823 = vpop.permute.xlu0 %4822
    %4825 = vmatpush.msra.mxu0 %v4156
    %4826 = vmatpush.msra.mxu0 %v4155
    %4827 = vmatpush.msra.mxu0 %v4154
    %4828 = vmatpush.msra.mxu0 %v4153
    %4829 = vmatpush.msra.mxu0 %v4152
    %4830 = vmatpush.msra.mxu0 %v4151
    %4831 = vmatpush.msra.mxu0 %v4150
    %4832 = vmatpush.msra.mxu0 %v4149
    %4833 = vmatpush.msra.mxu0 %v4148
    %4834 = vmatpush.msra.mxu0 %v4147
    %4835 = vmatpush.msra.mxu0 %v4146
    %4836 = vmatpush.msra.mxu0 %v4145
    %4837 = vmatpush.msra.mxu0 %v4144
    %4838 = vmatpush.msra.mxu0 %v4143
    %4839 = vmatpush.msra.mxu0 %v4142
    %4840 = vmatpush.msra.mxu0 %v4141
    %4841 = vmatmul.f32.gmra.mxu0 %v4793
    %v4842 = vpop.f32.mrf.mxu0
    %v4843 = vadd.f32 %v4823, %v4842
    %4844 = vdwg.mxu0
    %4845 = vmatpush.msra.mxu0 %v4172
    %4846 = vmatpush.msra.mxu0 %v4171
    %4847 = vmatpush.msra.mxu0 %v4170
    %4848 = vmatpush.msra.mxu0 %v4169
    %4849 = vmatpush.msra.mxu0 %v4168
    %4850 = vmatpush.msra.mxu0 %v4167
    %4851 = vmatpush.msra.mxu0 %v4166
    %4852 = vmatpush.msra.mxu0 %v4165
    %4853 = vmatpush.msra.mxu0 %v4164
    %4854 = vmatpush.msra.mxu0 %v4163
    %4855 = vmatpush.msra.mxu0 %v4162
    %4856 = vmatpush.msra.mxu0 %v4161
    %4857 = vmatpush.msra.mxu0 %v4160
    %4858 = vmatpush.msra.mxu0 %v4159
    %4859 = vmatpush.msra.mxu0 %v4158
    %4860 = vmatpush.msra.mxu0 %v4157
    %4861 = vmatmul.f32.gmra.mxu0 %v4796
    %v4862 = vpop.f32.mrf.mxu0
    %v4863 = vadd.f32 %v4843, %v4862
    %4864 = vdwg.mxu0
    %4865 = vmatpush.msra.mxu0 %v4188
    %4866 = vmatpush.msra.mxu0 %v4187
    %4867 = vmatpush.msra.mxu0 %v4186
    %4868 = vmatpush.msra.mxu0 %v4185
    %4869 = vmatpush.msra.mxu0 %v4184
    %4870 = vmatpush.msra.mxu0 %v4183
    %4871 = vmatpush.msra.mxu0 %v4182
    %4872 = vmatpush.msra.mxu0 %v4181
    %4873 = vmatpush.msra.mxu0 %v4180
    %4874 = vmatpush.msra.mxu0 %v4179
    %4875 = vmatpush.msra.mxu0 %v4178
    %4876 = vmatpush.msra.mxu0 %v4177
    %4877 = vmatpush.msra.mxu0 %v4176
    %4878 = vmatpush.msra.mxu0 %v4175
    %4879 = vmatpush.msra.mxu0 %v4174
    %4880 = vmatpush.msra.mxu0 %v4173
    %4881 = vmatmul.f32.gmra.mxu0 %v4799
    %v4882 = vpop.f32.mrf.mxu0
    %v4883 = vadd.f32 %v4863, %v4882
    %4884 = vdwg.mxu0
    %4885 = vmatpush.msra.mxu0 %v4204
    %4886 = vmatpush.msra.mxu0 %v4203
    %4887 = vmatpush.msra.mxu0 %v4202
    %4888 = vmatpush.msra.mxu0 %v4201
    %4889 = vmatpush.msra.mxu0 %v4200
    %4890 = vmatpush.msra.mxu0 %v4199
    %4891 = vmatpush.msra.mxu0 %v4198
    %4892 = vmatpush.msra.mxu0 %v4197
    %4893 = vmatpush.msra.mxu0 %v4196
    %4894 = vmatpush.msra.mxu0 %v4195
    %4895 = vmatpush.msra.mxu0 %v4194
    %4896 = vmatpush.msra.mxu0 %v4193
    %4897 = vmatpush.msra.mxu0 %v4192
    %4898 = vmatpush.msra.mxu0 %v4191
    %4899 = vmatpush.msra.mxu0 %v4190
    %4900 = vmatpush.msra.mxu0 %v4189
    %4901 = vmatmul.f32.gmra.mxu0 %v4802
    %v4902 = vpop.f32.mrf.mxu0
    %v4903 = vadd.f32 %v4883, %v4902
    %4904 = vdwg.mxu0
    %4905 = vmatpush.msra.mxu0 %v4220
    %4906 = vmatpush.msra.mxu0 %v4219
    %4907 = vmatpush.msra.mxu0 %v4218
    %4908 = vmatpush.msra.mxu0 %v4217
    %4909 = vmatpush.msra.mxu0 %v4216
    %4910 = vmatpush.msra.mxu0 %v4215
    %4911 = vmatpush.msra.mxu0 %v4214
    %4912 = vmatpush.msra.mxu0 %v4213
    %4913 = vmatpush.msra.mxu0 %v4212
    %4914 = vmatpush.msra.mxu0 %v4211
    %4915 = vmatpush.msra.mxu0 %v4210
    %4916 = vmatpush.msra.mxu0 %v4209
    %4917 = vmatpush.msra.mxu0 %v4208
    %4918 = vmatpush.msra.mxu0 %v4207
    %4919 = vmatpush.msra.mxu0 %v4206
    %4920 = vmatpush.msra.mxu0 %v4205
    %4921 = vmatmul.f32.gmra.mxu0 %v4805
    %v4922 = vpop.f32.mrf.mxu0
    %v4923 = vadd.f32 %v4903, %v4922
    %4924 = vdwg.mxu0
    %4925 = vmatpush.msra.mxu0 %v4236
    %4926 = vmatpush.msra.mxu0 %v4235
    %4927 = vmatpush.msra.mxu0 %v4234
    %4928 = vmatpush.msra.mxu0 %v4233
    %4929 = vmatpush.msra.mxu0 %v4232
    %4930 = vmatpush.msra.mxu0 %v4231
    %4931 = vmatpush.msra.mxu0 %v4230
    %4932 = vmatpush.msra.mxu0 %v4229
    %4933 = vmatpush.msra.mxu0 %v4228
    %4934 = vmatpush.msra.mxu0 %v4227
    %4935 = vmatpush.msra.mxu0 %v4226
    %4936 = vmatpush.msra.mxu0 %v4225
    %4937 = vmatpush.msra.mxu0 %v4224
    %4938 = vmatpush.msra.mxu0 %v4223
    %4939 = vmatpush.msra.mxu0 %v4222
    %4940 = vmatpush.msra.mxu0 %v4221
    %4941 = vmatmul.f32.gmra.mxu0 %v4808
    %v4942 = vpop.f32.mrf.mxu0
    %v4943 = vadd.f32 %v4923, %v4942
    %4944 = vdwg.mxu0
    %4945 = vmatpush.msra.mxu0 %v4252
    %4946 = vmatpush.msra.mxu0 %v4251
    %4947 = vmatpush.msra.mxu0 %v4250
    %4948 = vmatpush.msra.mxu0 %v4249
    %4949 = vmatpush.msra.mxu0 %v4248
    %4950 = vmatpush.msra.mxu0 %v4247
    %4951 = vmatpush.msra.mxu0 %v4246
    %4952 = vmatpush.msra.mxu0 %v4245
    %4953 = vmatpush.msra.mxu0 %v4244
    %4954 = vmatpush.msra.mxu0 %v4243
    %4955 = vmatpush.msra.mxu0 %v4242
    %4956 = vmatpush.msra.mxu0 %v4241
    %4957 = vmatpush.msra.mxu0 %v4240
    %4958 = vmatpush.msra.mxu0 %v4239
    %4959 = vmatpush.msra.mxu0 %v4238
    %4960 = vmatpush.msra.mxu0 %v4237
    %4961 = vmatmul.f32.gmra.mxu0 %v4811
    %v4962 = vpop.f32.mrf.mxu0
    %v4963 = vadd.f32 %v4943, %v4962
    %4964 = vdwg.mxu0
    %4965 = vmatpush.msra.mxu0 %v4268
    %4966 = vmatpush.msra.mxu0 %v4267
    %4967 = vmatpush.msra.mxu0 %v4266
    %4968 = vmatpush.msra.mxu0 %v4265
    %4969 = vmatpush.msra.mxu0 %v4264
    %4970 = vmatpush.msra.mxu0 %v4263
    %4971 = vmatpush.msra.mxu0 %v4262
    %4972 = vmatpush.msra.mxu0 %v4261
    %4973 = vmatpush.msra.mxu0 %v4260
    %4974 = vmatpush.msra.mxu0 %v4259
    %4975 = vmatpush.msra.mxu0 %v4258
    %4976 = vmatpush.msra.mxu0 %v4257
    %4977 = vmatpush.msra.mxu0 %v4256
    %4978 = vmatpush.msra.mxu0 %v4255
    %4979 = vmatpush.msra.mxu0 %v4254
    %4980 = vmatpush.msra.mxu0 %v4253
    %4981 = vmatmul.f32.gmra.mxu0 %v4814
    %v4982 = vpop.f32.mrf.mxu0
    %v4983 = vadd.f32 %v4963, %v4982
    %4984 = vdwg.mxu0
    %4985 = vmatpush.msra.mxu0 %v4284
    %4986 = vmatpush.msra.mxu0 %v4283
    %4987 = vmatpush.msra.mxu0 %v4282
    %4988 = vmatpush.msra.mxu0 %v4281
    %4989 = vmatpush.msra.mxu0 %v4280
    %4990 = vmatpush.msra.mxu0 %v4279
    %4991 = vmatpush.msra.mxu0 %v4278
    %4992 = vmatpush.msra.mxu0 %v4277
    %4993 = vmatpush.msra.mxu0 %v4276
    %4994 = vmatpush.msra.mxu0 %v4275
    %4995 = vmatpush.msra.mxu0 %v4274
    %4996 = vmatpush.msra.mxu0 %v4273
    %4997 = vmatpush.msra.mxu0 %v4272
    %4998 = vmatpush.msra.mxu0 %v4271
    %4999 = vmatpush.msra.mxu0 %v4270
    %5000 = vmatpush.msra.mxu0 %v4269
    %5001 = vmatmul.f32.gmra.mxu0 %v4817
    %v5002 = vpop.f32.mrf.mxu0
    %v5003 = vadd.f32 %v4983, %v5002
    %5004 = vdwg.mxu0
    %v5005 = vld [vmem:[#allocation7] sm:$0xff]
    %v5006 = vld [vmem:[#allocation7 + $0x8] sm:$0xff]
    %v5007 = vld [vmem:[#allocation7 + $0x10] sm:$0xff]
    %v5008 = vld [vmem:[#allocation7 + $0x18] sm:$0xff]
    %v5009 = vld [vmem:[#allocation7 + $0x20] sm:$0xff]
    %v5010 = vld [vmem:[#allocation7 + $0x28] sm:$0xff]
    %v5011 = vld [vmem:[#allocation7 + $0x30] sm:$0xff]
    %v5012 = vld [vmem:[#allocation7 + $0x38] sm:$0xff]
    %v5013 = vld [vmem:[#allocation7 + $0x40] sm:$0xff]
    %v5014 = vld [vmem:[#allocation7 + $0x48] sm:$0xff]
    %v5015 = vld [vmem:[#allocation7 + $0x50] sm:$0xff]
    %v5016 = vld [vmem:[#allocation7 + $0x58] sm:$0xff]
    %v5017 = vld [vmem:[#allocation7 + $0x60] sm:$0xff]
    %v5018 = vld [vmem:[#allocation7 + $0x68] sm:$0xff]
    %v5019 = vld [vmem:[#allocation7 + $0x70] sm:$0xff]
    %v5020 = vld [vmem:[#allocation7 + $0x78] sm:$0xff]
    %v5021 = vld [vmem:[#allocation7 + $0x80] sm:$0xff]
    %v5022 = vld [vmem:[#allocation7 + $0x88] sm:$0xff]
    %v5023 = vld [vmem:[#allocation7 + $0x90] sm:$0xff]
    %v5024 = vld [vmem:[#allocation7 + $0x98] sm:$0xff]
    %v5025 = vld [vmem:[#allocation7 + $0xa0] sm:$0xff]
    %v5026 = vld [vmem:[#allocation7 + $0xa8] sm:$0xff]
    %v5027 = vld [vmem:[#allocation7 + $0xb0] sm:$0xff]
    %v5028 = vld [vmem:[#allocation7 + $0xb8] sm:$0xff]
    %v5029 = vld [vmem:[#allocation7 + $0xc0] sm:$0xff]
    %v5030 = vld [vmem:[#allocation7 + $0xc8] sm:$0xff]
    %v5031 = vld [vmem:[#allocation7 + $0xd0] sm:$0xff]
    %v5032 = vld [vmem:[#allocation7 + $0xd8] sm:$0xff]
    %v5033 = vld [vmem:[#allocation7 + $0xe0] sm:$0xff]
    %v5034 = vld [vmem:[#allocation7 + $0xe8] sm:$0xff]
    %v5035 = vld [vmem:[#allocation7 + $0xf0] sm:$0xff]
    %v5036 = vld [vmem:[#allocation7 + $0xf8] sm:$0xff]
    %v5037 = vld [vmem:[#allocation7 + $0x100] sm:$0xff]
    %v5038 = vld [vmem:[#allocation7 + $0x108] sm:$0xff]
    %v5039 = vld [vmem:[#allocation7 + $0x110] sm:$0xff]
    %v5040 = vld [vmem:[#allocation7 + $0x118] sm:$0xff]
    %v5041 = vld [vmem:[#allocation7 + $0x120] sm:$0xff]
    %v5042 = vld [vmem:[#allocation7 + $0x128] sm:$0xff]
    %v5043 = vld [vmem:[#allocation7 + $0x130] sm:$0xff]
    %v5044 = vld [vmem:[#allocation7 + $0x138] sm:$0xff]
    %v5045 = vld [vmem:[#allocation7 + $0x140] sm:$0xff]
    %v5046 = vld [vmem:[#allocation7 + $0x148] sm:$0xff]
    %v5047 = vld [vmem:[#allocation7 + $0x150] sm:$0xff]
    %v5048 = vld [vmem:[#allocation7 + $0x158] sm:$0xff]
    %v5049 = vld [vmem:[#allocation7 + $0x160] sm:$0xff]
    %v5050 = vld [vmem:[#allocation7 + $0x168] sm:$0xff]
    %v5051 = vld [vmem:[#allocation7 + $0x170] sm:$0xff]
    %v5052 = vld [vmem:[#allocation7 + $0x178] sm:$0xff]
    %v5053 = vld [vmem:[#allocation7 + $0x180] sm:$0xff]
    %v5054 = vld [vmem:[#allocation7 + $0x188] sm:$0xff]
    %v5055 = vld [vmem:[#allocation7 + $0x190] sm:$0xff]
    %v5056 = vld [vmem:[#allocation7 + $0x198] sm:$0xff]
    %v5057 = vld [vmem:[#allocation7 + $0x1a0] sm:$0xff]
    %v5058 = vld [vmem:[#allocation7 + $0x1a8] sm:$0xff]
    %v5059 = vld [vmem:[#allocation7 + $0x1b0] sm:$0xff]
    %v5060 = vld [vmem:[#allocation7 + $0x1b8] sm:$0xff]
    %v5061 = vld [vmem:[#allocation7 + $0x1c0] sm:$0xff]
    %v5062 = vld [vmem:[#allocation7 + $0x1c8] sm:$0xff]
    %v5063 = vld [vmem:[#allocation7 + $0x1d0] sm:$0xff]
    %v5064 = vld [vmem:[#allocation7 + $0x1d8] sm:$0xff]
    %v5065 = vld [vmem:[#allocation7 + $0x1e0] sm:$0xff]
    %v5066 = vld [vmem:[#allocation7 + $0x1e8] sm:$0xff]
    %v5067 = vld [vmem:[#allocation7 + $0x1f0] sm:$0xff]
    %v5068 = vld [vmem:[#allocation7 + $0x1f8] sm:$0xff]
    %v5069 = vld [vmem:[#allocation7 + $0x200] sm:$0xff]
    %v5070 = vld [vmem:[#allocation7 + $0x208] sm:$0xff]
    %v5071 = vld [vmem:[#allocation7 + $0x210] sm:$0xff]
    %v5072 = vld [vmem:[#allocation7 + $0x218] sm:$0xff]
    %v5073 = vld [vmem:[#allocation7 + $0x220] sm:$0xff]
    %v5074 = vld [vmem:[#allocation7 + $0x228] sm:$0xff]
    %v5075 = vld [vmem:[#allocation7 + $0x230] sm:$0xff]
    %v5076 = vld [vmem:[#allocation7 + $0x238] sm:$0xff]
    %v5077 = vld [vmem:[#allocation7 + $0x240] sm:$0xff]
    %v5078 = vld [vmem:[#allocation7 + $0x248] sm:$0xff]
    %v5079 = vld [vmem:[#allocation7 + $0x250] sm:$0xff]
    %v5080 = vld [vmem:[#allocation7 + $0x258] sm:$0xff]
    %v5081 = vld [vmem:[#allocation7 + $0x260] sm:$0xff]
    %v5082 = vld [vmem:[#allocation7 + $0x268] sm:$0xff]
    %v5083 = vld [vmem:[#allocation7 + $0x270] sm:$0xff]
    %v5084 = vld [vmem:[#allocation7 + $0x278] sm:$0xff]
    %v5085 = vld [vmem:[%s17] sm:$0xff]
    %v5086 = vld [vmem:[%s17 + $0x8] sm:$0xff]
    %v5087 = vld [vmem:[%s17 + $0x10] sm:$0xff]
    %v5088 = vld [vmem:[%s17 + $0x18] sm:$0xff]
    %5089 = vmatpush.msra.mxu0 %v5080
    %5090 = vmatpush.msra.mxu0 %v5075
    %5091 = vmatpush.msra.mxu0 %v5070
    %5092 = vmatpush.msra.mxu0 %v5065
    %5093 = vmatpush.msra.mxu0 %v5060
    %5094 = vmatpush.msra.mxu0 %v5055
    %5095 = vmatpush.msra.mxu0 %v5050
    %5096 = vmatpush.msra.mxu0 %v5045
    %5097 = vmatpush.msra.mxu0 %v5040
    %5098 = vmatpush.msra.mxu0 %v5035
    %5099 = vmatpush.msra.mxu0 %v5030
    %5100 = vmatpush.msra.mxu0 %v5025
    %5101 = vmatpush.msra.mxu0 %v5020
    %5102 = vmatpush.msra.mxu0 %v5015
    %5103 = vmatpush.msra.mxu0 %v5010
    %5104 = vmatpush.msra.mxu0 %v5005
    %5105 = vmatmul.f32.gmra.mxu0 %v5003
    %v5106 = vpop.f32.mrf.mxu0
    %v5107 = vadd.f32 %v285, %v5106
    %5108 = vdwg.mxu0
    %5109 = vmatpush.msra.mxu0 %v5081
    %5110 = vmatpush.msra.mxu0 %v5076
    %5111 = vmatpush.msra.mxu0 %v5071
    %5112 = vmatpush.msra.mxu0 %v5066
    %5113 = vmatpush.msra.mxu0 %v5061
    %5114 = vmatpush.msra.mxu0 %v5056
    %5115 = vmatpush.msra.mxu0 %v5051
    %5116 = vmatpush.msra.mxu0 %v5046
    %5117 = vmatpush.msra.mxu0 %v5041
    %5118 = vmatpush.msra.mxu0 %v5036
    %5119 = vmatpush.msra.mxu0 %v5031
    %5120 = vmatpush.msra.mxu0 %v5026
    %5121 = vmatpush.msra.mxu0 %v5021
    %5122 = vmatpush.msra.mxu0 %v5016
    %5123 = vmatpush.msra.mxu0 %v5011
    %5124 = vmatpush.msra.mxu0 %v5006
    %5125 = vmatmul.f32.gmra.mxu0 %v5003
    %v5126 = vpop.f32.mrf.mxu0
    %v5127 = vadd.f32 %v305, %v5126
    %5128 = vdwg.mxu0
    %5129 = vmatpush.msra.mxu0 %v5082
    %5130 = vmatpush.msra.mxu0 %v5077
    %5131 = vmatpush.msra.mxu0 %v5072
    %5132 = vmatpush.msra.mxu0 %v5067
    %5133 = vmatpush.msra.mxu0 %v5062
    %5134 = vmatpush.msra.mxu0 %v5057
    %5135 = vmatpush.msra.mxu0 %v5052
    %5136 = vmatpush.msra.mxu0 %v5047
    %5137 = vmatpush.msra.mxu0 %v5042
    %5138 = vmatpush.msra.mxu0 %v5037
    %5139 = vmatpush.msra.mxu0 %v5032
    %5140 = vmatpush.msra.mxu0 %v5027
    %5141 = vmatpush.msra.mxu0 %v5022
    %5142 = vmatpush.msra.mxu0 %v5017
    %5143 = vmatpush.msra.mxu0 %v5012
    %5144 = vmatpush.msra.mxu0 %v5007
    %5145 = vmatmul.f32.gmra.mxu0 %v5003
    %v5146 = vpop.f32.mrf.mxu0
    %v5147 = vadd.f32 %v325, %v5146
    %5148 = vdwg.mxu0
    %5149 = vmatpush.msra.mxu0 %v5083
    %5150 = vmatpush.msra.mxu0 %v5078
    %5151 = vmatpush.msra.mxu0 %v5073
    %5152 = vmatpush.msra.mxu0 %v5068
    %5153 = vmatpush.msra.mxu0 %v5063
    %5154 = vmatpush.msra.mxu0 %v5058
    %5155 = vmatpush.msra.mxu0 %v5053
    %5156 = vmatpush.msra.mxu0 %v5048
    %5157 = vmatpush.msra.mxu0 %v5043
    %5158 = vmatpush.msra.mxu0 %v5038
    %5159 = vmatpush.msra.mxu0 %v5033
    %5160 = vmatpush.msra.mxu0 %v5028
    %5161 = vmatpush.msra.mxu0 %v5023
    %5162 = vmatpush.msra.mxu0 %v5018
    %5163 = vmatpush.msra.mxu0 %v5013
    %5164 = vmatpush.msra.mxu0 %v5008
    %5165 = vmatmul.f32.gmra.mxu0 %v5003
    %v5166 = vpop.f32.mrf.mxu0
    %v5167 = vadd.f32 %v345, %v5166
    %5168 = vdwg.mxu0
    %5169 = vmatpush.msra.mxu0 %v5084
    %5170 = vmatpush.msra.mxu0 %v5079
    %5171 = vmatpush.msra.mxu0 %v5074
    %5172 = vmatpush.msra.mxu0 %v5069
    %5173 = vmatpush.msra.mxu0 %v5064
    %5174 = vmatpush.msra.mxu0 %v5059
    %5175 = vmatpush.msra.mxu0 %v5054
    %5176 = vmatpush.msra.mxu0 %v5049
    %5177 = vmatpush.msra.mxu0 %v5044
    %5178 = vmatpush.msra.mxu0 %v5039
    %5179 = vmatpush.msra.mxu0 %v5034
    %5180 = vmatpush.msra.mxu0 %v5029
    %5181 = vmatpush.msra.mxu0 %v5024
    %5182 = vmatpush.msra.mxu0 %v5019
    %5183 = vmatpush.msra.mxu0 %v5014
    %5184 = vmatpush.msra.mxu0 %v5009
    %5185 = vmatmul.f32.gmra.mxu0 %v5003
    %v5186 = vpop.f32.mrf.mxu0
    %v5187 = vadd.f32 %v365, %v5186
    %5188 = vdwg.mxu0
    %v5189 = vld [vmem:[%s18] sm:$0xff]
    %v5190 = vld [vmem:[%s18 + $0x8] sm:$0xff]
    %v5191 = vld [vmem:[%s18 + $0x10] sm:$0xff]
    %v5192 = vld [vmem:[%s18 + $0x18] sm:$0xff]
    %5194 = vset.pattern.permute.xlu0 0
    %5195 = vperm.xlu0 %5194, %v5189
    %v5196 = vpop.permute.xlu0 %5195
    %5199 = vset.pattern.permute.xlu0 0
    %5200 = vperm.xlu0 %5199, %v5190
    %v5201 = vpop.permute.xlu0 %5200
    %5204 = vset.pattern.permute.xlu0 0
    %5205 = vperm.xlu0 %5204, %v5191
    %v5206 = vpop.permute.xlu0 %5205
    %5209 = vset.pattern.permute.xlu0 0
    %5210 = vperm.xlu0 %5209, %v5192
    %v5211 = vpop.permute.xlu0 %5210
    %v5214 = vsel %vm263, %v5085, 0
    %v5217 = vsel %vm263, %v5086, 0
    %v5220 = vsel %vm263, %v5087, 0
    %v5223 = vsel %vm263, %v5088, 0
    %5225 = vmatpush.msra.mxu0 0.0
    %5226 = vmatpush.msra.mxu0 0.0
    %5227 = vmatpush.msra.mxu0 0.0
    %5228 = vmatpush.msra.mxu0 0.0
    %5229 = vmatpush.msra.mxu0 0.0
    %5230 = vmatpush.msra.mxu0 0.0
    %5231 = vmatpush.msra.mxu0 0.0
    %5232 = vmatpush.msra.mxu0 0.0
    %5233 = vmatpush.msra.mxu0 0.0
    %5234 = vmatpush.msra.mxu0 0.0
    %5235 = vmatpush.msra.mxu0 0.0
    %5236 = vmatpush.msra.mxu0 0.0
    %5237 = vmatpush.msra.mxu0 0.0
    %5238 = vmatpush.msra.mxu0 0.0
    %5239 = vmatpush.msra.mxu0 0.0
    %5240 = vmatpush.msra.mxu0 %v5107
    %5241 = vmatmul.f32.gmra.mxu0 %v5214
    %v5242 = vpop.f32.mrf.mxu0
    %v5243 = vadd.f32 %v5196, %v5242
    %5244 = vmatmul.f32.gmra.mxu0 %v5217
    %v5245 = vpop.f32.mrf.mxu0
    %v5246 = vadd.f32 %v5201, %v5245
    %5247 = vmatmul.f32.gmra.mxu0 %v5220
    %v5248 = vpop.f32.mrf.mxu0
    %v5249 = vadd.f32 %v5206, %v5248
    %5250 = vmatmul.f32.gmra.mxu0 %v5223
    %v5251 = vpop.f32.mrf.mxu0
    %v5252 = vadd.f32 %v5211, %v5251
    %5253 = vdwg.mxu0
    %5254 = vmatpush.msra.mxu0 0.0
    %5255 = vmatpush.msra.mxu0 0.0
    %5256 = vmatpush.msra.mxu0 0.0
    %5257 = vmatpush.msra.mxu0 0.0
    %5258 = vmatpush.msra.mxu0 0.0
    %5259 = vmatpush.msra.mxu0 0.0
    %5260 = vmatpush.msra.mxu0 0.0
    %5261 = vmatpush.msra.mxu0 0.0
    %5262 = vmatpush.msra.mxu0 0.0
    %5263 = vmatpush.msra.mxu0 0.0
    %5264 = vmatpush.msra.mxu0 0.0
    %5265 = vmatpush.msra.mxu0 0.0
    %5266 = vmatpush.msra.mxu0 0.0
    %5267 = vmatpush.msra.mxu0 0.0
    %5268 = vmatpush.msra.mxu0 0.0
    %5269 = vmatpush.msra.mxu0 %v5127
    %5270 = vmatmul.f32.gmra.mxu0 %v5214
    %v5271 = vpop.f32.mrf.mxu0
    %v5272 = vadd.f32 %v5196, %v5271
    %5273 = vmatmul.f32.gmra.mxu0 %v5217
    %v5274 = vpop.f32.mrf.mxu0
    %v5275 = vadd.f32 %v5201, %v5274
    %5276 = vmatmul.f32.gmra.mxu0 %v5220
    %v5277 = vpop.f32.mrf.mxu0
    %v5278 = vadd.f32 %v5206, %v5277
    %5279 = vmatmul.f32.gmra.mxu0 %v5223
    %v5280 = vpop.f32.mrf.mxu0
    %v5281 = vadd.f32 %v5211, %v5280
    %5282 = vdwg.mxu0
    %5283 = vmatpush.msra.mxu0 0.0
    %5284 = vmatpush.msra.mxu0 0.0
    %5285 = vmatpush.msra.mxu0 0.0
    %5286 = vmatpush.msra.mxu0 0.0
    %5287 = vmatpush.msra.mxu0 0.0
    %5288 = vmatpush.msra.mxu0 0.0
    %5289 = vmatpush.msra.mxu0 0.0
    %5290 = vmatpush.msra.mxu0 0.0
    %5291 = vmatpush.msra.mxu0 0.0
    %5292 = vmatpush.msra.mxu0 0.0
    %5293 = vmatpush.msra.mxu0 0.0
    %5294 = vmatpush.msra.mxu0 0.0
    %5295 = vmatpush.msra.mxu0 0.0
    %5296 = vmatpush.msra.mxu0 0.0
    %5297 = vmatpush.msra.mxu0 0.0
    %5298 = vmatpush.msra.mxu0 %v5147
    %5299 = vmatmul.f32.gmra.mxu0 %v5214
    %v5300 = vpop.f32.mrf.mxu0
    %v5301 = vadd.f32 %v5196, %v5300
    %5302 = vmatmul.f32.gmra.mxu0 %v5217
    %v5303 = vpop.f32.mrf.mxu0
    %v5304 = vadd.f32 %v5201, %v5303
    %5305 = vmatmul.f32.gmra.mxu0 %v5220
    %v5306 = vpop.f32.mrf.mxu0
    %v5307 = vadd.f32 %v5206, %v5306
    %5308 = vmatmul.f32.gmra.mxu0 %v5223
    %v5309 = vpop.f32.mrf.mxu0
    %v5310 = vadd.f32 %v5211, %v5309
    %5311 = vdwg.mxu0
    %5312 = vmatpush.msra.mxu0 0.0
    %5313 = vmatpush.msra.mxu0 0.0
    %5314 = vmatpush.msra.mxu0 0.0
    %5315 = vmatpush.msra.mxu0 0.0
    %5316 = vmatpush.msra.mxu0 0.0
    %5317 = vmatpush.msra.mxu0 0.0
    %5318 = vmatpush.msra.mxu0 0.0
    %5319 = vmatpush.msra.mxu0 0.0
    %5320 = vmatpush.msra.mxu0 0.0
    %5321 = vmatpush.msra.mxu0 0.0
    %5322 = vmatpush.msra.mxu0 0.0
    %5323 = vmatpush.msra.mxu0 0.0
    %5324 = vmatpush.msra.mxu0 0.0
    %5325 = vmatpush.msra.mxu0 0.0
    %5326 = vmatpush.msra.mxu0 0.0
    %5327 = vmatpush.msra.mxu0 %v5167
    %5328 = vmatmul.f32.gmra.mxu0 %v5214
    %v5329 = vpop.f32.mrf.mxu0
    %v5330 = vadd.f32 %v5196, %v5329
    %5331 = vmatmul.f32.gmra.mxu0 %v5217
    %v5332 = vpop.f32.mrf.mxu0
    %v5333 = vadd.f32 %v5201, %v5332
    %5334 = vmatmul.f32.gmra.mxu0 %v5220
    %v5335 = vpop.f32.mrf.mxu0
    %v5336 = vadd.f32 %v5206, %v5335
    %5337 = vmatmul.f32.gmra.mxu0 %v5223
    %v5338 = vpop.f32.mrf.mxu0
    %v5339 = vadd.f32 %v5211, %v5338
    %5340 = vdwg.mxu0
    %5341 = vmatpush.msra.mxu0 0.0
    %5342 = vmatpush.msra.mxu0 0.0
    %5343 = vmatpush.msra.mxu0 0.0
    %5344 = vmatpush.msra.mxu0 0.0
    %5345 = vmatpush.msra.mxu0 0.0
    %5346 = vmatpush.msra.mxu0 0.0
    %5347 = vmatpush.msra.mxu0 0.0
    %5348 = vmatpush.msra.mxu0 0.0
    %5349 = vmatpush.msra.mxu0 0.0
    %5350 = vmatpush.msra.mxu0 0.0
    %5351 = vmatpush.msra.mxu0 0.0
    %5352 = vmatpush.msra.mxu0 0.0
    %5353 = vmatpush.msra.mxu0 0.0
    %5354 = vmatpush.msra.mxu0 0.0
    %5355 = vmatpush.msra.mxu0 0.0
    %5356 = vmatpush.msra.mxu0 %v5187
    %5357 = vmatmul.f32.gmra.mxu0 %v5214
    %v5358 = vpop.f32.mrf.mxu0
    %v5359 = vadd.f32 %v5196, %v5358
    %5360 = vmatmul.f32.gmra.mxu0 %v5217
    %v5361 = vpop.f32.mrf.mxu0
    %v5362 = vadd.f32 %v5201, %v5361
    %5363 = vmatmul.f32.gmra.mxu0 %v5220
    %v5364 = vpop.f32.mrf.mxu0
    %v5365 = vadd.f32 %v5206, %v5364
    %5366 = vmatmul.f32.gmra.mxu0 %v5223
    %v5367 = vpop.f32.mrf.mxu0
    %v5368 = vadd.f32 %v5211, %v5367
    %5369 = vdwg.mxu0
    %v5370 = vxor.u32 %v5243, 2147483648
    %v5371 = vxor.u32 %v5272, 2147483648
    %v5372 = vxor.u32 %v5301, 2147483648
    %v5373 = vxor.u32 %v5330, 2147483648
    %v5374 = vxor.u32 %v5359, 2147483648
    %v5375 = vxor.u32 %v5246, 2147483648
    %v5376 = vxor.u32 %v5275, 2147483648
    %v5377 = vxor.u32 %v5304, 2147483648
    %v5378 = vxor.u32 %v5333, 2147483648
    %v5379 = vxor.u32 %v5362, 2147483648
    %v5380 = vxor.u32 %v5249, 2147483648
    %v5381 = vxor.u32 %v5278, 2147483648
    %v5382 = vxor.u32 %v5307, 2147483648
    %v5383 = vxor.u32 %v5336, 2147483648
    %v5384 = vxor.u32 %v5365, 2147483648
    %v5385 = vxor.u32 %v5252, 2147483648
    %v5386 = vxor.u32 %v5281, 2147483648
    %v5387 = vxor.u32 %v5310, 2147483648
    %v5388 = vxor.u32 %v5339, 2147483648
    %v5389 = vxor.u32 %v5368, 2147483648
    %v5390 = vmul.f32 %v5370, 1.442695
    %v5391 = vpow.pop %v5390
    %v5392 = vmul.f32 %v5371, 1.442695
    %v5393 = vpow.pop %v5392
    %v5394 = vmul.f32 %v5372, 1.442695
    %v5395 = vpow.pop %v5394
    %v5396 = vmul.f32 %v5373, 1.442695
    %v5397 = vpow.pop %v5396
    %v5398 = vmul.f32 %v5374, 1.442695
    %v5399 = vpow.pop %v5398
    %v5400 = vmul.f32 %v5375, 1.442695
    %v5401 = vpow.pop %v5400
    %v5402 = vmul.f32 %v5376, 1.442695
    %v5403 = vpow.pop %v5402
    %v5404 = vmul.f32 %v5377, 1.442695
    %v5405 = vpow.pop %v5404
    %v5406 = vmul.f32 %v5378, 1.442695
    %v5407 = vpow.pop %v5406
    %v5408 = vmul.f32 %v5379, 1.442695
    %v5409 = vpow.pop %v5408
    %v5410 = vmul.f32 %v5380, 1.442695
    %v5411 = vpow.pop %v5410
    %v5412 = vmul.f32 %v5381, 1.442695
    %v5413 = vpow.pop %v5412
    %v5414 = vmul.f32 %v5382, 1.442695
    %v5415 = vpow.pop %v5414
    %v5416 = vmul.f32 %v5383, 1.442695
    %v5417 = vpow.pop %v5416
    %v5418 = vmul.f32 %v5384, 1.442695
    %v5419 = vpow.pop %v5418
    %v5420 = vmul.f32 %v5385, 1.442695
    %v5421 = vpow.pop %v5420
    %v5422 = vmul.f32 %v5386, 1.442695
    %v5423 = vpow.pop %v5422
    %v5424 = vmul.f32 %v5387, 1.442695
    %v5425 = vpow.pop %v5424
    %v5426 = vmul.f32 %v5388, 1.442695
    %v5427 = vpow.pop %v5426
    %v5428 = vmul.f32 %v5389, 1.442695
    %v5429 = vpow.pop %v5428
    %v5430 = vadd.f32 %v5391, 1.0
    %v5431 = vadd.f32 %v5393, 1.0
    %v5432 = vadd.f32 %v5395, 1.0
    %v5433 = vadd.f32 %v5397, 1.0
    %v5434 = vadd.f32 %v5399, 1.0
    %v5435 = vadd.f32 %v5401, 1.0
    %v5436 = vadd.f32 %v5403, 1.0
    %v5437 = vadd.f32 %v5405, 1.0
    %v5438 = vadd.f32 %v5407, 1.0
    %v5439 = vadd.f32 %v5409, 1.0
    %v5440 = vadd.f32 %v5411, 1.0
    %v5441 = vadd.f32 %v5413, 1.0
    %v5442 = vadd.f32 %v5415, 1.0
    %v5443 = vadd.f32 %v5417, 1.0
    %v5444 = vadd.f32 %v5419, 1.0
    %v5445 = vadd.f32 %v5421, 1.0
    %v5446 = vadd.f32 %v5423, 1.0
    %v5447 = vadd.f32 %v5425, 1.0
    %v5448 = vadd.f32 %v5427, 1.0
    %v5449 = vadd.f32 %v5429, 1.0
    %v5450 = vrcp.pop %v5430
    %v5451 = vmul.f32 %v5430, %v5450
    %v5452 = vsub.f32 1.0, %v5451
    %v5453 = vmul.f32 %v5450, %v5452
    %v5454 = vadd.f32 %v5450, %v5453
    %vm5455 = vweird.f32 %v5430
    %vm5456 = vweird.f32 %v5450
    %vm5457 = vmor %vm5455, %vm5456
    %v5458 = vsel %vm5457, %v5450, %v5454
    %v5459 = vand.u32 2147483647, %v5430
    %vm5460 = vcmp.eq.f32.partialorder %v5459, 8.507059e+37
    %v5461 = vand.u32 %v5430, 2147483648
    %v5462 = vor.u32 1.1754944e-38, %v5461
    %v5463 = vsel %vm5460, %v5462, %v5458
    %v5464 = vmul.f32 1.0, %v5463
    %v5465 = vrcp.pop %v5431
    %v5466 = vmul.f32 %v5431, %v5465
    %v5467 = vsub.f32 1.0, %v5466
    %v5468 = vmul.f32 %v5465, %v5467
    %v5469 = vadd.f32 %v5465, %v5468
    %vm5470 = vweird.f32 %v5431
    %vm5471 = vweird.f32 %v5465
    %vm5472 = vmor %vm5470, %vm5471
    %v5473 = vsel %vm5472, %v5465, %v5469
    %v5474 = vand.u32 2147483647, %v5431
    %vm5475 = vcmp.eq.f32.partialorder %v5474, 8.507059e+37
    %v5476 = vand.u32 %v5431, 2147483648
    %v5477 = vor.u32 1.1754944e-38, %v5476
    %v5478 = vsel %vm5475, %v5477, %v5473
    %v5479 = vmul.f32 1.0, %v5478
    %v5480 = vrcp.pop %v5432
    %v5481 = vmul.f32 %v5432, %v5480
    %v5482 = vsub.f32 1.0, %v5481
    %v5483 = vmul.f32 %v5480, %v5482
    %v5484 = vadd.f32 %v5480, %v5483
    %vm5485 = vweird.f32 %v5432
    %vm5486 = vweird.f32 %v5480
    %vm5487 = vmor %vm5485, %vm5486
    %v5488 = vsel %vm5487, %v5480, %v5484
    %v5489 = vand.u32 2147483647, %v5432
    %vm5490 = vcmp.eq.f32.partialorder %v5489, 8.507059e+37
    %v5491 = vand.u32 %v5432, 2147483648
    %v5492 = vor.u32 1.1754944e-38, %v5491
    %v5493 = vsel %vm5490, %v5492, %v5488
    %v5494 = vmul.f32 1.0, %v5493
    %v5495 = vrcp.pop %v5433
    %v5496 = vmul.f32 %v5433, %v5495
    %v5497 = vsub.f32 1.0, %v5496
    %v5498 = vmul.f32 %v5495, %v5497
    %v5499 = vadd.f32 %v5495, %v5498
    %vm5500 = vweird.f32 %v5433
    %vm5501 = vweird.f32 %v5495
    %vm5502 = vmor %vm5500, %vm5501
    %v5503 = vsel %vm5502, %v5495, %v5499
    %v5504 = vand.u32 2147483647, %v5433
    %vm5505 = vcmp.eq.f32.partialorder %v5504, 8.507059e+37
    %v5506 = vand.u32 %v5433, 2147483648
    %v5507 = vor.u32 1.1754944e-38, %v5506
    %v5508 = vsel %vm5505, %v5507, %v5503
    %v5509 = vmul.f32 1.0, %v5508
    %v5510 = vrcp.pop %v5434
    %v5511 = vmul.f32 %v5434, %v5510
    %v5512 = vsub.f32 1.0, %v5511
    %v5513 = vmul.f32 %v5510, %v5512
    %v5514 = vadd.f32 %v5510, %v5513
    %vm5515 = vweird.f32 %v5434
    %vm5516 = vweird.f32 %v5510
    %vm5517 = vmor %vm5515, %vm5516
    %v5518 = vsel %vm5517, %v5510, %v5514
    %v5519 = vand.u32 2147483647, %v5434
    %vm5520 = vcmp.eq.f32.partialorder %v5519, 8.507059e+37
    %v5521 = vand.u32 %v5434, 2147483648
    %v5522 = vor.u32 1.1754944e-38, %v5521
    %v5523 = vsel %vm5520, %v5522, %v5518
    %v5524 = vmul.f32 1.0, %v5523
    %v5525 = vrcp.pop %v5435
    %v5526 = vmul.f32 %v5435, %v5525
    %v5527 = vsub.f32 1.0, %v5526
    %v5528 = vmul.f32 %v5525, %v5527
    %v5529 = vadd.f32 %v5525, %v5528
    %vm5530 = vweird.f32 %v5435
    %vm5531 = vweird.f32 %v5525
    %vm5532 = vmor %vm5530, %vm5531
    %v5533 = vsel %vm5532, %v5525, %v5529
    %v5534 = vand.u32 2147483647, %v5435
    %vm5535 = vcmp.eq.f32.partialorder %v5534, 8.507059e+37
    %v5536 = vand.u32 %v5435, 2147483648
    %v5537 = vor.u32 1.1754944e-38, %v5536
    %v5538 = vsel %vm5535, %v5537, %v5533
    %v5539 = vmul.f32 1.0, %v5538
    %v5540 = vrcp.pop %v5436
    %v5541 = vmul.f32 %v5436, %v5540
    %v5542 = vsub.f32 1.0, %v5541
    %v5543 = vmul.f32 %v5540, %v5542
    %v5544 = vadd.f32 %v5540, %v5543
    %vm5545 = vweird.f32 %v5436
    %vm5546 = vweird.f32 %v5540
    %vm5547 = vmor %vm5545, %vm5546
    %v5548 = vsel %vm5547, %v5540, %v5544
    %v5549 = vand.u32 2147483647, %v5436
    %vm5550 = vcmp.eq.f32.partialorder %v5549, 8.507059e+37
    %v5551 = vand.u32 %v5436, 2147483648
    %v5552 = vor.u32 1.1754944e-38, %v5551
    %v5553 = vsel %vm5550, %v5552, %v5548
    %v5554 = vmul.f32 1.0, %v5553
    %v5555 = vrcp.pop %v5437
    %v5556 = vmul.f32 %v5437, %v5555
    %v5557 = vsub.f32 1.0, %v5556
    %v5558 = vmul.f32 %v5555, %v5557
    %v5559 = vadd.f32 %v5555, %v5558
    %vm5560 = vweird.f32 %v5437
    %vm5561 = vweird.f32 %v5555
    %vm5562 = vmor %vm5560, %vm5561
    %v5563 = vsel %vm5562, %v5555, %v5559
    %v5564 = vand.u32 2147483647, %v5437
    %vm5565 = vcmp.eq.f32.partialorder %v5564, 8.507059e+37
    %v5566 = vand.u32 %v5437, 2147483648
    %v5567 = vor.u32 1.1754944e-38, %v5566
    %v5568 = vsel %vm5565, %v5567, %v5563
    %v5569 = vmul.f32 1.0, %v5568
    %v5570 = vrcp.pop %v5438
    %v5571 = vmul.f32 %v5438, %v5570
    %v5572 = vsub.f32 1.0, %v5571
    %v5573 = vmul.f32 %v5570, %v5572
    %v5574 = vadd.f32 %v5570, %v5573
    %vm5575 = vweird.f32 %v5438
    %vm5576 = vweird.f32 %v5570
    %vm5577 = vmor %vm5575, %vm5576
    %v5578 = vsel %vm5577, %v5570, %v5574
    %v5579 = vand.u32 2147483647, %v5438
    %vm5580 = vcmp.eq.f32.partialorder %v5579, 8.507059e+37
    %v5581 = vand.u32 %v5438, 2147483648
    %v5582 = vor.u32 1.1754944e-38, %v5581
    %v5583 = vsel %vm5580, %v5582, %v5578
    %v5584 = vmul.f32 1.0, %v5583
    %v5585 = vrcp.pop %v5439
    %v5586 = vmul.f32 %v5439, %v5585
    %v5587 = vsub.f32 1.0, %v5586
    %v5588 = vmul.f32 %v5585, %v5587
    %v5589 = vadd.f32 %v5585, %v5588
    %vm5590 = vweird.f32 %v5439
    %vm5591 = vweird.f32 %v5585
    %vm5592 = vmor %vm5590, %vm5591
    %v5593 = vsel %vm5592, %v5585, %v5589
    %v5594 = vand.u32 2147483647, %v5439
    %vm5595 = vcmp.eq.f32.partialorder %v5594, 8.507059e+37
    %v5596 = vand.u32 %v5439, 2147483648
    %v5597 = vor.u32 1.1754944e-38, %v5596
    %v5598 = vsel %vm5595, %v5597, %v5593
    %v5599 = vmul.f32 1.0, %v5598
    %v5600 = vrcp.pop %v5440
    %v5601 = vmul.f32 %v5440, %v5600
    %v5602 = vsub.f32 1.0, %v5601
    %v5603 = vmul.f32 %v5600, %v5602
    %v5604 = vadd.f32 %v5600, %v5603
    %vm5605 = vweird.f32 %v5440
    %vm5606 = vweird.f32 %v5600
    %vm5607 = vmor %vm5605, %vm5606
    %v5608 = vsel %vm5607, %v5600, %v5604
    %v5609 = vand.u32 2147483647, %v5440
    %vm5610 = vcmp.eq.f32.partialorder %v5609, 8.507059e+37
    %v5611 = vand.u32 %v5440, 2147483648
    %v5612 = vor.u32 1.1754944e-38, %v5611
    %v5613 = vsel %vm5610, %v5612, %v5608
    %v5614 = vmul.f32 1.0, %v5613
    %v5615 = vrcp.pop %v5441
    %v5616 = vmul.f32 %v5441, %v5615
    %v5617 = vsub.f32 1.0, %v5616
    %v5618 = vmul.f32 %v5615, %v5617
    %v5619 = vadd.f32 %v5615, %v5618
    %vm5620 = vweird.f32 %v5441
    %vm5621 = vweird.f32 %v5615
    %vm5622 = vmor %vm5620, %vm5621
    %v5623 = vsel %vm5622, %v5615, %v5619
    %v5624 = vand.u32 2147483647, %v5441
    %vm5625 = vcmp.eq.f32.partialorder %v5624, 8.507059e+37
    %v5626 = vand.u32 %v5441, 2147483648
    %v5627 = vor.u32 1.1754944e-38, %v5626
    %v5628 = vsel %vm5625, %v5627, %v5623
    %v5629 = vmul.f32 1.0, %v5628
    %v5630 = vrcp.pop %v5442
    %v5631 = vmul.f32 %v5442, %v5630
    %v5632 = vsub.f32 1.0, %v5631
    %v5633 = vmul.f32 %v5630, %v5632
    %v5634 = vadd.f32 %v5630, %v5633
    %vm5635 = vweird.f32 %v5442
    %vm5636 = vweird.f32 %v5630
    %vm5637 = vmor %vm5635, %vm5636
    %v5638 = vsel %vm5637, %v5630, %v5634
    %v5639 = vand.u32 2147483647, %v5442
    %vm5640 = vcmp.eq.f32.partialorder %v5639, 8.507059e+37
    %v5641 = vand.u32 %v5442, 2147483648
    %v5642 = vor.u32 1.1754944e-38, %v5641
    %v5643 = vsel %vm5640, %v5642, %v5638
    %v5644 = vmul.f32 1.0, %v5643
    %v5645 = vrcp.pop %v5443
    %v5646 = vmul.f32 %v5443, %v5645
    %v5647 = vsub.f32 1.0, %v5646
    %v5648 = vmul.f32 %v5645, %v5647
    %v5649 = vadd.f32 %v5645, %v5648
    %vm5650 = vweird.f32 %v5443
    %vm5651 = vweird.f32 %v5645
    %vm5652 = vmor %vm5650, %vm5651
    %v5653 = vsel %vm5652, %v5645, %v5649
    %v5654 = vand.u32 2147483647, %v5443
    %vm5655 = vcmp.eq.f32.partialorder %v5654, 8.507059e+37
    %v5656 = vand.u32 %v5443, 2147483648
    %v5657 = vor.u32 1.1754944e-38, %v5656
    %v5658 = vsel %vm5655, %v5657, %v5653
    %v5659 = vmul.f32 1.0, %v5658
    %v5660 = vrcp.pop %v5444
    %v5661 = vmul.f32 %v5444, %v5660
    %v5662 = vsub.f32 1.0, %v5661
    %v5663 = vmul.f32 %v5660, %v5662
    %v5664 = vadd.f32 %v5660, %v5663
    %vm5665 = vweird.f32 %v5444
    %vm5666 = vweird.f32 %v5660
    %vm5667 = vmor %vm5665, %vm5666
    %v5668 = vsel %vm5667, %v5660, %v5664
    %v5669 = vand.u32 2147483647, %v5444
    %vm5670 = vcmp.eq.f32.partialorder %v5669, 8.507059e+37
    %v5671 = vand.u32 %v5444, 2147483648
    %v5672 = vor.u32 1.1754944e-38, %v5671
    %v5673 = vsel %vm5670, %v5672, %v5668
    %v5674 = vmul.f32 1.0, %v5673
    %v5675 = vrcp.pop %v5445
    %v5676 = vmul.f32 %v5445, %v5675
    %v5677 = vsub.f32 1.0, %v5676
    %v5678 = vmul.f32 %v5675, %v5677
    %v5679 = vadd.f32 %v5675, %v5678
    %vm5680 = vweird.f32 %v5445
    %vm5681 = vweird.f32 %v5675
    %vm5682 = vmor %vm5680, %vm5681
    %v5683 = vsel %vm5682, %v5675, %v5679
    %v5684 = vand.u32 2147483647, %v5445
    %vm5685 = vcmp.eq.f32.partialorder %v5684, 8.507059e+37
    %v5686 = vand.u32 %v5445, 2147483648
    %v5687 = vor.u32 1.1754944e-38, %v5686
    %v5688 = vsel %vm5685, %v5687, %v5683
    %v5689 = vmul.f32 1.0, %v5688
    %v5690 = vrcp.pop %v5446
    %v5691 = vmul.f32 %v5446, %v5690
    %v5692 = vsub.f32 1.0, %v5691
    %v5693 = vmul.f32 %v5690, %v5692
    %v5694 = vadd.f32 %v5690, %v5693
    %vm5695 = vweird.f32 %v5446
    %vm5696 = vweird.f32 %v5690
    %vm5697 = vmor %vm5695, %vm5696
    %v5698 = vsel %vm5697, %v5690, %v5694
    %v5699 = vand.u32 2147483647, %v5446
    %vm5700 = vcmp.eq.f32.partialorder %v5699, 8.507059e+37
    %v5701 = vand.u32 %v5446, 2147483648
    %v5702 = vor.u32 1.1754944e-38, %v5701
    %v5703 = vsel %vm5700, %v5702, %v5698
    %v5704 = vmul.f32 1.0, %v5703
    %v5705 = vrcp.pop %v5447
    %v5706 = vmul.f32 %v5447, %v5705
    %v5707 = vsub.f32 1.0, %v5706
    %v5708 = vmul.f32 %v5705, %v5707
    %v5709 = vadd.f32 %v5705, %v5708
    %vm5710 = vweird.f32 %v5447
    %vm5711 = vweird.f32 %v5705
    %vm5712 = vmor %vm5710, %vm5711
    %v5713 = vsel %vm5712, %v5705, %v5709
    %v5714 = vand.u32 2147483647, %v5447
    %vm5715 = vcmp.eq.f32.partialorder %v5714, 8.507059e+37
    %v5716 = vand.u32 %v5447, 2147483648
    %v5717 = vor.u32 1.1754944e-38, %v5716
    %v5718 = vsel %vm5715, %v5717, %v5713
    %v5719 = vmul.f32 1.0, %v5718
    %v5720 = vrcp.pop %v5448
    %v5721 = vmul.f32 %v5448, %v5720
    %v5722 = vsub.f32 1.0, %v5721
    %v5723 = vmul.f32 %v5720, %v5722
    %v5724 = vadd.f32 %v5720, %v5723
    %vm5725 = vweird.f32 %v5448
    %vm5726 = vweird.f32 %v5720
    %vm5727 = vmor %vm5725, %vm5726
    %v5728 = vsel %vm5727, %v5720, %v5724
    %v5729 = vand.u32 2147483647, %v5448
    %vm5730 = vcmp.eq.f32.partialorder %v5729, 8.507059e+37
    %v5731 = vand.u32 %v5448, 2147483648
    %v5732 = vor.u32 1.1754944e-38, %v5731
    %v5733 = vsel %vm5730, %v5732, %v5728
    %v5734 = vmul.f32 1.0, %v5733
    %v5735 = vrcp.pop %v5449
    %v5736 = vmul.f32 %v5449, %v5735
    %v5737 = vsub.f32 1.0, %v5736
    %v5738 = vmul.f32 %v5735, %v5737
    %v5739 = vadd.f32 %v5735, %v5738
    %vm5740 = vweird.f32 %v5449
    %vm5741 = vweird.f32 %v5735
    %vm5742 = vmor %vm5740, %vm5741
    %v5743 = vsel %vm5742, %v5735, %v5739
    %v5744 = vand.u32 2147483647, %v5449
    %vm5745 = vcmp.eq.f32.partialorder %v5744, 8.507059e+37
    %v5746 = vand.u32 %v5449, 2147483648
    %v5747 = vor.u32 1.1754944e-38, %v5746
    %v5748 = vsel %vm5745, %v5747, %v5743
    %v5749 = vmul.f32 1.0, %v5748
    %v5750 = vmul.f32 %v125, %v5464
    %v5751 = vmul.f32 %v126, %v5479
    %v5752 = vmul.f32 %v127, %v5494
    %v5753 = vmul.f32 %v128, %v5509
    %v5754 = vmul.f32 %v129, %v5524
    %v5755 = vmul.f32 %v130, %v5539
    %v5756 = vmul.f32 %v131, %v5554
    %v5757 = vmul.f32 %v132, %v5569
    %v5758 = vmul.f32 %v133, %v5584
    %v5759 = vmul.f32 %v134, %v5599
    %v5760 = vmul.f32 %v135, %v5614
    %v5761 = vmul.f32 %v136, %v5629
    %v5762 = vmul.f32 %v137, %v5644
    %v5763 = vmul.f32 %v138, %v5659
    %v5764 = vmul.f32 %v139, %v5674
    %v5765 = vmul.f32 %v140, %v5689
    %v5766 = vmul.f32 %v141, %v5704
    %v5767 = vmul.f32 %v142, %v5719
    %v5768 = vmul.f32 %v143, %v5734
    %v5769 = vmul.f32 %v144, %v5749
    %5770 = vst [vmem:[%s19] sm:$0xff] %v5750
    %5771 = vst [vmem:[%s19 + $0x8] sm:$0xff] %v5751
    %5772 = vst [vmem:[%s19 + $0x10] sm:$0xff] %v5752
    %5773 = vst [vmem:[%s19 + $0x18] sm:$0xff] %v5753
    %5774 = vst [vmem:[%s19 + $0x20] sm:$0xff] %v5754
    %5775 = vst [vmem:[%s19 + $0x28] sm:$0xff] %v5755
    %5776 = vst [vmem:[%s19 + $0x30] sm:$0xff] %v5756
    %5777 = vst [vmem:[%s19 + $0x38] sm:$0xff] %v5757
    %5778 = vst [vmem:[%s19 + $0x40] sm:$0xff] %v5758
    %5779 = vst [vmem:[%s19 + $0x48] sm:$0xff] %v5759
    %5780 = vst [vmem:[%s19 + $0x50] sm:$0xff] %v5760
    %5781 = vst [vmem:[%s19 + $0x58] sm:$0xff] %v5761
    %5782 = vst [vmem:[%s19 + $0x60] sm:$0xff] %v5762
    %5783 = vst [vmem:[%s19 + $0x68] sm:$0xff] %v5763
    %5784 = vst [vmem:[%s19 + $0x70] sm:$0xff] %v5764
    %5785 = vst [vmem:[%s19 + $0x78] sm:$0xff] %v5765
    %5786 = vst [vmem:[%s19 + $0x80] sm:$0xff] %v5766
    %5787 = vst [vmem:[%s19 + $0x88] sm:$0xff] %v5767
    %5788 = vst [vmem:[%s19 + $0x90] sm:$0xff] %v5768
    %5789 = vst [vmem:[%s19 + $0x98] sm:$0xff] %v5769
    // Predicated region
    $region94: #{sa_forward.1} parent=1 // pred_check
      _
    $region95: #{sa_forward.1} parent=1 // pred_check_branch
      %5791 = sbr.rel (0) target = $region97
    $region96: #{sa_forward.1} parent=1 // pred_region
      _
    $region97: #{sa_forward.1} parent=1 // pred_fallthru
      _
    // Predicated region
    $region98: #{sa_forward.1} parent=1 // pred_check
      _
    $region99: #{sa_forward.1} parent=1 // pred_check_branch
      %5793 = sbr.rel (0) target = $region101
    $region100: #{sa_forward.1} parent=1 // pred_region
      _
    $region101: #{sa_forward.1} parent=1 // pred_fallthru
      _
    %5794 = vsyncpa [#allocation3], 1
    %5795 = vsyncpa [#allocation5], 1
    %5796 = vsyncpa [#allocation8], 1

</llo_original>
